<compile_context>
chip_gen: v7x
topology: tpu7x:2x2x1
jax: 0.10.0
libtpu: 0.0.40
codegen_flags: <defaults>
</compile_context>

<pallas_src>
import functools
import numpy as np

import jax
import jax.numpy as jnp
from jax.experimental import pallas as pl
from jax.experimental.pallas import tpu as pltpu

ENCODER_DIMS = (64, 128, 256, 512, 512)
DECODER_DIMS = (512, 256)
LAYER_SCALE_FACTOR = 2
LANE = 128

_CPARAMS = pltpu.CompilerParams(
    dimension_semantics=("parallel",),          # batch axis -> both TCs on v7x
    vmem_limit_bytes=56 * 1024 * 1024,          # below v7x's 64 MiB physical VMEM
)


def _round_up(v, m):
    return ((v + m - 1) // m) * m


# ----------------------------------------------------------------------------
# Pallas kernels
# ----------------------------------------------------------------------------
def _repeated_conv_kernel(*refs, H, W, n_inputs):
    """Fused RepeatedConv block for one batch item:
       conv3x3(pad=1)+ReLU -> conv3x3(pad=1)+ReLU.

    refs = (x_0, ..., x_{n_inputs-1}, w1, b1, w2, b2, out, xpad, mpad)
      x_i : (1, H*W, C_i)  bf16   (channel-concatenated inside the kernel)
      w*  : (9, Cin, Cout) bf16   (3x3 taps flattened on the leading dim)
      b*  : (1, Cout)      f32
      out : (1, H*W, Cout) bf16
      xpad/mpad : ((H+4)*W, C) bf16 VMEM scratch, row-zero-padded image
    """
    x_refs = refs[:n_inputs]
    w1_ref, b1_ref, w2_ref, b2_ref, o_ref, xpad, mpad = refs[n_inputs:]
    HW = H * W
    cmid = w2_ref.shape[1]
    cout = o_ref.shape[-1]

    # Column index of every flattened output position (left/right edge masks).
    col = jax.lax.broadcasted_iota(jnp.int32, (HW, 1), 0) % W
    not_left = col != 0
    not_right = col != (W - 1)

    def conv_from_pad(pad_ref, w_ref, cout_):
        # 9 whole-image MXU matmuls accumulated in f32.
        acc = jnp.zeros((HW, cout_), jnp.float32)
        for ky in range(3):
            for kx in range(3):
                start = (ky + 1) * W + (kx - 1)
                slab = pad_ref[start:start + HW, :]            # (HW, Cin) bf16
                if kx == 0:      # tap reads wrap into previous row at x == 0
                    slab = jnp.where(not_left, slab, 0).astype(slab.dtype)
                elif kx == 2:    # tap reads wrap into next row at x == W-1
                    slab = jnp.where(not_right, slab, 0).astype(slab.dtype)
                acc = acc + jnp.dot(slab, w_ref[ky * 3 + kx],
                                    preferred_element_type=jnp.float32)
        return acc

    # --- stage input(s) into the row-zero-padded VMEM scratch ----------------
    zpad_x = jnp.zeros((2 * W, xpad.shape[-1]), xpad.dtype)
    xpad[0:2 * W, :] = zpad_x                                   # top pad rows
    xpad[(H + 2) * W:(H + 4) * W, :] = zpad_x                   # bottom pad rows
    c0 = 0
    for xr in x_refs:                                           # fused channel concat
        ci = xr.shape[-1]
        xpad[2 * W:(H + 2) * W, c0:c0 + ci] = xr[0].astype(xpad.dtype)
        c0 += ci

    # --- conv1 + ReLU (intermediate stays in VMEM) ----------------------------
    h1 = jnp.maximum(conv_from_pad(xpad, w1_ref, cmid) + b1_ref[...], 0.0)
    zpad_m = jnp.zeros((2 * W, cmid), mpad.dtype)
    mpad[0:2 * W, :] = zpad_m
    mpad[(H + 2) * W:(H + 4) * W, :] = zpad_m
    mpad[2 * W:(H + 2) * W, :] = h1.astype(mpad.dtype)

    # --- conv2 + ReLU ----------------------------------------------------------
    h2 = jnp.maximum(conv_from_pad(mpad, w2_ref, cout) + b2_ref[...], 0.0)
    o_ref[0] = h2.astype(o_ref.dtype)


def _conv1x1_kernel(x_ref, w_ref, b_ref, o_ref):
    o_ref[0] = (jnp.dot(x_ref[0], w_ref[...], preferred_element_type=jnp.float32)
                + b_ref[...]).astype(o_ref.dtype)


def _wmap_kernel(mw_ref, x_ref, o_ref):
    # Separable spatial operator, W direction (batched over H, channels in lanes).
    # mw_ref: (Wo, W); x_ref: (1, H, W, C); o_ref: (1, H, Wo, C)
    h = x_ref.shape[1]
    wo, w = mw_ref.shape
    mwb = jnp.broadcast_to(mw_ref[...][None, :, :], (h, wo, w))
    t = jnp.einsum('how,hwc->hoc', mwb, x_ref[0],
                   preferred_element_type=jnp.float32)
    o_ref[0] = t.astype(o_ref.dtype)


def _hmap_kernel(mh_ref, x_ref, o_ref):
    # Separable spatial operator, H direction (single 2D MXU matmul).
    # mh_ref: (Ho, H); x_ref: (1, H, W*C); o_ref: (1, Ho, W*C)
    o_ref[0] = jnp.dot(mh_ref[...], x_ref[0],
                       preferred_element_type=jnp.float32).astype(o_ref.dtype)


# ----------------------------------------------------------------------------
# pallas_call wrappers
# ----------------------------------------------------------------------------
def repeated_conv(xs, blk, H, W):
    """Fused RepeatedConv block on a list of channel-split inputs (skip fusion)."""
    # TODO(synk): utils.RepeatedConv source was not provided; assumed here to be
    # two 3x3 same-padding convolutions (in->out, out->out), each followed by ReLU.
    N, HW, _ = xs[0].shape
    cins = [int(x.shape[-1]) for x in xs]
    cin_total = sum(cins)
    w1, b1, w2, b2 = blk["w1"], blk["b1"], blk["w2"], blk["b2"]
    cmid = int(w1.shape[-1])
    cout = int(w2.shape[-1])
    assert w1.shape == (9, cin_total, cmid), (w1.shape, cin_total, cmid)

    kern = functools.partial(_repeated_conv_kernel, H=H, W=W, n_inputs=len(xs))
    in_specs = [pl.BlockSpec((1, HW, c), lambda n: (n, 0, 0)) for c in cins]
    in_specs += [
        pl.BlockSpec((9, cin_total, cmid), lambda n: (0, 0, 0)),
        pl.BlockSpec((1, cmid), lambda n: (0, 0)),
        pl.BlockSpec((9, cmid, cout), lambda n: (0, 0, 0)),
        pl.BlockSpec((1, cout), lambda n: (0, 0)),
    ]
    return pl.pallas_call(
        kern,
        out_shape=jax.ShapeDtypeStruct((N, HW, cout), jnp.bfloat16),
        grid=(N,),
        in_specs=in_specs,
        out_specs=pl.BlockSpec((1, HW, cout), lambda n: (n, 0, 0)),
        scratch_shapes=[
            pltpu.VMEM(((H + 4) * W, cin_total), jnp.bfloat16),
            pltpu.VMEM(((H + 4) * W, cmid), jnp.bfloat16),
        ],
        compiler_params=_CPARAMS,
    )(*xs, w1, b1.reshape(1, cmid).astype(jnp.float32),
      w2, b2.reshape(1, cout).astype(jnp.float32))


def conv1x1(x, w, b):
    N, HW, Cin = x.shape
    Cout = w.shape[-1]
    return pl.pallas_call(
        _conv1x1_kernel,
        out_shape=jax.ShapeDtypeStruct((N, HW, Cout), jnp.bfloat16),
        grid=(N,),
        in_specs=[
            pl.BlockSpec((1, HW, Cin), lambda n: (n, 0, 0)),
            pl.BlockSpec((Cin, Cout), lambda n: (0, 0)),
            pl.BlockSpec((1, Cout), lambda n: (0, 0)),
        ],
        out_specs=pl.BlockSpec((1, HW, Cout), lambda n: (n, 0, 0)),
        compiler_params=_CPARAMS,
    )(x, w, b.reshape(1, Cout).astype(jnp.float32))


def spatial_map(x, mh, mw):
    """Separable spatial linear operator y = (Mh (x) Mw) x on flattened NHWC."""
    N, HW, C = x.shape
    Ho, H = mh.shape
    Wo, W = mw.shape
    assert HW == H * W
    x4 = x.reshape(N, H, W, C)                                   # free reshape (glue)
    t = pl.pallas_call(
        _wmap_kernel,
        out_shape=jax.ShapeDtypeStruct((N, H, Wo, C), jnp.bfloat16),
        grid=(N,),
        in_specs=[pl.BlockSpec((Wo, W), lambda n: (0, 0)),
                  pl.BlockSpec((1, H, W, C), lambda n: (n, 0, 0, 0))],
        out_specs=pl.BlockSpec((1, H, Wo, C), lambda n: (n, 0, 0, 0)),
        compiler_params=_CPARAMS,
    )(mw, x4)
    t3 = t.reshape(N, H, Wo * C)                                 # free reshape (glue)
    y = pl.pallas_call(
        _hmap_kernel,
        out_shape=jax.ShapeDtypeStruct((N, Ho, Wo * C), jnp.bfloat16),
        grid=(N,),
        in_specs=[pl.BlockSpec((Ho, H), lambda n: (0, 0)),
                  pl.BlockSpec((1, H, Wo * C), lambda n: (n, 0, 0))],
        out_specs=pl.BlockSpec((1, Ho, Wo * C), lambda n: (n, 0, 0)),
        compiler_params=_CPARAMS,
    )(mh, t3)
    return y.reshape(N, Ho * Wo, C)


# ----------------------------------------------------------------------------
# Exact 1-D operators for AvgPool2d(2) and bilinear Upsample(x2, align_corners=False)
# ----------------------------------------------------------------------------
def _pool1d_matrix(L):
    M = np.zeros((L // LAYER_SCALE_FACTOR, L), np.float32)
    for i in range(L // LAYER_SCALE_FACTOR):
        M[i, 2 * i] = 0.5
        M[i, 2 * i + 1] = 0.5
    return M


def _upsample1d_matrix(L):
    # torch.nn.Upsample(scale_factor=2, mode='bilinear', align_corners=False), 1-D factor.
    U = np.zeros((2 * L, L), np.float32)
    for i in range(2 * L):
        s = max(0.5 * (i + 0.5) - 0.5, 0.0)
        i0 = min(int(np.floor(s)), L - 1)
        i1 = min(i0 + 1, L - 1)
        lam = s - i0
        U[i, i0] += 1.0 - lam
        U[i, i1] += lam
    return U


# ----------------------------------------------------------------------------
# Model: parameters + forward
# ----------------------------------------------------------------------------
def init_kpn_params(key, burst_length, channel_num, kernel_size,
                    blind=True, scale_factor=1):
    bc = burst_length * channel_num
    in_ch = bc + (0 if blind else 1)
    out_ch = bc * scale_factor ** 2 * kernel_size ** 2
    out_ch_pad = _round_up(out_ch, LANE)          # lane-dense final tail
    enc_dims = (in_ch,) + ENCODER_DIMS
    dec_dims = enc_dims[-1:] + DECODER_DIMS + (out_ch,)
    extra_dims = enc_dims[-2:-len(dec_dims) - 1:-1]

    def conv_params(k, cin, cout, ksz):
        kw, kb = jax.random.split(k)
        scale = np.sqrt(2.0 / (ksz * ksz * cin)).astype(np.float32)
        w = jax.random.normal(kw, (ksz * ksz, cin, cout), jnp.float32) * scale
        b = jax.random.normal(kb, (cout,), jnp.float32) * 0.01
        return w.astype(jnp.bfloat16), b

    def block_params(k, cin, cout, cout_pad=None):
        cp = cout if cout_pad is None else cout_pad
        k1, k2 = jax.random.split(k)
        w1, b1 = conv_params(k1, cin, cout, 3)
        w2, b2 = conv_params(k2, cout, cout, 3)
        if cp != cout:
            # Zero-pad output channels (and conv2 input rows) so the block's
            # activations are lane-dense; extra channels stay exactly zero.
            w1 = jnp.pad(w1, ((0, 0), (0, 0), (0, cp - cout)))
            b1 = jnp.pad(b1, ((0, cp - cout),))
            w2 = jnp.pad(w2, ((0, 0), (0, cp - cout), (0, cp - cout)))
            b2 = jnp.pad(b2, ((0, cp - cout),))
        return {"w1": w1, "b1": b1, "w2": w2, "b2": b2}

    n_enc = len(enc_dims) - 1
    n_dec = len(dec_dims) - 1
    keys = jax.random.split(key, n_enc + n_dec + 1)
    enc = [block_params(keys[i], enc_dims[i], enc_dims[i + 1]) for i in range(n_enc)]
    dec = [block_params(keys[n_enc + i], dec_dims[i] + extra_dims[i], dec_dims[i + 1],
                        cout_pad=(out_ch_pad if i == n_dec - 1 else None))
           for i in range(n_dec)]

    fw, fb = conv_params(keys[-1], out_ch, out_ch, 1)
    fw = fw.reshape(out_ch, out_ch)
    fw = jnp.pad(fw, ((0, out_ch_pad - out_ch), (0, out_ch_pad - out_ch)))
    fb = jnp.pad(fb, ((0, out_ch_pad - out_ch),))

    return {
        "enc": enc, "dec": dec,
        "final_w": fw, "final_b": fb,
        "blind": blind, "scale_factor": scale_factor, "kernel_size": kernel_size,
        "out_ch": out_ch,
    }


def kpn_forward(params, burst, noise_std=None):
    n, d, c, h, w = burst.shape
    x = burst.reshape(n, d * c, h, w)                       # NCHW
    if not params["blind"]:
        if noise_std.size == n:
            ns = jnp.broadcast_to(noise_std.reshape(n, 1, 1, 1), (n, 1, h, w))
        else:
            ns = noise_std.reshape(n, 1, h, w)
        x = jnp.concatenate([x, ns], axis=1)
    # NCHW -> flattened NHWC (N, H*W, C), bf16 activations (glue)
    x = jnp.transpose(x, (0, 2, 3, 1)).reshape(n, h * w, -1).astype(jnp.bfloat16)

    Hc, Wc = h, w
    out = repeated_conv([x], params["enc"][0], Hc, Wc)
    hidden = []
    for blk in params["enc"][1:]:
        mh = jnp.asarray(_pool1d_matrix(Hc), jnp.bfloat16)
        mw = jnp.asarray(_pool1d_matrix(Wc), jnp.bfloat16)
        out = spatial_map(out, mh, mw)                      # AvgPool2d(2), separable
        Hc //= LAYER_SCALE_FACTOR
        Wc //= LAYER_SCALE_FACTOR
        out = repeated_conv([out], blk, Hc, Wc)
        hidden.append((out, Hc, Wc))

    final_hidden, fh, fw_ = hidden.pop()

    for blk in params["dec"]:
        mh = jnp.asarray(_upsample1d_matrix(Hc), jnp.bfloat16)
        mw = jnp.asarray(_upsample1d_matrix(Wc), jnp.bfloat16)
        out = spatial_map(out, mh, mw)                      # bilinear Upsample x2
        Hc *= LAYER_SCALE_FACTOR
        Wc *= LAYER_SCALE_FACTOR
        skip, _, _ = hidden.pop()
        out = repeated_conv([out, skip], blk, Hc, Wc)       # fused skip-concat (split-K)

    mh = jnp.asarray(_upsample1d_matrix(Hc), jnp.bfloat16)
    mw = jnp.asarray(_upsample1d_matrix(Wc), jnp.bfloat16)
    out = spatial_map(out, mh, mw)
    Hc *= LAYER_SCALE_FACTOR
    Wc *= LAYER_SCALE_FACTOR
    out = conv1x1(out, params["final_w"], params["final_b"])
    out = out[:, :, :params["out_ch"]]                      # drop lane-padding channels

    sf2 = params["scale_factor"] ** 2
    ks2 = params["kernel_size"] ** 2
    out_nchw = jnp.transpose(out.reshape(n, Hc, Wc, -1), (0, 3, 1, 2)).astype(jnp.float32)
    kernels = out_nchw.reshape(n, d, c, sf2, ks2, Hc, Wc)
    final_hidden_nchw = jnp.transpose(
        final_hidden.reshape(n, fh, fw_, -1), (0, 3, 1, 2)).astype(jnp.float32)
    return final_hidden_nchw, kernels


if __name__ == "__main__":
    key = jax.random.PRNGKey(0)
    k_params, k_input = jax.random.split(key)

    burst_length, channel_num, kernel_size = 2, 2, 3
    n, h, w = 2, 16, 16   # h, w must be divisible by 2**(len(ENCODER_DIMS)-1) = 16

    params = init_kpn_params(k_params, burst_length, channel_num, kernel_size,
                             blind=True, scale_factor=1)
    burst = jax.random.normal(
        k_input, (n, burst_length, channel_num, h, w), jnp.float32)

    hidden, kernels = kpn_forward(params, burst)
    jax.block_until_ready((hidden, kernels))

    assert hidden.shape == (n, 512, h // 16, w // 16), hidden.shape
    assert kernels.shape == (n, burst_length, channel_num, 1, kernel_size ** 2, h, w), kernels.shape
    assert bool(jnp.all(jnp.isfinite(hidden))) and bool(jnp.all(jnp.isfinite(kernels)))
    print("KERNEL_OK")
</pallas_src>

<mosaic_0001>
module attributes {stable_mosaic.version = 11 : i64} {
  func.func @_repeated_conv_kernel(%arg0: i32, %arg1: memref<1x256x4xbf16, #tpu.memory_space<vmem>>, %arg2: memref<9x4x64xbf16, #tpu.memory_space<vmem>>, %arg3: memref<1x64xf32, #tpu.memory_space<vmem>>, %arg4: memref<9x64x64xbf16, #tpu.memory_space<vmem>>, %arg5: memref<1x64xf32, #tpu.memory_space<vmem>>, %arg6: memref<1x256x64xbf16, #tpu.memory_space<vmem>>, %arg7: memref<320x4xbf16, #tpu.memory_space<vmem>>, %arg8: memref<320x64xbf16, #tpu.memory_space<vmem>>) attributes {dimension_semantics = [#tpu.dimension_semantics<parallel>], iteration_bounds = array<i64: 2>, scalar_prefetch = 0 : i64, scratch_operands = 2 : i64, tpu.core_type = #tpu.core_type<tc>, window_params = [{transform_indices = @transform_0, window_bounds = array<i64: 1, 256, 4>}, {pipeline_mode = #tpu.pipeline_mode<synchronous>, transform_indices = @transform_1, window_bounds = array<i64: 9, 4, 64>}, {pipeline_mode = #tpu.pipeline_mode<synchronous>, transform_indices = @transform_2, window_bounds = array<i64: 1, 64>}, {pipeline_mode = #tpu.pipeline_mode<synchronous>, transform_indices = @transform_3, window_bounds = array<i64: 9, 64, 64>}, {pipeline_mode = #tpu.pipeline_mode<synchronous>, transform_indices = @transform_4, window_bounds = array<i64: 1, 64>}, {transform_indices = @transform_5, window_bounds = array<i64: 1, 256, 64>}]} {
    %0 = tpu.iota {dimensions = array<i32: 0>} : vector<256x1xi32>
    %c16_i32 = arith.constant 16 : i32
    %c0_i32 = arith.constant 0 : i32
    %1 = arith.cmpi eq, %c16_i32, %c0_i32 : i32
    %c1_i32 = arith.constant 1 : i32
    %2 = arith.select %1, %c1_i32, %c16_i32 : i32
    %3 = vector.broadcast %2 : i32 to vector<256x1xi32>
    %4 = arith.remsi %0, %3 : vector<256x1xi32>
    %c0_i32_0 = arith.constant 0 : i32
    %5 = vector.broadcast %c0_i32_0 : i32 to vector<256x1xi32>
    %6 = arith.cmpi ne, %4, %5 : vector<256x1xi32>
    %c0_i32_1 = arith.constant 0 : i32
    %7 = vector.broadcast %c0_i32_1 : i32 to vector<256x1xi32>
    %8 = arith.cmpi slt, %4, %7 : vector<256x1xi32>
    %c0_i32_2 = arith.constant 0 : i32
    %9 = arith.cmpi slt, %2, %c0_i32_2 : i32
    %10 = vector.broadcast %9 : i1 to vector<256x1xi1>
    %11 = vector.broadcast %10 : vector<256x1xi1> to vector<256x1xi1>
    %12 = arith.xori %8, %11 : vector<256x1xi1>
    %13 = arith.andi %12, %6 : vector<256x1xi1>
    %14 = vector.broadcast %2 : i32 to vector<256x1xi32>
    %15 = arith.addi %4, %14 : vector<256x1xi32>
    %16 = arith.select %13, %15, %4 : vector<256x1xi1>, vector<256x1xi32>
    %c0_i32_3 = arith.constant 0 : i32
    %17 = vector.broadcast %c0_i32_3 : i32 to vector<256x1xi32>
    %18 = arith.cmpi ne, %16, %17 : vector<256x1xi32>
    %c15_i32 = arith.constant 15 : i32
    %19 = vector.broadcast %c15_i32 : i32 to vector<256x1xi32>
    %20 = arith.cmpi ne, %16, %19 : vector<256x1xi32>
    %cst = arith.constant 0.000000e+00 : bf16
    %21 = vector.broadcast %cst : bf16 to vector<32x4xbf16>
    %c0 = arith.constant 0 : index
    %c0_4 = arith.constant 0 : index
    %22 = vector.load %arg7[%c0, %c0_4] : memref<320x4xbf16, #tpu.memory_space<vmem>>, vector<32x4xbf16>
    tpu.vector_store %arg7[%c0, %c0_4], %21 {strides = array<i32>} : memref<320x4xbf16, #tpu.memory_space<vmem>>, vector<32x4xbf16>,
    %c288 = arith.constant 288 : index
    %c0_5 = arith.constant 0 : index
    %23 = vector.load %arg7[%c288, %c0_5] : memref<320x4xbf16, #tpu.memory_space<vmem>>, vector<32x4xbf16>
    tpu.vector_store %arg7[%c288, %c0_5], %21 {strides = array<i32>} : memref<320x4xbf16, #tpu.memory_space<vmem>>, vector<32x4xbf16>,
    %c0_6 = arith.constant 0 : index
    %c0_7 = arith.constant 0 : index
    %c0_8 = arith.constant 0 : index
    %24 = vector.load %arg1[%c0_6, %c0_7, %c0_8] : memref<1x256x4xbf16, #tpu.memory_space<vmem>>, vector<1x256x4xbf16>
    %25 = vector.shape_cast %24 : vector<1x256x4xbf16> to vector<256x4xbf16>
    %c32 = arith.constant 32 : index
    %c0_9 = arith.constant 0 : index
    %26 = vector.load %arg7[%c32, %c0_9] : memref<320x4xbf16, #tpu.memory_space<vmem>>, vector<256x4xbf16>
    tpu.vector_store %arg7[%c32, %c0_9], %25 {strides = array<i32>} : memref<320x4xbf16, #tpu.memory_space<vmem>>, vector<256x4xbf16>,
    %cst_10 = arith.constant 0.000000e+00 : f32
    %27 = vector.broadcast %cst_10 : f32 to vector<256x64xf32>
    %c15 = arith.constant 15 : index
    %c0_11 = arith.constant 0 : index
    %28 = vector.load %arg7[%c15, %c0_11] : memref<320x4xbf16, #tpu.memory_space<vmem>>, vector<256x4xbf16>
    %c0_i32_12 = arith.constant 0 : i32
    %29 = arith.sitofp %c0_i32_12 : i32 to bf16
    %30 = vector.shape_cast %18 : vector<256x1xi1> to vector<256x1xi1>
    %31 = vector.broadcast %30 : vector<256x1xi1> to vector<256x4xi1>
    %32 = vector.broadcast %29 : bf16 to vector<256x4xbf16>
    %33 = arith.select %31, %28, %32 : vector<256x4xi1>, vector<256x4xbf16>
    %c0_13 = arith.constant 0 : index
    %c0_14 = arith.constant 0 : index
    %c0_15 = arith.constant 0 : index
    %34 = vector.load %arg2[%c0_13, %c0_14, %c0_15] : memref<9x4x64xbf16, #tpu.memory_space<vmem>>, vector<1x4x64xbf16>
    %35 = vector.shape_cast %34 : vector<1x4x64xbf16> to vector<4x64xbf16>
    %cst_16 = arith.constant dense<0.000000e+00> : vector<256x64xf32>
    %36 = tpu.matmul %33, %35, %cst_16 {dimension_numbers = #tpu.dot_dimension_numbers<[1], [0], [0], [1], [0, 0, 1, 1], [], []>} : vector<256x4xbf16>, vector<4x64xbf16>, vector<256x64xf32> -> vector<256x64xf32>
    %37 = arith.addf %27, %36 : vector<256x64xf32>
    %c16 = arith.constant 16 : index
    %c0_17 = arith.constant 0 : index
    %38 = vector.load %arg7[%c16, %c0_17] : memref<320x4xbf16, #tpu.memory_space<vmem>>, vector<256x4xbf16>
    %c1 = arith.constant 1 : index
    %c0_18 = arith.constant 0 : index
    %c0_19 = arith.constant 0 : index
    %39 = vector.load %arg2[%c1, %c0_18, %c0_19] : memref<9x4x64xbf16, #tpu.memory_space<vmem>>, vector<1x4x64xbf16>
    %40 = vector.shape_cast %39 : vector<1x4x64xbf16> to vector<4x64xbf16>
    %cst_20 = arith.constant dense<0.000000e+00> : vector<256x64xf32>
    %41 = tpu.matmul %38, %40, %cst_20 {dimension_numbers = #tpu.dot_dimension_numbers<[1], [0], [0], [1], [0, 0, 1, 1], [], []>} : vector<256x4xbf16>, vector<4x64xbf16>, vector<256x64xf32> -> vector<256x64xf32>
    %42 = arith.addf %37, %41 : vector<256x64xf32>
    %c17 = arith.constant 17 : index
    %c0_21 = arith.constant 0 : index
    %43 = vector.load %arg7[%c17, %c0_21] : memref<320x4xbf16, #tpu.memory_space<vmem>>, vector<256x4xbf16>
    %c0_i32_22 = arith.constant 0 : i32
    %44 = arith.sitofp %c0_i32_22 : i32 to bf16
    %45 = vector.shape_cast %20 : vector<256x1xi1> to vector<256x1xi1>
    %46 = vector.broadcast %45 : vector<256x1xi1> to vector<256x4xi1>
    %47 = vector.broadcast %44 : bf16 to vector<256x4xbf16>
    %48 = arith.select %46, %43, %47 : vector<256x4xi1>, vector<256x4xbf16>
    %c2 = arith.constant 2 : index
    %c0_23 = arith.constant 0 : index
    %c0_24 = arith.constant 0 : index
    %49 = vector.load %arg2[%c2, %c0_23, %c0_24] : memref<9x4x64xbf16, #tpu.memory_space<vmem>>, vector<1x4x64xbf16>
    %50 = vector.shape_cast %49 : vector<1x4x64xbf16> to vector<4x64xbf16>
    %cst_25 = arith.constant dense<0.000000e+00> : vector<256x64xf32>
    %51 = tpu.matmul %48, %50, %cst_25 {dimension_numbers = #tpu.dot_dimension_numbers<[1], [0], [0], [1], [0, 0, 1, 1], [], []>} : vector<256x4xbf16>, vector<4x64xbf16>, vector<256x64xf32> -> vector<256x64xf32>
    %52 = arith.addf %42, %51 : vector<256x64xf32>
    %c31 = arith.constant 31 : index
    %c0_26 = arith.constant 0 : index
    %53 = vector.load %arg7[%c31, %c0_26] : memref<320x4xbf16, #tpu.memory_space<vmem>>, vector<256x4xbf16>
    %c0_i32_27 = arith.constant 0 : i32
    %54 = arith.sitofp %c0_i32_27 : i32 to bf16
    %55 = vector.shape_cast %18 : vector<256x1xi1> to vector<256x1xi1>
    %56 = vector.broadcast %55 : vector<256x1xi1> to vector<256x4xi1>
    %57 = vector.broadcast %54 : bf16 to vector<256x4xbf16>
    %58 = arith.select %56, %53, %57 : vector<256x4xi1>, vector<256x4xbf16>
    %c3 = arith.constant 3 : index
    %c0_28 = arith.constant 0 : index
    %c0_29 = arith.constant 0 : index
    %59 = vector.load %arg2[%c3, %c0_28, %c0_29] : memref<9x4x64xbf16, #tpu.memory_space<vmem>>, vector<1x4x64xbf16>
    %60 = vector.shape_cast %59 : vector<1x4x64xbf16> to vector<4x64xbf16>
    %cst_30 = arith.constant dense<0.000000e+00> : vector<256x64xf32>
    %61 = tpu.matmul %58, %60, %cst_30 {dimension_numbers = #tpu.dot_dimension_numbers<[1], [0], [0], [1], [0, 0, 1, 1], [], []>} : vector<256x4xbf16>, vector<4x64xbf16>, vector<256x64xf32> -> vector<256x64xf32>
    %62 = arith.addf %52, %61 : vector<256x64xf32>
    %c32_31 = arith.constant 32 : index
    %c0_32 = arith.constant 0 : index
    %63 = vector.load %arg7[%c32_31, %c0_32] : memref<320x4xbf16, #tpu.memory_space<vmem>>, vector<256x4xbf16>
    %c4 = arith.constant 4 : index
    %c0_33 = arith.constant 0 : index
    %c0_34 = arith.constant 0 : index
    %64 = vector.load %arg2[%c4, %c0_33, %c0_34] : memref<9x4x64xbf16, #tpu.memory_space<vmem>>, vector<1x4x64xbf16>
    %65 = vector.shape_cast %64 : vector<1x4x64xbf16> to vector<4x64xbf16>
    %cst_35 = arith.constant dense<0.000000e+00> : vector<256x64xf32>
    %66 = tpu.matmul %63, %65, %cst_35 {dimension_numbers = #tpu.dot_dimension_numbers<[1], [0], [0], [1], [0, 0, 1, 1], [], []>} : vector<256x4xbf16>, vector<4x64xbf16>, vector<256x64xf32> -> vector<256x64xf32>
    %67 = arith.addf %62, %66 : vector<256x64xf32>
    %c33 = arith.constant 33 : index
    %c0_36 = arith.constant 0 : index
    %68 = vector.load %arg7[%c33, %c0_36] : memref<320x4xbf16, #tpu.memory_space<vmem>>, vector<256x4xbf16>
    %c0_i32_37 = arith.constant 0 : i32
    %69 = arith.sitofp %c0_i32_37 : i32 to bf16
    %70 = vector.shape_cast %20 : vector<256x1xi1> to vector<256x1xi1>
    %71 = vector.broadcast %70 : vector<256x1xi1> to vector<256x4xi1>
    %72 = vector.broadcast %69 : bf16 to vector<256x4xbf16>
    %73 = arith.select %71, %68, %72 : vector<256x4xi1>, vector<256x4xbf16>
    %c5 = arith.constant 5 : index
    %c0_38 = arith.constant 0 : index
    %c0_39 = arith.constant 0 : index
    %74 = vector.load %arg2[%c5, %c0_38, %c0_39] : memref<9x4x64xbf16, #tpu.memory_space<vmem>>, vector<1x4x64xbf16>
    %75 = vector.shape_cast %74 : vector<1x4x64xbf16> to vector<4x64xbf16>
    %cst_40 = arith.constant dense<0.000000e+00> : vector<256x64xf32>
    %76 = tpu.matmul %73, %75, %cst_40 {dimension_numbers = #tpu.dot_dimension_numbers<[1], [0], [0], [1], [0, 0, 1, 1], [], []>} : vector<256x4xbf16>, vector<4x64xbf16>, vector<256x64xf32> -> vector<256x64xf32>
    %77 = arith.addf %67, %76 : vector<256x64xf32>
    %c47 = arith.constant 47 : index
    %c0_41 = arith.constant 0 : index
    %78 = vector.load %arg7[%c47, %c0_41] : memref<320x4xbf16, #tpu.memory_space<vmem>>, vector<256x4xbf16>
    %c0_i32_42 = arith.constant 0 : i32
    %79 = arith.sitofp %c0_i32_42 : i32 to bf16
    %80 = vector.shape_cast %18 : vector<256x1xi1> to vector<256x1xi1>
    %81 = vector.broadcast %80 : vector<256x1xi1> to vector<256x4xi1>
    %82 = vector.broadcast %79 : bf16 to vector<256x4xbf16>
    %83 = arith.select %81, %78, %82 : vector<256x4xi1>, vector<256x4xbf16>
    %c6 = arith.constant 6 : index
    %c0_43 = arith.constant 0 : index
    %c0_44 = arith.constant 0 : index
    %84 = vector.load %arg2[%c6, %c0_43, %c0_44] : memref<9x4x64xbf16, #tpu.memory_space<vmem>>, vector<1x4x64xbf16>
    %85 = vector.shape_cast %84 : vector<1x4x64xbf16> to vector<4x64xbf16>
    %cst_45 = arith.constant dense<0.000000e+00> : vector<256x64xf32>
    %86 = tpu.matmul %83, %85, %cst_45 {dimension_numbers = #tpu.dot_dimension_numbers<[1], [0], [0], [1], [0, 0, 1, 1], [], []>} : vector<256x4xbf16>, vector<4x64xbf16>, vector<256x64xf32> -> vector<256x64xf32>
    %87 = arith.addf %77, %86 : vector<256x64xf32>
    %c48 = arith.constant 48 : index
    %c0_46 = arith.constant 0 : index
    %88 = vector.load %arg7[%c48, %c0_46] : memref<320x4xbf16, #tpu.memory_space<vmem>>, vector<256x4xbf16>
    %c7 = arith.constant 7 : index
    %c0_47 = arith.constant 0 : index
    %c0_48 = arith.constant 0 : index
    %89 = vector.load %arg2[%c7, %c0_47, %c0_48] : memref<9x4x64xbf16, #tpu.memory_space<vmem>>, vector<1x4x64xbf16>
    %90 = vector.shape_cast %89 : vector<1x4x64xbf16> to vector<4x64xbf16>
    %cst_49 = arith.constant dense<0.000000e+00> : vector<256x64xf32>
    %91 = tpu.matmul %88, %90, %cst_49 {dimension_numbers = #tpu.dot_dimension_numbers<[1], [0], [0], [1], [0, 0, 1, 1], [], []>} : vector<256x4xbf16>, vector<4x64xbf16>, vector<256x64xf32> -> vector<256x64xf32>
    %92 = arith.addf %87, %91 : vector<256x64xf32>
    %c49 = arith.constant 49 : index
    %c0_50 = arith.constant 0 : index
    %93 = vector.load %arg7[%c49, %c0_50] : memref<320x4xbf16, #tpu.memory_space<vmem>>, vector<256x4xbf16>
    %c0_i32_51 = arith.constant 0 : i32
    %94 = arith.sitofp %c0_i32_51 : i32 to bf16
    %95 = vector.shape_cast %20 : vector<256x1xi1> to vector<256x1xi1>
    %96 = vector.broadcast %95 : vector<256x1xi1> to vector<256x4xi1>
    %97 = vector.broadcast %94 : bf16 to vector<256x4xbf16>
    %98 = arith.select %96, %93, %97 : vector<256x4xi1>, vector<256x4xbf16>
    %c8 = arith.constant 8 : index
    %c0_52 = arith.constant 0 : index
    %c0_53 = arith.constant 0 : index
    %99 = vector.load %arg2[%c8, %c0_52, %c0_53] : memref<9x4x64xbf16, #tpu.memory_space<vmem>>, vector<1x4x64xbf16>
    %100 = vector.shape_cast %99 : vector<1x4x64xbf16> to vector<4x64xbf16>
    %cst_54 = arith.constant dense<0.000000e+00> : vector<256x64xf32>
    %101 = tpu.matmul %98, %100, %cst_54 {dimension_numbers = #tpu.dot_dimension_numbers<[1], [0], [0], [1], [0, 0, 1, 1], [], []>} : vector<256x4xbf16>, vector<4x64xbf16>, vector<256x64xf32> -> vector<256x64xf32>
    %102 = arith.addf %92, %101 : vector<256x64xf32>
    %c0_55 = arith.constant 0 : index
    %c0_56 = arith.constant 0 : index
    %103 = vector.load %arg3[%c0_55, %c0_56] : memref<1x64xf32, #tpu.memory_space<vmem>>, vector<1x64xf32>
    %104 = vector.broadcast %103 : vector<1x64xf32> to vector<256x64xf32>
    %105 = arith.addf %102, %104 : vector<256x64xf32>
    %cst_57 = arith.constant 0.000000e+00 : f32
    %106 = vector.broadcast %cst_57 : f32 to vector<256x64xf32>
    %107 = arith.maximumf %105, %106 : vector<256x64xf32>
    %cst_58 = arith.constant 0.000000e+00 : bf16
    %108 = vector.broadcast %cst_58 : bf16 to vector<32x64xbf16>
    %c0_59 = arith.constant 0 : index
    %c0_60 = arith.constant 0 : index
    %109 = vector.load %arg8[%c0_59, %c0_60] : memref<320x64xbf16, #tpu.memory_space<vmem>>, vector<32x64xbf16>
    tpu.vector_store %arg8[%c0_59, %c0_60], %108 {strides = array<i32>} : memref<320x64xbf16, #tpu.memory_space<vmem>>, vector<32x64xbf16>,
    %c288_61 = arith.constant 288 : index
    %c0_62 = arith.constant 0 : index
    %110 = vector.load %arg8[%c288_61, %c0_62] : memref<320x64xbf16, #tpu.memory_space<vmem>>, vector<32x64xbf16>
    tpu.vector_store %arg8[%c288_61, %c0_62], %108 {strides = array<i32>} : memref<320x64xbf16, #tpu.memory_space<vmem>>, vector<32x64xbf16>,
    %111 = arith.truncf %107 : vector<256x64xf32> to vector<256x64xbf16>
    %c32_63 = arith.constant 32 : index
    %c0_64 = arith.constant 0 : index
    %112 = vector.load %arg8[%c32_63, %c0_64] : memref<320x64xbf16, #tpu.memory_space<vmem>>, vector<256x64xbf16>
    tpu.vector_store %arg8[%c32_63, %c0_64], %111 {strides = array<i32>} : memref<320x64xbf16, #tpu.memory_space<vmem>>, vector<256x64xbf16>,
    %cst_65 = arith.constant 0.000000e+00 : f32
    %113 = vector.broadcast %cst_65 : f32 to vector<256x64xf32>
    %c15_66 = arith.constant 15 : index
    %c0_67 = arith.constant 0 : index
    %114 = vector.load %arg8[%c15_66, %c0_67] : memref<320x64xbf16, #tpu.memory_space<vmem>>, vector<256x64xbf16>
    %c0_i32_68 = arith.constant 0 : i32
    %115 = arith.sitofp %c0_i32_68 : i32 to bf16
    %116 = vector.shape_cast %18 : vector<256x1xi1> to vector<256x1xi1>
    %117 = vector.broadcast %116 : vector<256x1xi1> to vector<256x64xi1>
    %118 = vector.broadcast %115 : bf16 to vector<256x64xbf16>
    %119 = arith.select %117, %114, %118 : vector<256x64xi1>, vector<256x64xbf16>
    %c0_69 = arith.constant 0 : index
    %c0_70 = arith.constant 0 : index
    %c0_71 = arith.constant 0 : index
    %120 = vector.load %arg4[%c0_69, %c0_70, %c0_71] : memref<9x64x64xbf16, #tpu.memory_space<vmem>>, vector<1x64x64xbf16>
    %121 = vector.shape_cast %120 : vector<1x64x64xbf16> to vector<64x64xbf16>
    %cst_72 = arith.constant dense<0.000000e+00> : vector<256x64xf32>
    %122 = tpu.matmul %119, %121, %cst_72 {dimension_numbers = #tpu.dot_dimension_numbers<[1], [0], [0], [1], [0, 0, 1, 1], [], []>} : vector<256x64xbf16>, vector<64x64xbf16>, vector<256x64xf32> -> vector<256x64xf32>
    %123 = arith.addf %113, %122 : vector<256x64xf32>
    %c16_73 = arith.constant 16 : index
    %c0_74 = arith.constant 0 : index
    %124 = vector.load %arg8[%c16_73, %c0_74] : memref<320x64xbf16, #tpu.memory_space<vmem>>, vector<256x64xbf16>
    %c1_75 = arith.constant 1 : index
    %c0_76 = arith.constant 0 : index
    %c0_77 = arith.constant 0 : index
    %125 = vector.load %arg4[%c1_75, %c0_76, %c0_77] : memref<9x64x64xbf16, #tpu.memory_space<vmem>>, vector<1x64x64xbf16>
    %126 = vector.shape_cast %125 : vector<1x64x64xbf16> to vector<64x64xbf16>
    %cst_78 = arith.constant dense<0.000000e+00> : vector<256x64xf32>
    %127 = tpu.matmul %124, %126, %cst_78 {dimension_numbers = #tpu.dot_dimension_numbers<[1], [0], [0], [1], [0, 0, 1, 1], [], []>} : vector<256x64xbf16>, vector<64x64xbf16>, vector<256x64xf32> -> vector<256x64xf32>
    %128 = arith.addf %123, %127 : vector<256x64xf32>
    %c17_79 = arith.constant 17 : index
    %c0_80 = arith.constant 0 : index
    %129 = vector.load %arg8[%c17_79, %c0_80] : memref<320x64xbf16, #tpu.memory_space<vmem>>, vector<256x64xbf16>
    %c0_i32_81 = arith.constant 0 : i32
    %130 = arith.sitofp %c0_i32_81 : i32 to bf16
    %131 = vector.shape_cast %20 : vector<256x1xi1> to vector<256x1xi1>
    %132 = vector.broadcast %131 : vector<256x1xi1> to vector<256x64xi1>
    %133 = vector.broadcast %130 : bf16 to vector<256x64xbf16>
    %134 = arith.select %132, %129, %133 : vector<256x64xi1>, vector<256x64xbf16>
    %c2_82 = arith.constant 2 : index
    %c0_83 = arith.constant 0 : index
    %c0_84 = arith.constant 0 : index
    %135 = vector.load %arg4[%c2_82, %c0_83, %c0_84] : memref<9x64x64xbf16, #tpu.memory_space<vmem>>, vector<1x64x64xbf16>
    %136 = vector.shape_cast %135 : vector<1x64x64xbf16> to vector<64x64xbf16>
    %cst_85 = arith.constant dense<0.000000e+00> : vector<256x64xf32>
    %137 = tpu.matmul %134, %136, %cst_85 {dimension_numbers = #tpu.dot_dimension_numbers<[1], [0], [0], [1], [0, 0, 1, 1], [], []>} : vector<256x64xbf16>, vector<64x64xbf16>, vector<256x64xf32> -> vector<256x64xf32>
    %138 = arith.addf %128, %137 : vector<256x64xf32>
    %c31_86 = arith.constant 31 : index
    %c0_87 = arith.constant 0 : index
    %139 = vector.load %arg8[%c31_86, %c0_87] : memref<320x64xbf16, #tpu.memory_space<vmem>>, vector<256x64xbf16>
    %c0_i32_88 = arith.constant 0 : i32
    %140 = arith.sitofp %c0_i32_88 : i32 to bf16
    %141 = vector.shape_cast %18 : vector<256x1xi1> to vector<256x1xi1>
    %142 = vector.broadcast %141 : vector<256x1xi1> to vector<256x64xi1>
    %143 = vector.broadcast %140 : bf16 to vector<256x64xbf16>
    %144 = arith.select %142, %139, %143 : vector<256x64xi1>, vector<256x64xbf16>
    %c3_89 = arith.constant 3 : index
    %c0_90 = arith.constant 0 : index
    %c0_91 = arith.constant 0 : index
    %145 = vector.load %arg4[%c3_89, %c0_90, %c0_91] : memref<9x64x64xbf16, #tpu.memory_space<vmem>>, vector<1x64x64xbf16>
    %146 = vector.shape_cast %145 : vector<1x64x64xbf16> to vector<64x64xbf16>
    %cst_92 = arith.constant dense<0.000000e+00> : vector<256x64xf32>
    %147 = tpu.matmul %144, %146, %cst_92 {dimension_numbers = #tpu.dot_dimension_numbers<[1], [0], [0], [1], [0, 0, 1, 1], [], []>} : vector<256x64xbf16>, vector<64x64xbf16>, vector<256x64xf32> -> vector<256x64xf32>
    %148 = arith.addf %138, %147 : vector<256x64xf32>
    %c32_93 = arith.constant 32 : index
    %c0_94 = arith.constant 0 : index
    %149 = vector.load %arg8[%c32_93, %c0_94] : memref<320x64xbf16, #tpu.memory_space<vmem>>, vector<256x64xbf16>
    %c4_95 = arith.constant 4 : index
    %c0_96 = arith.constant 0 : index
    %c0_97 = arith.constant 0 : index
    %150 = vector.load %arg4[%c4_95, %c0_96, %c0_97] : memref<9x64x64xbf16, #tpu.memory_space<vmem>>, vector<1x64x64xbf16>
    %151 = vector.shape_cast %150 : vector<1x64x64xbf16> to vector<64x64xbf16>
    %cst_98 = arith.constant dense<0.000000e+00> : vector<256x64xf32>
    %152 = tpu.matmul %149, %151, %cst_98 {dimension_numbers = #tpu.dot_dimension_numbers<[1], [0], [0], [1], [0, 0, 1, 1], [], []>} : vector<256x64xbf16>, vector<64x64xbf16>, vector<256x64xf32> -> vector<256x64xf32>
    %153 = arith.addf %148, %152 : vector<256x64xf32>
    %c33_99 = arith.constant 33 : index
    %c0_100 = arith.constant 0 : index
    %154 = vector.load %arg8[%c33_99, %c0_100] : memref<320x64xbf16, #tpu.memory_space<vmem>>, vector<256x64xbf16>
    %c0_i32_101 = arith.constant 0 : i32
    %155 = arith.sitofp %c0_i32_101 : i32 to bf16
    %156 = vector.shape_cast %20 : vector<256x1xi1> to vector<256x1xi1>
    %157 = vector.broadcast %156 : vector<256x1xi1> to vector<256x64xi1>
    %158 = vector.broadcast %155 : bf16 to vector<256x64xbf16>
    %159 = arith.select %157, %154, %158 : vector<256x64xi1>, vector<256x64xbf16>
    %c5_102 = arith.constant 5 : index
    %c0_103 = arith.constant 0 : index
    %c0_104 = arith.constant 0 : index
    %160 = vector.load %arg4[%c5_102, %c0_103, %c0_104] : memref<9x64x64xbf16, #tpu.memory_space<vmem>>, vector<1x64x64xbf16>
    %161 = vector.shape_cast %160 : vector<1x64x64xbf16> to vector<64x64xbf16>
    %cst_105 = arith.constant dense<0.000000e+00> : vector<256x64xf32>
    %162 = tpu.matmul %159, %161, %cst_105 {dimension_numbers = #tpu.dot_dimension_numbers<[1], [0], [0], [1], [0, 0, 1, 1], [], []>} : vector<256x64xbf16>, vector<64x64xbf16>, vector<256x64xf32> -> vector<256x64xf32>
    %163 = arith.addf %153, %162 : vector<256x64xf32>
    %c47_106 = arith.constant 47 : index
    %c0_107 = arith.constant 0 : index
    %164 = vector.load %arg8[%c47_106, %c0_107] : memref<320x64xbf16, #tpu.memory_space<vmem>>, vector<256x64xbf16>
    %c0_i32_108 = arith.constant 0 : i32
    %165 = arith.sitofp %c0_i32_108 : i32 to bf16
    %166 = vector.shape_cast %18 : vector<256x1xi1> to vector<256x1xi1>
    %167 = vector.broadcast %166 : vector<256x1xi1> to vector<256x64xi1>
    %168 = vector.broadcast %165 : bf16 to vector<256x64xbf16>
    %169 = arith.select %167, %164, %168 : vector<256x64xi1>, vector<256x64xbf16>
    %c6_109 = arith.constant 6 : index
    %c0_110 = arith.constant 0 : index
    %c0_111 = arith.constant 0 : index
    %170 = vector.load %arg4[%c6_109, %c0_110, %c0_111] : memref<9x64x64xbf16, #tpu.memory_space<vmem>>, vector<1x64x64xbf16>
    %171 = vector.shape_cast %170 : vector<1x64x64xbf16> to vector<64x64xbf16>
    %cst_112 = arith.constant dense<0.000000e+00> : vector<256x64xf32>
    %172 = tpu.matmul %169, %171, %cst_112 {dimension_numbers = #tpu.dot_dimension_numbers<[1], [0], [0], [1], [0, 0, 1, 1], [], []>} : vector<256x64xbf16>, vector<64x64xbf16>, vector<256x64xf32> -> vector<256x64xf32>
    %173 = arith.addf %163, %172 : vector<256x64xf32>
    %c48_113 = arith.constant 48 : index
    %c0_114 = arith.constant 0 : index
    %174 = vector.load %arg8[%c48_113, %c0_114] : memref<320x64xbf16, #tpu.memory_space<vmem>>, vector<256x64xbf16>
    %c7_115 = arith.constant 7 : index
    %c0_116 = arith.constant 0 : index
    %c0_117 = arith.constant 0 : index
    %175 = vector.load %arg4[%c7_115, %c0_116, %c0_117] : memref<9x64x64xbf16, #tpu.memory_space<vmem>>, vector<1x64x64xbf16>
    %176 = vector.shape_cast %175 : vector<1x64x64xbf16> to vector<64x64xbf16>
    %cst_118 = arith.constant dense<0.000000e+00> : vector<256x64xf32>
    %177 = tpu.matmul %174, %176, %cst_118 {dimension_numbers = #tpu.dot_dimension_numbers<[1], [0], [0], [1], [0, 0, 1, 1], [], []>} : vector<256x64xbf16>, vector<64x64xbf16>, vector<256x64xf32> -> vector<256x64xf32>
    %178 = arith.addf %173, %177 : vector<256x64xf32>
    %c49_119 = arith.constant 49 : index
    %c0_120 = arith.constant 0 : index
    %179 = vector.load %arg8[%c49_119, %c0_120] : memref<320x64xbf16, #tpu.memory_space<vmem>>, vector<256x64xbf16>
    %c0_i32_121 = arith.constant 0 : i32
    %180 = arith.sitofp %c0_i32_121 : i32 to bf16
    %181 = vector.shape_cast %20 : vector<256x1xi1> to vector<256x1xi1>
    %182 = vector.broadcast %181 : vector<256x1xi1> to vector<256x64xi1>
    %183 = vector.broadcast %180 : bf16 to vector<256x64xbf16>
    %184 = arith.select %182, %179, %183 : vector<256x64xi1>, vector<256x64xbf16>
    %c8_122 = arith.constant 8 : index
    %c0_123 = arith.constant 0 : index
    %c0_124 = arith.constant 0 : index
    %185 = vector.load %arg4[%c8_122, %c0_123, %c0_124] : memref<9x64x64xbf16, #tpu.memory_space<vmem>>, vector<1x64x64xbf16>
    %186 = vector.shape_cast %185 : vector<1x64x64xbf16> to vector<64x64xbf16>
    %cst_125 = arith.constant dense<0.000000e+00> : vector<256x64xf32>
    %187 = tpu.matmul %184, %186, %cst_125 {dimension_numbers = #tpu.dot_dimension_numbers<[1], [0], [0], [1], [0, 0, 1, 1], [], []>} : vector<256x64xbf16>, vector<64x64xbf16>, vector<256x64xf32> -> vector<256x64xf32>
    %188 = arith.addf %178, %187 : vector<256x64xf32>
    %c0_126 = arith.constant 0 : index
    %c0_127 = arith.constant 0 : index
    %189 = vector.load %arg5[%c0_126, %c0_127] : memref<1x64xf32, #tpu.memory_space<vmem>>, vector<1x64xf32>
    %190 = vector.broadcast %189 : vector<1x64xf32> to vector<256x64xf32>
    %191 = arith.addf %188, %190 : vector<256x64xf32>
    %cst_128 = arith.constant 0.000000e+00 : f32
    %192 = vector.broadcast %cst_128 : f32 to vector<256x64xf32>
    %193 = arith.maximumf %191, %192 : vector<256x64xf32>
    %194 = arith.truncf %193 : vector<256x64xf32> to vector<256x64xbf16>
    %c0_129 = arith.constant 0 : index
    %c0_130 = arith.constant 0 : index
    %c0_131 = arith.constant 0 : index
    %195 = vector.load %arg6[%c0_129, %c0_130, %c0_131] : memref<1x256x64xbf16, #tpu.memory_space<vmem>>, vector<1x256x64xbf16>
    %196 = vector.shape_cast %195 : vector<1x256x64xbf16> to vector<256x64xbf16>
    %197 = vector.shape_cast %194 : vector<256x64xbf16> to vector<1x256x64xbf16>
    tpu.vector_store %arg6[%c0_129, %c0_130, %c0_131], %197 {strides = array<i32>} : memref<1x256x64xbf16, #tpu.memory_space<vmem>>, vector<1x256x64xbf16>,
    return
  }
  func.func @transform_0(%arg0: i32) -> (i32, i32, i32) {
    %c0_i32 = arith.constant 0 : i32
    %c0_i32_0 = arith.constant 0 : i32
    %c0_i32_1 = arith.constant 0 : i32
    return %arg0, %c0_i32, %c0_i32_0 : i32, i32, i32
  }
  func.func @transform_1(%arg0: i32) -> (i32, i32, i32) {
    %c0_i32 = arith.constant 0 : i32
    %c0_i32_0 = arith.constant 0 : i32
    %c0_i32_1 = arith.constant 0 : i32
    %c0_i32_2 = arith.constant 0 : i32
    return %c0_i32, %c0_i32_0, %c0_i32_1 : i32, i32, i32
  }
  func.func @transform_2(%arg0: i32) -> (i32, i32) {
    %c0_i32 = arith.constant 0 : i32
    %c0_i32_0 = arith.constant 0 : i32
    %c0_i32_1 = arith.constant 0 : i32
    return %c0_i32, %c0_i32_0 : i32, i32
  }
  func.func @transform_3(%arg0: i32) -> (i32, i32, i32) {
    %c0_i32 = arith.constant 0 : i32
    %c0_i32_0 = arith.constant 0 : i32
    %c0_i32_1 = arith.constant 0 : i32
    %c0_i32_2 = arith.constant 0 : i32
    return %c0_i32, %c0_i32_0, %c0_i32_1 : i32, i32, i32
  }
  func.func @transform_4(%arg0: i32) -> (i32, i32) {
    %c0_i32 = arith.constant 0 : i32
    %c0_i32_0 = arith.constant 0 : i32
    %c0_i32_1 = arith.constant 0 : i32
    return %c0_i32, %c0_i32_0 : i32, i32
  }
  func.func @transform_5(%arg0: i32) -> (i32, i32, i32) {
    %c0_i32 = arith.constant 0 : i32
    %c0_i32_0 = arith.constant 0 : i32
    %c0_i32_1 = arith.constant 0 : i32
    return %arg0, %c0_i32, %c0_i32_0 : i32, i32, i32
  }
}

</mosaic_0001>

<llo_original>
// kernel: tpu_custom_call.1
$region0: #{tpu_custom_call.1}
  #allocation0 [shape = 'u32[]', space=smem, size = 0x4, offset = 0x4, fixed_abs, tag = 'smem constant byte address 0x4 - core index']
  #allocation1 [shape = 'u32[144,128]{1,0:T(1,128)}', space=vmem, size = 0x12000, scoped, tag = 'internal scratch']
  #allocation2 [shape = 'bf16[320,4]{1,0:T(16,128)(2,1)}', space=vmem, size = 0x14000, scoped, tag = 'scratch operand']
  #allocation3 [shape = 'bf16[320,64]{1,0:T(16,128)(2,1)}', space=vmem, size = 0x14000, scoped, tag = 'scratch operand']
  %s0 = inlined_call_operand.vmem [shape: bf16[2,256,4], index: 0, kind: input, shape index: {}]
  %s1 = inlined_call_operand.vmem [shape: bf16[9,4,64], index: 1, kind: input, shape index: {}]
  %s2 = inlined_call_operand.vmem [shape: f32[1,64], index: 2, kind: input, shape index: {}]
  %s3 = inlined_call_operand.hbm [shape: bf16[9,64,64], index: 3, kind: input, shape index: {}]
  %s4 = inlined_call_operand.vmem [shape: f32[1,64], index: 4, kind: input, shape index: {}]
  %s5 = inlined_call_operand.vmem [shape: bf16[2,256,64], index: 5, kind: output, shape index: {}]
  %s6 = sld [smem:[#allocation0]]
  $region57: #{tpu_custom_call.1} parent=0
    _
  %s8 = ssub.s32 1, %s6
  %s9 = scalar_select 0, %s8, %s6
  $region1: #{tpu_custom_call.1} parent=0
    #allocation4 [shape = 'u8[147456]{0}', space=vmem, size = 0x24000, scoped, tag = 'input window, operand 3, single buffered']
    #allocation5 [shape = 's32[2]{0}', space=sflag, size = 0x8, scoped, tag = 'scoped memory for tpu_custom_call.1']
    %10 = vsyncpa [#allocation5], 0
    loop: start=0, step=1, limit=4
    $region2: #{tpu_custom_call.1} parent=1 // loop_pre_header
      _
    $region3: #{tpu_custom_call.1} parent=1 // loop_header
      %s12 = sphi 0, %s16
      %p13 = scmp.ge.s32.totalorder %s12, 4
      %s22 = sphi 0, %s24
      %s25 = sphi 0, %s22
      %s26 = sphi 0, %s25
      %s42 = sphi 0, %s26
      %s46 = sphi 0, %s46
      %s48 = sphi 0, %s46
      %s49 = sphi 0, %s48
      %s63 = sphi 0, %s49
      %s67 = sphi 0, %s67
      %s69 = sphi 0, %s67
      %s70 = sphi 0, %s69
      %s84 = sphi 0, %s70
      %s88 = sphi 0, %s88
      %s90 = sphi 0, %s88
      %s91 = sphi 0, %s90
      %s105 = sphi 0, %s91
      %s109 = sphi 0, %s109
      %s111 = sphi 0, %s109
      %s112 = sphi 0, %s111
      %s126 = sphi 0, %s112
      %s132 = sphi 0, %s134
      %s135 = sphi 0, %s132
      %s136 = sphi 0, %s135
      %s152 = sphi 0, %s136
    $region4: #{tpu_custom_call.1} parent=1 // loop_header_branch
      %15 = sbr.rel (%p13) target = $region8
    $region5: #{tpu_custom_call.1} parent=1 // loop_body
      %s17 = ssub.s32 %s12, 1
      %s18 = ssub.s32 %s12, 2
      %s19 = sadd.s32 %s12, 1
      %s20 = ssub.s32 %s12, %s19
      %p21 = scmp.eq.s32.totalorder %s20, 0
      %s23 = sadd.s32 %s22, 1
      %s24 = scalar_select %p21, %s22, %s23
      %p27 = pneg %p21
      %p28 = scmp.eq.s32.totalorder %s12, 1
      %p29 = por %p27, %p28
      %p30 = scmp.ne.s32.totalorder %s22, %s25
      %p31 = scmp.eq.s32.totalorder %s12, 0
      %p32 = por %p30, %p31
      %p33 = scmp.ne.s32.totalorder %s22, %s25
      %p34 = scmp.eq.s32.totalorder %s17, 1
      %p35 = por %p33, %p34
      %p36 = scmp.ne.s32.totalorder %s25, %s26
      %p37 = scmp.eq.s32.totalorder %s17, 0
      %p38 = por %p36, %p37
      %p39 = scmp.ne.s32.totalorder %s25, %s26
      %p40 = scmp.eq.s32.totalorder %s18, 1
      %p41 = por %p39, %p40
      %p43 = scmp.ne.s32.totalorder %s26, %s42
      %p44 = scmp.eq.s32.totalorder %s18, 0
      %p45 = por %p43, %p44
      %s47 = sadd.s32 %s46, 1
      %p50 = scmp.eq.s32.totalorder %s12, 1
      %p51 = scmp.ne.s32.totalorder %s46, %s48
      %p52 = scmp.eq.s32.totalorder %s12, 0
      %p53 = por %p51, %p52
      %p54 = scmp.ne.s32.totalorder %s46, %s48
      %p55 = scmp.eq.s32.totalorder %s17, 1
      %p56 = por %p54, %p55
      %p57 = scmp.ne.s32.totalorder %s48, %s49
      %p58 = scmp.eq.s32.totalorder %s17, 0
      %p59 = por %p57, %p58
      %p60 = scmp.ne.s32.totalorder %s48, %s49
      %p61 = scmp.eq.s32.totalorder %s18, 1
      %p62 = por %p60, %p61
      %p64 = scmp.ne.s32.totalorder %s49, %s63
      %p65 = scmp.eq.s32.totalorder %s18, 0
      %p66 = por %p64, %p65
      %s68 = sadd.s32 %s67, 1
      %p71 = scmp.eq.s32.totalorder %s12, 1
      %p72 = scmp.ne.s32.totalorder %s67, %s69
      %p73 = scmp.eq.s32.totalorder %s12, 0
      %p74 = por %p72, %p73
      %p75 = scmp.ne.s32.totalorder %s67, %s69
      %p76 = scmp.eq.s32.totalorder %s17, 1
      %p77 = por %p75, %p76
      %p78 = scmp.ne.s32.totalorder %s69, %s70
      %p79 = scmp.eq.s32.totalorder %s17, 0
      %p80 = por %p78, %p79
      %p81 = scmp.ne.s32.totalorder %s69, %s70
      %p82 = scmp.eq.s32.totalorder %s18, 1
      %p83 = por %p81, %p82
      %p85 = scmp.ne.s32.totalorder %s70, %s84
      %p86 = scmp.eq.s32.totalorder %s18, 0
      %p87 = por %p85, %p86
      %s89 = sadd.s32 %s88, 1
      %p92 = scmp.eq.s32.totalorder %s12, 1
      %p93 = scmp.ne.s32.totalorder %s88, %s90
      %p94 = scmp.eq.s32.totalorder %s12, 0
      %p95 = por %p93, %p94
      %p96 = scmp.ne.s32.totalorder %s88, %s90
      %p97 = scmp.eq.s32.totalorder %s17, 1
      %p98 = por %p96, %p97
      %p99 = scmp.ne.s32.totalorder %s90, %s91
      %p100 = scmp.eq.s32.totalorder %s17, 0
      %p101 = por %p99, %p100
      %p102 = scmp.ne.s32.totalorder %s90, %s91
      %p103 = scmp.eq.s32.totalorder %s18, 1
      %p104 = por %p102, %p103
      %p106 = scmp.ne.s32.totalorder %s91, %s105
      %p107 = scmp.eq.s32.totalorder %s18, 0
      %p108 = por %p106, %p107
      %s110 = sadd.s32 %s109, 1
      %p113 = scmp.eq.s32.totalorder %s12, 1
      %p114 = scmp.ne.s32.totalorder %s109, %s111
      %p115 = scmp.eq.s32.totalorder %s12, 0
      %p116 = por %p114, %p115
      %p117 = scmp.ne.s32.totalorder %s109, %s111
      %p118 = scmp.eq.s32.totalorder %s17, 1
      %p119 = por %p117, %p118
      %p120 = scmp.ne.s32.totalorder %s111, %s112
      %p121 = scmp.eq.s32.totalorder %s17, 0
      %p122 = por %p120, %p121
      %p123 = scmp.ne.s32.totalorder %s111, %s112
      %p124 = scmp.eq.s32.totalorder %s18, 1
      %p125 = por %p123, %p124
      %p127 = scmp.ne.s32.totalorder %s112, %s126
      %p128 = scmp.eq.s32.totalorder %s18, 0
      %p129 = por %p127, %p128
      %s130 = ssub.s32 %s12, %s19
      %p131 = scmp.eq.s32.totalorder %s130, 0
      %s133 = sadd.s32 %s132, 1
      %s134 = scalar_select %p131, %s132, %s133
      %p137 = pneg %p131
      %p138 = scmp.eq.s32.totalorder %s12, 1
      %p139 = por %p137, %p138
      %p140 = scmp.ne.s32.totalorder %s132, %s135
      %p141 = scmp.eq.s32.totalorder %s12, 0
      %p142 = por %p140, %p141
      %p143 = scmp.ne.s32.totalorder %s132, %s135
      %p144 = scmp.eq.s32.totalorder %s17, 1
      %p145 = por %p143, %p144
      %p146 = scmp.ne.s32.totalorder %s135, %s136
      %p147 = scmp.eq.s32.totalorder %s17, 0
      %p148 = por %p146, %p147
      %p149 = scmp.ne.s32.totalorder %s135, %s136
      %p150 = scmp.eq.s32.totalorder %s18, 1
      %p151 = por %p149, %p150
      %p153 = scmp.ne.s32.totalorder %s136, %s152
      %p154 = scmp.eq.s32.totalorder %s18, 0
      %p155 = por %p153, %p154
      %p156 = scmp.le.s32.totalorder 1, %s12
      %p157 = scmp.lt.s32.totalorder %s12, 3
      %p158 = pnand %p156, %p157
      %p159 = pneg %p158
      // Predicated region
      $region9: #{tpu_custom_call.1} parent=5 // pred_check
        _
      $region10: #{tpu_custom_call.1} parent=5 // pred_check_branch
        %161 = sbr.rel (%p158) target = $region12
      $region11: #{tpu_custom_call.1} parent=5 // pred_region
        %s162 = ssub.s32 %s12, 1
        // Predicated region
        $region13: #{tpu_custom_call.1} parent=11 // pred_check
          %p163 = pneg %p59
        $region14: #{tpu_custom_call.1} parent=11 // pred_check_branch
          %165 = sbr.rel (%p163) target = $region16
        $region15: #{tpu_custom_call.1} parent=11 // pred_region
          _
        $region16: #{tpu_custom_call.1} parent=11 // pred_fallthru
          _
        // Predicated region
        $region17: #{tpu_custom_call.1} parent=11 // pred_check
          %p166 = pneg %p80
        $region18: #{tpu_custom_call.1} parent=11 // pred_check_branch
          %168 = sbr.rel (%p166) target = $region20
        $region19: #{tpu_custom_call.1} parent=11 // pred_region
          _
        $region20: #{tpu_custom_call.1} parent=11 // pred_fallthru
          _
        // Predicated region
        $region21: #{tpu_custom_call.1} parent=11 // pred_check
          %p169 = pneg %p101
        $region22: #{tpu_custom_call.1} parent=11 // pred_check_branch
          %171 = sbr.rel (%p169) target = $region24
        $region23: #{tpu_custom_call.1} parent=11 // pred_region
          %s173 = ssub.s32 4608, 4608
          %174 = vsyncadd [#allocation5], %s173
          %s175 = sshll.u32 [#allocation4], 4
          %s176 = int_to_ptr.vmem [resolvable:$true] %s175
          %181 = dma.hbm_to_vmem [thread:$0]  %s3, 4608, %s176, [#allocation5], 64, 64, 4
        $region24: #{tpu_custom_call.1} parent=11 // pred_fallthru
          _
        // Predicated region
        $region25: #{tpu_custom_call.1} parent=11 // pred_check
          %p182 = pneg %p122
        $region26: #{tpu_custom_call.1} parent=11 // pred_check_branch
          %184 = sbr.rel (%p182) target = $region28
        $region27: #{tpu_custom_call.1} parent=11 // pred_region
          _
        $region28: #{tpu_custom_call.1} parent=11 // pred_fallthru
          _
      $region12: #{tpu_custom_call.1} parent=5 // pred_fallthru
        _
      %p185 = scmp.lt.s32.totalorder %s12, 2
      // Predicated region
      $region29: #{tpu_custom_call.1} parent=5 // pred_check
        %p186 = pneg %p185
      $region30: #{tpu_custom_call.1} parent=5 // pred_check_branch
        %188 = sbr.rel (%p186) target = $region32
      $region31: #{tpu_custom_call.1} parent=5 // pred_region
        // Predicated region
        $region33: #{tpu_custom_call.1} parent=31 // pred_check
          %p189 = pneg %p32
        $region34: #{tpu_custom_call.1} parent=31 // pred_check_branch
          %191 = sbr.rel (%p189) target = $region36
        $region35: #{tpu_custom_call.1} parent=31 // pred_region
          %p192 = scmp.lt.s32.totalorder %s12, 1
          %s193 = scalar_select %p192, %s12, 1
          %s194 = smul.addr %s193, 32
          %s195 = smul.addr %s194, 4
          %s196 = scalar_lea.vmem %s0, %s195
        $region36: #{tpu_custom_call.1} parent=31 // pred_fallthru
          _
      $region32: #{tpu_custom_call.1} parent=5 // pred_fallthru
        _
      %p197 = scmp.le.s32.totalorder 1, %s12
      %p198 = scmp.lt.s32.totalorder %s12, 3
      %p199 = pnand %p197, %p198
      %p200 = pneg %p199
      // Predicated region
      $region37: #{tpu_custom_call.1} parent=5 // pred_check
        _
      $region38: #{tpu_custom_call.1} parent=5 // pred_check_branch
        %202 = sbr.rel (%p199) target = $region40
      $region39: #{tpu_custom_call.1} parent=5 // pred_region
        %s203 = ssub.s32 %s12, 1
        // Predicated region
        $region41: #{tpu_custom_call.1} parent=39 // pred_check
          %p204 = pneg %p101
        $region42: #{tpu_custom_call.1} parent=39 // pred_check_branch
          %206 = sbr.rel (%p204) target = $region44
        $region43: #{tpu_custom_call.1} parent=39 // pred_region
          %207 = dma.done [#allocation5], 4608
        $region44: #{tpu_custom_call.1} parent=39 // pred_fallthru
          _
        %p208 = scmp.lt.s32.totalorder %s17, 1
        %s209 = scalar_select %p208, %s17, 1
        %s210 = smul.addr %s209, 32
        %s211 = smul.addr %s210, 4
        %s212 = scalar_lea.vmem %s0, %s211
        %p213 = pneg %p38
        %p214 = pneg %p35
        %p215 = pneg %p59
        %p216 = pneg %p56
        %p217 = pneg %p80
        %p218 = pneg %p77
        %p219 = pneg %p101
        %p220 = pneg %p98
        %p221 = pneg %p122
        %p222 = pneg %p119
        %p223 = pneg %p148
        %p224 = pneg %p145
        %p225 = scmp.lt.s32.totalorder %s17, 1
        %s226 = scalar_select %p225, %s17, 1
        %s227 = smul.addr %s226, 32
        %s228 = smul.addr %s227, 4
        %s229 = scalar_lea.vmem %s5, %s228
        %p230 = scmp.lt.s32.totalorder %s17, 1
        %s231 = scalar_select %p230, %s17, 1
        %s232 = smul.addr %s231, 32
        %s233 = smul.addr %s232, 4
        %s234 = scalar_lea.vmem %s0, %s233
        %p235 = scmp.lt.s32.totalorder %s17, 1
        %s236 = scalar_select %p235, %s17, 1
        %s237 = smul.addr %s236, 32
        %s238 = smul.addr %s237, 4
        %s239 = scalar_lea.vmem %s5, %s238
        %v243 = vlaneseq
        %v244 = vshrl.u32 %v243, 7
        %v245 = vadd.s32 %v244, 8
        %v246 = vadd.s32 %v244, 16
        %v247 = vadd.s32 %v244, 24
        %v248 = vadd.s32 %v244, 32
        %v249 = vadd.s32 %v244, 40
        %v250 = vadd.s32 %v244, 48
        %v251 = vadd.s32 %v244, 56
        %v252 = vadd.s32 %v244, 64
        %v253 = vadd.s32 %v244, 72
        %v254 = vadd.s32 %v244, 80
        %v255 = vadd.s32 %v244, 88
        %v256 = vadd.s32 %v244, 96
        %v257 = vadd.s32 %v244, 104
        %v258 = vadd.s32 %v244, 112
        %v259 = vadd.s32 %v244, 120
        %v260 = vadd.s32 %v244, 128
        %v261 = vadd.s32 %v244, 136
        %v262 = vadd.s32 %v244, 144
        %v263 = vadd.s32 %v244, 152
        %v264 = vadd.s32 %v244, 160
        %v265 = vadd.s32 %v244, 168
        %v266 = vadd.s32 %v244, 176
        %v267 = vadd.s32 %v244, 184
        %v268 = vadd.s32 %v244, 192
        %v269 = vadd.s32 %v244, 200
        %v270 = vadd.s32 %v244, 208
        %v271 = vadd.s32 %v244, 216
        %v272 = vadd.s32 %v244, 224
        %v273 = vadd.s32 %v244, 232
        %v274 = vadd.s32 %v244, 240
        %v275 = vadd.s32 %v244, 248
        %vm276 = vcmp.lt.s32.totalorder %v244, 0
        %v277 = vsub.s32 0, %v244
        %v278 = vsel %vm276, %v277, %v244
        %v279 = vshrl.u32 %v278, 4
        %v280 = vand.u32 %v278, 15
        %v281 = vsub.s32 0, %v280
        %v282 = vsel %vm276, %v281, %v280
        %vm283 = vcmp.lt.s32.totalorder %v245, 0
        %v284 = vsub.s32 0, %v245
        %v285 = vsel %vm283, %v284, %v245
        %v286 = vshrl.u32 %v285, 4
        %v287 = vand.u32 %v285, 15
        %v288 = vsub.s32 0, %v287
        %v289 = vsel %vm283, %v288, %v287
        %vm290 = vcmp.lt.s32.totalorder %v246, 0
        %v291 = vsub.s32 0, %v246
        %v292 = vsel %vm290, %v291, %v246
        %v293 = vshrl.u32 %v292, 4
        %v294 = vand.u32 %v292, 15
        %v295 = vsub.s32 0, %v294
        %v296 = vsel %vm290, %v295, %v294
        %vm297 = vcmp.lt.s32.totalorder %v247, 0
        %v298 = vsub.s32 0, %v247
        %v299 = vsel %vm297, %v298, %v247
        %v300 = vshrl.u32 %v299, 4
        %v301 = vand.u32 %v299, 15
        %v302 = vsub.s32 0, %v301
        %v303 = vsel %vm297, %v302, %v301
        %vm304 = vcmp.lt.s32.totalorder %v248, 0
        %v305 = vsub.s32 0, %v248
        %v306 = vsel %vm304, %v305, %v248
        %v307 = vshrl.u32 %v306, 4
        %v308 = vand.u32 %v306, 15
        %v309 = vsub.s32 0, %v308
        %v310 = vsel %vm304, %v309, %v308
        %vm311 = vcmp.lt.s32.totalorder %v249, 0
        %v312 = vsub.s32 0, %v249
        %v313 = vsel %vm311, %v312, %v249
        %v314 = vshrl.u32 %v313, 4
        %v315 = vand.u32 %v313, 15
        %v316 = vsub.s32 0, %v315
        %v317 = vsel %vm311, %v316, %v315
        %vm318 = vcmp.lt.s32.totalorder %v250, 0
        %v319 = vsub.s32 0, %v250
        %v320 = vsel %vm318, %v319, %v250
        %v321 = vshrl.u32 %v320, 4
        %v322 = vand.u32 %v320, 15
        %v323 = vsub.s32 0, %v322
        %v324 = vsel %vm318, %v323, %v322
        %vm325 = vcmp.lt.s32.totalorder %v251, 0
        %v326 = vsub.s32 0, %v251
        %v327 = vsel %vm325, %v326, %v251
        %v328 = vshrl.u32 %v327, 4
        %v329 = vand.u32 %v327, 15
        %v330 = vsub.s32 0, %v329
        %v331 = vsel %vm325, %v330, %v329
        %vm332 = vcmp.lt.s32.totalorder %v252, 0
        %v333 = vsub.s32 0, %v252
        %v334 = vsel %vm332, %v333, %v252
        %v335 = vshrl.u32 %v334, 4
        %v336 = vand.u32 %v334, 15
        %v337 = vsub.s32 0, %v336
        %v338 = vsel %vm332, %v337, %v336
        %vm339 = vcmp.lt.s32.totalorder %v253, 0
        %v340 = vsub.s32 0, %v253
        %v341 = vsel %vm339, %v340, %v253
        %v342 = vshrl.u32 %v341, 4
        %v343 = vand.u32 %v341, 15
        %v344 = vsub.s32 0, %v343
        %v345 = vsel %vm339, %v344, %v343
        %vm346 = vcmp.lt.s32.totalorder %v254, 0
        %v347 = vsub.s32 0, %v254
        %v348 = vsel %vm346, %v347, %v254
        %v349 = vshrl.u32 %v348, 4
        %v350 = vand.u32 %v348, 15
        %v351 = vsub.s32 0, %v350
        %v352 = vsel %vm346, %v351, %v350
        %vm353 = vcmp.lt.s32.totalorder %v255, 0
        %v354 = vsub.s32 0, %v255
        %v355 = vsel %vm353, %v354, %v255
        %v356 = vshrl.u32 %v355, 4
        %v357 = vand.u32 %v355, 15
        %v358 = vsub.s32 0, %v357
        %v359 = vsel %vm353, %v358, %v357
        %vm360 = vcmp.lt.s32.totalorder %v256, 0
        %v361 = vsub.s32 0, %v256
        %v362 = vsel %vm360, %v361, %v256
        %v363 = vshrl.u32 %v362, 4
        %v364 = vand.u32 %v362, 15
        %v365 = vsub.s32 0, %v364
        %v366 = vsel %vm360, %v365, %v364
        %vm367 = vcmp.lt.s32.totalorder %v257, 0
        %v368 = vsub.s32 0, %v257
        %v369 = vsel %vm367, %v368, %v257
        %v370 = vshrl.u32 %v369, 4
        %v371 = vand.u32 %v369, 15
        %v372 = vsub.s32 0, %v371
        %v373 = vsel %vm367, %v372, %v371
        %vm374 = vcmp.lt.s32.totalorder %v258, 0
        %v375 = vsub.s32 0, %v258
        %v376 = vsel %vm374, %v375, %v258
        %v377 = vshrl.u32 %v376, 4
        %v378 = vand.u32 %v376, 15
        %v379 = vsub.s32 0, %v378
        %v380 = vsel %vm374, %v379, %v378
        %vm381 = vcmp.lt.s32.totalorder %v259, 0
        %v382 = vsub.s32 0, %v259
        %v383 = vsel %vm381, %v382, %v259
        %v384 = vshrl.u32 %v383, 4
        %v385 = vand.u32 %v383, 15
        %v386 = vsub.s32 0, %v385
        %v387 = vsel %vm381, %v386, %v385
        %vm388 = vcmp.lt.s32.totalorder %v260, 0
        %v389 = vsub.s32 0, %v260
        %v390 = vsel %vm388, %v389, %v260
        %v391 = vshrl.u32 %v390, 4
        %v392 = vand.u32 %v390, 15
        %v393 = vsub.s32 0, %v392
        %v394 = vsel %vm388, %v393, %v392
        %vm395 = vcmp.lt.s32.totalorder %v261, 0
        %v396 = vsub.s32 0, %v261
        %v397 = vsel %vm395, %v396, %v261
        %v398 = vshrl.u32 %v397, 4
        %v399 = vand.u32 %v397, 15
        %v400 = vsub.s32 0, %v399
        %v401 = vsel %vm395, %v400, %v399
        %vm402 = vcmp.lt.s32.totalorder %v262, 0
        %v403 = vsub.s32 0, %v262
        %v404 = vsel %vm402, %v403, %v262
        %v405 = vshrl.u32 %v404, 4
        %v406 = vand.u32 %v404, 15
        %v407 = vsub.s32 0, %v406
        %v408 = vsel %vm402, %v407, %v406
        %vm409 = vcmp.lt.s32.totalorder %v263, 0
        %v410 = vsub.s32 0, %v263
        %v411 = vsel %vm409, %v410, %v263
        %v412 = vshrl.u32 %v411, 4
        %v413 = vand.u32 %v411, 15
        %v414 = vsub.s32 0, %v413
        %v415 = vsel %vm409, %v414, %v413
        %vm416 = vcmp.lt.s32.totalorder %v264, 0
        %v417 = vsub.s32 0, %v264
        %v418 = vsel %vm416, %v417, %v264
        %v419 = vshrl.u32 %v418, 4
        %v420 = vand.u32 %v418, 15
        %v421 = vsub.s32 0, %v420
        %v422 = vsel %vm416, %v421, %v420
        %vm423 = vcmp.lt.s32.totalorder %v265, 0
        %v424 = vsub.s32 0, %v265
        %v425 = vsel %vm423, %v424, %v265
        %v426 = vshrl.u32 %v425, 4
        %v427 = vand.u32 %v425, 15
        %v428 = vsub.s32 0, %v427
        %v429 = vsel %vm423, %v428, %v427
        %vm430 = vcmp.lt.s32.totalorder %v266, 0
        %v431 = vsub.s32 0, %v266
        %v432 = vsel %vm430, %v431, %v266
        %v433 = vshrl.u32 %v432, 4
        %v434 = vand.u32 %v432, 15
        %v435 = vsub.s32 0, %v434
        %v436 = vsel %vm430, %v435, %v434
        %vm437 = vcmp.lt.s32.totalorder %v267, 0
        %v438 = vsub.s32 0, %v267
        %v439 = vsel %vm437, %v438, %v267
        %v440 = vshrl.u32 %v439, 4
        %v441 = vand.u32 %v439, 15
        %v442 = vsub.s32 0, %v441
        %v443 = vsel %vm437, %v442, %v441
        %vm444 = vcmp.lt.s32.totalorder %v268, 0
        %v445 = vsub.s32 0, %v268
        %v446 = vsel %vm444, %v445, %v268
        %v447 = vshrl.u32 %v446, 4
        %v448 = vand.u32 %v446, 15
        %v449 = vsub.s32 0, %v448
        %v450 = vsel %vm444, %v449, %v448
        %vm451 = vcmp.lt.s32.totalorder %v269, 0
        %v452 = vsub.s32 0, %v269
        %v453 = vsel %vm451, %v452, %v269
        %v454 = vshrl.u32 %v453, 4
        %v455 = vand.u32 %v453, 15
        %v456 = vsub.s32 0, %v455
        %v457 = vsel %vm451, %v456, %v455
        %vm458 = vcmp.lt.s32.totalorder %v270, 0
        %v459 = vsub.s32 0, %v270
        %v460 = vsel %vm458, %v459, %v270
        %v461 = vshrl.u32 %v460, 4
        %v462 = vand.u32 %v460, 15
        %v463 = vsub.s32 0, %v462
        %v464 = vsel %vm458, %v463, %v462
        %vm465 = vcmp.lt.s32.totalorder %v271, 0
        %v466 = vsub.s32 0, %v271
        %v467 = vsel %vm465, %v466, %v271
        %v468 = vshrl.u32 %v467, 4
        %v469 = vand.u32 %v467, 15
        %v470 = vsub.s32 0, %v469
        %v471 = vsel %vm465, %v470, %v469
        %vm472 = vcmp.lt.s32.totalorder %v272, 0
        %v473 = vsub.s32 0, %v272
        %v474 = vsel %vm472, %v473, %v272
        %v475 = vshrl.u32 %v474, 4
        %v476 = vand.u32 %v474, 15
        %v477 = vsub.s32 0, %v476
        %v478 = vsel %vm472, %v477, %v476
        %vm479 = vcmp.lt.s32.totalorder %v273, 0
        %v480 = vsub.s32 0, %v273
        %v481 = vsel %vm479, %v480, %v273
        %v482 = vshrl.u32 %v481, 4
        %v483 = vand.u32 %v481, 15
        %v484 = vsub.s32 0, %v483
        %v485 = vsel %vm479, %v484, %v483
        %vm486 = vcmp.lt.s32.totalorder %v274, 0
        %v487 = vsub.s32 0, %v274
        %v488 = vsel %vm486, %v487, %v274
        %v489 = vshrl.u32 %v488, 4
        %v490 = vand.u32 %v488, 15
        %v491 = vsub.s32 0, %v490
        %v492 = vsel %vm486, %v491, %v490
        %vm493 = vcmp.lt.s32.totalorder %v275, 0
        %v494 = vsub.s32 0, %v275
        %v495 = vsel %vm493, %v494, %v275
        %v496 = vshrl.u32 %v495, 4
        %v497 = vand.u32 %v495, 15
        %v498 = vsub.s32 0, %v497
        %v499 = vsel %vm493, %v498, %v497
        %vm500 = vcmp.ne.s32.totalorder %v282, 0
        %vm501 = vcmp.ne.s32.totalorder %v289, 0
        %vm502 = vcmp.ne.s32.totalorder %v296, 0
        %vm503 = vcmp.ne.s32.totalorder %v303, 0
        %vm504 = vcmp.ne.s32.totalorder %v310, 0
        %vm505 = vcmp.ne.s32.totalorder %v317, 0
        %vm506 = vcmp.ne.s32.totalorder %v324, 0
        %vm507 = vcmp.ne.s32.totalorder %v331, 0
        %vm508 = vcmp.ne.s32.totalorder %v338, 0
        %vm509 = vcmp.ne.s32.totalorder %v345, 0
        %vm510 = vcmp.ne.s32.totalorder %v352, 0
        %vm511 = vcmp.ne.s32.totalorder %v359, 0
        %vm512 = vcmp.ne.s32.totalorder %v366, 0
        %vm513 = vcmp.ne.s32.totalorder %v373, 0
        %vm514 = vcmp.ne.s32.totalorder %v380, 0
        %vm515 = vcmp.ne.s32.totalorder %v387, 0
        %vm516 = vcmp.ne.s32.totalorder %v394, 0
        %vm517 = vcmp.ne.s32.totalorder %v401, 0
        %vm518 = vcmp.ne.s32.totalorder %v408, 0
        %vm519 = vcmp.ne.s32.totalorder %v415, 0
        %vm520 = vcmp.ne.s32.totalorder %v422, 0
        %vm521 = vcmp.ne.s32.totalorder %v429, 0
        %vm522 = vcmp.ne.s32.totalorder %v436, 0
        %vm523 = vcmp.ne.s32.totalorder %v443, 0
        %vm524 = vcmp.ne.s32.totalorder %v450, 0
        %vm525 = vcmp.ne.s32.totalorder %v457, 0
        %vm526 = vcmp.ne.s32.totalorder %v464, 0
        %vm527 = vcmp.ne.s32.totalorder %v471, 0
        %vm528 = vcmp.ne.s32.totalorder %v478, 0
        %vm529 = vcmp.ne.s32.totalorder %v485, 0
        %vm530 = vcmp.ne.s32.totalorder %v492, 0
        %vm531 = vcmp.ne.s32.totalorder %v499, 0
        %vm532 = vcmp.lt.s32.totalorder %v282, 0
        %vm533 = vcmp.lt.s32.totalorder %v289, 0
        %vm534 = vcmp.lt.s32.totalorder %v296, 0
        %vm535 = vcmp.lt.s32.totalorder %v303, 0
        %vm536 = vcmp.lt.s32.totalorder %v310, 0
        %vm537 = vcmp.lt.s32.totalorder %v317, 0
        %vm538 = vcmp.lt.s32.totalorder %v324, 0
        %vm539 = vcmp.lt.s32.totalorder %v331, 0
        %vm540 = vcmp.lt.s32.totalorder %v338, 0
        %vm541 = vcmp.lt.s32.totalorder %v345, 0
        %vm542 = vcmp.lt.s32.totalorder %v352, 0
        %vm543 = vcmp.lt.s32.totalorder %v359, 0
        %vm544 = vcmp.lt.s32.totalorder %v366, 0
        %vm545 = vcmp.lt.s32.totalorder %v373, 0
        %vm546 = vcmp.lt.s32.totalorder %v380, 0
        %vm547 = vcmp.lt.s32.totalorder %v387, 0
        %vm548 = vcmp.lt.s32.totalorder %v394, 0
        %vm549 = vcmp.lt.s32.totalorder %v401, 0
        %vm550 = vcmp.lt.s32.totalorder %v408, 0
        %vm551 = vcmp.lt.s32.totalorder %v415, 0
        %vm552 = vcmp.lt.s32.totalorder %v422, 0
        %vm553 = vcmp.lt.s32.totalorder %v429, 0
        %vm554 = vcmp.lt.s32.totalorder %v436, 0
        %vm555 = vcmp.lt.s32.totalorder %v443, 0
        %vm556 = vcmp.lt.s32.totalorder %v450, 0
        %vm557 = vcmp.lt.s32.totalorder %v457, 0
        %vm558 = vcmp.lt.s32.totalorder %v464, 0
        %vm559 = vcmp.lt.s32.totalorder %v471, 0
        %vm560 = vcmp.lt.s32.totalorder %v478, 0
        %vm561 = vcmp.lt.s32.totalorder %v485, 0
        %vm562 = vcmp.lt.s32.totalorder %v492, 0
        %vm563 = vcmp.lt.s32.totalorder %v499, 0
        %vm564 = vmand %vm532, %vm500
        %vm565 = vmand %vm533, %vm501
        %vm566 = vmand %vm534, %vm502
        %vm567 = vmand %vm535, %vm503
        %vm568 = vmand %vm536, %vm504
        %vm569 = vmand %vm537, %vm505
        %vm570 = vmand %vm538, %vm506
        %vm571 = vmand %vm539, %vm507
        %vm572 = vmand %vm540, %vm508
        %vm573 = vmand %vm541, %vm509
        %vm574 = vmand %vm542, %vm510
        %vm575 = vmand %vm543, %vm511
        %vm576 = vmand %vm544, %vm512
        %vm577 = vmand %vm545, %vm513
        %vm578 = vmand %vm546, %vm514
        %vm579 = vmand %vm547, %vm515
        %vm580 = vmand %vm548, %vm516
        %vm581 = vmand %vm549, %vm517
        %vm582 = vmand %vm550, %vm518
        %vm583 = vmand %vm551, %vm519
        %vm584 = vmand %vm552, %vm520
        %vm585 = vmand %vm553, %vm521
        %vm586 = vmand %vm554, %vm522
        %vm587 = vmand %vm555, %vm523
        %vm588 = vmand %vm556, %vm524
        %vm589 = vmand %vm557, %vm525
        %vm590 = vmand %vm558, %vm526
        %vm591 = vmand %vm559, %vm527
        %vm592 = vmand %vm560, %vm528
        %vm593 = vmand %vm561, %vm529
        %vm594 = vmand %vm562, %vm530
        %vm595 = vmand %vm563, %vm531
        %v596 = vadd.s32 %v282, 16
        %v597 = vadd.s32 %v289, 16
        %v598 = vadd.s32 %v296, 16
        %v599 = vadd.s32 %v303, 16
        %v600 = vadd.s32 %v310, 16
        %v601 = vadd.s32 %v317, 16
        %v602 = vadd.s32 %v324, 16
        %v603 = vadd.s32 %v331, 16
        %v604 = vadd.s32 %v338, 16
        %v605 = vadd.s32 %v345, 16
        %v606 = vadd.s32 %v352, 16
        %v607 = vadd.s32 %v359, 16
        %v608 = vadd.s32 %v366, 16
        %v609 = vadd.s32 %v373, 16
        %v610 = vadd.s32 %v380, 16
        %v611 = vadd.s32 %v387, 16
        %v612 = vadd.s32 %v394, 16
        %v613 = vadd.s32 %v401, 16
        %v614 = vadd.s32 %v408, 16
        %v615 = vadd.s32 %v415, 16
        %v616 = vadd.s32 %v422, 16
        %v617 = vadd.s32 %v429, 16
        %v618 = vadd.s32 %v436, 16
        %v619 = vadd.s32 %v443, 16
        %v620 = vadd.s32 %v450, 16
        %v621 = vadd.s32 %v457, 16
        %v622 = vadd.s32 %v464, 16
        %v623 = vadd.s32 %v471, 16
        %v624 = vadd.s32 %v478, 16
        %v625 = vadd.s32 %v485, 16
        %v626 = vadd.s32 %v492, 16
        %v627 = vadd.s32 %v499, 16
        %v628 = vsel %vm564, %v596, %v282
        %v629 = vsel %vm565, %v597, %v289
        %v630 = vsel %vm566, %v598, %v296
        %v631 = vsel %vm567, %v599, %v303
        %v632 = vsel %vm568, %v600, %v310
        %v633 = vsel %vm569, %v601, %v317
        %v634 = vsel %vm570, %v602, %v324
        %v635 = vsel %vm571, %v603, %v331
        %v636 = vsel %vm572, %v604, %v338
        %v637 = vsel %vm573, %v605, %v345
        %v638 = vsel %vm574, %v606, %v352
        %v639 = vsel %vm575, %v607, %v359
        %v640 = vsel %vm576, %v608, %v366
        %v641 = vsel %vm577, %v609, %v373
        %v642 = vsel %vm578, %v610, %v380
        %v643 = vsel %vm579, %v611, %v387
        %v644 = vsel %vm580, %v612, %v394
        %v645 = vsel %vm581, %v613, %v401
        %v646 = vsel %vm582, %v614, %v408
        %v647 = vsel %vm583, %v615, %v415
        %v648 = vsel %vm584, %v616, %v422
        %v649 = vsel %vm585, %v617, %v429
        %v650 = vsel %vm586, %v618, %v436
        %v651 = vsel %vm587, %v619, %v443
        %v652 = vsel %vm588, %v620, %v450
        %v653 = vsel %vm589, %v621, %v457
        %v654 = vsel %vm590, %v622, %v464
        %v655 = vsel %vm591, %v623, %v471
        %v656 = vsel %vm592, %v624, %v478
        %v657 = vsel %vm593, %v625, %v485
        %v658 = vsel %vm594, %v626, %v492
        %v659 = vsel %vm595, %v627, %v499
        %vm660 = vcmp.ne.s32.totalorder %v628, 0
        %vm661 = vcmp.ne.s32.totalorder %v629, 0
        %vm662 = vcmp.ne.s32.totalorder %v630, 0
        %vm663 = vcmp.ne.s32.totalorder %v631, 0
        %vm664 = vcmp.ne.s32.totalorder %v632, 0
        %vm665 = vcmp.ne.s32.totalorder %v633, 0
        %vm666 = vcmp.ne.s32.totalorder %v634, 0
        %vm667 = vcmp.ne.s32.totalorder %v635, 0
        %vm668 = vcmp.ne.s32.totalorder %v636, 0
        %vm669 = vcmp.ne.s32.totalorder %v637, 0
        %vm670 = vcmp.ne.s32.totalorder %v638, 0
        %vm671 = vcmp.ne.s32.totalorder %v639, 0
        %vm672 = vcmp.ne.s32.totalorder %v640, 0
        %vm673 = vcmp.ne.s32.totalorder %v641, 0
        %vm674 = vcmp.ne.s32.totalorder %v642, 0
        %vm675 = vcmp.ne.s32.totalorder %v643, 0
        %vm676 = vcmp.ne.s32.totalorder %v644, 0
        %vm677 = vcmp.ne.s32.totalorder %v645, 0
        %vm678 = vcmp.ne.s32.totalorder %v646, 0
        %vm679 = vcmp.ne.s32.totalorder %v647, 0
        %vm680 = vcmp.ne.s32.totalorder %v648, 0
        %vm681 = vcmp.ne.s32.totalorder %v649, 0
        %vm682 = vcmp.ne.s32.totalorder %v650, 0
        %vm683 = vcmp.ne.s32.totalorder %v651, 0
        %vm684 = vcmp.ne.s32.totalorder %v652, 0
        %vm685 = vcmp.ne.s32.totalorder %v653, 0
        %vm686 = vcmp.ne.s32.totalorder %v654, 0
        %vm687 = vcmp.ne.s32.totalorder %v655, 0
        %vm688 = vcmp.ne.s32.totalorder %v656, 0
        %vm689 = vcmp.ne.s32.totalorder %v657, 0
        %vm690 = vcmp.ne.s32.totalorder %v658, 0
        %vm691 = vcmp.ne.s32.totalorder %v659, 0
        %vm692 = vcmp.ne.s32.totalorder %v628, 15
        %vm693 = vcmp.ne.s32.totalorder %v629, 15
        %vm694 = vcmp.ne.s32.totalorder %v630, 15
        %vm695 = vcmp.ne.s32.totalorder %v631, 15
        %vm696 = vcmp.ne.s32.totalorder %v632, 15
        %vm697 = vcmp.ne.s32.totalorder %v633, 15
        %vm698 = vcmp.ne.s32.totalorder %v634, 15
        %vm699 = vcmp.ne.s32.totalorder %v635, 15
        %vm700 = vcmp.ne.s32.totalorder %v636, 15
        %vm701 = vcmp.ne.s32.totalorder %v637, 15
        %vm702 = vcmp.ne.s32.totalorder %v638, 15
        %vm703 = vcmp.ne.s32.totalorder %v639, 15
        %vm704 = vcmp.ne.s32.totalorder %v640, 15
        %vm705 = vcmp.ne.s32.totalorder %v641, 15
        %vm706 = vcmp.ne.s32.totalorder %v642, 15
        %vm707 = vcmp.ne.s32.totalorder %v643, 15
        %vm708 = vcmp.ne.s32.totalorder %v644, 15
        %vm709 = vcmp.ne.s32.totalorder %v645, 15
        %vm710 = vcmp.ne.s32.totalorder %v646, 15
        %vm711 = vcmp.ne.s32.totalorder %v647, 15
        %vm712 = vcmp.ne.s32.totalorder %v648, 15
        %vm713 = vcmp.ne.s32.totalorder %v649, 15
        %vm714 = vcmp.ne.s32.totalorder %v650, 15
        %vm715 = vcmp.ne.s32.totalorder %v651, 15
        %vm716 = vcmp.ne.s32.totalorder %v652, 15
        %vm717 = vcmp.ne.s32.totalorder %v653, 15
        %vm718 = vcmp.ne.s32.totalorder %v654, 15
        %vm719 = vcmp.ne.s32.totalorder %v655, 15
        %vm720 = vcmp.ne.s32.totalorder %v656, 15
        %vm721 = vcmp.ne.s32.totalorder %v657, 15
        %vm722 = vcmp.ne.s32.totalorder %v658, 15
        %vm723 = vcmp.ne.s32.totalorder %v659, 15
        %vm724 = vcmask 31744
        %725 = vst.msk [vmem:[#allocation2] sm:$0xff] %vm724, 0
        %726 = vst.msk [vmem:[#allocation2 + $0x8] sm:$0xff] %vm724, 0
        %727 = vst.msk [vmem:[#allocation2 + $0x90] sm:$0xff] %vm724, 0
        %728 = vst.msk [vmem:[#allocation2 + $0x98] sm:$0xff] %vm724, 0
        %v729 = vld [vmem:[%s234] sm:$0xf]
        %v730 = vld [vmem:[%s234 + $0x4] sm:$0xf]
        %v731 = vld [vmem:[%s234 + $0x8] sm:$0xf]
        %v732 = vld [vmem:[%s234 + $0xc] sm:$0xf]
        %v733 = vld [vmem:[%s234 + $0x10] sm:$0xf]
        %v734 = vld [vmem:[%s234 + $0x14] sm:$0xf]
        %v735 = vld [vmem:[%s234 + $0x18] sm:$0xf]
        %v736 = vld [vmem:[%s234 + $0x1c] sm:$0xf]
        %v737 = vld [vmem:[%s234 + $0x20] sm:$0xf]
        %v738 = vld [vmem:[%s234 + $0x24] sm:$0xf]
        %v739 = vld [vmem:[%s234 + $0x28] sm:$0xf]
        %v740 = vld [vmem:[%s234 + $0x2c] sm:$0xf]
        %v741 = vld [vmem:[%s234 + $0x30] sm:$0xf]
        %v742 = vld [vmem:[%s234 + $0x34] sm:$0xf]
        %v743 = vld [vmem:[%s234 + $0x38] sm:$0xf]
        %v744 = vld [vmem:[%s234 + $0x3c] sm:$0xf]
        %v745 = vld [vmem:[%s234 + $0x40] sm:$0xf]
        %v746 = vld [vmem:[%s234 + $0x44] sm:$0xf]
        %v747 = vld [vmem:[%s234 + $0x48] sm:$0xf]
        %v748 = vld [vmem:[%s234 + $0x4c] sm:$0xf]
        %v749 = vld [vmem:[%s234 + $0x50] sm:$0xf]
        %v750 = vld [vmem:[%s234 + $0x54] sm:$0xf]
        %v751 = vld [vmem:[%s234 + $0x58] sm:$0xf]
        %v752 = vld [vmem:[%s234 + $0x5c] sm:$0xf]
        %v753 = vld [vmem:[%s234 + $0x60] sm:$0xf]
        %v754 = vld [vmem:[%s234 + $0x64] sm:$0xf]
        %v755 = vld [vmem:[%s234 + $0x68] sm:$0xf]
        %v756 = vld [vmem:[%s234 + $0x6c] sm:$0xf]
        %v757 = vld [vmem:[%s234 + $0x70] sm:$0xf]
        %v758 = vld [vmem:[%s234 + $0x74] sm:$0xf]
        %v759 = vld [vmem:[%s234 + $0x78] sm:$0xf]
        %v760 = vld [vmem:[%s234 + $0x7c] sm:$0xf]
        %v793 = vunpack.c.l.b16 %v729
        %v794 = vunpack.c.l.b16 %v730
        %v795 = vunpack.c.l.b16 %v731
        %v796 = vunpack.c.l.b16 %v732
        %v797 = vunpack.c.l.b16 %v733
        %v798 = vunpack.c.l.b16 %v734
        %v799 = vunpack.c.l.b16 %v735
        %v800 = vunpack.c.l.b16 %v736
        %v801 = vunpack.c.l.b16 %v737
        %v802 = vunpack.c.l.b16 %v738
        %v803 = vunpack.c.l.b16 %v739
        %v804 = vunpack.c.l.b16 %v740
        %v805 = vunpack.c.l.b16 %v741
        %v806 = vunpack.c.l.b16 %v742
        %v807 = vunpack.c.l.b16 %v743
        %v808 = vunpack.c.l.b16 %v744
        %v809 = vunpack.c.l.b16 %v745
        %v810 = vunpack.c.l.b16 %v746
        %v811 = vunpack.c.l.b16 %v747
        %v812 = vunpack.c.l.b16 %v748
        %v813 = vunpack.c.l.b16 %v749
        %v814 = vunpack.c.l.b16 %v750
        %v815 = vunpack.c.l.b16 %v751
        %v816 = vunpack.c.l.b16 %v752
        %v817 = vunpack.c.l.b16 %v753
        %v818 = vunpack.c.l.b16 %v754
        %v819 = vunpack.c.l.b16 %v755
        %v820 = vunpack.c.l.b16 %v756
        %v821 = vunpack.c.l.b16 %v757
        %v822 = vunpack.c.l.b16 %v758
        %v823 = vunpack.c.l.b16 %v759
        %v824 = vunpack.c.l.b16 %v760
        %v825 = vpack.c.b16 %v794, %v793
        %v826 = vpack.c.b16 %v796, %v795
        %v827 = vpack.c.b16 %v798, %v797
        %v828 = vpack.c.b16 %v800, %v799
        %v829 = vpack.c.b16 %v802, %v801
        %v830 = vpack.c.b16 %v804, %v803
        %v831 = vpack.c.b16 %v806, %v805
        %v832 = vpack.c.b16 %v808, %v807
        %v833 = vpack.c.b16 %v810, %v809
        %v834 = vpack.c.b16 %v812, %v811
        %v835 = vpack.c.b16 %v814, %v813
        %v836 = vpack.c.b16 %v816, %v815
        %v837 = vpack.c.b16 %v818, %v817
        %v838 = vpack.c.b16 %v820, %v819
        %v839 = vpack.c.b16 %v822, %v821
        %v840 = vpack.c.b16 %v824, %v823
        %857 = vst.msk [vmem:[#allocation2 + $0x10] sm:$0xff] %vm724, %v825
        %858 = vst.msk [vmem:[#allocation2 + $0x18] sm:$0xff] %vm724, %v826
        %859 = vst.msk [vmem:[#allocation2 + $0x20] sm:$0xff] %vm724, %v827
        %860 = vst.msk [vmem:[#allocation2 + $0x28] sm:$0xff] %vm724, %v828
        %861 = vst.msk [vmem:[#allocation2 + $0x30] sm:$0xff] %vm724, %v829
        %862 = vst.msk [vmem:[#allocation2 + $0x38] sm:$0xff] %vm724, %v830
        %863 = vst.msk [vmem:[#allocation2 + $0x40] sm:$0xff] %vm724, %v831
        %864 = vst.msk [vmem:[#allocation2 + $0x48] sm:$0xff] %vm724, %v832
        %865 = vst.msk [vmem:[#allocation2 + $0x50] sm:$0xff] %vm724, %v833
        %866 = vst.msk [vmem:[#allocation2 + $0x58] sm:$0xff] %vm724, %v834
        %867 = vst.msk [vmem:[#allocation2 + $0x60] sm:$0xff] %vm724, %v835
        %868 = vst.msk [vmem:[#allocation2 + $0x68] sm:$0xff] %vm724, %v836
        %869 = vst.msk [vmem:[#allocation2 + $0x70] sm:$0xff] %vm724, %v837
        %870 = vst.msk [vmem:[#allocation2 + $0x78] sm:$0xff] %vm724, %v838
        %871 = vst.msk [vmem:[#allocation2 + $0x80] sm:$0xff] %vm724, %v839
        %872 = vst.msk [vmem:[#allocation2 + $0x88] sm:$0xff] %vm724, %v840
        %v873 = vld [vmem:[#allocation2] sm:$0x80]
        %v874 = vld [vmem:[#allocation2 + $0x8] sm:$0xff]
        %v875 = vld [vmem:[#allocation2 + $0x10] sm:$0xff]
        %v876 = vld [vmem:[#allocation2 + $0x18] sm:$0xff]
        %v877 = vld [vmem:[#allocation2 + $0x20] sm:$0xff]
        %v878 = vld [vmem:[#allocation2 + $0x28] sm:$0xff]
        %v879 = vld [vmem:[#allocation2 + $0x30] sm:$0xff]
        %v880 = vld [vmem:[#allocation2 + $0x38] sm:$0xff]
        %v881 = vld [vmem:[#allocation2 + $0x40] sm:$0xff]
        %v882 = vld [vmem:[#allocation2 + $0x48] sm:$0xff]
        %v883 = vld [vmem:[#allocation2 + $0x50] sm:$0xff]
        %v884 = vld [vmem:[#allocation2 + $0x58] sm:$0xff]
        %v885 = vld [vmem:[#allocation2 + $0x60] sm:$0xff]
        %v886 = vld [vmem:[#allocation2 + $0x68] sm:$0xff]
        %v887 = vld [vmem:[#allocation2 + $0x70] sm:$0xff]
        %v888 = vld [vmem:[#allocation2 + $0x78] sm:$0xff]
        %v889 = vld [vmem:[#allocation2 + $0x80] sm:$0xff]
        %v890 = vsel %vm660, 1, 0
        %v891 = vsel %vm661, 1, 0
        %v892 = vsel %vm662, 1, 0
        %v893 = vsel %vm663, 1, 0
        %v894 = vsel %vm664, 1, 0
        %v895 = vsel %vm665, 1, 0
        %v896 = vsel %vm666, 1, 0
        %v897 = vsel %vm667, 1, 0
        %v898 = vsel %vm668, 1, 0
        %v899 = vsel %vm669, 1, 0
        %v900 = vsel %vm670, 1, 0
        %v901 = vsel %vm671, 1, 0
        %v902 = vsel %vm672, 1, 0
        %v903 = vsel %vm673, 1, 0
        %v904 = vsel %vm674, 1, 0
        %v905 = vsel %vm675, 1, 0
        %v906 = vsel %vm676, 1, 0
        %v907 = vsel %vm677, 1, 0
        %v908 = vsel %vm678, 1, 0
        %v909 = vsel %vm679, 1, 0
        %v910 = vsel %vm680, 1, 0
        %v911 = vsel %vm681, 1, 0
        %v912 = vsel %vm682, 1, 0
        %v913 = vsel %vm683, 1, 0
        %v914 = vsel %vm684, 1, 0
        %v915 = vsel %vm685, 1, 0
        %v916 = vsel %vm686, 1, 0
        %v917 = vsel %vm687, 1, 0
        %v918 = vsel %vm688, 1, 0
        %v919 = vsel %vm689, 1, 0
        %v920 = vsel %vm690, 1, 0
        %v921 = vsel %vm691, 1, 0
        %vm922 = vcmp.eq.s32.totalorder %v890, 1
        %vm923 = vcmp.eq.s32.totalorder %v891, 1
        %vm924 = vcmp.eq.s32.totalorder %v892, 1
        %vm925 = vcmp.eq.s32.totalorder %v893, 1
        %vm926 = vcmp.eq.s32.totalorder %v894, 1
        %vm927 = vcmp.eq.s32.totalorder %v895, 1
        %vm928 = vcmp.eq.s32.totalorder %v896, 1
        %vm929 = vcmp.eq.s32.totalorder %v897, 1
        %vm930 = vcmp.eq.s32.totalorder %v898, 1
        %vm931 = vcmp.eq.s32.totalorder %v899, 1
        %vm932 = vcmp.eq.s32.totalorder %v900, 1
        %vm933 = vcmp.eq.s32.totalorder %v901, 1
        %vm934 = vcmp.eq.s32.totalorder %v902, 1
        %vm935 = vcmp.eq.s32.totalorder %v903, 1
        %vm936 = vcmp.eq.s32.totalorder %v904, 1
        %vm937 = vcmp.eq.s32.totalorder %v905, 1
        %vm938 = vcmp.eq.s32.totalorder %v906, 1
        %vm939 = vcmp.eq.s32.totalorder %v907, 1
        %vm940 = vcmp.eq.s32.totalorder %v908, 1
        %vm941 = vcmp.eq.s32.totalorder %v909, 1
        %vm942 = vcmp.eq.s32.totalorder %v910, 1
        %vm943 = vcmp.eq.s32.totalorder %v911, 1
        %vm944 = vcmp.eq.s32.totalorder %v912, 1
        %vm945 = vcmp.eq.s32.totalorder %v913, 1
        %vm946 = vcmp.eq.s32.totalorder %v914, 1
        %vm947 = vcmp.eq.s32.totalorder %v915, 1
        %vm948 = vcmp.eq.s32.totalorder %v916, 1
        %vm949 = vcmp.eq.s32.totalorder %v917, 1
        %vm950 = vcmp.eq.s32.totalorder %v918, 1
        %vm951 = vcmp.eq.s32.totalorder %v919, 1
        %vm952 = vcmp.eq.s32.totalorder %v920, 1
        %vm953 = vcmp.eq.s32.totalorder %v921, 1
        %vm954 = vmpackc.low %vm922, %vm922
        %vm955 = vmpackc.low %vm923, %vm923
        %vm956 = vmpackc.low %vm924, %vm924
        %vm957 = vmpackc.low %vm925, %vm925
        %vm958 = vmpackc.low %vm926, %vm926
        %vm959 = vmpackc.low %vm927, %vm927
        %vm960 = vmpackc.low %vm928, %vm928
        %vm961 = vmpackc.low %vm929, %vm929
        %vm962 = vmpackc.low %vm930, %vm930
        %vm963 = vmpackc.low %vm931, %vm931
        %vm964 = vmpackc.low %vm932, %vm932
        %vm965 = vmpackc.low %vm933, %vm933
        %vm966 = vmpackc.low %vm934, %vm934
        %vm967 = vmpackc.low %vm935, %vm935
        %vm968 = vmpackc.low %vm936, %vm936
        %vm969 = vmpackc.low %vm937, %vm937
        %vm970 = vmpackc.low %vm938, %vm938
        %vm971 = vmpackc.low %vm939, %vm939
        %vm972 = vmpackc.low %vm940, %vm940
        %vm973 = vmpackc.low %vm941, %vm941
        %vm974 = vmpackc.low %vm942, %vm942
        %vm975 = vmpackc.low %vm943, %vm943
        %vm976 = vmpackc.low %vm944, %vm944
        %vm977 = vmpackc.low %vm945, %vm945
        %vm978 = vmpackc.low %vm946, %vm946
        %vm979 = vmpackc.low %vm947, %vm947
        %vm980 = vmpackc.low %vm948, %vm948
        %vm981 = vmpackc.low %vm949, %vm949
        %vm982 = vmpackc.low %vm950, %vm950
        %vm983 = vmpackc.low %vm951, %vm951
        %vm984 = vmpackc.low %vm952, %vm952
        %vm985 = vmpackc.low %vm953, %vm953
        %v986 = vsel %vm954, 65537, 0
        %v987 = vsel %vm955, 65537, 0
        %v988 = vsel %vm956, 65537, 0
        %v989 = vsel %vm957, 65537, 0
        %v990 = vsel %vm958, 65537, 0
        %v991 = vsel %vm959, 65537, 0
        %v992 = vsel %vm960, 65537, 0
        %v993 = vsel %vm961, 65537, 0
        %v994 = vsel %vm962, 65537, 0
        %v995 = vsel %vm963, 65537, 0
        %v996 = vsel %vm964, 65537, 0
        %v997 = vsel %vm965, 65537, 0
        %v998 = vsel %vm966, 65537, 0
        %v999 = vsel %vm967, 65537, 0
        %v1000 = vsel %vm968, 65537, 0
        %v1001 = vsel %vm969, 65537, 0
        %v1002 = vsel %vm970, 65537, 0
        %v1003 = vsel %vm971, 65537, 0
        %v1004 = vsel %vm972, 65537, 0
        %v1005 = vsel %vm973, 65537, 0
        %v1006 = vsel %vm974, 65537, 0
        %v1007 = vsel %vm975, 65537, 0
        %v1008 = vsel %vm976, 65537, 0
        %v1009 = vsel %vm977, 65537, 0
        %v1010 = vsel %vm978, 65537, 0
        %v1011 = vsel %vm979, 65537, 0
        %v1012 = vsel %vm980, 65537, 0
        %v1013 = vsel %vm981, 65537, 0
        %v1014 = vsel %vm982, 65537, 0
        %v1015 = vsel %vm983, 65537, 0
        %v1016 = vsel %vm984, 65537, 0
        %v1017 = vsel %vm985, 65537, 0
        %v1018 = vunpack.c.l.b16 %v986
        %v1019 = vunpack.c.l.b16 %v987
        %v1020 = vunpack.c.l.b16 %v988
        %v1021 = vunpack.c.l.b16 %v989
        %v1022 = vunpack.c.l.b16 %v990
        %v1023 = vunpack.c.l.b16 %v991
        %v1024 = vunpack.c.l.b16 %v992
        %v1025 = vunpack.c.l.b16 %v993
        %v1026 = vunpack.c.l.b16 %v994
        %v1027 = vunpack.c.l.b16 %v995
        %v1028 = vunpack.c.l.b16 %v996
        %v1029 = vunpack.c.l.b16 %v997
        %v1030 = vunpack.c.l.b16 %v998
        %v1031 = vunpack.c.l.b16 %v999
        %v1032 = vunpack.c.l.b16 %v1000
        %v1033 = vunpack.c.l.b16 %v1001
        %v1034 = vunpack.c.l.b16 %v1002
        %v1035 = vunpack.c.l.b16 %v1003
        %v1036 = vunpack.c.l.b16 %v1004
        %v1037 = vunpack.c.l.b16 %v1005
        %v1038 = vunpack.c.l.b16 %v1006
        %v1039 = vunpack.c.l.b16 %v1007
        %v1040 = vunpack.c.l.b16 %v1008
        %v1041 = vunpack.c.l.b16 %v1009
        %v1042 = vunpack.c.l.b16 %v1010
        %v1043 = vunpack.c.l.b16 %v1011
        %v1044 = vunpack.c.l.b16 %v1012
        %v1045 = vunpack.c.l.b16 %v1013
        %v1046 = vunpack.c.l.b16 %v1014
        %v1047 = vunpack.c.l.b16 %v1015
        %v1048 = vunpack.c.l.b16 %v1016
        %v1049 = vunpack.c.l.b16 %v1017
        %v1050 = vpack.c.b16 %v1019, %v1018
        %v1051 = vpack.c.b16 %v1021, %v1020
        %v1052 = vpack.c.b16 %v1023, %v1022
        %v1053 = vpack.c.b16 %v1025, %v1024
        %v1054 = vpack.c.b16 %v1027, %v1026
        %v1055 = vpack.c.b16 %v1029, %v1028
        %v1056 = vpack.c.b16 %v1031, %v1030
        %v1057 = vpack.c.b16 %v1033, %v1032
        %v1058 = vpack.c.b16 %v1035, %v1034
        %v1059 = vpack.c.b16 %v1037, %v1036
        %v1060 = vpack.c.b16 %v1039, %v1038
        %v1061 = vpack.c.b16 %v1041, %v1040
        %v1062 = vpack.c.b16 %v1043, %v1042
        %v1063 = vpack.c.b16 %v1045, %v1044
        %v1064 = vpack.c.b16 %v1047, %v1046
        %v1065 = vpack.c.b16 %v1049, %v1048
        %vm1066 = vsmask.f32 7424
        %v1068 = vshll.u32 %v1050, 16
        %v1070 = vrot.slane %v1068, 1
        %v1071 = vshrl.u32 %v1050, 16
        %v1073 = vor.u32 %v1071, %v1070
        %v1075 = vshll.u32 %v1051, 16
        %v1077 = vrot.slane %v1075, 1
        %v1078 = vsel %vm1066, %v1073, %v1077
        %v1079 = vshrl.u32 %v1051, 16
        %v1081 = vor.u32 %v1079, %v1077
        %v1083 = vshll.u32 %v1052, 16
        %v1085 = vrot.slane %v1083, 1
        %v1086 = vsel %vm1066, %v1081, %v1085
        %v1087 = vshrl.u32 %v1052, 16
        %v1089 = vor.u32 %v1087, %v1085
        %v1091 = vshll.u32 %v1053, 16
        %v1093 = vrot.slane %v1091, 1
        %v1094 = vsel %vm1066, %v1089, %v1093
        %v1095 = vshrl.u32 %v1053, 16
        %v1097 = vor.u32 %v1095, %v1093
        %v1099 = vshll.u32 %v1054, 16
        %v1101 = vrot.slane %v1099, 1
        %v1102 = vsel %vm1066, %v1097, %v1101
        %v1103 = vshrl.u32 %v1054, 16
        %v1105 = vor.u32 %v1103, %v1101
        %v1107 = vshll.u32 %v1055, 16
        %v1109 = vrot.slane %v1107, 1
        %v1110 = vsel %vm1066, %v1105, %v1109
        %v1111 = vshrl.u32 %v1055, 16
        %v1113 = vor.u32 %v1111, %v1109
        %v1115 = vshll.u32 %v1056, 16
        %v1117 = vrot.slane %v1115, 1
        %v1118 = vsel %vm1066, %v1113, %v1117
        %v1119 = vshrl.u32 %v1056, 16
        %v1121 = vor.u32 %v1119, %v1117
        %v1123 = vshll.u32 %v1057, 16
        %v1125 = vrot.slane %v1123, 1
        %v1126 = vsel %vm1066, %v1121, %v1125
        %v1127 = vshrl.u32 %v1057, 16
        %v1129 = vor.u32 %v1127, %v1125
        %v1131 = vshll.u32 %v1058, 16
        %v1133 = vrot.slane %v1131, 1
        %v1134 = vsel %vm1066, %v1129, %v1133
        %v1135 = vshrl.u32 %v1058, 16
        %v1137 = vor.u32 %v1135, %v1133
        %v1139 = vshll.u32 %v1059, 16
        %v1141 = vrot.slane %v1139, 1
        %v1142 = vsel %vm1066, %v1137, %v1141
        %v1143 = vshrl.u32 %v1059, 16
        %v1145 = vor.u32 %v1143, %v1141
        %v1147 = vshll.u32 %v1060, 16
        %v1149 = vrot.slane %v1147, 1
        %v1150 = vsel %vm1066, %v1145, %v1149
        %v1151 = vshrl.u32 %v1060, 16
        %v1153 = vor.u32 %v1151, %v1149
        %v1155 = vshll.u32 %v1061, 16
        %v1157 = vrot.slane %v1155, 1
        %v1158 = vsel %vm1066, %v1153, %v1157
        %v1159 = vshrl.u32 %v1061, 16
        %v1161 = vor.u32 %v1159, %v1157
        %v1163 = vshll.u32 %v1062, 16
        %v1165 = vrot.slane %v1163, 1
        %v1166 = vsel %vm1066, %v1161, %v1165
        %v1167 = vshrl.u32 %v1062, 16
        %v1169 = vor.u32 %v1167, %v1165
        %v1171 = vshll.u32 %v1063, 16
        %v1173 = vrot.slane %v1171, 1
        %v1174 = vsel %vm1066, %v1169, %v1173
        %v1175 = vshrl.u32 %v1063, 16
        %v1177 = vor.u32 %v1175, %v1173
        %v1179 = vshll.u32 %v1064, 16
        %v1181 = vrot.slane %v1179, 1
        %v1182 = vsel %vm1066, %v1177, %v1181
        %v1183 = vshrl.u32 %v1064, 16
        %v1185 = vor.u32 %v1183, %v1181
        %v1187 = vshll.u32 %v1065, 16
        %v1189 = vrot.slane %v1187, 1
        %v1190 = vsel %vm1066, %v1185, %v1189
        %v1191 = vshrl.u32 %v1065, 16
        %v1193 = vor.u32 %v1191, %v1189
        %vm1194 = vcmp.ne.s16.totalorder %v1070, 0
        %vm1195 = vcmp.ne.s16.totalorder %v1078, 0
        %vm1196 = vcmp.ne.s16.totalorder %v1086, 0
        %vm1197 = vcmp.ne.s16.totalorder %v1094, 0
        %vm1198 = vcmp.ne.s16.totalorder %v1102, 0
        %vm1199 = vcmp.ne.s16.totalorder %v1110, 0
        %vm1200 = vcmp.ne.s16.totalorder %v1118, 0
        %vm1201 = vcmp.ne.s16.totalorder %v1126, 0
        %vm1202 = vcmp.ne.s16.totalorder %v1134, 0
        %vm1203 = vcmp.ne.s16.totalorder %v1142, 0
        %vm1204 = vcmp.ne.s16.totalorder %v1150, 0
        %vm1205 = vcmp.ne.s16.totalorder %v1158, 0
        %vm1206 = vcmp.ne.s16.totalorder %v1166, 0
        %vm1207 = vcmp.ne.s16.totalorder %v1174, 0
        %vm1208 = vcmp.ne.s16.totalorder %v1182, 0
        %vm1209 = vcmp.ne.s16.totalorder %v1190, 0
        %vm1210 = vcmp.ne.s16.totalorder %v1193, 0
        %v1211 = vsel %vm1194, %v873, 0
        %v1212 = vsel %vm1195, %v874, 0
        %v1213 = vsel %vm1196, %v875, 0
        %v1214 = vsel %vm1197, %v876, 0
        %v1215 = vsel %vm1198, %v877, 0
        %v1216 = vsel %vm1199, %v878, 0
        %v1217 = vsel %vm1200, %v879, 0
        %v1218 = vsel %vm1201, %v880, 0
        %v1219 = vsel %vm1202, %v881, 0
        %v1220 = vsel %vm1203, %v882, 0
        %v1221 = vsel %vm1204, %v883, 0
        %v1222 = vsel %vm1205, %v884, 0
        %v1223 = vsel %vm1206, %v885, 0
        %v1224 = vsel %vm1207, %v886, 0
        %v1225 = vsel %vm1208, %v887, 0
        %v1226 = vsel %vm1209, %v888, 0
        %v1227 = vsel %vm1210, %v889, 0
        %v1228 = vld [vmem:[%s1] sm:$0x3]
        %s1229 = scalar_lea.vmem %s1, 2
        %v1230 = vld [vmem:[%s1229] sm:$0x3]
        %v1232 = vsel %vm724, %v874, 0
        %v1235 = vsel %vm724, %v875, 0
        %v1238 = vsel %vm724, %v876, 0
        %v1241 = vsel %vm724, %v877, 0
        %v1244 = vsel %vm724, %v878, 0
        %v1247 = vsel %vm724, %v879, 0
        %v1250 = vsel %vm724, %v880, 0
        %v1253 = vsel %vm724, %v881, 0
        %v1256 = vsel %vm724, %v882, 0
        %v1259 = vsel %vm724, %v883, 0
        %v1262 = vsel %vm724, %v884, 0
        %v1265 = vsel %vm724, %v885, 0
        %v1268 = vsel %vm724, %v886, 0
        %v1271 = vsel %vm724, %v887, 0
        %v1274 = vsel %vm724, %v888, 0
        %v1277 = vsel %vm724, %v889, 0
        %vm1279 = vcmask 1041408
        %v1281 = vsel %vm1279, %v1230, 0
        %1283 = vmatprep.subr.bf16.mxu0 0
        %1284 = vmatpush1.bf16.msra.mxu0 %v1281
        %1285 = vmatprep.subr.bf16.mxu0 0
        %1286 = vmatpush1.bf16.msra.mxu0 0
        %1287 = vmatprep.subr.bf16.mxu0 0
        %1288 = vmatpush1.bf16.msra.mxu0 0
        %1289 = vmatprep.subr.bf16.mxu0 0
        %1290 = vmatpush1.bf16.msra.mxu0 0
        %1291 = vmatprep.subr.bf16.mxu0 0
        %1292 = vmatpush1.bf16.msra.mxu0 0
        %1293 = vmatprep.subr.bf16.mxu0 0
        %1294 = vmatpush1.bf16.msra.mxu0 0
        %1295 = vmatprep.subr.bf16.mxu0 0
        %1296 = vmatpush1.bf16.msra.mxu0 0
        %1297 = vmatprep.subr.bf16.mxu0 0
        %1298 = vmatpush1.bf16.msra.mxu0 0
        %1299 = vmatprep.subr.bf16.mxu0 0
        %1300 = vmatpush1.bf16.msra.mxu0 0
        %1301 = vmatprep.subr.bf16.mxu0 0
        %1302 = vmatpush1.bf16.msra.mxu0 0
        %1303 = vmatprep.subr.bf16.mxu0 0
        %1304 = vmatpush1.bf16.msra.mxu0 0
        %1305 = vmatprep.subr.bf16.mxu0 0
        %1306 = vmatpush1.bf16.msra.mxu0 0
        %1307 = vmatprep.subr.bf16.mxu0 0
        %1308 = vmatpush1.bf16.msra.mxu0 0
        %1309 = vmatprep.subr.bf16.mxu0 0
        %1310 = vmatpush1.bf16.msra.mxu0 0
        %1311 = vmatprep.subr.bf16.mxu0 0
        %1312 = vmatpush1.bf16.msra.mxu0 0
        %1313 = vmatprep.subr.bf16.mxu0 0
        %1314 = vmatpush1.bf16.msra.mxu0 0
        %1315 = vmatprep.mubr.bf16.mxu0 0
        %1316 = vmatmul.mubr.bf16.gmra.mrb[0].mxu0 %v1232
        %v1317 = vpop.f32.mrb[0].mxu0
        %v1318 = vadd.f32 0.0, %v1317
        %v1319 = vpop.f32.mrb[0].mxu0
        %v1320 = vpop.f32.mrb[0].mxu0
        %v1321 = vadd.f32 0.0, %v1320
        %v1322 = vpop.f32.mrb[0].mxu0
        %1323 = vmatprep.mubr.bf16.mxu0 0
        %1324 = vmatmul.mubr.bf16.gmra.mrb[0].mxu0 %v1235
        %v1325 = vpop.f32.mrb[0].mxu0
        %v1326 = vadd.f32 0.0, %v1325
        %v1327 = vpop.f32.mrb[0].mxu0
        %v1328 = vpop.f32.mrb[0].mxu0
        %v1329 = vadd.f32 0.0, %v1328
        %v1330 = vpop.f32.mrb[0].mxu0
        %1331 = vmatprep.mubr.bf16.mxu0 0
        %1332 = vmatmul.mubr.bf16.gmra.mrb[0].mxu0 %v1238
        %v1333 = vpop.f32.mrb[0].mxu0
        %v1334 = vadd.f32 0.0, %v1333
        %v1335 = vpop.f32.mrb[0].mxu0
        %v1336 = vpop.f32.mrb[0].mxu0
        %v1337 = vadd.f32 0.0, %v1336
        %v1338 = vpop.f32.mrb[0].mxu0
        %1339 = vmatprep.mubr.bf16.mxu0 0
        %1340 = vmatmul.mubr.bf16.gmra.mrb[0].mxu0 %v1241
        %v1341 = vpop.f32.mrb[0].mxu0
        %v1342 = vadd.f32 0.0, %v1341
        %v1343 = vpop.f32.mrb[0].mxu0
        %v1344 = vpop.f32.mrb[0].mxu0
        %v1345 = vadd.f32 0.0, %v1344
        %v1346 = vpop.f32.mrb[0].mxu0
        %1347 = vmatprep.mubr.bf16.mxu0 0
        %1348 = vmatmul.mubr.bf16.gmra.mrb[0].mxu0 %v1244
        %v1349 = vpop.f32.mrb[0].mxu0
        %v1350 = vadd.f32 0.0, %v1349
        %v1351 = vpop.f32.mrb[0].mxu0
        %v1352 = vpop.f32.mrb[0].mxu0
        %v1353 = vadd.f32 0.0, %v1352
        %v1354 = vpop.f32.mrb[0].mxu0
        %1355 = vmatprep.mubr.bf16.mxu0 0
        %1356 = vmatmul.mubr.bf16.gmra.mrb[0].mxu0 %v1247
        %v1357 = vpop.f32.mrb[0].mxu0
        %v1358 = vadd.f32 0.0, %v1357
        %v1359 = vpop.f32.mrb[0].mxu0
        %v1360 = vpop.f32.mrb[0].mxu0
        %v1361 = vadd.f32 0.0, %v1360
        %v1362 = vpop.f32.mrb[0].mxu0
        %1363 = vmatprep.mubr.bf16.mxu0 0
        %1364 = vmatmul.mubr.bf16.gmra.mrb[0].mxu0 %v1250
        %v1365 = vpop.f32.mrb[0].mxu0
        %v1366 = vadd.f32 0.0, %v1365
        %v1367 = vpop.f32.mrb[0].mxu0
        %v1368 = vpop.f32.mrb[0].mxu0
        %v1369 = vadd.f32 0.0, %v1368
        %v1370 = vpop.f32.mrb[0].mxu0
        %1371 = vmatprep.mubr.bf16.mxu0 0
        %1372 = vmatmul.mubr.bf16.gmra.mrb[0].mxu0 %v1253
        %v1373 = vpop.f32.mrb[0].mxu0
        %v1374 = vadd.f32 0.0, %v1373
        %v1375 = vpop.f32.mrb[0].mxu0
        %v1376 = vpop.f32.mrb[0].mxu0
        %v1377 = vadd.f32 0.0, %v1376
        %v1378 = vpop.f32.mrb[0].mxu0
        %1379 = vmatprep.mubr.bf16.mxu0 0
        %1380 = vmatmul.mubr.bf16.gmra.mrb[0].mxu0 %v1256
        %v1381 = vpop.f32.mrb[0].mxu0
        %v1382 = vadd.f32 0.0, %v1381
        %v1383 = vpop.f32.mrb[0].mxu0
        %v1384 = vpop.f32.mrb[0].mxu0
        %v1385 = vadd.f32 0.0, %v1384
        %v1386 = vpop.f32.mrb[0].mxu0
        %1387 = vmatprep.mubr.bf16.mxu0 0
        %1388 = vmatmul.mubr.bf16.gmra.mrb[0].mxu0 %v1259
        %v1389 = vpop.f32.mrb[0].mxu0
        %v1390 = vadd.f32 0.0, %v1389
        %v1391 = vpop.f32.mrb[0].mxu0
        %v1392 = vpop.f32.mrb[0].mxu0
        %v1393 = vadd.f32 0.0, %v1392
        %v1394 = vpop.f32.mrb[0].mxu0
        %1395 = vmatprep.mubr.bf16.mxu0 0
        %1396 = vmatmul.mubr.bf16.gmra.mrb[0].mxu0 %v1262
        %v1397 = vpop.f32.mrb[0].mxu0
        %v1398 = vadd.f32 0.0, %v1397
        %v1399 = vpop.f32.mrb[0].mxu0
        %v1400 = vpop.f32.mrb[0].mxu0
        %v1401 = vadd.f32 0.0, %v1400
        %v1402 = vpop.f32.mrb[0].mxu0
        %1403 = vmatprep.mubr.bf16.mxu0 0
        %1404 = vmatmul.mubr.bf16.gmra.mrb[0].mxu0 %v1265
        %v1405 = vpop.f32.mrb[0].mxu0
        %v1406 = vadd.f32 0.0, %v1405
        %v1407 = vpop.f32.mrb[0].mxu0
        %v1408 = vpop.f32.mrb[0].mxu0
        %v1409 = vadd.f32 0.0, %v1408
        %v1410 = vpop.f32.mrb[0].mxu0
        %1411 = vmatprep.mubr.bf16.mxu0 0
        %1412 = vmatmul.mubr.bf16.gmra.mrb[0].mxu0 %v1268
        %v1413 = vpop.f32.mrb[0].mxu0
        %v1414 = vadd.f32 0.0, %v1413
        %v1415 = vpop.f32.mrb[0].mxu0
        %v1416 = vpop.f32.mrb[0].mxu0
        %v1417 = vadd.f32 0.0, %v1416
        %v1418 = vpop.f32.mrb[0].mxu0
        %1419 = vmatprep.mubr.bf16.mxu0 0
        %1420 = vmatmul.mubr.bf16.gmra.mrb[0].mxu0 %v1271
        %v1421 = vpop.f32.mrb[0].mxu0
        %v1422 = vadd.f32 0.0, %v1421
        %v1423 = vpop.f32.mrb[0].mxu0
        %v1424 = vpop.f32.mrb[0].mxu0
        %v1425 = vadd.f32 0.0, %v1424
        %v1426 = vpop.f32.mrb[0].mxu0
        %1427 = vmatprep.mubr.bf16.mxu0 0
        %1428 = vmatmul.mubr.bf16.gmra.mrb[0].mxu0 %v1274
        %v1429 = vpop.f32.mrb[0].mxu0
        %v1430 = vadd.f32 0.0, %v1429
        %v1431 = vpop.f32.mrb[0].mxu0
        %v1432 = vpop.f32.mrb[0].mxu0
        %v1433 = vadd.f32 0.0, %v1432
        %v1434 = vpop.f32.mrb[0].mxu0
        %1435 = vmatprep.mubr.bf16.mxu0 0
        %1436 = vmatmul.mubr.bf16.gmra.mrb[0].mxu0 %v1277
        %v1437 = vpop.f32.mrb[0].mxu0
        %v1438 = vadd.f32 0.0, %v1437
        %v1439 = vpop.f32.mrb[0].mxu0
        %v1440 = vpop.f32.mrb[0].mxu0
        %v1441 = vadd.f32 0.0, %v1440
        %v1442 = vpop.f32.mrb[0].mxu0
        %1443 = vdwg.mxu0
        %vm1444 = vsmask.f32 256
        %v1446 = vshrl.u32 %v1211, 16
        %v1448 = vrot.slane %v1446, 7
        %v1450 = vshrl.u32 %v1212, 16
        %v1452 = vrot.slane %v1450, 7
        %v1453 = vshll.u32 %v1212, 16
        %v1455 = vor.u32 %v1452, %v1453
        %v1456 = vsel %vm1444, %v1448, %v1455
        %v1458 = vshrl.u32 %v1213, 16
        %v1460 = vrot.slane %v1458, 7
        %v1461 = vshll.u32 %v1213, 16
        %v1463 = vor.u32 %v1460, %v1461
        %v1464 = vsel %vm1444, %v1452, %v1463
        %v1466 = vshrl.u32 %v1214, 16
        %v1468 = vrot.slane %v1466, 7
        %v1469 = vshll.u32 %v1214, 16
        %v1471 = vor.u32 %v1468, %v1469
        %v1472 = vsel %vm1444, %v1460, %v1471
        %v1474 = vshrl.u32 %v1215, 16
        %v1476 = vrot.slane %v1474, 7
        %v1477 = vshll.u32 %v1215, 16
        %v1479 = vor.u32 %v1476, %v1477
        %v1480 = vsel %vm1444, %v1468, %v1479
        %v1482 = vshrl.u32 %v1216, 16
        %v1484 = vrot.slane %v1482, 7
        %v1485 = vshll.u32 %v1216, 16
        %v1487 = vor.u32 %v1484, %v1485
        %v1488 = vsel %vm1444, %v1476, %v1487
        %v1490 = vshrl.u32 %v1217, 16
        %v1492 = vrot.slane %v1490, 7
        %v1493 = vshll.u32 %v1217, 16
        %v1495 = vor.u32 %v1492, %v1493
        %v1496 = vsel %vm1444, %v1484, %v1495
        %v1498 = vshrl.u32 %v1218, 16
        %v1500 = vrot.slane %v1498, 7
        %v1501 = vshll.u32 %v1218, 16
        %v1503 = vor.u32 %v1500, %v1501
        %v1504 = vsel %vm1444, %v1492, %v1503
        %v1506 = vshrl.u32 %v1219, 16
        %v1508 = vrot.slane %v1506, 7
        %v1509 = vshll.u32 %v1219, 16
        %v1511 = vor.u32 %v1508, %v1509
        %v1512 = vsel %vm1444, %v1500, %v1511
        %v1514 = vshrl.u32 %v1220, 16
        %v1516 = vrot.slane %v1514, 7
        %v1517 = vshll.u32 %v1220, 16
        %v1519 = vor.u32 %v1516, %v1517
        %v1520 = vsel %vm1444, %v1508, %v1519
        %v1522 = vshrl.u32 %v1221, 16
        %v1524 = vrot.slane %v1522, 7
        %v1525 = vshll.u32 %v1221, 16
        %v1527 = vor.u32 %v1524, %v1525
        %v1528 = vsel %vm1444, %v1516, %v1527
        %v1530 = vshrl.u32 %v1222, 16
        %v1532 = vrot.slane %v1530, 7
        %v1533 = vshll.u32 %v1222, 16
        %v1535 = vor.u32 %v1532, %v1533
        %v1536 = vsel %vm1444, %v1524, %v1535
        %v1538 = vshrl.u32 %v1223, 16
        %v1540 = vrot.slane %v1538, 7
        %v1541 = vshll.u32 %v1223, 16
        %v1543 = vor.u32 %v1540, %v1541
        %v1544 = vsel %vm1444, %v1532, %v1543
        %v1546 = vshrl.u32 %v1224, 16
        %v1548 = vrot.slane %v1546, 7
        %v1549 = vshll.u32 %v1224, 16
        %v1551 = vor.u32 %v1548, %v1549
        %v1552 = vsel %vm1444, %v1540, %v1551
        %v1554 = vshrl.u32 %v1225, 16
        %v1556 = vrot.slane %v1554, 7
        %v1557 = vshll.u32 %v1225, 16
        %v1559 = vor.u32 %v1556, %v1557
        %v1560 = vsel %vm1444, %v1548, %v1559
        %v1562 = vshrl.u32 %v1226, 16
        %v1564 = vrot.slane %v1562, 7
        %v1565 = vshll.u32 %v1226, 16
        %v1567 = vor.u32 %v1564, %v1565
        %v1568 = vsel %vm1444, %v1556, %v1567
        %v1570 = vshrl.u32 %v1227, 16
        %v1572 = vrot.slane %v1570, 7
        %v1573 = vshll.u32 %v1227, 16
        %v1575 = vor.u32 %v1572, %v1573
        %v1576 = vsel %vm1444, %v1564, %v1575
        %v1578 = vsel %vm724, %v1456, 0
        %v1581 = vsel %vm724, %v1464, 0
        %v1584 = vsel %vm724, %v1472, 0
        %v1587 = vsel %vm724, %v1480, 0
        %v1590 = vsel %vm724, %v1488, 0
        %v1593 = vsel %vm724, %v1496, 0
        %v1596 = vsel %vm724, %v1504, 0
        %v1599 = vsel %vm724, %v1512, 0
        %v1602 = vsel %vm724, %v1520, 0
        %v1605 = vsel %vm724, %v1528, 0
        %v1608 = vsel %vm724, %v1536, 0
        %v1611 = vsel %vm724, %v1544, 0
        %v1614 = vsel %vm724, %v1552, 0
        %v1617 = vsel %vm724, %v1560, 0
        %v1620 = vsel %vm724, %v1568, 0
        %v1623 = vsel %vm724, %v1576, 0
        %v1626 = vsel %vm1279, %v1228, 0
        %1628 = vmatprep.subr.bf16.mxu0 0
        %1629 = vmatpush1.bf16.msra.mxu0 %v1626
        %1630 = vmatprep.subr.bf16.mxu0 0
        %1631 = vmatpush1.bf16.msra.mxu0 0
        %1632 = vmatprep.subr.bf16.mxu0 0
        %1633 = vmatpush1.bf16.msra.mxu0 0
        %1634 = vmatprep.subr.bf16.mxu0 0
        %1635 = vmatpush1.bf16.msra.mxu0 0
        %1636 = vmatprep.subr.bf16.mxu0 0
        %1637 = vmatpush1.bf16.msra.mxu0 0
        %1638 = vmatprep.subr.bf16.mxu0 0
        %1639 = vmatpush1.bf16.msra.mxu0 0
        %1640 = vmatprep.subr.bf16.mxu0 0
        %1641 = vmatpush1.bf16.msra.mxu0 0
        %1642 = vmatprep.subr.bf16.mxu0 0
        %1643 = vmatpush1.bf16.msra.mxu0 0
        %1644 = vmatprep.subr.bf16.mxu0 0
        %1645 = vmatpush1.bf16.msra.mxu0 0
        %1646 = vmatprep.subr.bf16.mxu0 0
        %1647 = vmatpush1.bf16.msra.mxu0 0
        %1648 = vmatprep.subr.bf16.mxu0 0
        %1649 = vmatpush1.bf16.msra.mxu0 0
        %1650 = vmatprep.subr.bf16.mxu0 0
        %1651 = vmatpush1.bf16.msra.mxu0 0
        %1652 = vmatprep.subr.bf16.mxu0 0
        %1653 = vmatpush1.bf16.msra.mxu0 0
        %1654 = vmatprep.subr.bf16.mxu0 0
        %1655 = vmatpush1.bf16.msra.mxu0 0
        %1656 = vmatprep.subr.bf16.mxu0 0
        %1657 = vmatpush1.bf16.msra.mxu0 0
        %1658 = vmatprep.subr.bf16.mxu0 0
        %1659 = vmatpush1.bf16.msra.mxu0 0
        %1660 = vmatprep.mubr.bf16.mxu0 0
        %1661 = vmatmul.mubr.bf16.gmra.mrb[0].mxu0 %v1578
        %v1662 = vpop.f32.mrb[0].mxu0
        %v1663 = vadd.f32 %v1318, %v1662
        %v1664 = vpop.f32.mrb[0].mxu0
        %v1665 = vpop.f32.mrb[0].mxu0
        %v1666 = vadd.f32 %v1321, %v1665
        %v1667 = vpop.f32.mrb[0].mxu0
        %1668 = vmatprep.mubr.bf16.mxu0 0
        %1669 = vmatmul.mubr.bf16.gmra.mrb[0].mxu0 %v1581
        %v1670 = vpop.f32.mrb[0].mxu0
        %v1671 = vadd.f32 %v1326, %v1670
        %v1672 = vpop.f32.mrb[0].mxu0
        %v1673 = vpop.f32.mrb[0].mxu0
        %v1674 = vadd.f32 %v1329, %v1673
        %v1675 = vpop.f32.mrb[0].mxu0
        %1676 = vmatprep.mubr.bf16.mxu0 0
        %1677 = vmatmul.mubr.bf16.gmra.mrb[0].mxu0 %v1584
        %v1678 = vpop.f32.mrb[0].mxu0
        %v1679 = vadd.f32 %v1334, %v1678
        %v1680 = vpop.f32.mrb[0].mxu0
        %v1681 = vpop.f32.mrb[0].mxu0
        %v1682 = vadd.f32 %v1337, %v1681
        %v1683 = vpop.f32.mrb[0].mxu0
        %1684 = vmatprep.mubr.bf16.mxu0 0
        %1685 = vmatmul.mubr.bf16.gmra.mrb[0].mxu0 %v1587
        %v1686 = vpop.f32.mrb[0].mxu0
        %v1687 = vadd.f32 %v1342, %v1686
        %v1688 = vpop.f32.mrb[0].mxu0
        %v1689 = vpop.f32.mrb[0].mxu0
        %v1690 = vadd.f32 %v1345, %v1689
        %v1691 = vpop.f32.mrb[0].mxu0
        %1692 = vmatprep.mubr.bf16.mxu0 0
        %1693 = vmatmul.mubr.bf16.gmra.mrb[0].mxu0 %v1590
        %v1694 = vpop.f32.mrb[0].mxu0
        %v1695 = vadd.f32 %v1350, %v1694
        %v1696 = vpop.f32.mrb[0].mxu0
        %v1697 = vpop.f32.mrb[0].mxu0
        %v1698 = vadd.f32 %v1353, %v1697
        %v1699 = vpop.f32.mrb[0].mxu0
        %1700 = vmatprep.mubr.bf16.mxu0 0
        %1701 = vmatmul.mubr.bf16.gmra.mrb[0].mxu0 %v1593
        %v1702 = vpop.f32.mrb[0].mxu0
        %v1703 = vadd.f32 %v1358, %v1702
        %v1704 = vpop.f32.mrb[0].mxu0
        %v1705 = vpop.f32.mrb[0].mxu0
        %v1706 = vadd.f32 %v1361, %v1705
        %v1707 = vpop.f32.mrb[0].mxu0
        %1708 = vmatprep.mubr.bf16.mxu0 0
        %1709 = vmatmul.mubr.bf16.gmra.mrb[0].mxu0 %v1596
        %v1710 = vpop.f32.mrb[0].mxu0
        %v1711 = vadd.f32 %v1366, %v1710
        %v1712 = vpop.f32.mrb[0].mxu0
        %v1713 = vpop.f32.mrb[0].mxu0
        %v1714 = vadd.f32 %v1369, %v1713
        %v1715 = vpop.f32.mrb[0].mxu0
        %1716 = vmatprep.mubr.bf16.mxu0 0
        %1717 = vmatmul.mubr.bf16.gmra.mrb[0].mxu0 %v1599
        %v1718 = vpop.f32.mrb[0].mxu0
        %v1719 = vadd.f32 %v1374, %v1718
        %v1720 = vpop.f32.mrb[0].mxu0
        %v1721 = vpop.f32.mrb[0].mxu0
        %v1722 = vadd.f32 %v1377, %v1721
        %v1723 = vpop.f32.mrb[0].mxu0
        %1724 = vmatprep.mubr.bf16.mxu0 0
        %1725 = vmatmul.mubr.bf16.gmra.mrb[0].mxu0 %v1602
        %v1726 = vpop.f32.mrb[0].mxu0
        %v1727 = vadd.f32 %v1382, %v1726
        %v1728 = vpop.f32.mrb[0].mxu0
        %v1729 = vpop.f32.mrb[0].mxu0
        %v1730 = vadd.f32 %v1385, %v1729
        %v1731 = vpop.f32.mrb[0].mxu0
        %1732 = vmatprep.mubr.bf16.mxu0 0
        %1733 = vmatmul.mubr.bf16.gmra.mrb[0].mxu0 %v1605
        %v1734 = vpop.f32.mrb[0].mxu0
        %v1735 = vadd.f32 %v1390, %v1734
        %v1736 = vpop.f32.mrb[0].mxu0
        %v1737 = vpop.f32.mrb[0].mxu0
        %v1738 = vadd.f32 %v1393, %v1737
        %v1739 = vpop.f32.mrb[0].mxu0
        %1740 = vmatprep.mubr.bf16.mxu0 0
        %1741 = vmatmul.mubr.bf16.gmra.mrb[0].mxu0 %v1608
        %v1742 = vpop.f32.mrb[0].mxu0
        %v1743 = vadd.f32 %v1398, %v1742
        %v1744 = vpop.f32.mrb[0].mxu0
        %v1745 = vpop.f32.mrb[0].mxu0
        %v1746 = vadd.f32 %v1401, %v1745
        %v1747 = vpop.f32.mrb[0].mxu0
        %1748 = vmatprep.mubr.bf16.mxu0 0
        %1749 = vmatmul.mubr.bf16.gmra.mrb[0].mxu0 %v1611
        %v1750 = vpop.f32.mrb[0].mxu0
        %v1751 = vadd.f32 %v1406, %v1750
        %v1752 = vpop.f32.mrb[0].mxu0
        %v1753 = vpop.f32.mrb[0].mxu0
        %v1754 = vadd.f32 %v1409, %v1753
        %v1755 = vpop.f32.mrb[0].mxu0
        %1756 = vmatprep.mubr.bf16.mxu0 0
        %1757 = vmatmul.mubr.bf16.gmra.mrb[0].mxu0 %v1614
        %v1758 = vpop.f32.mrb[0].mxu0
        %v1759 = vadd.f32 %v1414, %v1758
        %v1760 = vpop.f32.mrb[0].mxu0
        %v1761 = vpop.f32.mrb[0].mxu0
        %v1762 = vadd.f32 %v1417, %v1761
        %v1763 = vpop.f32.mrb[0].mxu0
        %1764 = vmatprep.mubr.bf16.mxu0 0
        %1765 = vmatmul.mubr.bf16.gmra.mrb[0].mxu0 %v1617
        %v1766 = vpop.f32.mrb[0].mxu0
        %v1767 = vadd.f32 %v1422, %v1766
        %v1768 = vpop.f32.mrb[0].mxu0
        %v1769 = vpop.f32.mrb[0].mxu0
        %v1770 = vadd.f32 %v1425, %v1769
        %v1771 = vpop.f32.mrb[0].mxu0
        %1772 = vmatprep.mubr.bf16.mxu0 0
        %1773 = vmatmul.mubr.bf16.gmra.mrb[0].mxu0 %v1620
        %v1774 = vpop.f32.mrb[0].mxu0
        %v1775 = vadd.f32 %v1430, %v1774
        %v1776 = vpop.f32.mrb[0].mxu0
        %v1777 = vpop.f32.mrb[0].mxu0
        %v1778 = vadd.f32 %v1433, %v1777
        %v1779 = vpop.f32.mrb[0].mxu0
        %1780 = vmatprep.mubr.bf16.mxu0 0
        %1781 = vmatmul.mubr.bf16.gmra.mrb[0].mxu0 %v1623
        %v1782 = vpop.f32.mrb[0].mxu0
        %v1783 = vadd.f32 %v1438, %v1782
        %v1784 = vpop.f32.mrb[0].mxu0
        %v1785 = vpop.f32.mrb[0].mxu0
        %v1786 = vadd.f32 %v1441, %v1785
        %v1787 = vpop.f32.mrb[0].mxu0
        %1788 = vdwg.mxu0
        %v1789 = vld [vmem:[#allocation2 + $0x8] sm:$0xff]
        %v1790 = vld [vmem:[#allocation2 + $0x10] sm:$0xff]
        %v1791 = vld [vmem:[#allocation2 + $0x18] sm:$0xff]
        %v1792 = vld [vmem:[#allocation2 + $0x20] sm:$0xff]
        %v1793 = vld [vmem:[#allocation2 + $0x28] sm:$0xff]
        %v1794 = vld [vmem:[#allocation2 + $0x30] sm:$0xff]
        %v1795 = vld [vmem:[#allocation2 + $0x38] sm:$0xff]
        %v1796 = vld [vmem:[#allocation2 + $0x40] sm:$0xff]
        %v1797 = vld [vmem:[#allocation2 + $0x48] sm:$0xff]
        %v1798 = vld [vmem:[#allocation2 + $0x50] sm:$0xff]
        %v1799 = vld [vmem:[#allocation2 + $0x58] sm:$0xff]
        %v1800 = vld [vmem:[#allocation2 + $0x60] sm:$0xff]
        %v1801 = vld [vmem:[#allocation2 + $0x68] sm:$0xff]
        %v1802 = vld [vmem:[#allocation2 + $0x70] sm:$0xff]
        %v1803 = vld [vmem:[#allocation2 + $0x78] sm:$0xff]
        %v1804 = vld [vmem:[#allocation2 + $0x80] sm:$0xff]
        %v1805 = vld [vmem:[#allocation2 + $0x88] sm:$0x1]
        %v1806 = vsel %vm692, 1, 0
        %v1807 = vsel %vm693, 1, 0
        %v1808 = vsel %vm694, 1, 0
        %v1809 = vsel %vm695, 1, 0
        %v1810 = vsel %vm696, 1, 0
        %v1811 = vsel %vm697, 1, 0
        %v1812 = vsel %vm698, 1, 0
        %v1813 = vsel %vm699, 1, 0
        %v1814 = vsel %vm700, 1, 0
        %v1815 = vsel %vm701, 1, 0
        %v1816 = vsel %vm702, 1, 0
        %v1817 = vsel %vm703, 1, 0
        %v1818 = vsel %vm704, 1, 0
        %v1819 = vsel %vm705, 1, 0
        %v1820 = vsel %vm706, 1, 0
        %v1821 = vsel %vm707, 1, 0
        %v1822 = vsel %vm708, 1, 0
        %v1823 = vsel %vm709, 1, 0
        %v1824 = vsel %vm710, 1, 0
        %v1825 = vsel %vm711, 1, 0
        %v1826 = vsel %vm712, 1, 0
        %v1827 = vsel %vm713, 1, 0
        %v1828 = vsel %vm714, 1, 0
        %v1829 = vsel %vm715, 1, 0
        %v1830 = vsel %vm716, 1, 0
        %v1831 = vsel %vm717, 1, 0
        %v1832 = vsel %vm718, 1, 0
        %v1833 = vsel %vm719, 1, 0
        %v1834 = vsel %vm720, 1, 0
        %v1835 = vsel %vm721, 1, 0
        %v1836 = vsel %vm722, 1, 0
        %v1837 = vsel %vm723, 1, 0
        %vm1838 = vcmp.eq.s32.totalorder %v1806, 1
        %vm1839 = vcmp.eq.s32.totalorder %v1807, 1
        %vm1840 = vcmp.eq.s32.totalorder %v1808, 1
        %vm1841 = vcmp.eq.s32.totalorder %v1809, 1
        %vm1842 = vcmp.eq.s32.totalorder %v1810, 1
        %vm1843 = vcmp.eq.s32.totalorder %v1811, 1
        %vm1844 = vcmp.eq.s32.totalorder %v1812, 1
        %vm1845 = vcmp.eq.s32.totalorder %v1813, 1
        %vm1846 = vcmp.eq.s32.totalorder %v1814, 1
        %vm1847 = vcmp.eq.s32.totalorder %v1815, 1
        %vm1848 = vcmp.eq.s32.totalorder %v1816, 1
        %vm1849 = vcmp.eq.s32.totalorder %v1817, 1
        %vm1850 = vcmp.eq.s32.totalorder %v1818, 1
        %vm1851 = vcmp.eq.s32.totalorder %v1819, 1
        %vm1852 = vcmp.eq.s32.totalorder %v1820, 1
        %vm1853 = vcmp.eq.s32.totalorder %v1821, 1
        %vm1854 = vcmp.eq.s32.totalorder %v1822, 1
        %vm1855 = vcmp.eq.s32.totalorder %v1823, 1
        %vm1856 = vcmp.eq.s32.totalorder %v1824, 1
        %vm1857 = vcmp.eq.s32.totalorder %v1825, 1
        %vm1858 = vcmp.eq.s32.totalorder %v1826, 1
        %vm1859 = vcmp.eq.s32.totalorder %v1827, 1
        %vm1860 = vcmp.eq.s32.totalorder %v1828, 1
        %vm1861 = vcmp.eq.s32.totalorder %v1829, 1
        %vm1862 = vcmp.eq.s32.totalorder %v1830, 1
        %vm1863 = vcmp.eq.s32.totalorder %v1831, 1
        %vm1864 = vcmp.eq.s32.totalorder %v1832, 1
        %vm1865 = vcmp.eq.s32.totalorder %v1833, 1
        %vm1866 = vcmp.eq.s32.totalorder %v1834, 1
        %vm1867 = vcmp.eq.s32.totalorder %v1835, 1
        %vm1868 = vcmp.eq.s32.totalorder %v1836, 1
        %vm1869 = vcmp.eq.s32.totalorder %v1837, 1
        %vm1870 = vmpackc.low %vm1838, %vm1838
        %vm1871 = vmpackc.low %vm1839, %vm1839
        %vm1872 = vmpackc.low %vm1840, %vm1840
        %vm1873 = vmpackc.low %vm1841, %vm1841
        %vm1874 = vmpackc.low %vm1842, %vm1842
        %vm1875 = vmpackc.low %vm1843, %vm1843
        %vm1876 = vmpackc.low %vm1844, %vm1844
        %vm1877 = vmpackc.low %vm1845, %vm1845
        %vm1878 = vmpackc.low %vm1846, %vm1846
        %vm1879 = vmpackc.low %vm1847, %vm1847
        %vm1880 = vmpackc.low %vm1848, %vm1848
        %vm1881 = vmpackc.low %vm1849, %vm1849
        %vm1882 = vmpackc.low %vm1850, %vm1850
        %vm1883 = vmpackc.low %vm1851, %vm1851
        %vm1884 = vmpackc.low %vm1852, %vm1852
        %vm1885 = vmpackc.low %vm1853, %vm1853
        %vm1886 = vmpackc.low %vm1854, %vm1854
        %vm1887 = vmpackc.low %vm1855, %vm1855
        %vm1888 = vmpackc.low %vm1856, %vm1856
        %vm1889 = vmpackc.low %vm1857, %vm1857
        %vm1890 = vmpackc.low %vm1858, %vm1858
        %vm1891 = vmpackc.low %vm1859, %vm1859
        %vm1892 = vmpackc.low %vm1860, %vm1860
        %vm1893 = vmpackc.low %vm1861, %vm1861
        %vm1894 = vmpackc.low %vm1862, %vm1862
        %vm1895 = vmpackc.low %vm1863, %vm1863
        %vm1896 = vmpackc.low %vm1864, %vm1864
        %vm1897 = vmpackc.low %vm1865, %vm1865
        %vm1898 = vmpackc.low %vm1866, %vm1866
        %vm1899 = vmpackc.low %vm1867, %vm1867
        %vm1900 = vmpackc.low %vm1868, %vm1868
        %vm1901 = vmpackc.low %vm1869, %vm1869
        %v1902 = vsel %vm1870, 65537, 0
        %v1903 = vsel %vm1871, 65537, 0
        %v1904 = vsel %vm1872, 65537, 0
        %v1905 = vsel %vm1873, 65537, 0
        %v1906 = vsel %vm1874, 65537, 0
        %v1907 = vsel %vm1875, 65537, 0
        %v1908 = vsel %vm1876, 65537, 0
        %v1909 = vsel %vm1877, 65537, 0
        %v1910 = vsel %vm1878, 65537, 0
        %v1911 = vsel %vm1879, 65537, 0
        %v1912 = vsel %vm1880, 65537, 0
        %v1913 = vsel %vm1881, 65537, 0
        %v1914 = vsel %vm1882, 65537, 0
        %v1915 = vsel %vm1883, 65537, 0
        %v1916 = vsel %vm1884, 65537, 0
        %v1917 = vsel %vm1885, 65537, 0
        %v1918 = vsel %vm1886, 65537, 0
        %v1919 = vsel %vm1887, 65537, 0
        %v1920 = vsel %vm1888, 65537, 0
        %v1921 = vsel %vm1889, 65537, 0
        %v1922 = vsel %vm1890, 65537, 0
        %v1923 = vsel %vm1891, 65537, 0
        %v1924 = vsel %vm1892, 65537, 0
        %v1925 = vsel %vm1893, 65537, 0
        %v1926 = vsel %vm1894, 65537, 0
        %v1927 = vsel %vm1895, 65537, 0
        %v1928 = vsel %vm1896, 65537, 0
        %v1929 = vsel %vm1897, 65537, 0
        %v1930 = vsel %vm1898, 65537, 0
        %v1931 = vsel %vm1899, 65537, 0
        %v1932 = vsel %vm1900, 65537, 0
        %v1933 = vsel %vm1901, 65537, 0
        %v1934 = vunpack.c.l.b16 %v1902
        %v1935 = vunpack.c.l.b16 %v1903
        %v1936 = vunpack.c.l.b16 %v1904
        %v1937 = vunpack.c.l.b16 %v1905
        %v1938 = vunpack.c.l.b16 %v1906
        %v1939 = vunpack.c.l.b16 %v1907
        %v1940 = vunpack.c.l.b16 %v1908
        %v1941 = vunpack.c.l.b16 %v1909
        %v1942 = vunpack.c.l.b16 %v1910
        %v1943 = vunpack.c.l.b16 %v1911
        %v1944 = vunpack.c.l.b16 %v1912
        %v1945 = vunpack.c.l.b16 %v1913
        %v1946 = vunpack.c.l.b16 %v1914
        %v1947 = vunpack.c.l.b16 %v1915
        %v1948 = vunpack.c.l.b16 %v1916
        %v1949 = vunpack.c.l.b16 %v1917
        %v1950 = vunpack.c.l.b16 %v1918
        %v1951 = vunpack.c.l.b16 %v1919
        %v1952 = vunpack.c.l.b16 %v1920
        %v1953 = vunpack.c.l.b16 %v1921
        %v1954 = vunpack.c.l.b16 %v1922
        %v1955 = vunpack.c.l.b16 %v1923
        %v1956 = vunpack.c.l.b16 %v1924
        %v1957 = vunpack.c.l.b16 %v1925
        %v1958 = vunpack.c.l.b16 %v1926
        %v1959 = vunpack.c.l.b16 %v1927
        %v1960 = vunpack.c.l.b16 %v1928
        %v1961 = vunpack.c.l.b16 %v1929
        %v1962 = vunpack.c.l.b16 %v1930
        %v1963 = vunpack.c.l.b16 %v1931
        %v1964 = vunpack.c.l.b16 %v1932
        %v1965 = vunpack.c.l.b16 %v1933
        %v1966 = vpack.c.b16 %v1935, %v1934
        %v1967 = vpack.c.b16 %v1937, %v1936
        %v1968 = vpack.c.b16 %v1939, %v1938
        %v1969 = vpack.c.b16 %v1941, %v1940
        %v1970 = vpack.c.b16 %v1943, %v1942
        %v1971 = vpack.c.b16 %v1945, %v1944
        %v1972 = vpack.c.b16 %v1947, %v1946
        %v1973 = vpack.c.b16 %v1949, %v1948
        %v1974 = vpack.c.b16 %v1951, %v1950
        %v1975 = vpack.c.b16 %v1953, %v1952
        %v1976 = vpack.c.b16 %v1955, %v1954
        %v1977 = vpack.c.b16 %v1957, %v1956
        %v1978 = vpack.c.b16 %v1959, %v1958
        %v1979 = vpack.c.b16 %v1961, %v1960
        %v1980 = vpack.c.b16 %v1963, %v1962
        %v1981 = vpack.c.b16 %v1965, %v1964
        %v1983 = vshrl.u32 %v1966, 16
        %v1985 = vrot.slane %v1983, 7
        %v1986 = vshll.u32 %v1966, 16
        %v1988 = vor.u32 %v1985, %v1986
        %v1990 = vshrl.u32 %v1967, 16
        %v1992 = vrot.slane %v1990, 7
        %v1993 = vshll.u32 %v1967, 16
        %v1995 = vor.u32 %v1992, %v1993
        %v1996 = vsel %vm1444, %v1985, %v1995
        %v1998 = vshrl.u32 %v1968, 16
        %v2000 = vrot.slane %v1998, 7
        %v2001 = vshll.u32 %v1968, 16
        %v2003 = vor.u32 %v2000, %v2001
        %v2004 = vsel %vm1444, %v1992, %v2003
        %v2006 = vshrl.u32 %v1969, 16
        %v2008 = vrot.slane %v2006, 7
        %v2009 = vshll.u32 %v1969, 16
        %v2011 = vor.u32 %v2008, %v2009
        %v2012 = vsel %vm1444, %v2000, %v2011
        %v2014 = vshrl.u32 %v1970, 16
        %v2016 = vrot.slane %v2014, 7
        %v2017 = vshll.u32 %v1970, 16
        %v2019 = vor.u32 %v2016, %v2017
        %v2020 = vsel %vm1444, %v2008, %v2019
        %v2022 = vshrl.u32 %v1971, 16
        %v2024 = vrot.slane %v2022, 7
        %v2025 = vshll.u32 %v1971, 16
        %v2027 = vor.u32 %v2024, %v2025
        %v2028 = vsel %vm1444, %v2016, %v2027
        %v2030 = vshrl.u32 %v1972, 16
        %v2032 = vrot.slane %v2030, 7
        %v2033 = vshll.u32 %v1972, 16
        %v2035 = vor.u32 %v2032, %v2033
        %v2036 = vsel %vm1444, %v2024, %v2035
        %v2038 = vshrl.u32 %v1973, 16
        %v2040 = vrot.slane %v2038, 7
        %v2041 = vshll.u32 %v1973, 16
        %v2043 = vor.u32 %v2040, %v2041
        %v2044 = vsel %vm1444, %v2032, %v2043
        %v2046 = vshrl.u32 %v1974, 16
        %v2048 = vrot.slane %v2046, 7
        %v2049 = vshll.u32 %v1974, 16
        %v2051 = vor.u32 %v2048, %v2049
        %v2052 = vsel %vm1444, %v2040, %v2051
        %v2054 = vshrl.u32 %v1975, 16
        %v2056 = vrot.slane %v2054, 7
        %v2057 = vshll.u32 %v1975, 16
        %v2059 = vor.u32 %v2056, %v2057
        %v2060 = vsel %vm1444, %v2048, %v2059
        %v2062 = vshrl.u32 %v1976, 16
        %v2064 = vrot.slane %v2062, 7
        %v2065 = vshll.u32 %v1976, 16
        %v2067 = vor.u32 %v2064, %v2065
        %v2068 = vsel %vm1444, %v2056, %v2067
        %v2070 = vshrl.u32 %v1977, 16
        %v2072 = vrot.slane %v2070, 7
        %v2073 = vshll.u32 %v1977, 16
        %v2075 = vor.u32 %v2072, %v2073
        %v2076 = vsel %vm1444, %v2064, %v2075
        %v2078 = vshrl.u32 %v1978, 16
        %v2080 = vrot.slane %v2078, 7
        %v2081 = vshll.u32 %v1978, 16
        %v2083 = vor.u32 %v2080, %v2081
        %v2084 = vsel %vm1444, %v2072, %v2083
        %v2086 = vshrl.u32 %v1979, 16
        %v2088 = vrot.slane %v2086, 7
        %v2089 = vshll.u32 %v1979, 16
        %v2091 = vor.u32 %v2088, %v2089
        %v2092 = vsel %vm1444, %v2080, %v2091
        %v2094 = vshrl.u32 %v1980, 16
        %v2096 = vrot.slane %v2094, 7
        %v2097 = vshll.u32 %v1980, 16
        %v2099 = vor.u32 %v2096, %v2097
        %v2100 = vsel %vm1444, %v2088, %v2099
        %v2102 = vshrl.u32 %v1981, 16
        %v2104 = vrot.slane %v2102, 7
        %v2105 = vshll.u32 %v1981, 16
        %v2107 = vor.u32 %v2104, %v2105
        %v2108 = vsel %vm1444, %v2096, %v2107
        %vm2109 = vcmp.ne.s16.totalorder %v1988, 0
        %vm2110 = vcmp.ne.s16.totalorder %v1996, 0
        %vm2111 = vcmp.ne.s16.totalorder %v2004, 0
        %vm2112 = vcmp.ne.s16.totalorder %v2012, 0
        %vm2113 = vcmp.ne.s16.totalorder %v2020, 0
        %vm2114 = vcmp.ne.s16.totalorder %v2028, 0
        %vm2115 = vcmp.ne.s16.totalorder %v2036, 0
        %vm2116 = vcmp.ne.s16.totalorder %v2044, 0
        %vm2117 = vcmp.ne.s16.totalorder %v2052, 0
        %vm2118 = vcmp.ne.s16.totalorder %v2060, 0
        %vm2119 = vcmp.ne.s16.totalorder %v2068, 0
        %vm2120 = vcmp.ne.s16.totalorder %v2076, 0
        %vm2121 = vcmp.ne.s16.totalorder %v2084, 0
        %vm2122 = vcmp.ne.s16.totalorder %v2092, 0
        %vm2123 = vcmp.ne.s16.totalorder %v2100, 0
        %vm2124 = vcmp.ne.s16.totalorder %v2108, 0
        %vm2125 = vcmp.ne.s16.totalorder %v2104, 0
        %v2126 = vsel %vm2109, %v1789, 0
        %v2127 = vsel %vm2110, %v1790, 0
        %v2128 = vsel %vm2111, %v1791, 0
        %v2129 = vsel %vm2112, %v1792, 0
        %v2130 = vsel %vm2113, %v1793, 0
        %v2131 = vsel %vm2114, %v1794, 0
        %v2132 = vsel %vm2115, %v1795, 0
        %v2133 = vsel %vm2116, %v1796, 0
        %v2134 = vsel %vm2117, %v1797, 0
        %v2135 = vsel %vm2118, %v1798, 0
        %v2136 = vsel %vm2119, %v1799, 0
        %v2137 = vsel %vm2120, %v1800, 0
        %v2138 = vsel %vm2121, %v1801, 0
        %v2139 = vsel %vm2122, %v1802, 0
        %v2140 = vsel %vm2123, %v1803, 0
        %v2141 = vsel %vm2124, %v1804, 0
        %v2142 = vsel %vm2125, %v1805, 0
        %s2143 = scalar_lea.vmem %s1, 4
        %v2144 = vld [vmem:[%s2143] sm:$0x3]
        %v2146 = vshrl.u32 %v2126, 16
        %v2148 = vshll.u32 %v2126, 16
        %v2150 = vrot.slane %v2148, 1
        %v2151 = vor.u32 %v2146, %v2150
        %v2153 = vshll.u32 %v2127, 16
        %v2155 = vrot.slane %v2153, 1
        %v2156 = vsel %vm1066, %v2151, %v2155
        %v2157 = vshrl.u32 %v2127, 16
        %v2159 = vor.u32 %v2157, %v2155
        %v2161 = vshll.u32 %v2128, 16
        %v2163 = vrot.slane %v2161, 1
        %v2164 = vsel %vm1066, %v2159, %v2163
        %v2165 = vshrl.u32 %v2128, 16
        %v2167 = vor.u32 %v2165, %v2163
        %v2169 = vshll.u32 %v2129, 16
        %v2171 = vrot.slane %v2169, 1
        %v2172 = vsel %vm1066, %v2167, %v2171
        %v2173 = vshrl.u32 %v2129, 16
        %v2175 = vor.u32 %v2173, %v2171
        %v2177 = vshll.u32 %v2130, 16
        %v2179 = vrot.slane %v2177, 1
        %v2180 = vsel %vm1066, %v2175, %v2179
        %v2181 = vshrl.u32 %v2130, 16
        %v2183 = vor.u32 %v2181, %v2179
        %v2185 = vshll.u32 %v2131, 16
        %v2187 = vrot.slane %v2185, 1
        %v2188 = vsel %vm1066, %v2183, %v2187
        %v2189 = vshrl.u32 %v2131, 16
        %v2191 = vor.u32 %v2189, %v2187
        %v2193 = vshll.u32 %v2132, 16
        %v2195 = vrot.slane %v2193, 1
        %v2196 = vsel %vm1066, %v2191, %v2195
        %v2197 = vshrl.u32 %v2132, 16
        %v2199 = vor.u32 %v2197, %v2195
        %v2201 = vshll.u32 %v2133, 16
        %v2203 = vrot.slane %v2201, 1
        %v2204 = vsel %vm1066, %v2199, %v2203
        %v2205 = vshrl.u32 %v2133, 16
        %v2207 = vor.u32 %v2205, %v2203
        %v2209 = vshll.u32 %v2134, 16
        %v2211 = vrot.slane %v2209, 1
        %v2212 = vsel %vm1066, %v2207, %v2211
        %v2213 = vshrl.u32 %v2134, 16
        %v2215 = vor.u32 %v2213, %v2211
        %v2217 = vshll.u32 %v2135, 16
        %v2219 = vrot.slane %v2217, 1
        %v2220 = vsel %vm1066, %v2215, %v2219
        %v2221 = vshrl.u32 %v2135, 16
        %v2223 = vor.u32 %v2221, %v2219
        %v2225 = vshll.u32 %v2136, 16
        %v2227 = vrot.slane %v2225, 1
        %v2228 = vsel %vm1066, %v2223, %v2227
        %v2229 = vshrl.u32 %v2136, 16
        %v2231 = vor.u32 %v2229, %v2227
        %v2233 = vshll.u32 %v2137, 16
        %v2235 = vrot.slane %v2233, 1
        %v2236 = vsel %vm1066, %v2231, %v2235
        %v2237 = vshrl.u32 %v2137, 16
        %v2239 = vor.u32 %v2237, %v2235
        %v2241 = vshll.u32 %v2138, 16
        %v2243 = vrot.slane %v2241, 1
        %v2244 = vsel %vm1066, %v2239, %v2243
        %v2245 = vshrl.u32 %v2138, 16
        %v2247 = vor.u32 %v2245, %v2243
        %v2249 = vshll.u32 %v2139, 16
        %v2251 = vrot.slane %v2249, 1
        %v2252 = vsel %vm1066, %v2247, %v2251
        %v2253 = vshrl.u32 %v2139, 16
        %v2255 = vor.u32 %v2253, %v2251
        %v2257 = vshll.u32 %v2140, 16
        %v2259 = vrot.slane %v2257, 1
        %v2260 = vsel %vm1066, %v2255, %v2259
        %v2261 = vshrl.u32 %v2140, 16
        %v2263 = vor.u32 %v2261, %v2259
        %v2265 = vshll.u32 %v2141, 16
        %v2267 = vrot.slane %v2265, 1
        %v2268 = vsel %vm1066, %v2263, %v2267
        %v2269 = vshrl.u32 %v2141, 16
        %v2271 = vor.u32 %v2269, %v2267
        %v2273 = vshll.u32 %v2142, 16
        %v2275 = vrot.slane %v2273, 1
        %v2276 = vsel %vm1066, %v2271, %v2275
        %v2278 = vsel %vm724, %v2156, 0
        %v2281 = vsel %vm724, %v2164, 0
        %v2284 = vsel %vm724, %v2172, 0
        %v2287 = vsel %vm724, %v2180, 0
        %v2290 = vsel %vm724, %v2188, 0
        %v2293 = vsel %vm724, %v2196, 0
        %v2296 = vsel %vm724, %v2204, 0
        %v2299 = vsel %vm724, %v2212, 0
        %v2302 = vsel %vm724, %v2220, 0
        %v2305 = vsel %vm724, %v2228, 0
        %v2308 = vsel %vm724, %v2236, 0
        %v2311 = vsel %vm724, %v2244, 0
        %v2314 = vsel %vm724, %v2252, 0
        %v2317 = vsel %vm724, %v2260, 0
        %v2320 = vsel %vm724, %v2268, 0
        %v2323 = vsel %vm724, %v2276, 0
        %v2326 = vsel %vm1279, %v2144, 0
        %2328 = vmatprep.subr.bf16.mxu0 0
        %2329 = vmatpush1.bf16.msra.mxu0 %v2326
        %2330 = vmatprep.subr.bf16.mxu0 0
        %2331 = vmatpush1.bf16.msra.mxu0 0
        %2332 = vmatprep.subr.bf16.mxu0 0
        %2333 = vmatpush1.bf16.msra.mxu0 0
        %2334 = vmatprep.subr.bf16.mxu0 0
        %2335 = vmatpush1.bf16.msra.mxu0 0
        %2336 = vmatprep.subr.bf16.mxu0 0
        %2337 = vmatpush1.bf16.msra.mxu0 0
        %2338 = vmatprep.subr.bf16.mxu0 0
        %2339 = vmatpush1.bf16.msra.mxu0 0
        %2340 = vmatprep.subr.bf16.mxu0 0
        %2341 = vmatpush1.bf16.msra.mxu0 0
        %2342 = vmatprep.subr.bf16.mxu0 0
        %2343 = vmatpush1.bf16.msra.mxu0 0
        %2344 = vmatprep.subr.bf16.mxu0 0
        %2345 = vmatpush1.bf16.msra.mxu0 0
        %2346 = vmatprep.subr.bf16.mxu0 0
        %2347 = vmatpush1.bf16.msra.mxu0 0
        %2348 = vmatprep.subr.bf16.mxu0 0
        %2349 = vmatpush1.bf16.msra.mxu0 0
        %2350 = vmatprep.subr.bf16.mxu0 0
        %2351 = vmatpush1.bf16.msra.mxu0 0
        %2352 = vmatprep.subr.bf16.mxu0 0
        %2353 = vmatpush1.bf16.msra.mxu0 0
        %2354 = vmatprep.subr.bf16.mxu0 0
        %2355 = vmatpush1.bf16.msra.mxu0 0
        %2356 = vmatprep.subr.bf16.mxu0 0
        %2357 = vmatpush1.bf16.msra.mxu0 0
        %2358 = vmatprep.subr.bf16.mxu0 0
        %2359 = vmatpush1.bf16.msra.mxu0 0
        %2360 = vmatprep.mubr.bf16.mxu0 0
        %2361 = vmatmul.mubr.bf16.gmra.mrb[0].mxu0 %v2278
        %v2362 = vpop.f32.mrb[0].mxu0
        %v2363 = vadd.f32 0.0, %v2362
        %v2364 = vpop.f32.mrb[0].mxu0
        %v2365 = vpop.f32.mrb[0].mxu0
        %v2366 = vadd.f32 0.0, %v2365
        %v2367 = vpop.f32.mrb[0].mxu0
        %2368 = vmatprep.mubr.bf16.mxu0 0
        %2369 = vmatmul.mubr.bf16.gmra.mrb[0].mxu0 %v2281
        %v2370 = vpop.f32.mrb[0].mxu0
        %v2371 = vadd.f32 0.0, %v2370
        %v2372 = vpop.f32.mrb[0].mxu0
        %v2373 = vpop.f32.mrb[0].mxu0
        %v2374 = vadd.f32 0.0, %v2373
        %v2375 = vpop.f32.mrb[0].mxu0
        %2376 = vmatprep.mubr.bf16.mxu0 0
        %2377 = vmatmul.mubr.bf16.gmra.mrb[0].mxu0 %v2284
        %v2378 = vpop.f32.mrb[0].mxu0
        %v2379 = vadd.f32 0.0, %v2378
        %v2380 = vpop.f32.mrb[0].mxu0
        %v2381 = vpop.f32.mrb[0].mxu0
        %v2382 = vadd.f32 0.0, %v2381
        %v2383 = vpop.f32.mrb[0].mxu0
        %2384 = vmatprep.mubr.bf16.mxu0 0
        %2385 = vmatmul.mubr.bf16.gmra.mrb[0].mxu0 %v2287
        %v2386 = vpop.f32.mrb[0].mxu0
        %v2387 = vadd.f32 0.0, %v2386
        %v2388 = vpop.f32.mrb[0].mxu0
        %v2389 = vpop.f32.mrb[0].mxu0
        %v2390 = vadd.f32 0.0, %v2389
        %v2391 = vpop.f32.mrb[0].mxu0
        %2392 = vmatprep.mubr.bf16.mxu0 0
        %2393 = vmatmul.mubr.bf16.gmra.mrb[0].mxu0 %v2290
        %v2394 = vpop.f32.mrb[0].mxu0
        %v2395 = vadd.f32 0.0, %v2394
        %v2396 = vpop.f32.mrb[0].mxu0
        %v2397 = vpop.f32.mrb[0].mxu0
        %v2398 = vadd.f32 0.0, %v2397
        %v2399 = vpop.f32.mrb[0].mxu0
        %2400 = vmatprep.mubr.bf16.mxu0 0
        %2401 = vmatmul.mubr.bf16.gmra.mrb[0].mxu0 %v2293
        %v2402 = vpop.f32.mrb[0].mxu0
        %v2403 = vadd.f32 0.0, %v2402
        %v2404 = vpop.f32.mrb[0].mxu0
        %v2405 = vpop.f32.mrb[0].mxu0
        %v2406 = vadd.f32 0.0, %v2405
        %v2407 = vpop.f32.mrb[0].mxu0
        %2408 = vmatprep.mubr.bf16.mxu0 0
        %2409 = vmatmul.mubr.bf16.gmra.mrb[0].mxu0 %v2296
        %v2410 = vpop.f32.mrb[0].mxu0
        %v2411 = vadd.f32 0.0, %v2410
        %v2412 = vpop.f32.mrb[0].mxu0
        %v2413 = vpop.f32.mrb[0].mxu0
        %v2414 = vadd.f32 0.0, %v2413
        %v2415 = vpop.f32.mrb[0].mxu0
        %2416 = vmatprep.mubr.bf16.mxu0 0
        %2417 = vmatmul.mubr.bf16.gmra.mrb[0].mxu0 %v2299
        %v2418 = vpop.f32.mrb[0].mxu0
        %v2419 = vadd.f32 0.0, %v2418
        %v2420 = vpop.f32.mrb[0].mxu0
        %v2421 = vpop.f32.mrb[0].mxu0
        %v2422 = vadd.f32 0.0, %v2421
        %v2423 = vpop.f32.mrb[0].mxu0
        %2424 = vmatprep.mubr.bf16.mxu0 0
        %2425 = vmatmul.mubr.bf16.gmra.mrb[0].mxu0 %v2302
        %v2426 = vpop.f32.mrb[0].mxu0
        %v2427 = vadd.f32 0.0, %v2426
        %v2428 = vpop.f32.mrb[0].mxu0
        %v2429 = vpop.f32.mrb[0].mxu0
        %v2430 = vadd.f32 0.0, %v2429
        %v2431 = vpop.f32.mrb[0].mxu0
        %2432 = vmatprep.mubr.bf16.mxu0 0
        %2433 = vmatmul.mubr.bf16.gmra.mrb[0].mxu0 %v2305
        %v2434 = vpop.f32.mrb[0].mxu0
        %v2435 = vadd.f32 0.0, %v2434
        %v2436 = vpop.f32.mrb[0].mxu0
        %v2437 = vpop.f32.mrb[0].mxu0
        %v2438 = vadd.f32 0.0, %v2437
        %v2439 = vpop.f32.mrb[0].mxu0
        %2440 = vmatprep.mubr.bf16.mxu0 0
        %2441 = vmatmul.mubr.bf16.gmra.mrb[0].mxu0 %v2308
        %v2442 = vpop.f32.mrb[0].mxu0
        %v2443 = vadd.f32 0.0, %v2442
        %v2444 = vpop.f32.mrb[0].mxu0
        %v2445 = vpop.f32.mrb[0].mxu0
        %v2446 = vadd.f32 0.0, %v2445
        %v2447 = vpop.f32.mrb[0].mxu0
        %2448 = vmatprep.mubr.bf16.mxu0 0
        %2449 = vmatmul.mubr.bf16.gmra.mrb[0].mxu0 %v2311
        %v2450 = vpop.f32.mrb[0].mxu0
        %v2451 = vadd.f32 0.0, %v2450
        %v2452 = vpop.f32.mrb[0].mxu0
        %v2453 = vpop.f32.mrb[0].mxu0
        %v2454 = vadd.f32 0.0, %v2453
        %v2455 = vpop.f32.mrb[0].mxu0
        %2456 = vmatprep.mubr.bf16.mxu0 0
        %2457 = vmatmul.mubr.bf16.gmra.mrb[0].mxu0 %v2314
        %v2458 = vpop.f32.mrb[0].mxu0
        %v2459 = vadd.f32 0.0, %v2458
        %v2460 = vpop.f32.mrb[0].mxu0
        %v2461 = vpop.f32.mrb[0].mxu0
        %v2462 = vadd.f32 0.0, %v2461
        %v2463 = vpop.f32.mrb[0].mxu0
        %2464 = vmatprep.mubr.bf16.mxu0 0
        %2465 = vmatmul.mubr.bf16.gmra.mrb[0].mxu0 %v2317
        %v2466 = vpop.f32.mrb[0].mxu0
        %v2467 = vadd.f32 0.0, %v2466
        %v2468 = vpop.f32.mrb[0].mxu0
        %v2469 = vpop.f32.mrb[0].mxu0
        %v2470 = vadd.f32 0.0, %v2469
        %v2471 = vpop.f32.mrb[0].mxu0
        %2472 = vmatprep.mubr.bf16.mxu0 0
        %2473 = vmatmul.mubr.bf16.gmra.mrb[0].mxu0 %v2320
        %v2474 = vpop.f32.mrb[0].mxu0
        %v2475 = vadd.f32 0.0, %v2474
        %v2476 = vpop.f32.mrb[0].mxu0
        %v2477 = vpop.f32.mrb[0].mxu0
        %v2478 = vadd.f32 0.0, %v2477
        %v2479 = vpop.f32.mrb[0].mxu0
        %2480 = vmatprep.mubr.bf16.mxu0 0
        %2481 = vmatmul.mubr.bf16.gmra.mrb[0].mxu0 %v2323
        %v2482 = vpop.f32.mrb[0].mxu0
        %v2483 = vadd.f32 0.0, %v2482
        %v2484 = vpop.f32.mrb[0].mxu0
        %v2485 = vpop.f32.mrb[0].mxu0
        %v2486 = vadd.f32 0.0, %v2485
        %v2487 = vpop.f32.mrb[0].mxu0
        %2488 = vdwg.mxu0
        %v2489 = vadd.f32 %v1663, %v2363
        %v2490 = vadd.f32 %v1666, %v2366
        %v2491 = vadd.f32 %v1671, %v2371
        %v2492 = vadd.f32 %v1674, %v2374
        %v2493 = vadd.f32 %v1679, %v2379
        %v2494 = vadd.f32 %v1682, %v2382
        %v2495 = vadd.f32 %v1687, %v2387
        %v2496 = vadd.f32 %v1690, %v2390
        %v2497 = vadd.f32 %v1695, %v2395
        %v2498 = vadd.f32 %v1698, %v2398
        %v2499 = vadd.f32 %v1703, %v2403
        %v2500 = vadd.f32 %v1706, %v2406
        %v2501 = vadd.f32 %v1711, %v2411
        %v2502 = vadd.f32 %v1714, %v2414
        %v2503 = vadd.f32 %v1719, %v2419
        %v2504 = vadd.f32 %v1722, %v2422
        %v2505 = vadd.f32 %v1727, %v2427
        %v2506 = vadd.f32 %v1730, %v2430
        %v2507 = vadd.f32 %v1735, %v2435
        %v2508 = vadd.f32 %v1738, %v2438
        %v2509 = vadd.f32 %v1743, %v2443
        %v2510 = vadd.f32 %v1746, %v2446
        %v2511 = vadd.f32 %v1751, %v2451
        %v2512 = vadd.f32 %v1754, %v2454
        %v2513 = vadd.f32 %v1759, %v2459
        %v2514 = vadd.f32 %v1762, %v2462
        %v2515 = vadd.f32 %v1767, %v2467
        %v2516 = vadd.f32 %v1770, %v2470
        %v2517 = vadd.f32 %v1775, %v2475
        %v2518 = vadd.f32 %v1778, %v2478
        %v2519 = vadd.f32 %v1783, %v2483
        %v2520 = vadd.f32 %v1786, %v2486
        %v2521 = vld [vmem:[#allocation2 + $0x8] sm:$0x80]
        %v2522 = vld [vmem:[#allocation2 + $0x88] sm:$0xff]
        %v2523 = vsel %vm1194, %v2521, 0
        %v2524 = vsel %vm1195, %v1790, 0
        %v2525 = vsel %vm1196, %v1791, 0
        %v2526 = vsel %vm1197, %v1792, 0
        %v2527 = vsel %vm1198, %v1793, 0
        %v2528 = vsel %vm1199, %v1794, 0
        %v2529 = vsel %vm1200, %v1795, 0
        %v2530 = vsel %vm1201, %v1796, 0
        %v2531 = vsel %vm1202, %v1797, 0
        %v2532 = vsel %vm1203, %v1798, 0
        %v2533 = vsel %vm1204, %v1799, 0
        %v2534 = vsel %vm1205, %v1800, 0
        %v2535 = vsel %vm1206, %v1801, 0
        %v2536 = vsel %vm1207, %v1802, 0
        %v2537 = vsel %vm1208, %v1803, 0
        %v2538 = vsel %vm1209, %v1804, 0
        %v2539 = vsel %vm1210, %v2522, 0
        %s2540 = scalar_lea.vmem %s1, 6
        %v2541 = vld [vmem:[%s2540] sm:$0x3]
        %v2543 = vshrl.u32 %v2523, 16
        %v2545 = vrot.slane %v2543, 7
        %v2547 = vshrl.u32 %v2524, 16
        %v2549 = vrot.slane %v2547, 7
        %v2550 = vshll.u32 %v2524, 16
        %v2552 = vor.u32 %v2549, %v2550
        %v2553 = vsel %vm1444, %v2545, %v2552
        %v2555 = vshrl.u32 %v2525, 16
        %v2557 = vrot.slane %v2555, 7
        %v2558 = vshll.u32 %v2525, 16
        %v2560 = vor.u32 %v2557, %v2558
        %v2561 = vsel %vm1444, %v2549, %v2560
        %v2563 = vshrl.u32 %v2526, 16
        %v2565 = vrot.slane %v2563, 7
        %v2566 = vshll.u32 %v2526, 16
        %v2568 = vor.u32 %v2565, %v2566
        %v2569 = vsel %vm1444, %v2557, %v2568
        %v2571 = vshrl.u32 %v2527, 16
        %v2573 = vrot.slane %v2571, 7
        %v2574 = vshll.u32 %v2527, 16
        %v2576 = vor.u32 %v2573, %v2574
        %v2577 = vsel %vm1444, %v2565, %v2576
        %v2579 = vshrl.u32 %v2528, 16
        %v2581 = vrot.slane %v2579, 7
        %v2582 = vshll.u32 %v2528, 16
        %v2584 = vor.u32 %v2581, %v2582
        %v2585 = vsel %vm1444, %v2573, %v2584
        %v2587 = vshrl.u32 %v2529, 16
        %v2589 = vrot.slane %v2587, 7
        %v2590 = vshll.u32 %v2529, 16
        %v2592 = vor.u32 %v2589, %v2590
        %v2593 = vsel %vm1444, %v2581, %v2592
        %v2595 = vshrl.u32 %v2530, 16
        %v2597 = vrot.slane %v2595, 7
        %v2598 = vshll.u32 %v2530, 16
        %v2600 = vor.u32 %v2597, %v2598
        %v2601 = vsel %vm1444, %v2589, %v2600
        %v2603 = vshrl.u32 %v2531, 16
        %v2605 = vrot.slane %v2603, 7
        %v2606 = vshll.u32 %v2531, 16
        %v2608 = vor.u32 %v2605, %v2606
        %v2609 = vsel %vm1444, %v2597, %v2608
        %v2611 = vshrl.u32 %v2532, 16
        %v2613 = vrot.slane %v2611, 7
        %v2614 = vshll.u32 %v2532, 16
        %v2616 = vor.u32 %v2613, %v2614
        %v2617 = vsel %vm1444, %v2605, %v2616
        %v2619 = vshrl.u32 %v2533, 16
        %v2621 = vrot.slane %v2619, 7
        %v2622 = vshll.u32 %v2533, 16
        %v2624 = vor.u32 %v2621, %v2622
        %v2625 = vsel %vm1444, %v2613, %v2624
        %v2627 = vshrl.u32 %v2534, 16
        %v2629 = vrot.slane %v2627, 7
        %v2630 = vshll.u32 %v2534, 16
        %v2632 = vor.u32 %v2629, %v2630
        %v2633 = vsel %vm1444, %v2621, %v2632
        %v2635 = vshrl.u32 %v2535, 16
        %v2637 = vrot.slane %v2635, 7
        %v2638 = vshll.u32 %v2535, 16
        %v2640 = vor.u32 %v2637, %v2638
        %v2641 = vsel %vm1444, %v2629, %v2640
        %v2643 = vshrl.u32 %v2536, 16
        %v2645 = vrot.slane %v2643, 7
        %v2646 = vshll.u32 %v2536, 16
        %v2648 = vor.u32 %v2645, %v2646
        %v2649 = vsel %vm1444, %v2637, %v2648
        %v2651 = vshrl.u32 %v2537, 16
        %v2653 = vrot.slane %v2651, 7
        %v2654 = vshll.u32 %v2537, 16
        %v2656 = vor.u32 %v2653, %v2654
        %v2657 = vsel %vm1444, %v2645, %v2656
        %v2659 = vshrl.u32 %v2538, 16
        %v2661 = vrot.slane %v2659, 7
        %v2662 = vshll.u32 %v2538, 16
        %v2664 = vor.u32 %v2661, %v2662
        %v2665 = vsel %vm1444, %v2653, %v2664
        %v2667 = vshrl.u32 %v2539, 16
        %v2669 = vrot.slane %v2667, 7
        %v2670 = vshll.u32 %v2539, 16
        %v2672 = vor.u32 %v2669, %v2670
        %v2673 = vsel %vm1444, %v2661, %v2672
        %v2675 = vsel %vm724, %v2553, 0
        %v2678 = vsel %vm724, %v2561, 0
        %v2681 = vsel %vm724, %v2569, 0
        %v2684 = vsel %vm724, %v2577, 0
        %v2687 = vsel %vm724, %v2585, 0
        %v2690 = vsel %vm724, %v2593, 0
        %v2693 = vsel %vm724, %v2601, 0
        %v2696 = vsel %vm724, %v2609, 0
        %v2699 = vsel %vm724, %v2617, 0
        %v2702 = vsel %vm724, %v2625, 0
        %v2705 = vsel %vm724, %v2633, 0
        %v2708 = vsel %vm724, %v2641, 0
        %v2711 = vsel %vm724, %v2649, 0
        %v2714 = vsel %vm724, %v2657, 0
        %v2717 = vsel %vm724, %v2665, 0
        %v2720 = vsel %vm724, %v2673, 0
        %v2723 = vsel %vm1279, %v2541, 0
        %2725 = vmatprep.subr.bf16.mxu0 0
        %2726 = vmatpush1.bf16.msra.mxu0 %v2723
        %2727 = vmatprep.subr.bf16.mxu0 0
        %2728 = vmatpush1.bf16.msra.mxu0 0
        %2729 = vmatprep.subr.bf16.mxu0 0
        %2730 = vmatpush1.bf16.msra.mxu0 0
        %2731 = vmatprep.subr.bf16.mxu0 0
        %2732 = vmatpush1.bf16.msra.mxu0 0
        %2733 = vmatprep.subr.bf16.mxu0 0
        %2734 = vmatpush1.bf16.msra.mxu0 0
        %2735 = vmatprep.subr.bf16.mxu0 0
        %2736 = vmatpush1.bf16.msra.mxu0 0
        %2737 = vmatprep.subr.bf16.mxu0 0
        %2738 = vmatpush1.bf16.msra.mxu0 0
        %2739 = vmatprep.subr.bf16.mxu0 0
        %2740 = vmatpush1.bf16.msra.mxu0 0
        %2741 = vmatprep.subr.bf16.mxu0 0
        %2742 = vmatpush1.bf16.msra.mxu0 0
        %2743 = vmatprep.subr.bf16.mxu0 0
        %2744 = vmatpush1.bf16.msra.mxu0 0
        %2745 = vmatprep.subr.bf16.mxu0 0
        %2746 = vmatpush1.bf16.msra.mxu0 0
        %2747 = vmatprep.subr.bf16.mxu0 0
        %2748 = vmatpush1.bf16.msra.mxu0 0
        %2749 = vmatprep.subr.bf16.mxu0 0
        %2750 = vmatpush1.bf16.msra.mxu0 0
        %2751 = vmatprep.subr.bf16.mxu0 0
        %2752 = vmatpush1.bf16.msra.mxu0 0
        %2753 = vmatprep.subr.bf16.mxu0 0
        %2754 = vmatpush1.bf16.msra.mxu0 0
        %2755 = vmatprep.subr.bf16.mxu0 0
        %2756 = vmatpush1.bf16.msra.mxu0 0
        %2757 = vmatprep.mubr.bf16.mxu0 0
        %2758 = vmatmul.mubr.bf16.gmra.mrb[0].mxu0 %v2675
        %v2759 = vpop.f32.mrb[0].mxu0
        %v2760 = vadd.f32 0.0, %v2759
        %v2761 = vpop.f32.mrb[0].mxu0
        %v2762 = vpop.f32.mrb[0].mxu0
        %v2763 = vadd.f32 0.0, %v2762
        %v2764 = vpop.f32.mrb[0].mxu0
        %2765 = vmatprep.mubr.bf16.mxu0 0
        %2766 = vmatmul.mubr.bf16.gmra.mrb[0].mxu0 %v2678
        %v2767 = vpop.f32.mrb[0].mxu0
        %v2768 = vadd.f32 0.0, %v2767
        %v2769 = vpop.f32.mrb[0].mxu0
        %v2770 = vpop.f32.mrb[0].mxu0
        %v2771 = vadd.f32 0.0, %v2770
        %v2772 = vpop.f32.mrb[0].mxu0
        %2773 = vmatprep.mubr.bf16.mxu0 0
        %2774 = vmatmul.mubr.bf16.gmra.mrb[0].mxu0 %v2681
        %v2775 = vpop.f32.mrb[0].mxu0
        %v2776 = vadd.f32 0.0, %v2775
        %v2777 = vpop.f32.mrb[0].mxu0
        %v2778 = vpop.f32.mrb[0].mxu0
        %v2779 = vadd.f32 0.0, %v2778
        %v2780 = vpop.f32.mrb[0].mxu0
        %2781 = vmatprep.mubr.bf16.mxu0 0
        %2782 = vmatmul.mubr.bf16.gmra.mrb[0].mxu0 %v2684
        %v2783 = vpop.f32.mrb[0].mxu0
        %v2784 = vadd.f32 0.0, %v2783
        %v2785 = vpop.f32.mrb[0].mxu0
        %v2786 = vpop.f32.mrb[0].mxu0
        %v2787 = vadd.f32 0.0, %v2786
        %v2788 = vpop.f32.mrb[0].mxu0
        %2789 = vmatprep.mubr.bf16.mxu0 0
        %2790 = vmatmul.mubr.bf16.gmra.mrb[0].mxu0 %v2687
        %v2791 = vpop.f32.mrb[0].mxu0
        %v2792 = vadd.f32 0.0, %v2791
        %v2793 = vpop.f32.mrb[0].mxu0
        %v2794 = vpop.f32.mrb[0].mxu0
        %v2795 = vadd.f32 0.0, %v2794
        %v2796 = vpop.f32.mrb[0].mxu0
        %2797 = vmatprep.mubr.bf16.mxu0 0
        %2798 = vmatmul.mubr.bf16.gmra.mrb[0].mxu0 %v2690
        %v2799 = vpop.f32.mrb[0].mxu0
        %v2800 = vadd.f32 0.0, %v2799
        %v2801 = vpop.f32.mrb[0].mxu0
        %v2802 = vpop.f32.mrb[0].mxu0
        %v2803 = vadd.f32 0.0, %v2802
        %v2804 = vpop.f32.mrb[0].mxu0
        %2805 = vmatprep.mubr.bf16.mxu0 0
        %2806 = vmatmul.mubr.bf16.gmra.mrb[0].mxu0 %v2693
        %v2807 = vpop.f32.mrb[0].mxu0
        %v2808 = vadd.f32 0.0, %v2807
        %v2809 = vpop.f32.mrb[0].mxu0
        %v2810 = vpop.f32.mrb[0].mxu0
        %v2811 = vadd.f32 0.0, %v2810
        %v2812 = vpop.f32.mrb[0].mxu0
        %2813 = vmatprep.mubr.bf16.mxu0 0
        %2814 = vmatmul.mubr.bf16.gmra.mrb[0].mxu0 %v2696
        %v2815 = vpop.f32.mrb[0].mxu0
        %v2816 = vadd.f32 0.0, %v2815
        %v2817 = vpop.f32.mrb[0].mxu0
        %v2818 = vpop.f32.mrb[0].mxu0
        %v2819 = vadd.f32 0.0, %v2818
        %v2820 = vpop.f32.mrb[0].mxu0
        %2821 = vmatprep.mubr.bf16.mxu0 0
        %2822 = vmatmul.mubr.bf16.gmra.mrb[0].mxu0 %v2699
        %v2823 = vpop.f32.mrb[0].mxu0
        %v2824 = vadd.f32 0.0, %v2823
        %v2825 = vpop.f32.mrb[0].mxu0
        %v2826 = vpop.f32.mrb[0].mxu0
        %v2827 = vadd.f32 0.0, %v2826
        %v2828 = vpop.f32.mrb[0].mxu0
        %2829 = vmatprep.mubr.bf16.mxu0 0
        %2830 = vmatmul.mubr.bf16.gmra.mrb[0].mxu0 %v2702
        %v2831 = vpop.f32.mrb[0].mxu0
        %v2832 = vadd.f32 0.0, %v2831
        %v2833 = vpop.f32.mrb[0].mxu0
        %v2834 = vpop.f32.mrb[0].mxu0
        %v2835 = vadd.f32 0.0, %v2834
        %v2836 = vpop.f32.mrb[0].mxu0
        %2837 = vmatprep.mubr.bf16.mxu0 0
        %2838 = vmatmul.mubr.bf16.gmra.mrb[0].mxu0 %v2705
        %v2839 = vpop.f32.mrb[0].mxu0
        %v2840 = vadd.f32 0.0, %v2839
        %v2841 = vpop.f32.mrb[0].mxu0
        %v2842 = vpop.f32.mrb[0].mxu0
        %v2843 = vadd.f32 0.0, %v2842
        %v2844 = vpop.f32.mrb[0].mxu0
        %2845 = vmatprep.mubr.bf16.mxu0 0
        %2846 = vmatmul.mubr.bf16.gmra.mrb[0].mxu0 %v2708
        %v2847 = vpop.f32.mrb[0].mxu0
        %v2848 = vadd.f32 0.0, %v2847
        %v2849 = vpop.f32.mrb[0].mxu0
        %v2850 = vpop.f32.mrb[0].mxu0
        %v2851 = vadd.f32 0.0, %v2850
        %v2852 = vpop.f32.mrb[0].mxu0
        %2853 = vmatprep.mubr.bf16.mxu0 0
        %2854 = vmatmul.mubr.bf16.gmra.mrb[0].mxu0 %v2711
        %v2855 = vpop.f32.mrb[0].mxu0
        %v2856 = vadd.f32 0.0, %v2855
        %v2857 = vpop.f32.mrb[0].mxu0
        %v2858 = vpop.f32.mrb[0].mxu0
        %v2859 = vadd.f32 0.0, %v2858
        %v2860 = vpop.f32.mrb[0].mxu0
        %2861 = vmatprep.mubr.bf16.mxu0 0
        %2862 = vmatmul.mubr.bf16.gmra.mrb[0].mxu0 %v2714
        %v2863 = vpop.f32.mrb[0].mxu0
        %v2864 = vadd.f32 0.0, %v2863
        %v2865 = vpop.f32.mrb[0].mxu0
        %v2866 = vpop.f32.mrb[0].mxu0
        %v2867 = vadd.f32 0.0, %v2866
        %v2868 = vpop.f32.mrb[0].mxu0
        %2869 = vmatprep.mubr.bf16.mxu0 0
        %2870 = vmatmul.mubr.bf16.gmra.mrb[0].mxu0 %v2717
        %v2871 = vpop.f32.mrb[0].mxu0
        %v2872 = vadd.f32 0.0, %v2871
        %v2873 = vpop.f32.mrb[0].mxu0
        %v2874 = vpop.f32.mrb[0].mxu0
        %v2875 = vadd.f32 0.0, %v2874
        %v2876 = vpop.f32.mrb[0].mxu0
        %2877 = vmatprep.mubr.bf16.mxu0 0
        %2878 = vmatmul.mubr.bf16.gmra.mrb[0].mxu0 %v2720
        %v2879 = vpop.f32.mrb[0].mxu0
        %v2880 = vadd.f32 0.0, %v2879
        %v2881 = vpop.f32.mrb[0].mxu0
        %v2882 = vpop.f32.mrb[0].mxu0
        %v2883 = vadd.f32 0.0, %v2882
        %v2884 = vpop.f32.mrb[0].mxu0
        %2885 = vdwg.mxu0
        %v2886 = vadd.f32 %v2489, %v2760
        %v2887 = vadd.f32 %v2490, %v2763
        %v2888 = vadd.f32 %v2491, %v2768
        %v2889 = vadd.f32 %v2492, %v2771
        %v2890 = vadd.f32 %v2493, %v2776
        %v2891 = vadd.f32 %v2494, %v2779
        %v2892 = vadd.f32 %v2495, %v2784
        %v2893 = vadd.f32 %v2496, %v2787
        %v2894 = vadd.f32 %v2497, %v2792
        %v2895 = vadd.f32 %v2498, %v2795
        %v2896 = vadd.f32 %v2499, %v2800
        %v2897 = vadd.f32 %v2500, %v2803
        %v2898 = vadd.f32 %v2501, %v2808
        %v2899 = vadd.f32 %v2502, %v2811
        %v2900 = vadd.f32 %v2503, %v2816
        %v2901 = vadd.f32 %v2504, %v2819
        %v2902 = vadd.f32 %v2505, %v2824
        %v2903 = vadd.f32 %v2506, %v2827
        %v2904 = vadd.f32 %v2507, %v2832
        %v2905 = vadd.f32 %v2508, %v2835
        %v2906 = vadd.f32 %v2509, %v2840
        %v2907 = vadd.f32 %v2510, %v2843
        %v2908 = vadd.f32 %v2511, %v2848
        %v2909 = vadd.f32 %v2512, %v2851
        %v2910 = vadd.f32 %v2513, %v2856
        %v2911 = vadd.f32 %v2514, %v2859
        %v2912 = vadd.f32 %v2515, %v2864
        %v2913 = vadd.f32 %v2516, %v2867
        %v2914 = vadd.f32 %v2517, %v2872
        %v2915 = vadd.f32 %v2518, %v2875
        %v2916 = vadd.f32 %v2519, %v2880
        %v2917 = vadd.f32 %v2520, %v2883
        %s2918 = scalar_lea.vmem %s1, 8
        %v2919 = vld [vmem:[%s2918] sm:$0x3]
        %v2921 = vsel %vm724, %v1790, 0
        %v2924 = vsel %vm724, %v1791, 0
        %v2927 = vsel %vm724, %v1792, 0
        %v2930 = vsel %vm724, %v1793, 0
        %v2933 = vsel %vm724, %v1794, 0
        %v2936 = vsel %vm724, %v1795, 0
        %v2939 = vsel %vm724, %v1796, 0
        %v2942 = vsel %vm724, %v1797, 0
        %v2945 = vsel %vm724, %v1798, 0
        %v2948 = vsel %vm724, %v1799, 0
        %v2951 = vsel %vm724, %v1800, 0
        %v2954 = vsel %vm724, %v1801, 0
        %v2957 = vsel %vm724, %v1802, 0
        %v2960 = vsel %vm724, %v1803, 0
        %v2963 = vsel %vm724, %v1804, 0
        %v2966 = vsel %vm724, %v2522, 0
        %v2969 = vsel %vm1279, %v2919, 0
        %2971 = vmatprep.subr.bf16.mxu0 0
        %2972 = vmatpush1.bf16.msra.mxu0 %v2969
        %2973 = vmatprep.subr.bf16.mxu0 0
        %2974 = vmatpush1.bf16.msra.mxu0 0
        %2975 = vmatprep.subr.bf16.mxu0 0
        %2976 = vmatpush1.bf16.msra.mxu0 0
        %2977 = vmatprep.subr.bf16.mxu0 0
        %2978 = vmatpush1.bf16.msra.mxu0 0
        %2979 = vmatprep.subr.bf16.mxu0 0
        %2980 = vmatpush1.bf16.msra.mxu0 0
        %2981 = vmatprep.subr.bf16.mxu0 0
        %2982 = vmatpush1.bf16.msra.mxu0 0
        %2983 = vmatprep.subr.bf16.mxu0 0
        %2984 = vmatpush1.bf16.msra.mxu0 0
        %2985 = vmatprep.subr.bf16.mxu0 0
        %2986 = vmatpush1.bf16.msra.mxu0 0
        %2987 = vmatprep.subr.bf16.mxu0 0
        %2988 = vmatpush1.bf16.msra.mxu0 0
        %2989 = vmatprep.subr.bf16.mxu0 0
        %2990 = vmatpush1.bf16.msra.mxu0 0
        %2991 = vmatprep.subr.bf16.mxu0 0
        %2992 = vmatpush1.bf16.msra.mxu0 0
        %2993 = vmatprep.subr.bf16.mxu0 0
        %2994 = vmatpush1.bf16.msra.mxu0 0
        %2995 = vmatprep.subr.bf16.mxu0 0
        %2996 = vmatpush1.bf16.msra.mxu0 0
        %2997 = vmatprep.subr.bf16.mxu0 0
        %2998 = vmatpush1.bf16.msra.mxu0 0
        %2999 = vmatprep.subr.bf16.mxu0 0
        %3000 = vmatpush1.bf16.msra.mxu0 0
        %3001 = vmatprep.subr.bf16.mxu0 0
        %3002 = vmatpush1.bf16.msra.mxu0 0
        %3003 = vmatprep.mubr.bf16.mxu0 0
        %3004 = vmatmul.mubr.bf16.gmra.mrb[0].mxu0 %v2921
        %v3005 = vpop.f32.mrb[0].mxu0
        %v3006 = vadd.f32 0.0, %v3005
        %v3007 = vpop.f32.mrb[0].mxu0
        %v3008 = vpop.f32.mrb[0].mxu0
        %v3009 = vadd.f32 0.0, %v3008
        %v3010 = vpop.f32.mrb[0].mxu0
        %3011 = vmatprep.mubr.bf16.mxu0 0
        %3012 = vmatmul.mubr.bf16.gmra.mrb[0].mxu0 %v2924
        %v3013 = vpop.f32.mrb[0].mxu0
        %v3014 = vadd.f32 0.0, %v3013
        %v3015 = vpop.f32.mrb[0].mxu0
        %v3016 = vpop.f32.mrb[0].mxu0
        %v3017 = vadd.f32 0.0, %v3016
        %v3018 = vpop.f32.mrb[0].mxu0
        %3019 = vmatprep.mubr.bf16.mxu0 0
        %3020 = vmatmul.mubr.bf16.gmra.mrb[0].mxu0 %v2927
        %v3021 = vpop.f32.mrb[0].mxu0
        %v3022 = vadd.f32 0.0, %v3021
        %v3023 = vpop.f32.mrb[0].mxu0
        %v3024 = vpop.f32.mrb[0].mxu0
        %v3025 = vadd.f32 0.0, %v3024
        %v3026 = vpop.f32.mrb[0].mxu0
        %3027 = vmatprep.mubr.bf16.mxu0 0
        %3028 = vmatmul.mubr.bf16.gmra.mrb[0].mxu0 %v2930
        %v3029 = vpop.f32.mrb[0].mxu0
        %v3030 = vadd.f32 0.0, %v3029
        %v3031 = vpop.f32.mrb[0].mxu0
        %v3032 = vpop.f32.mrb[0].mxu0
        %v3033 = vadd.f32 0.0, %v3032
        %v3034 = vpop.f32.mrb[0].mxu0
        %3035 = vmatprep.mubr.bf16.mxu0 0
        %3036 = vmatmul.mubr.bf16.gmra.mrb[0].mxu0 %v2933
        %v3037 = vpop.f32.mrb[0].mxu0
        %v3038 = vadd.f32 0.0, %v3037
        %v3039 = vpop.f32.mrb[0].mxu0
        %v3040 = vpop.f32.mrb[0].mxu0
        %v3041 = vadd.f32 0.0, %v3040
        %v3042 = vpop.f32.mrb[0].mxu0
        %3043 = vmatprep.mubr.bf16.mxu0 0
        %3044 = vmatmul.mubr.bf16.gmra.mrb[0].mxu0 %v2936
        %v3045 = vpop.f32.mrb[0].mxu0
        %v3046 = vadd.f32 0.0, %v3045
        %v3047 = vpop.f32.mrb[0].mxu0
        %v3048 = vpop.f32.mrb[0].mxu0
        %v3049 = vadd.f32 0.0, %v3048
        %v3050 = vpop.f32.mrb[0].mxu0
        %3051 = vmatprep.mubr.bf16.mxu0 0
        %3052 = vmatmul.mubr.bf16.gmra.mrb[0].mxu0 %v2939
        %v3053 = vpop.f32.mrb[0].mxu0
        %v3054 = vadd.f32 0.0, %v3053
        %v3055 = vpop.f32.mrb[0].mxu0
        %v3056 = vpop.f32.mrb[0].mxu0
        %v3057 = vadd.f32 0.0, %v3056
        %v3058 = vpop.f32.mrb[0].mxu0
        %3059 = vmatprep.mubr.bf16.mxu0 0
        %3060 = vmatmul.mubr.bf16.gmra.mrb[0].mxu0 %v2942
        %v3061 = vpop.f32.mrb[0].mxu0
        %v3062 = vadd.f32 0.0, %v3061
        %v3063 = vpop.f32.mrb[0].mxu0
        %v3064 = vpop.f32.mrb[0].mxu0
        %v3065 = vadd.f32 0.0, %v3064
        %v3066 = vpop.f32.mrb[0].mxu0
        %3067 = vmatprep.mubr.bf16.mxu0 0
        %3068 = vmatmul.mubr.bf16.gmra.mrb[0].mxu0 %v2945
        %v3069 = vpop.f32.mrb[0].mxu0
        %v3070 = vadd.f32 0.0, %v3069
        %v3071 = vpop.f32.mrb[0].mxu0
        %v3072 = vpop.f32.mrb[0].mxu0
        %v3073 = vadd.f32 0.0, %v3072
        %v3074 = vpop.f32.mrb[0].mxu0
        %3075 = vmatprep.mubr.bf16.mxu0 0
        %3076 = vmatmul.mubr.bf16.gmra.mrb[0].mxu0 %v2948
        %v3077 = vpop.f32.mrb[0].mxu0
        %v3078 = vadd.f32 0.0, %v3077
        %v3079 = vpop.f32.mrb[0].mxu0
        %v3080 = vpop.f32.mrb[0].mxu0
        %v3081 = vadd.f32 0.0, %v3080
        %v3082 = vpop.f32.mrb[0].mxu0
        %3083 = vmatprep.mubr.bf16.mxu0 0
        %3084 = vmatmul.mubr.bf16.gmra.mrb[0].mxu0 %v2951
        %v3085 = vpop.f32.mrb[0].mxu0
        %v3086 = vadd.f32 0.0, %v3085
        %v3087 = vpop.f32.mrb[0].mxu0
        %v3088 = vpop.f32.mrb[0].mxu0
        %v3089 = vadd.f32 0.0, %v3088
        %v3090 = vpop.f32.mrb[0].mxu0
        %3091 = vmatprep.mubr.bf16.mxu0 0
        %3092 = vmatmul.mubr.bf16.gmra.mrb[0].mxu0 %v2954
        %v3093 = vpop.f32.mrb[0].mxu0
        %v3094 = vadd.f32 0.0, %v3093
        %v3095 = vpop.f32.mrb[0].mxu0
        %v3096 = vpop.f32.mrb[0].mxu0
        %v3097 = vadd.f32 0.0, %v3096
        %v3098 = vpop.f32.mrb[0].mxu0
        %3099 = vmatprep.mubr.bf16.mxu0 0
        %3100 = vmatmul.mubr.bf16.gmra.mrb[0].mxu0 %v2957
        %v3101 = vpop.f32.mrb[0].mxu0
        %v3102 = vadd.f32 0.0, %v3101
        %v3103 = vpop.f32.mrb[0].mxu0
        %v3104 = vpop.f32.mrb[0].mxu0
        %v3105 = vadd.f32 0.0, %v3104
        %v3106 = vpop.f32.mrb[0].mxu0
        %3107 = vmatprep.mubr.bf16.mxu0 0
        %3108 = vmatmul.mubr.bf16.gmra.mrb[0].mxu0 %v2960
        %v3109 = vpop.f32.mrb[0].mxu0
        %v3110 = vadd.f32 0.0, %v3109
        %v3111 = vpop.f32.mrb[0].mxu0
        %v3112 = vpop.f32.mrb[0].mxu0
        %v3113 = vadd.f32 0.0, %v3112
        %v3114 = vpop.f32.mrb[0].mxu0
        %3115 = vmatprep.mubr.bf16.mxu0 0
        %3116 = vmatmul.mubr.bf16.gmra.mrb[0].mxu0 %v2963
        %v3117 = vpop.f32.mrb[0].mxu0
        %v3118 = vadd.f32 0.0, %v3117
        %v3119 = vpop.f32.mrb[0].mxu0
        %v3120 = vpop.f32.mrb[0].mxu0
        %v3121 = vadd.f32 0.0, %v3120
        %v3122 = vpop.f32.mrb[0].mxu0
        %3123 = vmatprep.mubr.bf16.mxu0 0
        %3124 = vmatmul.mubr.bf16.gmra.mrb[0].mxu0 %v2966
        %v3125 = vpop.f32.mrb[0].mxu0
        %v3126 = vadd.f32 0.0, %v3125
        %v3127 = vpop.f32.mrb[0].mxu0
        %v3128 = vpop.f32.mrb[0].mxu0
        %v3129 = vadd.f32 0.0, %v3128
        %v3130 = vpop.f32.mrb[0].mxu0
        %3131 = vdwg.mxu0
        %v3132 = vadd.f32 %v2886, %v3006
        %v3133 = vadd.f32 %v2887, %v3009
        %v3134 = vadd.f32 %v2888, %v3014
        %v3135 = vadd.f32 %v2889, %v3017
        %v3136 = vadd.f32 %v2890, %v3022
        %v3137 = vadd.f32 %v2891, %v3025
        %v3138 = vadd.f32 %v2892, %v3030
        %v3139 = vadd.f32 %v2893, %v3033
        %v3140 = vadd.f32 %v2894, %v3038
        %v3141 = vadd.f32 %v2895, %v3041
        %v3142 = vadd.f32 %v2896, %v3046
        %v3143 = vadd.f32 %v2897, %v3049
        %v3144 = vadd.f32 %v2898, %v3054
        %v3145 = vadd.f32 %v2899, %v3057
        %v3146 = vadd.f32 %v2900, %v3062
        %v3147 = vadd.f32 %v2901, %v3065
        %v3148 = vadd.f32 %v2902, %v3070
        %v3149 = vadd.f32 %v2903, %v3073
        %v3150 = vadd.f32 %v2904, %v3078
        %v3151 = vadd.f32 %v2905, %v3081
        %v3152 = vadd.f32 %v2906, %v3086
        %v3153 = vadd.f32 %v2907, %v3089
        %v3154 = vadd.f32 %v2908, %v3094
        %v3155 = vadd.f32 %v2909, %v3097
        %v3156 = vadd.f32 %v2910, %v3102
        %v3157 = vadd.f32 %v2911, %v3105
        %v3158 = vadd.f32 %v2912, %v3110
        %v3159 = vadd.f32 %v2913, %v3113
        %v3160 = vadd.f32 %v2914, %v3118
        %v3161 = vadd.f32 %v2915, %v3121
        %v3162 = vadd.f32 %v2916, %v3126
        %v3163 = vadd.f32 %v2917, %v3129
        %v3164 = vld [vmem:[#allocation2 + $0x10] sm:$0xff]
        %v3165 = vld [vmem:[#allocation2 + $0x18] sm:$0xff]
        %v3166 = vld [vmem:[#allocation2 + $0x20] sm:$0xff]
        %v3167 = vld [vmem:[#allocation2 + $0x28] sm:$0xff]
        %v3168 = vld [vmem:[#allocation2 + $0x30] sm:$0xff]
        %v3169 = vld [vmem:[#allocation2 + $0x38] sm:$0xff]
        %v3170 = vld [vmem:[#allocation2 + $0x40] sm:$0xff]
        %v3171 = vld [vmem:[#allocation2 + $0x48] sm:$0xff]
        %v3172 = vld [vmem:[#allocation2 + $0x50] sm:$0xff]
        %v3173 = vld [vmem:[#allocation2 + $0x58] sm:$0xff]
        %v3174 = vld [vmem:[#allocation2 + $0x60] sm:$0xff]
        %v3175 = vld [vmem:[#allocation2 + $0x68] sm:$0xff]
        %v3176 = vld [vmem:[#allocation2 + $0x70] sm:$0xff]
        %v3177 = vld [vmem:[#allocation2 + $0x78] sm:$0xff]
        %v3178 = vld [vmem:[#allocation2 + $0x80] sm:$0xff]
        %v3179 = vld [vmem:[#allocation2 + $0x88] sm:$0xff]
        %v3180 = vld [vmem:[#allocation2 + $0x90] sm:$0x1]
        %v3181 = vsel %vm2109, %v3164, 0
        %v3182 = vsel %vm2110, %v3165, 0
        %v3183 = vsel %vm2111, %v3166, 0
        %v3184 = vsel %vm2112, %v3167, 0
        %v3185 = vsel %vm2113, %v3168, 0
        %v3186 = vsel %vm2114, %v3169, 0
        %v3187 = vsel %vm2115, %v3170, 0
        %v3188 = vsel %vm2116, %v3171, 0
        %v3189 = vsel %vm2117, %v3172, 0
        %v3190 = vsel %vm2118, %v3173, 0
        %v3191 = vsel %vm2119, %v3174, 0
        %v3192 = vsel %vm2120, %v3175, 0
        %v3193 = vsel %vm2121, %v3176, 0
        %v3194 = vsel %vm2122, %v3177, 0
        %v3195 = vsel %vm2123, %v3178, 0
        %v3196 = vsel %vm2124, %v3179, 0
        %v3197 = vsel %vm2125, %v3180, 0
        %s3198 = scalar_lea.vmem %s1, 10
        %v3199 = vld [vmem:[%s3198] sm:$0x3]
        %v3201 = vshrl.u32 %v3181, 16
        %v3203 = vshll.u32 %v3181, 16
        %v3205 = vrot.slane %v3203, 1
        %v3206 = vor.u32 %v3201, %v3205
        %v3208 = vshll.u32 %v3182, 16
        %v3210 = vrot.slane %v3208, 1
        %v3211 = vsel %vm1066, %v3206, %v3210
        %v3212 = vshrl.u32 %v3182, 16
        %v3214 = vor.u32 %v3212, %v3210
        %v3216 = vshll.u32 %v3183, 16
        %v3218 = vrot.slane %v3216, 1
        %v3219 = vsel %vm1066, %v3214, %v3218
        %v3220 = vshrl.u32 %v3183, 16
        %v3222 = vor.u32 %v3220, %v3218
        %v3224 = vshll.u32 %v3184, 16
        %v3226 = vrot.slane %v3224, 1
        %v3227 = vsel %vm1066, %v3222, %v3226
        %v3228 = vshrl.u32 %v3184, 16
        %v3230 = vor.u32 %v3228, %v3226
        %v3232 = vshll.u32 %v3185, 16
        %v3234 = vrot.slane %v3232, 1
        %v3235 = vsel %vm1066, %v3230, %v3234
        %v3236 = vshrl.u32 %v3185, 16
        %v3238 = vor.u32 %v3236, %v3234
        %v3240 = vshll.u32 %v3186, 16
        %v3242 = vrot.slane %v3240, 1
        %v3243 = vsel %vm1066, %v3238, %v3242
        %v3244 = vshrl.u32 %v3186, 16
        %v3246 = vor.u32 %v3244, %v3242
        %v3248 = vshll.u32 %v3187, 16
        %v3250 = vrot.slane %v3248, 1
        %v3251 = vsel %vm1066, %v3246, %v3250
        %v3252 = vshrl.u32 %v3187, 16
        %v3254 = vor.u32 %v3252, %v3250
        %v3256 = vshll.u32 %v3188, 16
        %v3258 = vrot.slane %v3256, 1
        %v3259 = vsel %vm1066, %v3254, %v3258
        %v3260 = vshrl.u32 %v3188, 16
        %v3262 = vor.u32 %v3260, %v3258
        %v3264 = vshll.u32 %v3189, 16
        %v3266 = vrot.slane %v3264, 1
        %v3267 = vsel %vm1066, %v3262, %v3266
        %v3268 = vshrl.u32 %v3189, 16
        %v3270 = vor.u32 %v3268, %v3266
        %v3272 = vshll.u32 %v3190, 16
        %v3274 = vrot.slane %v3272, 1
        %v3275 = vsel %vm1066, %v3270, %v3274
        %v3276 = vshrl.u32 %v3190, 16
        %v3278 = vor.u32 %v3276, %v3274
        %v3280 = vshll.u32 %v3191, 16
        %v3282 = vrot.slane %v3280, 1
        %v3283 = vsel %vm1066, %v3278, %v3282
        %v3284 = vshrl.u32 %v3191, 16
        %v3286 = vor.u32 %v3284, %v3282
        %v3288 = vshll.u32 %v3192, 16
        %v3290 = vrot.slane %v3288, 1
        %v3291 = vsel %vm1066, %v3286, %v3290
        %v3292 = vshrl.u32 %v3192, 16
        %v3294 = vor.u32 %v3292, %v3290
        %v3296 = vshll.u32 %v3193, 16
        %v3298 = vrot.slane %v3296, 1
        %v3299 = vsel %vm1066, %v3294, %v3298
        %v3300 = vshrl.u32 %v3193, 16
        %v3302 = vor.u32 %v3300, %v3298
        %v3304 = vshll.u32 %v3194, 16
        %v3306 = vrot.slane %v3304, 1
        %v3307 = vsel %vm1066, %v3302, %v3306
        %v3308 = vshrl.u32 %v3194, 16
        %v3310 = vor.u32 %v3308, %v3306
        %v3312 = vshll.u32 %v3195, 16
        %v3314 = vrot.slane %v3312, 1
        %v3315 = vsel %vm1066, %v3310, %v3314
        %v3316 = vshrl.u32 %v3195, 16
        %v3318 = vor.u32 %v3316, %v3314
        %v3320 = vshll.u32 %v3196, 16
        %v3322 = vrot.slane %v3320, 1
        %v3323 = vsel %vm1066, %v3318, %v3322
        %v3324 = vshrl.u32 %v3196, 16
        %v3326 = vor.u32 %v3324, %v3322
        %v3328 = vshll.u32 %v3197, 16
        %v3330 = vrot.slane %v3328, 1
        %v3331 = vsel %vm1066, %v3326, %v3330
        %v3333 = vsel %vm724, %v3211, 0
        %v3336 = vsel %vm724, %v3219, 0
        %v3339 = vsel %vm724, %v3227, 0
        %v3342 = vsel %vm724, %v3235, 0
        %v3345 = vsel %vm724, %v3243, 0
        %v3348 = vsel %vm724, %v3251, 0
        %v3351 = vsel %vm724, %v3259, 0
        %v3354 = vsel %vm724, %v3267, 0
        %v3357 = vsel %vm724, %v3275, 0
        %v3360 = vsel %vm724, %v3283, 0
        %v3363 = vsel %vm724, %v3291, 0
        %v3366 = vsel %vm724, %v3299, 0
        %v3369 = vsel %vm724, %v3307, 0
        %v3372 = vsel %vm724, %v3315, 0
        %v3375 = vsel %vm724, %v3323, 0
        %v3378 = vsel %vm724, %v3331, 0
        %v3381 = vsel %vm1279, %v3199, 0
        %3383 = vmatprep.subr.bf16.mxu0 0
        %3384 = vmatpush1.bf16.msra.mxu0 %v3381
        %3385 = vmatprep.subr.bf16.mxu0 0
        %3386 = vmatpush1.bf16.msra.mxu0 0
        %3387 = vmatprep.subr.bf16.mxu0 0
        %3388 = vmatpush1.bf16.msra.mxu0 0
        %3389 = vmatprep.subr.bf16.mxu0 0
        %3390 = vmatpush1.bf16.msra.mxu0 0
        %3391 = vmatprep.subr.bf16.mxu0 0
        %3392 = vmatpush1.bf16.msra.mxu0 0
        %3393 = vmatprep.subr.bf16.mxu0 0
        %3394 = vmatpush1.bf16.msra.mxu0 0
        %3395 = vmatprep.subr.bf16.mxu0 0
        %3396 = vmatpush1.bf16.msra.mxu0 0
        %3397 = vmatprep.subr.bf16.mxu0 0
        %3398 = vmatpush1.bf16.msra.mxu0 0
        %3399 = vmatprep.subr.bf16.mxu0 0
        %3400 = vmatpush1.bf16.msra.mxu0 0
        %3401 = vmatprep.subr.bf16.mxu0 0
        %3402 = vmatpush1.bf16.msra.mxu0 0
        %3403 = vmatprep.subr.bf16.mxu0 0
        %3404 = vmatpush1.bf16.msra.mxu0 0
        %3405 = vmatprep.subr.bf16.mxu0 0
        %3406 = vmatpush1.bf16.msra.mxu0 0
        %3407 = vmatprep.subr.bf16.mxu0 0
        %3408 = vmatpush1.bf16.msra.mxu0 0
        %3409 = vmatprep.subr.bf16.mxu0 0
        %3410 = vmatpush1.bf16.msra.mxu0 0
        %3411 = vmatprep.subr.bf16.mxu0 0
        %3412 = vmatpush1.bf16.msra.mxu0 0
        %3413 = vmatprep.subr.bf16.mxu0 0
        %3414 = vmatpush1.bf16.msra.mxu0 0
        %3415 = vmatprep.mubr.bf16.mxu0 0
        %3416 = vmatmul.mubr.bf16.gmra.mrb[0].mxu0 %v3333
        %v3417 = vpop.f32.mrb[0].mxu0
        %v3418 = vadd.f32 0.0, %v3417
        %v3419 = vpop.f32.mrb[0].mxu0
        %v3420 = vpop.f32.mrb[0].mxu0
        %v3421 = vadd.f32 0.0, %v3420
        %v3422 = vpop.f32.mrb[0].mxu0
        %3423 = vmatprep.mubr.bf16.mxu0 0
        %3424 = vmatmul.mubr.bf16.gmra.mrb[0].mxu0 %v3336
        %v3425 = vpop.f32.mrb[0].mxu0
        %v3426 = vadd.f32 0.0, %v3425
        %v3427 = vpop.f32.mrb[0].mxu0
        %v3428 = vpop.f32.mrb[0].mxu0
        %v3429 = vadd.f32 0.0, %v3428
        %v3430 = vpop.f32.mrb[0].mxu0
        %3431 = vmatprep.mubr.bf16.mxu0 0
        %3432 = vmatmul.mubr.bf16.gmra.mrb[0].mxu0 %v3339
        %v3433 = vpop.f32.mrb[0].mxu0
        %v3434 = vadd.f32 0.0, %v3433
        %v3435 = vpop.f32.mrb[0].mxu0
        %v3436 = vpop.f32.mrb[0].mxu0
        %v3437 = vadd.f32 0.0, %v3436
        %v3438 = vpop.f32.mrb[0].mxu0
        %3439 = vmatprep.mubr.bf16.mxu0 0
        %3440 = vmatmul.mubr.bf16.gmra.mrb[0].mxu0 %v3342
        %v3441 = vpop.f32.mrb[0].mxu0
        %v3442 = vadd.f32 0.0, %v3441
        %v3443 = vpop.f32.mrb[0].mxu0
        %v3444 = vpop.f32.mrb[0].mxu0
        %v3445 = vadd.f32 0.0, %v3444
        %v3446 = vpop.f32.mrb[0].mxu0
        %3447 = vmatprep.mubr.bf16.mxu0 0
        %3448 = vmatmul.mubr.bf16.gmra.mrb[0].mxu0 %v3345
        %v3449 = vpop.f32.mrb[0].mxu0
        %v3450 = vadd.f32 0.0, %v3449
        %v3451 = vpop.f32.mrb[0].mxu0
        %v3452 = vpop.f32.mrb[0].mxu0
        %v3453 = vadd.f32 0.0, %v3452
        %v3454 = vpop.f32.mrb[0].mxu0
        %3455 = vmatprep.mubr.bf16.mxu0 0
        %3456 = vmatmul.mubr.bf16.gmra.mrb[0].mxu0 %v3348
        %v3457 = vpop.f32.mrb[0].mxu0
        %v3458 = vadd.f32 0.0, %v3457
        %v3459 = vpop.f32.mrb[0].mxu0
        %v3460 = vpop.f32.mrb[0].mxu0
        %v3461 = vadd.f32 0.0, %v3460
        %v3462 = vpop.f32.mrb[0].mxu0
        %3463 = vmatprep.mubr.bf16.mxu0 0
        %3464 = vmatmul.mubr.bf16.gmra.mrb[0].mxu0 %v3351
        %v3465 = vpop.f32.mrb[0].mxu0
        %v3466 = vadd.f32 0.0, %v3465
        %v3467 = vpop.f32.mrb[0].mxu0
        %v3468 = vpop.f32.mrb[0].mxu0
        %v3469 = vadd.f32 0.0, %v3468
        %v3470 = vpop.f32.mrb[0].mxu0
        %3471 = vmatprep.mubr.bf16.mxu0 0
        %3472 = vmatmul.mubr.bf16.gmra.mrb[0].mxu0 %v3354
        %v3473 = vpop.f32.mrb[0].mxu0
        %v3474 = vadd.f32 0.0, %v3473
        %v3475 = vpop.f32.mrb[0].mxu0
        %v3476 = vpop.f32.mrb[0].mxu0
        %v3477 = vadd.f32 0.0, %v3476
        %v3478 = vpop.f32.mrb[0].mxu0
        %3479 = vmatprep.mubr.bf16.mxu0 0
        %3480 = vmatmul.mubr.bf16.gmra.mrb[0].mxu0 %v3357
        %v3481 = vpop.f32.mrb[0].mxu0
        %v3482 = vadd.f32 0.0, %v3481
        %v3483 = vpop.f32.mrb[0].mxu0
        %v3484 = vpop.f32.mrb[0].mxu0
        %v3485 = vadd.f32 0.0, %v3484
        %v3486 = vpop.f32.mrb[0].mxu0
        %3487 = vmatprep.mubr.bf16.mxu0 0
        %3488 = vmatmul.mubr.bf16.gmra.mrb[0].mxu0 %v3360
        %v3489 = vpop.f32.mrb[0].mxu0
        %v3490 = vadd.f32 0.0, %v3489
        %v3491 = vpop.f32.mrb[0].mxu0
        %v3492 = vpop.f32.mrb[0].mxu0
        %v3493 = vadd.f32 0.0, %v3492
        %v3494 = vpop.f32.mrb[0].mxu0
        %3495 = vmatprep.mubr.bf16.mxu0 0
        %3496 = vmatmul.mubr.bf16.gmra.mrb[0].mxu0 %v3363
        %v3497 = vpop.f32.mrb[0].mxu0
        %v3498 = vadd.f32 0.0, %v3497
        %v3499 = vpop.f32.mrb[0].mxu0
        %v3500 = vpop.f32.mrb[0].mxu0
        %v3501 = vadd.f32 0.0, %v3500
        %v3502 = vpop.f32.mrb[0].mxu0
        %3503 = vmatprep.mubr.bf16.mxu0 0
        %3504 = vmatmul.mubr.bf16.gmra.mrb[0].mxu0 %v3366
        %v3505 = vpop.f32.mrb[0].mxu0
        %v3506 = vadd.f32 0.0, %v3505
        %v3507 = vpop.f32.mrb[0].mxu0
        %v3508 = vpop.f32.mrb[0].mxu0
        %v3509 = vadd.f32 0.0, %v3508
        %v3510 = vpop.f32.mrb[0].mxu0
        %3511 = vmatprep.mubr.bf16.mxu0 0
        %3512 = vmatmul.mubr.bf16.gmra.mrb[0].mxu0 %v3369
        %v3513 = vpop.f32.mrb[0].mxu0
        %v3514 = vadd.f32 0.0, %v3513
        %v3515 = vpop.f32.mrb[0].mxu0
        %v3516 = vpop.f32.mrb[0].mxu0
        %v3517 = vadd.f32 0.0, %v3516
        %v3518 = vpop.f32.mrb[0].mxu0
        %3519 = vmatprep.mubr.bf16.mxu0 0
        %3520 = vmatmul.mubr.bf16.gmra.mrb[0].mxu0 %v3372
        %v3521 = vpop.f32.mrb[0].mxu0
        %v3522 = vadd.f32 0.0, %v3521
        %v3523 = vpop.f32.mrb[0].mxu0
        %v3524 = vpop.f32.mrb[0].mxu0
        %v3525 = vadd.f32 0.0, %v3524
        %v3526 = vpop.f32.mrb[0].mxu0
        %3527 = vmatprep.mubr.bf16.mxu0 0
        %3528 = vmatmul.mubr.bf16.gmra.mrb[0].mxu0 %v3375
        %v3529 = vpop.f32.mrb[0].mxu0
        %v3530 = vadd.f32 0.0, %v3529
        %v3531 = vpop.f32.mrb[0].mxu0
        %v3532 = vpop.f32.mrb[0].mxu0
        %v3533 = vadd.f32 0.0, %v3532
        %v3534 = vpop.f32.mrb[0].mxu0
        %3535 = vmatprep.mubr.bf16.mxu0 0
        %3536 = vmatmul.mubr.bf16.gmra.mrb[0].mxu0 %v3378
        %v3537 = vpop.f32.mrb[0].mxu0
        %v3538 = vadd.f32 0.0, %v3537
        %v3539 = vpop.f32.mrb[0].mxu0
        %v3540 = vpop.f32.mrb[0].mxu0
        %v3541 = vadd.f32 0.0, %v3540
        %v3542 = vpop.f32.mrb[0].mxu0
        %3543 = vdwg.mxu0
        %v3544 = vadd.f32 %v3132, %v3418
        %v3545 = vadd.f32 %v3133, %v3421
        %v3546 = vadd.f32 %v3134, %v3426
        %v3547 = vadd.f32 %v3135, %v3429
        %v3548 = vadd.f32 %v3136, %v3434
        %v3549 = vadd.f32 %v3137, %v3437
        %v3550 = vadd.f32 %v3138, %v3442
        %v3551 = vadd.f32 %v3139, %v3445
        %v3552 = vadd.f32 %v3140, %v3450
        %v3553 = vadd.f32 %v3141, %v3453
        %v3554 = vadd.f32 %v3142, %v3458
        %v3555 = vadd.f32 %v3143, %v3461
        %v3556 = vadd.f32 %v3144, %v3466
        %v3557 = vadd.f32 %v3145, %v3469
        %v3558 = vadd.f32 %v3146, %v3474
        %v3559 = vadd.f32 %v3147, %v3477
        %v3560 = vadd.f32 %v3148, %v3482
        %v3561 = vadd.f32 %v3149, %v3485
        %v3562 = vadd.f32 %v3150, %v3490
        %v3563 = vadd.f32 %v3151, %v3493
        %v3564 = vadd.f32 %v3152, %v3498
        %v3565 = vadd.f32 %v3153, %v3501
        %v3566 = vadd.f32 %v3154, %v3506
        %v3567 = vadd.f32 %v3155, %v3509
        %v3568 = vadd.f32 %v3156, %v3514
        %v3569 = vadd.f32 %v3157, %v3517
        %v3570 = vadd.f32 %v3158, %v3522
        %v3571 = vadd.f32 %v3159, %v3525
        %v3572 = vadd.f32 %v3160, %v3530
        %v3573 = vadd.f32 %v3161, %v3533
        %v3574 = vadd.f32 %v3162, %v3538
        %v3575 = vadd.f32 %v3163, %v3541
        %v3576 = vld [vmem:[#allocation2 + $0x10] sm:$0x80]
        %v3577 = vld [vmem:[#allocation2 + $0x90] sm:$0xff]
        %v3578 = vsel %vm1194, %v3576, 0
        %v3579 = vsel %vm1195, %v3165, 0
        %v3580 = vsel %vm1196, %v3166, 0
        %v3581 = vsel %vm1197, %v3167, 0
        %v3582 = vsel %vm1198, %v3168, 0
        %v3583 = vsel %vm1199, %v3169, 0
        %v3584 = vsel %vm1200, %v3170, 0
        %v3585 = vsel %vm1201, %v3171, 0
        %v3586 = vsel %vm1202, %v3172, 0
        %v3587 = vsel %vm1203, %v3173, 0
        %v3588 = vsel %vm1204, %v3174, 0
        %v3589 = vsel %vm1205, %v3175, 0
        %v3590 = vsel %vm1206, %v3176, 0
        %v3591 = vsel %vm1207, %v3177, 0
        %v3592 = vsel %vm1208, %v3178, 0
        %v3593 = vsel %vm1209, %v3179, 0
        %v3594 = vsel %vm1210, %v3577, 0
        %s3595 = scalar_lea.vmem %s1, 12
        %v3596 = vld [vmem:[%s3595] sm:$0x3]
        %v3598 = vshrl.u32 %v3578, 16
        %v3600 = vrot.slane %v3598, 7
        %v3602 = vshrl.u32 %v3579, 16
        %v3604 = vrot.slane %v3602, 7
        %v3605 = vshll.u32 %v3579, 16
        %v3607 = vor.u32 %v3604, %v3605
        %v3608 = vsel %vm1444, %v3600, %v3607
        %v3610 = vshrl.u32 %v3580, 16
        %v3612 = vrot.slane %v3610, 7
        %v3613 = vshll.u32 %v3580, 16
        %v3615 = vor.u32 %v3612, %v3613
        %v3616 = vsel %vm1444, %v3604, %v3615
        %v3618 = vshrl.u32 %v3581, 16
        %v3620 = vrot.slane %v3618, 7
        %v3621 = vshll.u32 %v3581, 16
        %v3623 = vor.u32 %v3620, %v3621
        %v3624 = vsel %vm1444, %v3612, %v3623
        %v3626 = vshrl.u32 %v3582, 16
        %v3628 = vrot.slane %v3626, 7
        %v3629 = vshll.u32 %v3582, 16
        %v3631 = vor.u32 %v3628, %v3629
        %v3632 = vsel %vm1444, %v3620, %v3631
        %v3634 = vshrl.u32 %v3583, 16
        %v3636 = vrot.slane %v3634, 7
        %v3637 = vshll.u32 %v3583, 16
        %v3639 = vor.u32 %v3636, %v3637
        %v3640 = vsel %vm1444, %v3628, %v3639
        %v3642 = vshrl.u32 %v3584, 16
        %v3644 = vrot.slane %v3642, 7
        %v3645 = vshll.u32 %v3584, 16
        %v3647 = vor.u32 %v3644, %v3645
        %v3648 = vsel %vm1444, %v3636, %v3647
        %v3650 = vshrl.u32 %v3585, 16
        %v3652 = vrot.slane %v3650, 7
        %v3653 = vshll.u32 %v3585, 16
        %v3655 = vor.u32 %v3652, %v3653
        %v3656 = vsel %vm1444, %v3644, %v3655
        %v3658 = vshrl.u32 %v3586, 16
        %v3660 = vrot.slane %v3658, 7
        %v3661 = vshll.u32 %v3586, 16
        %v3663 = vor.u32 %v3660, %v3661
        %v3664 = vsel %vm1444, %v3652, %v3663
        %v3666 = vshrl.u32 %v3587, 16
        %v3668 = vrot.slane %v3666, 7
        %v3669 = vshll.u32 %v3587, 16
        %v3671 = vor.u32 %v3668, %v3669
        %v3672 = vsel %vm1444, %v3660, %v3671
        %v3674 = vshrl.u32 %v3588, 16
        %v3676 = vrot.slane %v3674, 7
        %v3677 = vshll.u32 %v3588, 16
        %v3679 = vor.u32 %v3676, %v3677
        %v3680 = vsel %vm1444, %v3668, %v3679
        %v3682 = vshrl.u32 %v3589, 16
        %v3684 = vrot.slane %v3682, 7
        %v3685 = vshll.u32 %v3589, 16
        %v3687 = vor.u32 %v3684, %v3685
        %v3688 = vsel %vm1444, %v3676, %v3687
        %v3690 = vshrl.u32 %v3590, 16
        %v3692 = vrot.slane %v3690, 7
        %v3693 = vshll.u32 %v3590, 16
        %v3695 = vor.u32 %v3692, %v3693
        %v3696 = vsel %vm1444, %v3684, %v3695
        %v3698 = vshrl.u32 %v3591, 16
        %v3700 = vrot.slane %v3698, 7
        %v3701 = vshll.u32 %v3591, 16
        %v3703 = vor.u32 %v3700, %v3701
        %v3704 = vsel %vm1444, %v3692, %v3703
        %v3706 = vshrl.u32 %v3592, 16
        %v3708 = vrot.slane %v3706, 7
        %v3709 = vshll.u32 %v3592, 16
        %v3711 = vor.u32 %v3708, %v3709
        %v3712 = vsel %vm1444, %v3700, %v3711
        %v3714 = vshrl.u32 %v3593, 16
        %v3716 = vrot.slane %v3714, 7
        %v3717 = vshll.u32 %v3593, 16
        %v3719 = vor.u32 %v3716, %v3717
        %v3720 = vsel %vm1444, %v3708, %v3719
        %v3722 = vshrl.u32 %v3594, 16
        %v3724 = vrot.slane %v3722, 7
        %v3725 = vshll.u32 %v3594, 16
        %v3727 = vor.u32 %v3724, %v3725
        %v3728 = vsel %vm1444, %v3716, %v3727
        %v3730 = vsel %vm724, %v3608, 0
        %v3733 = vsel %vm724, %v3616, 0
        %v3736 = vsel %vm724, %v3624, 0
        %v3739 = vsel %vm724, %v3632, 0
        %v3742 = vsel %vm724, %v3640, 0
        %v3745 = vsel %vm724, %v3648, 0
        %v3748 = vsel %vm724, %v3656, 0
        %v3751 = vsel %vm724, %v3664, 0
        %v3754 = vsel %vm724, %v3672, 0
        %v3757 = vsel %vm724, %v3680, 0
        %v3760 = vsel %vm724, %v3688, 0
        %v3763 = vsel %vm724, %v3696, 0
        %v3766 = vsel %vm724, %v3704, 0
        %v3769 = vsel %vm724, %v3712, 0
        %v3772 = vsel %vm724, %v3720, 0
        %v3775 = vsel %vm724, %v3728, 0
        %v3778 = vsel %vm1279, %v3596, 0
        %3780 = vmatprep.subr.bf16.mxu0 0
        %3781 = vmatpush1.bf16.msra.mxu0 %v3778
        %3782 = vmatprep.subr.bf16.mxu0 0
        %3783 = vmatpush1.bf16.msra.mxu0 0
        %3784 = vmatprep.subr.bf16.mxu0 0
        %3785 = vmatpush1.bf16.msra.mxu0 0
        %3786 = vmatprep.subr.bf16.mxu0 0
        %3787 = vmatpush1.bf16.msra.mxu0 0
        %3788 = vmatprep.subr.bf16.mxu0 0
        %3789 = vmatpush1.bf16.msra.mxu0 0
        %3790 = vmatprep.subr.bf16.mxu0 0
        %3791 = vmatpush1.bf16.msra.mxu0 0
        %3792 = vmatprep.subr.bf16.mxu0 0
        %3793 = vmatpush1.bf16.msra.mxu0 0
        %3794 = vmatprep.subr.bf16.mxu0 0
        %3795 = vmatpush1.bf16.msra.mxu0 0
        %3796 = vmatprep.subr.bf16.mxu0 0
        %3797 = vmatpush1.bf16.msra.mxu0 0
        %3798 = vmatprep.subr.bf16.mxu0 0
        %3799 = vmatpush1.bf16.msra.mxu0 0
        %3800 = vmatprep.subr.bf16.mxu0 0
        %3801 = vmatpush1.bf16.msra.mxu0 0
        %3802 = vmatprep.subr.bf16.mxu0 0
        %3803 = vmatpush1.bf16.msra.mxu0 0
        %3804 = vmatprep.subr.bf16.mxu0 0
        %3805 = vmatpush1.bf16.msra.mxu0 0
        %3806 = vmatprep.subr.bf16.mxu0 0
        %3807 = vmatpush1.bf16.msra.mxu0 0
        %3808 = vmatprep.subr.bf16.mxu0 0
        %3809 = vmatpush1.bf16.msra.mxu0 0
        %3810 = vmatprep.subr.bf16.mxu0 0
        %3811 = vmatpush1.bf16.msra.mxu0 0
        %3812 = vmatprep.mubr.bf16.mxu0 0
        %3813 = vmatmul.mubr.bf16.gmra.mrb[0].mxu0 %v3730
        %v3814 = vpop.f32.mrb[0].mxu0
        %v3815 = vadd.f32 0.0, %v3814
        %v3816 = vpop.f32.mrb[0].mxu0
        %v3817 = vpop.f32.mrb[0].mxu0
        %v3818 = vadd.f32 0.0, %v3817
        %v3819 = vpop.f32.mrb[0].mxu0
        %3820 = vmatprep.mubr.bf16.mxu0 0
        %3821 = vmatmul.mubr.bf16.gmra.mrb[0].mxu0 %v3733
        %v3822 = vpop.f32.mrb[0].mxu0
        %v3823 = vadd.f32 0.0, %v3822
        %v3824 = vpop.f32.mrb[0].mxu0
        %v3825 = vpop.f32.mrb[0].mxu0
        %v3826 = vadd.f32 0.0, %v3825
        %v3827 = vpop.f32.mrb[0].mxu0
        %3828 = vmatprep.mubr.bf16.mxu0 0
        %3829 = vmatmul.mubr.bf16.gmra.mrb[0].mxu0 %v3736
        %v3830 = vpop.f32.mrb[0].mxu0
        %v3831 = vadd.f32 0.0, %v3830
        %v3832 = vpop.f32.mrb[0].mxu0
        %v3833 = vpop.f32.mrb[0].mxu0
        %v3834 = vadd.f32 0.0, %v3833
        %v3835 = vpop.f32.mrb[0].mxu0
        %3836 = vmatprep.mubr.bf16.mxu0 0
        %3837 = vmatmul.mubr.bf16.gmra.mrb[0].mxu0 %v3739
        %v3838 = vpop.f32.mrb[0].mxu0
        %v3839 = vadd.f32 0.0, %v3838
        %v3840 = vpop.f32.mrb[0].mxu0
        %v3841 = vpop.f32.mrb[0].mxu0
        %v3842 = vadd.f32 0.0, %v3841
        %v3843 = vpop.f32.mrb[0].mxu0
        %3844 = vmatprep.mubr.bf16.mxu0 0
        %3845 = vmatmul.mubr.bf16.gmra.mrb[0].mxu0 %v3742
        %v3846 = vpop.f32.mrb[0].mxu0
        %v3847 = vadd.f32 0.0, %v3846
        %v3848 = vpop.f32.mrb[0].mxu0
        %v3849 = vpop.f32.mrb[0].mxu0
        %v3850 = vadd.f32 0.0, %v3849
        %v3851 = vpop.f32.mrb[0].mxu0
        %3852 = vmatprep.mubr.bf16.mxu0 0
        %3853 = vmatmul.mubr.bf16.gmra.mrb[0].mxu0 %v3745
        %v3854 = vpop.f32.mrb[0].mxu0
        %v3855 = vadd.f32 0.0, %v3854
        %v3856 = vpop.f32.mrb[0].mxu0
        %v3857 = vpop.f32.mrb[0].mxu0
        %v3858 = vadd.f32 0.0, %v3857
        %v3859 = vpop.f32.mrb[0].mxu0
        %3860 = vmatprep.mubr.bf16.mxu0 0
        %3861 = vmatmul.mubr.bf16.gmra.mrb[0].mxu0 %v3748
        %v3862 = vpop.f32.mrb[0].mxu0
        %v3863 = vadd.f32 0.0, %v3862
        %v3864 = vpop.f32.mrb[0].mxu0
        %v3865 = vpop.f32.mrb[0].mxu0
        %v3866 = vadd.f32 0.0, %v3865
        %v3867 = vpop.f32.mrb[0].mxu0
        %3868 = vmatprep.mubr.bf16.mxu0 0
        %3869 = vmatmul.mubr.bf16.gmra.mrb[0].mxu0 %v3751
        %v3870 = vpop.f32.mrb[0].mxu0
        %v3871 = vadd.f32 0.0, %v3870
        %v3872 = vpop.f32.mrb[0].mxu0
        %v3873 = vpop.f32.mrb[0].mxu0
        %v3874 = vadd.f32 0.0, %v3873
        %v3875 = vpop.f32.mrb[0].mxu0
        %3876 = vmatprep.mubr.bf16.mxu0 0
        %3877 = vmatmul.mubr.bf16.gmra.mrb[0].mxu0 %v3754
        %v3878 = vpop.f32.mrb[0].mxu0
        %v3879 = vadd.f32 0.0, %v3878
        %v3880 = vpop.f32.mrb[0].mxu0
        %v3881 = vpop.f32.mrb[0].mxu0
        %v3882 = vadd.f32 0.0, %v3881
        %v3883 = vpop.f32.mrb[0].mxu0
        %3884 = vmatprep.mubr.bf16.mxu0 0
        %3885 = vmatmul.mubr.bf16.gmra.mrb[0].mxu0 %v3757
        %v3886 = vpop.f32.mrb[0].mxu0
        %v3887 = vadd.f32 0.0, %v3886
        %v3888 = vpop.f32.mrb[0].mxu0
        %v3889 = vpop.f32.mrb[0].mxu0
        %v3890 = vadd.f32 0.0, %v3889
        %v3891 = vpop.f32.mrb[0].mxu0
        %3892 = vmatprep.mubr.bf16.mxu0 0
        %3893 = vmatmul.mubr.bf16.gmra.mrb[0].mxu0 %v3760
        %v3894 = vpop.f32.mrb[0].mxu0
        %v3895 = vadd.f32 0.0, %v3894
        %v3896 = vpop.f32.mrb[0].mxu0
        %v3897 = vpop.f32.mrb[0].mxu0
        %v3898 = vadd.f32 0.0, %v3897
        %v3899 = vpop.f32.mrb[0].mxu0
        %3900 = vmatprep.mubr.bf16.mxu0 0
        %3901 = vmatmul.mubr.bf16.gmra.mrb[0].mxu0 %v3763
        %v3902 = vpop.f32.mrb[0].mxu0
        %v3903 = vadd.f32 0.0, %v3902
        %v3904 = vpop.f32.mrb[0].mxu0
        %v3905 = vpop.f32.mrb[0].mxu0
        %v3906 = vadd.f32 0.0, %v3905
        %v3907 = vpop.f32.mrb[0].mxu0
        %3908 = vmatprep.mubr.bf16.mxu0 0
        %3909 = vmatmul.mubr.bf16.gmra.mrb[0].mxu0 %v3766
        %v3910 = vpop.f32.mrb[0].mxu0
        %v3911 = vadd.f32 0.0, %v3910
        %v3912 = vpop.f32.mrb[0].mxu0
        %v3913 = vpop.f32.mrb[0].mxu0
        %v3914 = vadd.f32 0.0, %v3913
        %v3915 = vpop.f32.mrb[0].mxu0
        %3916 = vmatprep.mubr.bf16.mxu0 0
        %3917 = vmatmul.mubr.bf16.gmra.mrb[0].mxu0 %v3769
        %v3918 = vpop.f32.mrb[0].mxu0
        %v3919 = vadd.f32 0.0, %v3918
        %v3920 = vpop.f32.mrb[0].mxu0
        %v3921 = vpop.f32.mrb[0].mxu0
        %v3922 = vadd.f32 0.0, %v3921
        %v3923 = vpop.f32.mrb[0].mxu0
        %3924 = vmatprep.mubr.bf16.mxu0 0
        %3925 = vmatmul.mubr.bf16.gmra.mrb[0].mxu0 %v3772
        %v3926 = vpop.f32.mrb[0].mxu0
        %v3927 = vadd.f32 0.0, %v3926
        %v3928 = vpop.f32.mrb[0].mxu0
        %v3929 = vpop.f32.mrb[0].mxu0
        %v3930 = vadd.f32 0.0, %v3929
        %v3931 = vpop.f32.mrb[0].mxu0
        %3932 = vmatprep.mubr.bf16.mxu0 0
        %3933 = vmatmul.mubr.bf16.gmra.mrb[0].mxu0 %v3775
        %v3934 = vpop.f32.mrb[0].mxu0
        %v3935 = vadd.f32 0.0, %v3934
        %v3936 = vpop.f32.mrb[0].mxu0
        %v3937 = vpop.f32.mrb[0].mxu0
        %v3938 = vadd.f32 0.0, %v3937
        %v3939 = vpop.f32.mrb[0].mxu0
        %3940 = vdwg.mxu0
        %v3941 = vadd.f32 %v3544, %v3815
        %v3942 = vadd.f32 %v3545, %v3818
        %v3943 = vadd.f32 %v3546, %v3823
        %v3944 = vadd.f32 %v3547, %v3826
        %v3945 = vadd.f32 %v3548, %v3831
        %v3946 = vadd.f32 %v3549, %v3834
        %v3947 = vadd.f32 %v3550, %v3839
        %v3948 = vadd.f32 %v3551, %v3842
        %v3949 = vadd.f32 %v3552, %v3847
        %v3950 = vadd.f32 %v3553, %v3850
        %v3951 = vadd.f32 %v3554, %v3855
        %v3952 = vadd.f32 %v3555, %v3858
        %v3953 = vadd.f32 %v3556, %v3863
        %v3954 = vadd.f32 %v3557, %v3866
        %v3955 = vadd.f32 %v3558, %v3871
        %v3956 = vadd.f32 %v3559, %v3874
        %v3957 = vadd.f32 %v3560, %v3879
        %v3958 = vadd.f32 %v3561, %v3882
        %v3959 = vadd.f32 %v3562, %v3887
        %v3960 = vadd.f32 %v3563, %v3890
        %v3961 = vadd.f32 %v3564, %v3895
        %v3962 = vadd.f32 %v3565, %v3898
        %v3963 = vadd.f32 %v3566, %v3903
        %v3964 = vadd.f32 %v3567, %v3906
        %v3965 = vadd.f32 %v3568, %v3911
        %v3966 = vadd.f32 %v3569, %v3914
        %v3967 = vadd.f32 %v3570, %v3919
        %v3968 = vadd.f32 %v3571, %v3922
        %v3969 = vadd.f32 %v3572, %v3927
        %v3970 = vadd.f32 %v3573, %v3930
        %v3971 = vadd.f32 %v3574, %v3935
        %v3972 = vadd.f32 %v3575, %v3938
        %s3973 = scalar_lea.vmem %s1, 14
        %v3974 = vld [vmem:[%s3973] sm:$0x3]
        %v3976 = vsel %vm724, %v3165, 0
        %v3979 = vsel %vm724, %v3166, 0
        %v3982 = vsel %vm724, %v3167, 0
        %v3985 = vsel %vm724, %v3168, 0
        %v3988 = vsel %vm724, %v3169, 0
        %v3991 = vsel %vm724, %v3170, 0
        %v3994 = vsel %vm724, %v3171, 0
        %v3997 = vsel %vm724, %v3172, 0
        %v4000 = vsel %vm724, %v3173, 0
        %v4003 = vsel %vm724, %v3174, 0
        %v4006 = vsel %vm724, %v3175, 0
        %v4009 = vsel %vm724, %v3176, 0
        %v4012 = vsel %vm724, %v3177, 0
        %v4015 = vsel %vm724, %v3178, 0
        %v4018 = vsel %vm724, %v3179, 0
        %v4021 = vsel %vm724, %v3577, 0
        %v4024 = vsel %vm1279, %v3974, 0
        %4026 = vmatprep.subr.bf16.mxu0 0
        %4027 = vmatpush1.bf16.msra.mxu0 %v4024
        %4028 = vmatprep.subr.bf16.mxu0 0
        %4029 = vmatpush1.bf16.msra.mxu0 0
        %4030 = vmatprep.subr.bf16.mxu0 0
        %4031 = vmatpush1.bf16.msra.mxu0 0
        %4032 = vmatprep.subr.bf16.mxu0 0
        %4033 = vmatpush1.bf16.msra.mxu0 0
        %4034 = vmatprep.subr.bf16.mxu0 0
        %4035 = vmatpush1.bf16.msra.mxu0 0
        %4036 = vmatprep.subr.bf16.mxu0 0
        %4037 = vmatpush1.bf16.msra.mxu0 0
        %4038 = vmatprep.subr.bf16.mxu0 0
        %4039 = vmatpush1.bf16.msra.mxu0 0
        %4040 = vmatprep.subr.bf16.mxu0 0
        %4041 = vmatpush1.bf16.msra.mxu0 0
        %4042 = vmatprep.subr.bf16.mxu0 0
        %4043 = vmatpush1.bf16.msra.mxu0 0
        %4044 = vmatprep.subr.bf16.mxu0 0
        %4045 = vmatpush1.bf16.msra.mxu0 0
        %4046 = vmatprep.subr.bf16.mxu0 0
        %4047 = vmatpush1.bf16.msra.mxu0 0
        %4048 = vmatprep.subr.bf16.mxu0 0
        %4049 = vmatpush1.bf16.msra.mxu0 0
        %4050 = vmatprep.subr.bf16.mxu0 0
        %4051 = vmatpush1.bf16.msra.mxu0 0
        %4052 = vmatprep.subr.bf16.mxu0 0
        %4053 = vmatpush1.bf16.msra.mxu0 0
        %4054 = vmatprep.subr.bf16.mxu0 0
        %4055 = vmatpush1.bf16.msra.mxu0 0
        %4056 = vmatprep.subr.bf16.mxu0 0
        %4057 = vmatpush1.bf16.msra.mxu0 0
        %4058 = vmatprep.mubr.bf16.mxu0 0
        %4059 = vmatmul.mubr.bf16.gmra.mrb[0].mxu0 %v3976
        %v4060 = vpop.f32.mrb[0].mxu0
        %v4061 = vadd.f32 0.0, %v4060
        %v4062 = vpop.f32.mrb[0].mxu0
        %v4063 = vpop.f32.mrb[0].mxu0
        %v4064 = vadd.f32 0.0, %v4063
        %v4065 = vpop.f32.mrb[0].mxu0
        %4066 = vmatprep.mubr.bf16.mxu0 0
        %4067 = vmatmul.mubr.bf16.gmra.mrb[0].mxu0 %v3979
        %v4068 = vpop.f32.mrb[0].mxu0
        %v4069 = vadd.f32 0.0, %v4068
        %v4070 = vpop.f32.mrb[0].mxu0
        %v4071 = vpop.f32.mrb[0].mxu0
        %v4072 = vadd.f32 0.0, %v4071
        %v4073 = vpop.f32.mrb[0].mxu0
        %4074 = vmatprep.mubr.bf16.mxu0 0
        %4075 = vmatmul.mubr.bf16.gmra.mrb[0].mxu0 %v3982
        %v4076 = vpop.f32.mrb[0].mxu0
        %v4077 = vadd.f32 0.0, %v4076
        %v4078 = vpop.f32.mrb[0].mxu0
        %v4079 = vpop.f32.mrb[0].mxu0
        %v4080 = vadd.f32 0.0, %v4079
        %v4081 = vpop.f32.mrb[0].mxu0
        %4082 = vmatprep.mubr.bf16.mxu0 0
        %4083 = vmatmul.mubr.bf16.gmra.mrb[0].mxu0 %v3985
        %v4084 = vpop.f32.mrb[0].mxu0
        %v4085 = vadd.f32 0.0, %v4084
        %v4086 = vpop.f32.mrb[0].mxu0
        %v4087 = vpop.f32.mrb[0].mxu0
        %v4088 = vadd.f32 0.0, %v4087
        %v4089 = vpop.f32.mrb[0].mxu0
        %4090 = vmatprep.mubr.bf16.mxu0 0
        %4091 = vmatmul.mubr.bf16.gmra.mrb[0].mxu0 %v3988
        %v4092 = vpop.f32.mrb[0].mxu0
        %v4093 = vadd.f32 0.0, %v4092
        %v4094 = vpop.f32.mrb[0].mxu0
        %v4095 = vpop.f32.mrb[0].mxu0
        %v4096 = vadd.f32 0.0, %v4095
        %v4097 = vpop.f32.mrb[0].mxu0
        %4098 = vmatprep.mubr.bf16.mxu0 0
        %4099 = vmatmul.mubr.bf16.gmra.mrb[0].mxu0 %v3991
        %v4100 = vpop.f32.mrb[0].mxu0
        %v4101 = vadd.f32 0.0, %v4100
        %v4102 = vpop.f32.mrb[0].mxu0
        %v4103 = vpop.f32.mrb[0].mxu0
        %v4104 = vadd.f32 0.0, %v4103
        %v4105 = vpop.f32.mrb[0].mxu0
        %4106 = vmatprep.mubr.bf16.mxu0 0
        %4107 = vmatmul.mubr.bf16.gmra.mrb[0].mxu0 %v3994
        %v4108 = vpop.f32.mrb[0].mxu0
        %v4109 = vadd.f32 0.0, %v4108
        %v4110 = vpop.f32.mrb[0].mxu0
        %v4111 = vpop.f32.mrb[0].mxu0
        %v4112 = vadd.f32 0.0, %v4111
        %v4113 = vpop.f32.mrb[0].mxu0
        %4114 = vmatprep.mubr.bf16.mxu0 0
        %4115 = vmatmul.mubr.bf16.gmra.mrb[0].mxu0 %v3997
        %v4116 = vpop.f32.mrb[0].mxu0
        %v4117 = vadd.f32 0.0, %v4116
        %v4118 = vpop.f32.mrb[0].mxu0
        %v4119 = vpop.f32.mrb[0].mxu0
        %v4120 = vadd.f32 0.0, %v4119
        %v4121 = vpop.f32.mrb[0].mxu0
        %4122 = vmatprep.mubr.bf16.mxu0 0
        %4123 = vmatmul.mubr.bf16.gmra.mrb[0].mxu0 %v4000
        %v4124 = vpop.f32.mrb[0].mxu0
        %v4125 = vadd.f32 0.0, %v4124
        %v4126 = vpop.f32.mrb[0].mxu0
        %v4127 = vpop.f32.mrb[0].mxu0
        %v4128 = vadd.f32 0.0, %v4127
        %v4129 = vpop.f32.mrb[0].mxu0
        %4130 = vmatprep.mubr.bf16.mxu0 0
        %4131 = vmatmul.mubr.bf16.gmra.mrb[0].mxu0 %v4003
        %v4132 = vpop.f32.mrb[0].mxu0
        %v4133 = vadd.f32 0.0, %v4132
        %v4134 = vpop.f32.mrb[0].mxu0
        %v4135 = vpop.f32.mrb[0].mxu0
        %v4136 = vadd.f32 0.0, %v4135
        %v4137 = vpop.f32.mrb[0].mxu0
        %4138 = vmatprep.mubr.bf16.mxu0 0
        %4139 = vmatmul.mubr.bf16.gmra.mrb[0].mxu0 %v4006
        %v4140 = vpop.f32.mrb[0].mxu0
        %v4141 = vadd.f32 0.0, %v4140
        %v4142 = vpop.f32.mrb[0].mxu0
        %v4143 = vpop.f32.mrb[0].mxu0
        %v4144 = vadd.f32 0.0, %v4143
        %v4145 = vpop.f32.mrb[0].mxu0
        %4146 = vmatprep.mubr.bf16.mxu0 0
        %4147 = vmatmul.mubr.bf16.gmra.mrb[0].mxu0 %v4009
        %v4148 = vpop.f32.mrb[0].mxu0
        %v4149 = vadd.f32 0.0, %v4148
        %v4150 = vpop.f32.mrb[0].mxu0
        %v4151 = vpop.f32.mrb[0].mxu0
        %v4152 = vadd.f32 0.0, %v4151
        %v4153 = vpop.f32.mrb[0].mxu0
        %4154 = vmatprep.mubr.bf16.mxu0 0
        %4155 = vmatmul.mubr.bf16.gmra.mrb[0].mxu0 %v4012
        %v4156 = vpop.f32.mrb[0].mxu0
        %v4157 = vadd.f32 0.0, %v4156
        %v4158 = vpop.f32.mrb[0].mxu0
        %v4159 = vpop.f32.mrb[0].mxu0
        %v4160 = vadd.f32 0.0, %v4159
        %v4161 = vpop.f32.mrb[0].mxu0
        %4162 = vmatprep.mubr.bf16.mxu0 0
        %4163 = vmatmul.mubr.bf16.gmra.mrb[0].mxu0 %v4015
        %v4164 = vpop.f32.mrb[0].mxu0
        %v4165 = vadd.f32 0.0, %v4164
        %v4166 = vpop.f32.mrb[0].mxu0
        %v4167 = vpop.f32.mrb[0].mxu0
        %v4168 = vadd.f32 0.0, %v4167
        %v4169 = vpop.f32.mrb[0].mxu0
        %4170 = vmatprep.mubr.bf16.mxu0 0
        %4171 = vmatmul.mubr.bf16.gmra.mrb[0].mxu0 %v4018
        %v4172 = vpop.f32.mrb[0].mxu0
        %v4173 = vadd.f32 0.0, %v4172
        %v4174 = vpop.f32.mrb[0].mxu0
        %v4175 = vpop.f32.mrb[0].mxu0
        %v4176 = vadd.f32 0.0, %v4175
        %v4177 = vpop.f32.mrb[0].mxu0
        %4178 = vmatprep.mubr.bf16.mxu0 0
        %4179 = vmatmul.mubr.bf16.gmra.mrb[0].mxu0 %v4021
        %v4180 = vpop.f32.mrb[0].mxu0
        %v4181 = vadd.f32 0.0, %v4180
        %v4182 = vpop.f32.mrb[0].mxu0
        %v4183 = vpop.f32.mrb[0].mxu0
        %v4184 = vadd.f32 0.0, %v4183
        %v4185 = vpop.f32.mrb[0].mxu0
        %4186 = vdwg.mxu0
        %v4187 = vadd.f32 %v3941, %v4061
        %v4188 = vadd.f32 %v3942, %v4064
        %v4189 = vadd.f32 %v3943, %v4069
        %v4190 = vadd.f32 %v3944, %v4072
        %v4191 = vadd.f32 %v3945, %v4077
        %v4192 = vadd.f32 %v3946, %v4080
        %v4193 = vadd.f32 %v3947, %v4085
        %v4194 = vadd.f32 %v3948, %v4088
        %v4195 = vadd.f32 %v3949, %v4093
        %v4196 = vadd.f32 %v3950, %v4096
        %v4197 = vadd.f32 %v3951, %v4101
        %v4198 = vadd.f32 %v3952, %v4104
        %v4199 = vadd.f32 %v3953, %v4109
        %v4200 = vadd.f32 %v3954, %v4112
        %v4201 = vadd.f32 %v3955, %v4117
        %v4202 = vadd.f32 %v3956, %v4120
        %v4203 = vadd.f32 %v3957, %v4125
        %v4204 = vadd.f32 %v3958, %v4128
        %v4205 = vadd.f32 %v3959, %v4133
        %v4206 = vadd.f32 %v3960, %v4136
        %v4207 = vadd.f32 %v3961, %v4141
        %v4208 = vadd.f32 %v3962, %v4144
        %v4209 = vadd.f32 %v3963, %v4149
        %v4210 = vadd.f32 %v3964, %v4152
        %v4211 = vadd.f32 %v3965, %v4157
        %v4212 = vadd.f32 %v3966, %v4160
        %v4213 = vadd.f32 %v3967, %v4165
        %v4214 = vadd.f32 %v3968, %v4168
        %v4215 = vadd.f32 %v3969, %v4173
        %v4216 = vadd.f32 %v3970, %v4176
        %v4217 = vadd.f32 %v3971, %v4181
        %v4218 = vadd.f32 %v3972, %v4184
        %v4219 = vld [vmem:[#allocation2 + $0x18] sm:$0xff]
        %v4220 = vld [vmem:[#allocation2 + $0x20] sm:$0xff]
        %v4221 = vld [vmem:[#allocation2 + $0x28] sm:$0xff]
        %v4222 = vld [vmem:[#allocation2 + $0x30] sm:$0xff]
        %v4223 = vld [vmem:[#allocation2 + $0x38] sm:$0xff]
        %v4224 = vld [vmem:[#allocation2 + $0x40] sm:$0xff]
        %v4225 = vld [vmem:[#allocation2 + $0x48] sm:$0xff]
        %v4226 = vld [vmem:[#allocation2 + $0x50] sm:$0xff]
        %v4227 = vld [vmem:[#allocation2 + $0x58] sm:$0xff]
        %v4228 = vld [vmem:[#allocation2 + $0x60] sm:$0xff]
        %v4229 = vld [vmem:[#allocation2 + $0x68] sm:$0xff]
        %v4230 = vld [vmem:[#allocation2 + $0x70] sm:$0xff]
        %v4231 = vld [vmem:[#allocation2 + $0x78] sm:$0xff]
        %v4232 = vld [vmem:[#allocation2 + $0x80] sm:$0xff]
        %v4233 = vld [vmem:[#allocation2 + $0x88] sm:$0xff]
        %v4234 = vld [vmem:[#allocation2 + $0x90] sm:$0xff]
        %v4235 = vld [vmem:[#allocation2 + $0x98] sm:$0x1]
        %v4236 = vsel %vm2109, %v4219, 0
        %v4237 = vsel %vm2110, %v4220, 0
        %v4238 = vsel %vm2111, %v4221, 0
        %v4239 = vsel %vm2112, %v4222, 0
        %v4240 = vsel %vm2113, %v4223, 0
        %v4241 = vsel %vm2114, %v4224, 0
        %v4242 = vsel %vm2115, %v4225, 0
        %v4243 = vsel %vm2116, %v4226, 0
        %v4244 = vsel %vm2117, %v4227, 0
        %v4245 = vsel %vm2118, %v4228, 0
        %v4246 = vsel %vm2119, %v4229, 0
        %v4247 = vsel %vm2120, %v4230, 0
        %v4248 = vsel %vm2121, %v4231, 0
        %v4249 = vsel %vm2122, %v4232, 0
        %v4250 = vsel %vm2123, %v4233, 0
        %v4251 = vsel %vm2124, %v4234, 0
        %v4252 = vsel %vm2125, %v4235, 0
        %s4253 = scalar_lea.vmem %s1, 16
        %v4254 = vld [vmem:[%s4253] sm:$0x3]
        %v4256 = vshrl.u32 %v4236, 16
        %v4258 = vshll.u32 %v4236, 16
        %v4260 = vrot.slane %v4258, 1
        %v4261 = vor.u32 %v4256, %v4260
        %v4263 = vshll.u32 %v4237, 16
        %v4265 = vrot.slane %v4263, 1
        %v4266 = vsel %vm1066, %v4261, %v4265
        %v4267 = vshrl.u32 %v4237, 16
        %v4269 = vor.u32 %v4267, %v4265
        %v4271 = vshll.u32 %v4238, 16
        %v4273 = vrot.slane %v4271, 1
        %v4274 = vsel %vm1066, %v4269, %v4273
        %v4275 = vshrl.u32 %v4238, 16
        %v4277 = vor.u32 %v4275, %v4273
        %v4279 = vshll.u32 %v4239, 16
        %v4281 = vrot.slane %v4279, 1
        %v4282 = vsel %vm1066, %v4277, %v4281
        %v4283 = vshrl.u32 %v4239, 16
        %v4285 = vor.u32 %v4283, %v4281
        %v4287 = vshll.u32 %v4240, 16
        %v4289 = vrot.slane %v4287, 1
        %v4290 = vsel %vm1066, %v4285, %v4289
        %v4291 = vshrl.u32 %v4240, 16
        %v4293 = vor.u32 %v4291, %v4289
        %v4295 = vshll.u32 %v4241, 16
        %v4297 = vrot.slane %v4295, 1
        %v4298 = vsel %vm1066, %v4293, %v4297
        %v4299 = vshrl.u32 %v4241, 16
        %v4301 = vor.u32 %v4299, %v4297
        %v4303 = vshll.u32 %v4242, 16
        %v4305 = vrot.slane %v4303, 1
        %v4306 = vsel %vm1066, %v4301, %v4305
        %v4307 = vshrl.u32 %v4242, 16
        %v4309 = vor.u32 %v4307, %v4305
        %v4311 = vshll.u32 %v4243, 16
        %v4313 = vrot.slane %v4311, 1
        %v4314 = vsel %vm1066, %v4309, %v4313
        %v4315 = vshrl.u32 %v4243, 16
        %v4317 = vor.u32 %v4315, %v4313
        %v4319 = vshll.u32 %v4244, 16
        %v4321 = vrot.slane %v4319, 1
        %v4322 = vsel %vm1066, %v4317, %v4321
        %v4323 = vshrl.u32 %v4244, 16
        %v4325 = vor.u32 %v4323, %v4321
        %v4327 = vshll.u32 %v4245, 16
        %v4329 = vrot.slane %v4327, 1
        %v4330 = vsel %vm1066, %v4325, %v4329
        %v4331 = vshrl.u32 %v4245, 16
        %v4333 = vor.u32 %v4331, %v4329
        %v4335 = vshll.u32 %v4246, 16
        %v4337 = vrot.slane %v4335, 1
        %v4338 = vsel %vm1066, %v4333, %v4337
        %v4339 = vshrl.u32 %v4246, 16
        %v4341 = vor.u32 %v4339, %v4337
        %v4343 = vshll.u32 %v4247, 16
        %v4345 = vrot.slane %v4343, 1
        %v4346 = vsel %vm1066, %v4341, %v4345
        %v4347 = vshrl.u32 %v4247, 16
        %v4349 = vor.u32 %v4347, %v4345
        %v4351 = vshll.u32 %v4248, 16
        %v4353 = vrot.slane %v4351, 1
        %v4354 = vsel %vm1066, %v4349, %v4353
        %v4355 = vshrl.u32 %v4248, 16
        %v4357 = vor.u32 %v4355, %v4353
        %v4359 = vshll.u32 %v4249, 16
        %v4361 = vrot.slane %v4359, 1
        %v4362 = vsel %vm1066, %v4357, %v4361
        %v4363 = vshrl.u32 %v4249, 16
        %v4365 = vor.u32 %v4363, %v4361
        %v4367 = vshll.u32 %v4250, 16
        %v4369 = vrot.slane %v4367, 1
        %v4370 = vsel %vm1066, %v4365, %v4369
        %v4371 = vshrl.u32 %v4250, 16
        %v4373 = vor.u32 %v4371, %v4369
        %v4375 = vshll.u32 %v4251, 16
        %v4377 = vrot.slane %v4375, 1
        %v4378 = vsel %vm1066, %v4373, %v4377
        %v4379 = vshrl.u32 %v4251, 16
        %v4381 = vor.u32 %v4379, %v4377
        %v4383 = vshll.u32 %v4252, 16
        %v4385 = vrot.slane %v4383, 1
        %v4386 = vsel %vm1066, %v4381, %v4385
        %v4388 = vsel %vm724, %v4266, 0
        %v4391 = vsel %vm724, %v4274, 0
        %v4394 = vsel %vm724, %v4282, 0
        %v4397 = vsel %vm724, %v4290, 0
        %v4400 = vsel %vm724, %v4298, 0
        %v4403 = vsel %vm724, %v4306, 0
        %v4406 = vsel %vm724, %v4314, 0
        %v4409 = vsel %vm724, %v4322, 0
        %v4412 = vsel %vm724, %v4330, 0
        %v4415 = vsel %vm724, %v4338, 0
        %v4418 = vsel %vm724, %v4346, 0
        %v4421 = vsel %vm724, %v4354, 0
        %v4424 = vsel %vm724, %v4362, 0
        %v4427 = vsel %vm724, %v4370, 0
        %v4430 = vsel %vm724, %v4378, 0
        %v4433 = vsel %vm724, %v4386, 0
        %v4436 = vsel %vm1279, %v4254, 0
        %4438 = vmatprep.subr.bf16.mxu0 0
        %4439 = vmatpush1.bf16.msra.mxu0 %v4436
        %4440 = vmatprep.subr.bf16.mxu0 0
        %4441 = vmatpush1.bf16.msra.mxu0 0
        %4442 = vmatprep.subr.bf16.mxu0 0
        %4443 = vmatpush1.bf16.msra.mxu0 0
        %4444 = vmatprep.subr.bf16.mxu0 0
        %4445 = vmatpush1.bf16.msra.mxu0 0
        %4446 = vmatprep.subr.bf16.mxu0 0
        %4447 = vmatpush1.bf16.msra.mxu0 0
        %4448 = vmatprep.subr.bf16.mxu0 0
        %4449 = vmatpush1.bf16.msra.mxu0 0
        %4450 = vmatprep.subr.bf16.mxu0 0
        %4451 = vmatpush1.bf16.msra.mxu0 0
        %4452 = vmatprep.subr.bf16.mxu0 0
        %4453 = vmatpush1.bf16.msra.mxu0 0
        %4454 = vmatprep.subr.bf16.mxu0 0
        %4455 = vmatpush1.bf16.msra.mxu0 0
        %4456 = vmatprep.subr.bf16.mxu0 0
        %4457 = vmatpush1.bf16.msra.mxu0 0
        %4458 = vmatprep.subr.bf16.mxu0 0
        %4459 = vmatpush1.bf16.msra.mxu0 0
        %4460 = vmatprep.subr.bf16.mxu0 0
        %4461 = vmatpush1.bf16.msra.mxu0 0
        %4462 = vmatprep.subr.bf16.mxu0 0
        %4463 = vmatpush1.bf16.msra.mxu0 0
        %4464 = vmatprep.subr.bf16.mxu0 0
        %4465 = vmatpush1.bf16.msra.mxu0 0
        %4466 = vmatprep.subr.bf16.mxu0 0
        %4467 = vmatpush1.bf16.msra.mxu0 0
        %4468 = vmatprep.subr.bf16.mxu0 0
        %4469 = vmatpush1.bf16.msra.mxu0 0
        %4470 = vmatprep.mubr.bf16.mxu0 0
        %4471 = vmatmul.mubr.bf16.gmra.mrb[0].mxu0 %v4388
        %v4472 = vpop.f32.mrb[0].mxu0
        %v4473 = vadd.f32 0.0, %v4472
        %v4474 = vpop.f32.mrb[0].mxu0
        %v4475 = vpop.f32.mrb[0].mxu0
        %v4476 = vadd.f32 0.0, %v4475
        %v4477 = vpop.f32.mrb[0].mxu0
        %4478 = vmatprep.mubr.bf16.mxu0 0
        %4479 = vmatmul.mubr.bf16.gmra.mrb[0].mxu0 %v4391
        %v4480 = vpop.f32.mrb[0].mxu0
        %v4481 = vadd.f32 0.0, %v4480
        %v4482 = vpop.f32.mrb[0].mxu0
        %v4483 = vpop.f32.mrb[0].mxu0
        %v4484 = vadd.f32 0.0, %v4483
        %v4485 = vpop.f32.mrb[0].mxu0
        %4486 = vmatprep.mubr.bf16.mxu0 0
        %4487 = vmatmul.mubr.bf16.gmra.mrb[0].mxu0 %v4394
        %v4488 = vpop.f32.mrb[0].mxu0
        %v4489 = vadd.f32 0.0, %v4488
        %v4490 = vpop.f32.mrb[0].mxu0
        %v4491 = vpop.f32.mrb[0].mxu0
        %v4492 = vadd.f32 0.0, %v4491
        %v4493 = vpop.f32.mrb[0].mxu0
        %4494 = vmatprep.mubr.bf16.mxu0 0
        %4495 = vmatmul.mubr.bf16.gmra.mrb[0].mxu0 %v4397
        %v4496 = vpop.f32.mrb[0].mxu0
        %v4497 = vadd.f32 0.0, %v4496
        %v4498 = vpop.f32.mrb[0].mxu0
        %v4499 = vpop.f32.mrb[0].mxu0
        %v4500 = vadd.f32 0.0, %v4499
        %v4501 = vpop.f32.mrb[0].mxu0
        %4502 = vmatprep.mubr.bf16.mxu0 0
        %4503 = vmatmul.mubr.bf16.gmra.mrb[0].mxu0 %v4400
        %v4504 = vpop.f32.mrb[0].mxu0
        %v4505 = vadd.f32 0.0, %v4504
        %v4506 = vpop.f32.mrb[0].mxu0
        %v4507 = vpop.f32.mrb[0].mxu0
        %v4508 = vadd.f32 0.0, %v4507
        %v4509 = vpop.f32.mrb[0].mxu0
        %4510 = vmatprep.mubr.bf16.mxu0 0
        %4511 = vmatmul.mubr.bf16.gmra.mrb[0].mxu0 %v4403
        %v4512 = vpop.f32.mrb[0].mxu0
        %v4513 = vadd.f32 0.0, %v4512
        %v4514 = vpop.f32.mrb[0].mxu0
        %v4515 = vpop.f32.mrb[0].mxu0
        %v4516 = vadd.f32 0.0, %v4515
        %v4517 = vpop.f32.mrb[0].mxu0
        %4518 = vmatprep.mubr.bf16.mxu0 0
        %4519 = vmatmul.mubr.bf16.gmra.mrb[0].mxu0 %v4406
        %v4520 = vpop.f32.mrb[0].mxu0
        %v4521 = vadd.f32 0.0, %v4520
        %v4522 = vpop.f32.mrb[0].mxu0
        %v4523 = vpop.f32.mrb[0].mxu0
        %v4524 = vadd.f32 0.0, %v4523
        %v4525 = vpop.f32.mrb[0].mxu0
        %4526 = vmatprep.mubr.bf16.mxu0 0
        %4527 = vmatmul.mubr.bf16.gmra.mrb[0].mxu0 %v4409
        %v4528 = vpop.f32.mrb[0].mxu0
        %v4529 = vadd.f32 0.0, %v4528
        %v4530 = vpop.f32.mrb[0].mxu0
        %v4531 = vpop.f32.mrb[0].mxu0
        %v4532 = vadd.f32 0.0, %v4531
        %v4533 = vpop.f32.mrb[0].mxu0
        %4534 = vmatprep.mubr.bf16.mxu0 0
        %4535 = vmatmul.mubr.bf16.gmra.mrb[0].mxu0 %v4412
        %v4536 = vpop.f32.mrb[0].mxu0
        %v4537 = vadd.f32 0.0, %v4536
        %v4538 = vpop.f32.mrb[0].mxu0
        %v4539 = vpop.f32.mrb[0].mxu0
        %v4540 = vadd.f32 0.0, %v4539
        %v4541 = vpop.f32.mrb[0].mxu0
        %4542 = vmatprep.mubr.bf16.mxu0 0
        %4543 = vmatmul.mubr.bf16.gmra.mrb[0].mxu0 %v4415
        %v4544 = vpop.f32.mrb[0].mxu0
        %v4545 = vadd.f32 0.0, %v4544
        %v4546 = vpop.f32.mrb[0].mxu0
        %v4547 = vpop.f32.mrb[0].mxu0
        %v4548 = vadd.f32 0.0, %v4547
        %v4549 = vpop.f32.mrb[0].mxu0
        %4550 = vmatprep.mubr.bf16.mxu0 0
        %4551 = vmatmul.mubr.bf16.gmra.mrb[0].mxu0 %v4418
        %v4552 = vpop.f32.mrb[0].mxu0
        %v4553 = vadd.f32 0.0, %v4552
        %v4554 = vpop.f32.mrb[0].mxu0
        %v4555 = vpop.f32.mrb[0].mxu0
        %v4556 = vadd.f32 0.0, %v4555
        %v4557 = vpop.f32.mrb[0].mxu0
        %4558 = vmatprep.mubr.bf16.mxu0 0
        %4559 = vmatmul.mubr.bf16.gmra.mrb[0].mxu0 %v4421
        %v4560 = vpop.f32.mrb[0].mxu0
        %v4561 = vadd.f32 0.0, %v4560
        %v4562 = vpop.f32.mrb[0].mxu0
        %v4563 = vpop.f32.mrb[0].mxu0
        %v4564 = vadd.f32 0.0, %v4563
        %v4565 = vpop.f32.mrb[0].mxu0
        %4566 = vmatprep.mubr.bf16.mxu0 0
        %4567 = vmatmul.mubr.bf16.gmra.mrb[0].mxu0 %v4424
        %v4568 = vpop.f32.mrb[0].mxu0
        %v4569 = vadd.f32 0.0, %v4568
        %v4570 = vpop.f32.mrb[0].mxu0
        %v4571 = vpop.f32.mrb[0].mxu0
        %v4572 = vadd.f32 0.0, %v4571
        %v4573 = vpop.f32.mrb[0].mxu0
        %4574 = vmatprep.mubr.bf16.mxu0 0
        %4575 = vmatmul.mubr.bf16.gmra.mrb[0].mxu0 %v4427
        %v4576 = vpop.f32.mrb[0].mxu0
        %v4577 = vadd.f32 0.0, %v4576
        %v4578 = vpop.f32.mrb[0].mxu0
        %v4579 = vpop.f32.mrb[0].mxu0
        %v4580 = vadd.f32 0.0, %v4579
        %v4581 = vpop.f32.mrb[0].mxu0
        %4582 = vmatprep.mubr.bf16.mxu0 0
        %4583 = vmatmul.mubr.bf16.gmra.mrb[0].mxu0 %v4430
        %v4584 = vpop.f32.mrb[0].mxu0
        %v4585 = vadd.f32 0.0, %v4584
        %v4586 = vpop.f32.mrb[0].mxu0
        %v4587 = vpop.f32.mrb[0].mxu0
        %v4588 = vadd.f32 0.0, %v4587
        %v4589 = vpop.f32.mrb[0].mxu0
        %4590 = vmatprep.mubr.bf16.mxu0 0
        %4591 = vmatmul.mubr.bf16.gmra.mrb[0].mxu0 %v4433
        %v4592 = vpop.f32.mrb[0].mxu0
        %v4593 = vadd.f32 0.0, %v4592
        %v4594 = vpop.f32.mrb[0].mxu0
        %v4595 = vpop.f32.mrb[0].mxu0
        %v4596 = vadd.f32 0.0, %v4595
        %v4597 = vpop.f32.mrb[0].mxu0
        %4598 = vdwg.mxu0
        %v4599 = vadd.f32 %v4187, %v4473
        %v4600 = vadd.f32 %v4188, %v4476
        %v4601 = vadd.f32 %v4189, %v4481
        %v4602 = vadd.f32 %v4190, %v4484
        %v4603 = vadd.f32 %v4191, %v4489
        %v4604 = vadd.f32 %v4192, %v4492
        %v4605 = vadd.f32 %v4193, %v4497
        %v4606 = vadd.f32 %v4194, %v4500
        %v4607 = vadd.f32 %v4195, %v4505
        %v4608 = vadd.f32 %v4196, %v4508
        %v4609 = vadd.f32 %v4197, %v4513
        %v4610 = vadd.f32 %v4198, %v4516
        %v4611 = vadd.f32 %v4199, %v4521
        %v4612 = vadd.f32 %v4200, %v4524
        %v4613 = vadd.f32 %v4201, %v4529
        %v4614 = vadd.f32 %v4202, %v4532
        %v4615 = vadd.f32 %v4203, %v4537
        %v4616 = vadd.f32 %v4204, %v4540
        %v4617 = vadd.f32 %v4205, %v4545
        %v4618 = vadd.f32 %v4206, %v4548
        %v4619 = vadd.f32 %v4207, %v4553
        %v4620 = vadd.f32 %v4208, %v4556
        %v4621 = vadd.f32 %v4209, %v4561
        %v4622 = vadd.f32 %v4210, %v4564
        %v4623 = vadd.f32 %v4211, %v4569
        %v4624 = vadd.f32 %v4212, %v4572
        %v4625 = vadd.f32 %v4213, %v4577
        %v4626 = vadd.f32 %v4214, %v4580
        %v4627 = vadd.f32 %v4215, %v4585
        %v4628 = vadd.f32 %v4216, %v4588
        %v4629 = vadd.f32 %v4217, %v4593
        %v4630 = vadd.f32 %v4218, %v4596
        %v4631 = vld [vmem:[%s2] sm:$0x1]
        %v4633 = vlaneseq
        %v4634 = vshrl.u32 %v4633, 7
        %v4635 = vsub.s32 0, %v4634
        %v4636 = vrot.slane %v4631, %v4635
        %v4638 = vadd.f32 %v4599, %v4636
        %v4639 = vadd.f32 %v4600, %v4636
        %v4640 = vadd.f32 %v4601, %v4636
        %v4641 = vadd.f32 %v4602, %v4636
        %v4642 = vadd.f32 %v4603, %v4636
        %v4643 = vadd.f32 %v4604, %v4636
        %v4644 = vadd.f32 %v4605, %v4636
        %v4645 = vadd.f32 %v4606, %v4636
        %v4646 = vadd.f32 %v4607, %v4636
        %v4647 = vadd.f32 %v4608, %v4636
        %v4648 = vadd.f32 %v4609, %v4636
        %v4649 = vadd.f32 %v4610, %v4636
        %v4650 = vadd.f32 %v4611, %v4636
        %v4651 = vadd.f32 %v4612, %v4636
        %v4652 = vadd.f32 %v4613, %v4636
        %v4653 = vadd.f32 %v4614, %v4636
        %v4654 = vadd.f32 %v4615, %v4636
        %v4655 = vadd.f32 %v4616, %v4636
        %v4656 = vadd.f32 %v4617, %v4636
        %v4657 = vadd.f32 %v4618, %v4636
        %v4658 = vadd.f32 %v4619, %v4636
        %v4659 = vadd.f32 %v4620, %v4636
        %v4660 = vadd.f32 %v4621, %v4636
        %v4661 = vadd.f32 %v4622, %v4636
        %v4662 = vadd.f32 %v4623, %v4636
        %v4663 = vadd.f32 %v4624, %v4636
        %v4664 = vadd.f32 %v4625, %v4636
        %v4665 = vadd.f32 %v4626, %v4636
        %v4666 = vadd.f32 %v4627, %v4636
        %v4667 = vadd.f32 %v4628, %v4636
        %v4668 = vadd.f32 %v4629, %v4636
        %v4669 = vadd.f32 %v4630, %v4636
        %v4670 = vmax.f32 %v4638, 0.0
        %v4671 = vmax.f32 %v4639, 0.0
        %v4672 = vmax.f32 %v4640, 0.0
        %v4673 = vmax.f32 %v4641, 0.0
        %v4674 = vmax.f32 %v4642, 0.0
        %v4675 = vmax.f32 %v4643, 0.0
        %v4676 = vmax.f32 %v4644, 0.0
        %v4677 = vmax.f32 %v4645, 0.0
        %v4678 = vmax.f32 %v4646, 0.0
        %v4679 = vmax.f32 %v4647, 0.0
        %v4680 = vmax.f32 %v4648, 0.0
        %v4681 = vmax.f32 %v4649, 0.0
        %v4682 = vmax.f32 %v4650, 0.0
        %v4683 = vmax.f32 %v4651, 0.0
        %v4684 = vmax.f32 %v4652, 0.0
        %v4685 = vmax.f32 %v4653, 0.0
        %v4686 = vmax.f32 %v4654, 0.0
        %v4687 = vmax.f32 %v4655, 0.0
        %v4688 = vmax.f32 %v4656, 0.0
        %v4689 = vmax.f32 %v4657, 0.0
        %v4690 = vmax.f32 %v4658, 0.0
        %v4691 = vmax.f32 %v4659, 0.0
        %v4692 = vmax.f32 %v4660, 0.0
        %v4693 = vmax.f32 %v4661, 0.0
        %v4694 = vmax.f32 %v4662, 0.0
        %v4695 = vmax.f32 %v4663, 0.0
        %v4696 = vmax.f32 %v4664, 0.0
        %v4697 = vmax.f32 %v4665, 0.0
        %v4698 = vmax.f32 %v4666, 0.0
        %v4699 = vmax.f32 %v4667, 0.0
        %v4700 = vmax.f32 %v4668, 0.0
        %v4701 = vmax.f32 %v4669, 0.0
        %vm4702 = vcmask 523264
        %4703 = vst.msk [vmem:[#allocation3] sm:$0xff] %vm4702, 0
        %4704 = vst.msk [vmem:[#allocation3 + $0x8] sm:$0xff] %vm4702, 0
        %4705 = vst.msk [vmem:[#allocation3 + $0x90] sm:$0xff] %vm4702, 0
        %4706 = vst.msk [vmem:[#allocation3 + $0x98] sm:$0xff] %vm4702, 0
        %v4707 = vpack.c.bf16 %v4671, %v4670
        %v4708 = vpack.c.bf16 %v4673, %v4672
        %v4709 = vpack.c.bf16 %v4675, %v4674
        %v4710 = vpack.c.bf16 %v4677, %v4676
        %v4711 = vpack.c.bf16 %v4679, %v4678
        %v4712 = vpack.c.bf16 %v4681, %v4680
        %v4713 = vpack.c.bf16 %v4683, %v4682
        %v4714 = vpack.c.bf16 %v4685, %v4684
        %v4715 = vpack.c.bf16 %v4687, %v4686
        %v4716 = vpack.c.bf16 %v4689, %v4688
        %v4717 = vpack.c.bf16 %v4691, %v4690
        %v4718 = vpack.c.bf16 %v4693, %v4692
        %v4719 = vpack.c.bf16 %v4695, %v4694
        %v4720 = vpack.c.bf16 %v4697, %v4696
        %v4721 = vpack.c.bf16 %v4699, %v4698
        %v4722 = vpack.c.bf16 %v4701, %v4700
        %4723 = vst.msk [vmem:[#allocation3 + $0x10] sm:$0xff] %vm4702, %v4707
        %4724 = vst.msk [vmem:[#allocation3 + $0x18] sm:$0xff] %vm4702, %v4708
        %4725 = vst.msk [vmem:[#allocation3 + $0x20] sm:$0xff] %vm4702, %v4709
        %4726 = vst.msk [vmem:[#allocation3 + $0x28] sm:$0xff] %vm4702, %v4710
        %4727 = vst.msk [vmem:[#allocation3 + $0x30] sm:$0xff] %vm4702, %v4711
        %4728 = vst.msk [vmem:[#allocation3 + $0x38] sm:$0xff] %vm4702, %v4712
        %4729 = vst.msk [vmem:[#allocation3 + $0x40] sm:$0xff] %vm4702, %v4713
        %4730 = vst.msk [vmem:[#allocation3 + $0x48] sm:$0xff] %vm4702, %v4714
        %4731 = vst.msk [vmem:[#allocation3 + $0x50] sm:$0xff] %vm4702, %v4715
        %4732 = vst.msk [vmem:[#allocation3 + $0x58] sm:$0xff] %vm4702, %v4716
        %4733 = vst.msk [vmem:[#allocation3 + $0x60] sm:$0xff] %vm4702, %v4717
        %4734 = vst.msk [vmem:[#allocation3 + $0x68] sm:$0xff] %vm4702, %v4718
        %4735 = vst.msk [vmem:[#allocation3 + $0x70] sm:$0xff] %vm4702, %v4719
        %4736 = vst.msk [vmem:[#allocation3 + $0x78] sm:$0xff] %vm4702, %v4720
        %4737 = vst.msk [vmem:[#allocation3 + $0x80] sm:$0xff] %vm4702, %v4721
        %4738 = vst.msk [vmem:[#allocation3 + $0x88] sm:$0xff] %vm4702, %v4722
        %v4739 = vld [vmem:[#allocation3] sm:$0x80]
        %v4740 = vld [vmem:[#allocation3 + $0x8] sm:$0xff]
        %v4741 = vld [vmem:[#allocation3 + $0x10] sm:$0xff]
        %v4742 = vld [vmem:[#allocation3 + $0x18] sm:$0xff]
        %v4743 = vld [vmem:[#allocation3 + $0x20] sm:$0xff]
        %v4744 = vld [vmem:[#allocation3 + $0x28] sm:$0xff]
        %v4745 = vld [vmem:[#allocation3 + $0x30] sm:$0xff]
        %v4746 = vld [vmem:[#allocation3 + $0x38] sm:$0xff]
        %v4747 = vld [vmem:[#allocation3 + $0x40] sm:$0xff]
        %v4748 = vld [vmem:[#allocation3 + $0x48] sm:$0xff]
        %v4749 = vld [vmem:[#allocation3 + $0x50] sm:$0xff]
        %v4750 = vld [vmem:[#allocation3 + $0x58] sm:$0xff]
        %v4751 = vld [vmem:[#allocation3 + $0x60] sm:$0xff]
        %v4752 = vld [vmem:[#allocation3 + $0x68] sm:$0xff]
        %v4753 = vld [vmem:[#allocation3 + $0x70] sm:$0xff]
        %v4754 = vld [vmem:[#allocation3 + $0x78] sm:$0xff]
        %v4755 = vld [vmem:[#allocation3 + $0x80] sm:$0xff]
        %v4756 = vsel %vm1194, %v4739, 0
        %v4757 = vsel %vm1195, %v4740, 0
        %v4758 = vsel %vm1196, %v4741, 0
        %v4759 = vsel %vm1197, %v4742, 0
        %v4760 = vsel %vm1198, %v4743, 0
        %v4761 = vsel %vm1199, %v4744, 0
        %v4762 = vsel %vm1200, %v4745, 0
        %v4763 = vsel %vm1201, %v4746, 0
        %v4764 = vsel %vm1202, %v4747, 0
        %v4765 = vsel %vm1203, %v4748, 0
        %v4766 = vsel %vm1204, %v4749, 0
        %v4767 = vsel %vm1205, %v4750, 0
        %v4768 = vsel %vm1206, %v4751, 0
        %v4769 = vsel %vm1207, %v4752, 0
        %v4770 = vsel %vm1208, %v4753, 0
        %v4771 = vsel %vm1209, %v4754, 0
        %v4772 = vsel %vm1210, %v4755, 0
        %v4773 = vld [vmem:[#allocation4] sm:$0xf]
        %v4774 = vld [vmem:[#allocation4 + $0x4] sm:$0xf]
        %v4775 = vld [vmem:[#allocation4 + $0x8] sm:$0xf]
        %v4776 = vld [vmem:[#allocation4 + $0xc] sm:$0xf]
        %v4777 = vld [vmem:[#allocation4 + $0x10] sm:$0xf]
        %v4778 = vld [vmem:[#allocation4 + $0x14] sm:$0xf]
        %v4779 = vld [vmem:[#allocation4 + $0x18] sm:$0xf]
        %v4780 = vld [vmem:[#allocation4 + $0x1c] sm:$0xf]
        %s4781 = scalar_lea.vmem [#allocation4], 32
        %v4782 = vld [vmem:[%s4781] sm:$0xf]
        %v4783 = vld [vmem:[%s4781 + $0x4] sm:$0xf]
        %v4784 = vld [vmem:[%s4781 + $0x8] sm:$0xf]
        %v4785 = vld [vmem:[%s4781 + $0xc] sm:$0xf]
        %v4786 = vld [vmem:[%s4781 + $0x10] sm:$0xf]
        %v4787 = vld [vmem:[%s4781 + $0x14] sm:$0xf]
        %v4788 = vld [vmem:[%s4781 + $0x18] sm:$0xf]
        %v4789 = vld [vmem:[%s4781 + $0x1c] sm:$0xf]
        %v4798 = vunpack.c.l.b16 %v4782
        %v4799 = vunpack.c.l.b16 %v4783
        %v4800 = vunpack.c.l.b16 %v4784
        %v4801 = vunpack.c.l.b16 %v4785
        %v4802 = vunpack.c.l.b16 %v4786
        %v4803 = vunpack.c.l.b16 %v4787
        %v4804 = vunpack.c.l.b16 %v4788
        %v4805 = vunpack.c.l.b16 %v4789
        %v4806 = vpack.c.b16 %v4799, %v4798
        %v4807 = vpack.c.b16 %v4801, %v4800
        %v4808 = vpack.c.b16 %v4803, %v4802
        %v4809 = vpack.c.b16 %v4805, %v4804
        %v4815 = vsel %vm4702, %v4740, 0
        %v4818 = vsel %vm4702, %v4741, 0
        %v4821 = vsel %vm4702, %v4742, 0
        %v4824 = vsel %vm4702, %v4743, 0
        %v4827 = vsel %vm4702, %v4744, 0
        %v4830 = vsel %vm4702, %v4745, 0
        %v4833 = vsel %vm4702, %v4746, 0
        %v4836 = vsel %vm4702, %v4747, 0
        %v4839 = vsel %vm4702, %v4748, 0
        %v4842 = vsel %vm4702, %v4749, 0
        %v4845 = vsel %vm4702, %v4750, 0
        %v4848 = vsel %vm4702, %v4751, 0
        %v4851 = vsel %vm4702, %v4752, 0
        %v4854 = vsel %vm4702, %v4753, 0
        %v4857 = vsel %vm4702, %v4754, 0
        %v4860 = vsel %vm4702, %v4755, 0
        %4862 = vmatprep.subr.bf16.mxu0 0
        %4863 = vmatpush1.bf16.msra.mxu0 %v4806
        %4864 = vmatprep.subr.bf16.mxu0 0
        %4865 = vmatpush1.bf16.msra.mxu0 %v4807
        %4866 = vmatprep.subr.bf16.mxu0 0
        %4867 = vmatpush1.bf16.msra.mxu0 %v4808
        %4868 = vmatprep.subr.bf16.mxu0 0
        %4869 = vmatpush1.bf16.msra.mxu0 %v4809
        %4870 = vmatprep.subr.bf16.mxu0 0
        %4871 = vmatpush1.bf16.msra.mxu0 0
        %4872 = vmatprep.subr.bf16.mxu0 0
        %4873 = vmatpush1.bf16.msra.mxu0 0
        %4874 = vmatprep.subr.bf16.mxu0 0
        %4875 = vmatpush1.bf16.msra.mxu0 0
        %4876 = vmatprep.subr.bf16.mxu0 0
        %4877 = vmatpush1.bf16.msra.mxu0 0
        %4878 = vmatprep.subr.bf16.mxu0 0
        %4879 = vmatpush1.bf16.msra.mxu0 0
        %4880 = vmatprep.subr.bf16.mxu0 0
        %4881 = vmatpush1.bf16.msra.mxu0 0
        %4882 = vmatprep.subr.bf16.mxu0 0
        %4883 = vmatpush1.bf16.msra.mxu0 0
        %4884 = vmatprep.subr.bf16.mxu0 0
        %4885 = vmatpush1.bf16.msra.mxu0 0
        %4886 = vmatprep.subr.bf16.mxu0 0
        %4887 = vmatpush1.bf16.msra.mxu0 0
        %4888 = vmatprep.subr.bf16.mxu0 0
        %4889 = vmatpush1.bf16.msra.mxu0 0
        %4890 = vmatprep.subr.bf16.mxu0 0
        %4891 = vmatpush1.bf16.msra.mxu0 0
        %4892 = vmatprep.subr.bf16.mxu0 0
        %4893 = vmatpush1.bf16.msra.mxu0 0
        %4894 = vmatprep.mubr.bf16.mxu0 0
        %4895 = vmatmul.mubr.bf16.gmra.mrb[0].mxu0 %v4815
        %v4896 = vpop.f32.mrb[0].mxu0
        %v4897 = vadd.f32 0.0, %v4896
        %v4898 = vpop.f32.mrb[0].mxu0
        %v4899 = vpop.f32.mrb[0].mxu0
        %v4900 = vadd.f32 0.0, %v4899
        %v4901 = vpop.f32.mrb[0].mxu0
        %4902 = vmatprep.mubr.bf16.mxu0 0
        %4903 = vmatmul.mubr.bf16.gmra.mrb[0].mxu0 %v4818
        %v4904 = vpop.f32.mrb[0].mxu0
        %v4905 = vadd.f32 0.0, %v4904
        %v4906 = vpop.f32.mrb[0].mxu0
        %v4907 = vpop.f32.mrb[0].mxu0
        %v4908 = vadd.f32 0.0, %v4907
        %v4909 = vpop.f32.mrb[0].mxu0
        %4910 = vmatprep.mubr.bf16.mxu0 0
        %4911 = vmatmul.mubr.bf16.gmra.mrb[0].mxu0 %v4821
        %v4912 = vpop.f32.mrb[0].mxu0
        %v4913 = vadd.f32 0.0, %v4912
        %v4914 = vpop.f32.mrb[0].mxu0
        %v4915 = vpop.f32.mrb[0].mxu0
        %v4916 = vadd.f32 0.0, %v4915
        %v4917 = vpop.f32.mrb[0].mxu0
        %4918 = vmatprep.mubr.bf16.mxu0 0
        %4919 = vmatmul.mubr.bf16.gmra.mrb[0].mxu0 %v4824
        %v4920 = vpop.f32.mrb[0].mxu0
        %v4921 = vadd.f32 0.0, %v4920
        %v4922 = vpop.f32.mrb[0].mxu0
        %v4923 = vpop.f32.mrb[0].mxu0
        %v4924 = vadd.f32 0.0, %v4923
        %v4925 = vpop.f32.mrb[0].mxu0
        %4926 = vmatprep.mubr.bf16.mxu0 0
        %4927 = vmatmul.mubr.bf16.gmra.mrb[0].mxu0 %v4827
        %v4928 = vpop.f32.mrb[0].mxu0
        %v4929 = vadd.f32 0.0, %v4928
        %v4930 = vpop.f32.mrb[0].mxu0
        %v4931 = vpop.f32.mrb[0].mxu0
        %v4932 = vadd.f32 0.0, %v4931
        %v4933 = vpop.f32.mrb[0].mxu0
        %4934 = vmatprep.mubr.bf16.mxu0 0
        %4935 = vmatmul.mubr.bf16.gmra.mrb[0].mxu0 %v4830
        %v4936 = vpop.f32.mrb[0].mxu0
        %v4937 = vadd.f32 0.0, %v4936
        %v4938 = vpop.f32.mrb[0].mxu0
        %v4939 = vpop.f32.mrb[0].mxu0
        %v4940 = vadd.f32 0.0, %v4939
        %v4941 = vpop.f32.mrb[0].mxu0
        %4942 = vmatprep.mubr.bf16.mxu0 0
        %4943 = vmatmul.mubr.bf16.gmra.mrb[0].mxu0 %v4833
        %v4944 = vpop.f32.mrb[0].mxu0
        %v4945 = vadd.f32 0.0, %v4944
        %v4946 = vpop.f32.mrb[0].mxu0
        %v4947 = vpop.f32.mrb[0].mxu0
        %v4948 = vadd.f32 0.0, %v4947
        %v4949 = vpop.f32.mrb[0].mxu0
        %4950 = vmatprep.mubr.bf16.mxu0 0
        %4951 = vmatmul.mubr.bf16.gmra.mrb[0].mxu0 %v4836
        %v4952 = vpop.f32.mrb[0].mxu0
        %v4953 = vadd.f32 0.0, %v4952
        %v4954 = vpop.f32.mrb[0].mxu0
        %v4955 = vpop.f32.mrb[0].mxu0
        %v4956 = vadd.f32 0.0, %v4955
        %v4957 = vpop.f32.mrb[0].mxu0
        %4958 = vmatprep.mubr.bf16.mxu0 0
        %4959 = vmatmul.mubr.bf16.gmra.mrb[0].mxu0 %v4839
        %v4960 = vpop.f32.mrb[0].mxu0
        %v4961 = vadd.f32 0.0, %v4960
        %v4962 = vpop.f32.mrb[0].mxu0
        %v4963 = vpop.f32.mrb[0].mxu0
        %v4964 = vadd.f32 0.0, %v4963
        %v4965 = vpop.f32.mrb[0].mxu0
        %4966 = vmatprep.mubr.bf16.mxu0 0
        %4967 = vmatmul.mubr.bf16.gmra.mrb[0].mxu0 %v4842
        %v4968 = vpop.f32.mrb[0].mxu0
        %v4969 = vadd.f32 0.0, %v4968
        %v4970 = vpop.f32.mrb[0].mxu0
        %v4971 = vpop.f32.mrb[0].mxu0
        %v4972 = vadd.f32 0.0, %v4971
        %v4973 = vpop.f32.mrb[0].mxu0
        %4974 = vmatprep.mubr.bf16.mxu0 0
        %4975 = vmatmul.mubr.bf16.gmra.mrb[0].mxu0 %v4845
        %v4976 = vpop.f32.mrb[0].mxu0
        %v4977 = vadd.f32 0.0, %v4976
        %v4978 = vpop.f32.mrb[0].mxu0
        %v4979 = vpop.f32.mrb[0].mxu0
        %v4980 = vadd.f32 0.0, %v4979
        %v4981 = vpop.f32.mrb[0].mxu0
        %4982 = vmatprep.mubr.bf16.mxu0 0
        %4983 = vmatmul.mubr.bf16.gmra.mrb[0].mxu0 %v4848
        %v4984 = vpop.f32.mrb[0].mxu0
        %v4985 = vadd.f32 0.0, %v4984
        %v4986 = vpop.f32.mrb[0].mxu0
        %v4987 = vpop.f32.mrb[0].mxu0
        %v4988 = vadd.f32 0.0, %v4987
        %v4989 = vpop.f32.mrb[0].mxu0
        %4990 = vmatprep.mubr.bf16.mxu0 0
        %4991 = vmatmul.mubr.bf16.gmra.mrb[0].mxu0 %v4851
        %v4992 = vpop.f32.mrb[0].mxu0
        %v4993 = vadd.f32 0.0, %v4992
        %v4994 = vpop.f32.mrb[0].mxu0
        %v4995 = vpop.f32.mrb[0].mxu0
        %v4996 = vadd.f32 0.0, %v4995
        %v4997 = vpop.f32.mrb[0].mxu0
        %4998 = vmatprep.mubr.bf16.mxu0 0
        %4999 = vmatmul.mubr.bf16.gmra.mrb[0].mxu0 %v4854
        %v5000 = vpop.f32.mrb[0].mxu0
        %v5001 = vadd.f32 0.0, %v5000
        %v5002 = vpop.f32.mrb[0].mxu0
        %v5003 = vpop.f32.mrb[0].mxu0
        %v5004 = vadd.f32 0.0, %v5003
        %v5005 = vpop.f32.mrb[0].mxu0
        %5006 = vmatprep.mubr.bf16.mxu0 0
        %5007 = vmatmul.mubr.bf16.gmra.mrb[0].mxu0 %v4857
        %v5008 = vpop.f32.mrb[0].mxu0
        %v5009 = vadd.f32 0.0, %v5008
        %v5010 = vpop.f32.mrb[0].mxu0
        %v5011 = vpop.f32.mrb[0].mxu0
        %v5012 = vadd.f32 0.0, %v5011
        %v5013 = vpop.f32.mrb[0].mxu0
        %5014 = vmatprep.mubr.bf16.mxu0 0
        %5015 = vmatmul.mubr.bf16.gmra.mrb[0].mxu0 %v4860
        %v5016 = vpop.f32.mrb[0].mxu0
        %v5017 = vadd.f32 0.0, %v5016
        %v5018 = vpop.f32.mrb[0].mxu0
        %v5019 = vpop.f32.mrb[0].mxu0
        %v5020 = vadd.f32 0.0, %v5019
        %v5021 = vpop.f32.mrb[0].mxu0
        %5022 = vdwg.mxu0
        %v5024 = vshrl.u32 %v4756, 16
        %v5026 = vrot.slane %v5024, 7
        %v5028 = vshrl.u32 %v4757, 16
        %v5030 = vrot.slane %v5028, 7
        %v5031 = vshll.u32 %v4757, 16
        %v5033 = vor.u32 %v5030, %v5031
        %v5034 = vsel %vm1444, %v5026, %v5033
        %v5036 = vshrl.u32 %v4758, 16
        %v5038 = vrot.slane %v5036, 7
        %v5039 = vshll.u32 %v4758, 16
        %v5041 = vor.u32 %v5038, %v5039
        %v5042 = vsel %vm1444, %v5030, %v5041
        %v5044 = vshrl.u32 %v4759, 16
        %v5046 = vrot.slane %v5044, 7
        %v5047 = vshll.u32 %v4759, 16
        %v5049 = vor.u32 %v5046, %v5047
        %v5050 = vsel %vm1444, %v5038, %v5049
        %v5052 = vshrl.u32 %v4760, 16
        %v5054 = vrot.slane %v5052, 7
        %v5055 = vshll.u32 %v4760, 16
        %v5057 = vor.u32 %v5054, %v5055
        %v5058 = vsel %vm1444, %v5046, %v5057
        %v5060 = vshrl.u32 %v4761, 16
        %v5062 = vrot.slane %v5060, 7
        %v5063 = vshll.u32 %v4761, 16
        %v5065 = vor.u32 %v5062, %v5063
        %v5066 = vsel %vm1444, %v5054, %v5065
        %v5068 = vshrl.u32 %v4762, 16
        %v5070 = vrot.slane %v5068, 7
        %v5071 = vshll.u32 %v4762, 16
        %v5073 = vor.u32 %v5070, %v5071
        %v5074 = vsel %vm1444, %v5062, %v5073
        %v5076 = vshrl.u32 %v4763, 16
        %v5078 = vrot.slane %v5076, 7
        %v5079 = vshll.u32 %v4763, 16
        %v5081 = vor.u32 %v5078, %v5079
        %v5082 = vsel %vm1444, %v5070, %v5081
        %v5084 = vshrl.u32 %v4764, 16
        %v5086 = vrot.slane %v5084, 7
        %v5087 = vshll.u32 %v4764, 16
        %v5089 = vor.u32 %v5086, %v5087
        %v5090 = vsel %vm1444, %v5078, %v5089
        %v5092 = vshrl.u32 %v4765, 16
        %v5094 = vrot.slane %v5092, 7
        %v5095 = vshll.u32 %v4765, 16
        %v5097 = vor.u32 %v5094, %v5095
        %v5098 = vsel %vm1444, %v5086, %v5097
        %v5100 = vshrl.u32 %v4766, 16
        %v5102 = vrot.slane %v5100, 7
        %v5103 = vshll.u32 %v4766, 16
        %v5105 = vor.u32 %v5102, %v5103
        %v5106 = vsel %vm1444, %v5094, %v5105
        %v5108 = vshrl.u32 %v4767, 16
        %v5110 = vrot.slane %v5108, 7
        %v5111 = vshll.u32 %v4767, 16
        %v5113 = vor.u32 %v5110, %v5111
        %v5114 = vsel %vm1444, %v5102, %v5113
        %v5116 = vshrl.u32 %v4768, 16
        %v5118 = vrot.slane %v5116, 7
        %v5119 = vshll.u32 %v4768, 16
        %v5121 = vor.u32 %v5118, %v5119
        %v5122 = vsel %vm1444, %v5110, %v5121
        %v5124 = vshrl.u32 %v4769, 16
        %v5126 = vrot.slane %v5124, 7
        %v5127 = vshll.u32 %v4769, 16
        %v5129 = vor.u32 %v5126, %v5127
        %v5130 = vsel %vm1444, %v5118, %v5129
        %v5132 = vshrl.u32 %v4770, 16
        %v5134 = vrot.slane %v5132, 7
        %v5135 = vshll.u32 %v4770, 16
        %v5137 = vor.u32 %v5134, %v5135
        %v5138 = vsel %vm1444, %v5126, %v5137
        %v5140 = vshrl.u32 %v4771, 16
        %v5142 = vrot.slane %v5140, 7
        %v5143 = vshll.u32 %v4771, 16
        %v5145 = vor.u32 %v5142, %v5143
        %v5146 = vsel %vm1444, %v5134, %v5145
        %v5148 = vshrl.u32 %v4772, 16
        %v5150 = vrot.slane %v5148, 7
        %v5151 = vshll.u32 %v4772, 16
        %v5153 = vor.u32 %v5150, %v5151
        %v5154 = vsel %vm1444, %v5142, %v5153
        %v5163 = vunpack.c.l.b16 %v4773
        %v5164 = vunpack.c.l.b16 %v4774
        %v5165 = vunpack.c.l.b16 %v4775
        %v5166 = vunpack.c.l.b16 %v4776
        %v5167 = vunpack.c.l.b16 %v4777
        %v5168 = vunpack.c.l.b16 %v4778
        %v5169 = vunpack.c.l.b16 %v4779
        %v5170 = vunpack.c.l.b16 %v4780
        %v5171 = vpack.c.b16 %v5164, %v5163
        %v5172 = vpack.c.b16 %v5166, %v5165
        %v5173 = vpack.c.b16 %v5168, %v5167
        %v5174 = vpack.c.b16 %v5170, %v5169
        %v5180 = vsel %vm4702, %v5034, 0
        %v5183 = vsel %vm4702, %v5042, 0
        %v5186 = vsel %vm4702, %v5050, 0
        %v5189 = vsel %vm4702, %v5058, 0
        %v5192 = vsel %vm4702, %v5066, 0
        %v5195 = vsel %vm4702, %v5074, 0
        %v5198 = vsel %vm4702, %v5082, 0
        %v5201 = vsel %vm4702, %v5090, 0
        %v5204 = vsel %vm4702, %v5098, 0
        %v5207 = vsel %vm4702, %v5106, 0
        %v5210 = vsel %vm4702, %v5114, 0
        %v5213 = vsel %vm4702, %v5122, 0
        %v5216 = vsel %vm4702, %v5130, 0
        %v5219 = vsel %vm4702, %v5138, 0
        %v5222 = vsel %vm4702, %v5146, 0
        %v5225 = vsel %vm4702, %v5154, 0
        %5227 = vmatprep.subr.bf16.mxu0 0
        %5228 = vmatpush1.bf16.msra.mxu0 %v5171
        %5229 = vmatprep.subr.bf16.mxu0 0
        %5230 = vmatpush1.bf16.msra.mxu0 %v5172
        %5231 = vmatprep.subr.bf16.mxu0 0
        %5232 = vmatpush1.bf16.msra.mxu0 %v5173
        %5233 = vmatprep.subr.bf16.mxu0 0
        %5234 = vmatpush1.bf16.msra.mxu0 %v5174
        %5235 = vmatprep.subr.bf16.mxu0 0
        %5236 = vmatpush1.bf16.msra.mxu0 0
        %5237 = vmatprep.subr.bf16.mxu0 0
        %5238 = vmatpush1.bf16.msra.mxu0 0
        %5239 = vmatprep.subr.bf16.mxu0 0
        %5240 = vmatpush1.bf16.msra.mxu0 0
        %5241 = vmatprep.subr.bf16.mxu0 0
        %5242 = vmatpush1.bf16.msra.mxu0 0
        %5243 = vmatprep.subr.bf16.mxu0 0
        %5244 = vmatpush1.bf16.msra.mxu0 0
        %5245 = vmatprep.subr.bf16.mxu0 0
        %5246 = vmatpush1.bf16.msra.mxu0 0
        %5247 = vmatprep.subr.bf16.mxu0 0
        %5248 = vmatpush1.bf16.msra.mxu0 0
        %5249 = vmatprep.subr.bf16.mxu0 0
        %5250 = vmatpush1.bf16.msra.mxu0 0
        %5251 = vmatprep.subr.bf16.mxu0 0
        %5252 = vmatpush1.bf16.msra.mxu0 0
        %5253 = vmatprep.subr.bf16.mxu0 0
        %5254 = vmatpush1.bf16.msra.mxu0 0
        %5255 = vmatprep.subr.bf16.mxu0 0
        %5256 = vmatpush1.bf16.msra.mxu0 0
        %5257 = vmatprep.subr.bf16.mxu0 0
        %5258 = vmatpush1.bf16.msra.mxu0 0
        %5259 = vmatprep.mubr.bf16.mxu0 0
        %5260 = vmatmul.mubr.bf16.gmra.mrb[0].mxu0 %v5180
        %v5261 = vpop.f32.mrb[0].mxu0
        %v5262 = vadd.f32 %v4897, %v5261
        %v5263 = vpop.f32.mrb[0].mxu0
        %v5264 = vpop.f32.mrb[0].mxu0
        %v5265 = vadd.f32 %v4900, %v5264
        %v5266 = vpop.f32.mrb[0].mxu0
        %5267 = vmatprep.mubr.bf16.mxu0 0
        %5268 = vmatmul.mubr.bf16.gmra.mrb[0].mxu0 %v5183
        %v5269 = vpop.f32.mrb[0].mxu0
        %v5270 = vadd.f32 %v4905, %v5269
        %v5271 = vpop.f32.mrb[0].mxu0
        %v5272 = vpop.f32.mrb[0].mxu0
        %v5273 = vadd.f32 %v4908, %v5272
        %v5274 = vpop.f32.mrb[0].mxu0
        %5275 = vmatprep.mubr.bf16.mxu0 0
        %5276 = vmatmul.mubr.bf16.gmra.mrb[0].mxu0 %v5186
        %v5277 = vpop.f32.mrb[0].mxu0
        %v5278 = vadd.f32 %v4913, %v5277
        %v5279 = vpop.f32.mrb[0].mxu0
        %v5280 = vpop.f32.mrb[0].mxu0
        %v5281 = vadd.f32 %v4916, %v5280
        %v5282 = vpop.f32.mrb[0].mxu0
        %5283 = vmatprep.mubr.bf16.mxu0 0
        %5284 = vmatmul.mubr.bf16.gmra.mrb[0].mxu0 %v5189
        %v5285 = vpop.f32.mrb[0].mxu0
        %v5286 = vadd.f32 %v4921, %v5285
        %v5287 = vpop.f32.mrb[0].mxu0
        %v5288 = vpop.f32.mrb[0].mxu0
        %v5289 = vadd.f32 %v4924, %v5288
        %v5290 = vpop.f32.mrb[0].mxu0
        %5291 = vmatprep.mubr.bf16.mxu0 0
        %5292 = vmatmul.mubr.bf16.gmra.mrb[0].mxu0 %v5192
        %v5293 = vpop.f32.mrb[0].mxu0
        %v5294 = vadd.f32 %v4929, %v5293
        %v5295 = vpop.f32.mrb[0].mxu0
        %v5296 = vpop.f32.mrb[0].mxu0
        %v5297 = vadd.f32 %v4932, %v5296
        %v5298 = vpop.f32.mrb[0].mxu0
        %5299 = vmatprep.mubr.bf16.mxu0 0
        %5300 = vmatmul.mubr.bf16.gmra.mrb[0].mxu0 %v5195
        %v5301 = vpop.f32.mrb[0].mxu0
        %v5302 = vadd.f32 %v4937, %v5301
        %v5303 = vpop.f32.mrb[0].mxu0
        %v5304 = vpop.f32.mrb[0].mxu0
        %v5305 = vadd.f32 %v4940, %v5304
        %v5306 = vpop.f32.mrb[0].mxu0
        %5307 = vmatprep.mubr.bf16.mxu0 0
        %5308 = vmatmul.mubr.bf16.gmra.mrb[0].mxu0 %v5198
        %v5309 = vpop.f32.mrb[0].mxu0
        %v5310 = vadd.f32 %v4945, %v5309
        %v5311 = vpop.f32.mrb[0].mxu0
        %v5312 = vpop.f32.mrb[0].mxu0
        %v5313 = vadd.f32 %v4948, %v5312
        %v5314 = vpop.f32.mrb[0].mxu0
        %5315 = vmatprep.mubr.bf16.mxu0 0
        %5316 = vmatmul.mubr.bf16.gmra.mrb[0].mxu0 %v5201
        %v5317 = vpop.f32.mrb[0].mxu0
        %v5318 = vadd.f32 %v4953, %v5317
        %v5319 = vpop.f32.mrb[0].mxu0
        %v5320 = vpop.f32.mrb[0].mxu0
        %v5321 = vadd.f32 %v4956, %v5320
        %v5322 = vpop.f32.mrb[0].mxu0
        %5323 = vmatprep.mubr.bf16.mxu0 0
        %5324 = vmatmul.mubr.bf16.gmra.mrb[0].mxu0 %v5204
        %v5325 = vpop.f32.mrb[0].mxu0
        %v5326 = vadd.f32 %v4961, %v5325
        %v5327 = vpop.f32.mrb[0].mxu0
        %v5328 = vpop.f32.mrb[0].mxu0
        %v5329 = vadd.f32 %v4964, %v5328
        %v5330 = vpop.f32.mrb[0].mxu0
        %5331 = vmatprep.mubr.bf16.mxu0 0
        %5332 = vmatmul.mubr.bf16.gmra.mrb[0].mxu0 %v5207
        %v5333 = vpop.f32.mrb[0].mxu0
        %v5334 = vadd.f32 %v4969, %v5333
        %v5335 = vpop.f32.mrb[0].mxu0
        %v5336 = vpop.f32.mrb[0].mxu0
        %v5337 = vadd.f32 %v4972, %v5336
        %v5338 = vpop.f32.mrb[0].mxu0
        %5339 = vmatprep.mubr.bf16.mxu0 0
        %5340 = vmatmul.mubr.bf16.gmra.mrb[0].mxu0 %v5210
        %v5341 = vpop.f32.mrb[0].mxu0
        %v5342 = vadd.f32 %v4977, %v5341
        %v5343 = vpop.f32.mrb[0].mxu0
        %v5344 = vpop.f32.mrb[0].mxu0
        %v5345 = vadd.f32 %v4980, %v5344
        %v5346 = vpop.f32.mrb[0].mxu0
        %5347 = vmatprep.mubr.bf16.mxu0 0
        %5348 = vmatmul.mubr.bf16.gmra.mrb[0].mxu0 %v5213
        %v5349 = vpop.f32.mrb[0].mxu0
        %v5350 = vadd.f32 %v4985, %v5349
        %v5351 = vpop.f32.mrb[0].mxu0
        %v5352 = vpop.f32.mrb[0].mxu0
        %v5353 = vadd.f32 %v4988, %v5352
        %v5354 = vpop.f32.mrb[0].mxu0
        %5355 = vmatprep.mubr.bf16.mxu0 0
        %5356 = vmatmul.mubr.bf16.gmra.mrb[0].mxu0 %v5216
        %v5357 = vpop.f32.mrb[0].mxu0
        %v5358 = vadd.f32 %v4993, %v5357
        %v5359 = vpop.f32.mrb[0].mxu0
        %v5360 = vpop.f32.mrb[0].mxu0
        %v5361 = vadd.f32 %v4996, %v5360
        %v5362 = vpop.f32.mrb[0].mxu0
        %5363 = vmatprep.mubr.bf16.mxu0 0
        %5364 = vmatmul.mubr.bf16.gmra.mrb[0].mxu0 %v5219
        %v5365 = vpop.f32.mrb[0].mxu0
        %v5366 = vadd.f32 %v5001, %v5365
        %v5367 = vpop.f32.mrb[0].mxu0
        %v5368 = vpop.f32.mrb[0].mxu0
        %v5369 = vadd.f32 %v5004, %v5368
        %v5370 = vpop.f32.mrb[0].mxu0
        %5371 = vmatprep.mubr.bf16.mxu0 0
        %5372 = vmatmul.mubr.bf16.gmra.mrb[0].mxu0 %v5222
        %v5373 = vpop.f32.mrb[0].mxu0
        %v5374 = vadd.f32 %v5009, %v5373
        %v5375 = vpop.f32.mrb[0].mxu0
        %v5376 = vpop.f32.mrb[0].mxu0
        %v5377 = vadd.f32 %v5012, %v5376
        %v5378 = vpop.f32.mrb[0].mxu0
        %5379 = vmatprep.mubr.bf16.mxu0 0
        %5380 = vmatmul.mubr.bf16.gmra.mrb[0].mxu0 %v5225
        %v5381 = vpop.f32.mrb[0].mxu0
        %v5382 = vadd.f32 %v5017, %v5381
        %v5383 = vpop.f32.mrb[0].mxu0
        %v5384 = vpop.f32.mrb[0].mxu0
        %v5385 = vadd.f32 %v5020, %v5384
        %v5386 = vpop.f32.mrb[0].mxu0
        %5387 = vdwg.mxu0
        %v5388 = vld [vmem:[#allocation3 + $0x8] sm:$0xff]
        %v5389 = vld [vmem:[#allocation3 + $0x10] sm:$0xff]
        %v5390 = vld [vmem:[#allocation3 + $0x18] sm:$0xff]
        %v5391 = vld [vmem:[#allocation3 + $0x20] sm:$0xff]
        %v5392 = vld [vmem:[#allocation3 + $0x28] sm:$0xff]
        %v5393 = vld [vmem:[#allocation3 + $0x30] sm:$0xff]
        %v5394 = vld [vmem:[#allocation3 + $0x38] sm:$0xff]
        %v5395 = vld [vmem:[#allocation3 + $0x40] sm:$0xff]
        %v5396 = vld [vmem:[#allocation3 + $0x48] sm:$0xff]
        %v5397 = vld [vmem:[#allocation3 + $0x50] sm:$0xff]
        %v5398 = vld [vmem:[#allocation3 + $0x58] sm:$0xff]
        %v5399 = vld [vmem:[#allocation3 + $0x60] sm:$0xff]
        %v5400 = vld [vmem:[#allocation3 + $0x68] sm:$0xff]
        %v5401 = vld [vmem:[#allocation3 + $0x70] sm:$0xff]
        %v5402 = vld [vmem:[#allocation3 + $0x78] sm:$0xff]
        %v5403 = vld [vmem:[#allocation3 + $0x80] sm:$0xff]
        %v5404 = vld [vmem:[#allocation3 + $0x88] sm:$0x1]
        %v5405 = vsel %vm2109, %v5388, 0
        %v5406 = vsel %vm2110, %v5389, 0
        %v5407 = vsel %vm2111, %v5390, 0
        %v5408 = vsel %vm2112, %v5391, 0
        %v5409 = vsel %vm2113, %v5392, 0
        %v5410 = vsel %vm2114, %v5393, 0
        %v5411 = vsel %vm2115, %v5394, 0
        %v5412 = vsel %vm2116, %v5395, 0
        %v5413 = vsel %vm2117, %v5396, 0
        %v5414 = vsel %vm2118, %v5397, 0
        %v5415 = vsel %vm2119, %v5398, 0
        %v5416 = vsel %vm2120, %v5399, 0
        %v5417 = vsel %vm2121, %v5400, 0
        %v5418 = vsel %vm2122, %v5401, 0
        %v5419 = vsel %vm2123, %v5402, 0
        %v5420 = vsel %vm2124, %v5403, 0
        %v5421 = vsel %vm2125, %v5404, 0
        %s5422 = scalar_lea.vmem [#allocation4], 64
        %v5423 = vld [vmem:[%s5422] sm:$0xf]
        %v5424 = vld [vmem:[%s5422 + $0x4] sm:$0xf]
        %v5425 = vld [vmem:[%s5422 + $0x8] sm:$0xf]
        %v5426 = vld [vmem:[%s5422 + $0xc] sm:$0xf]
        %v5427 = vld [vmem:[%s5422 + $0x10] sm:$0xf]
        %v5428 = vld [vmem:[%s5422 + $0x14] sm:$0xf]
        %v5429 = vld [vmem:[%s5422 + $0x18] sm:$0xf]
        %v5430 = vld [vmem:[%s5422 + $0x1c] sm:$0xf]
        %v5432 = vshrl.u32 %v5405, 16
        %v5434 = vshll.u32 %v5405, 16
        %v5436 = vrot.slane %v5434, 1
        %v5437 = vor.u32 %v5432, %v5436
        %v5439 = vshll.u32 %v5406, 16
        %v5441 = vrot.slane %v5439, 1
        %v5442 = vsel %vm1066, %v5437, %v5441
        %v5443 = vshrl.u32 %v5406, 16
        %v5445 = vor.u32 %v5443, %v5441
        %v5447 = vshll.u32 %v5407, 16
        %v5449 = vrot.slane %v5447, 1
        %v5450 = vsel %vm1066, %v5445, %v5449
        %v5451 = vshrl.u32 %v5407, 16
        %v5453 = vor.u32 %v5451, %v5449
        %v5455 = vshll.u32 %v5408, 16
        %v5457 = vrot.slane %v5455, 1
        %v5458 = vsel %vm1066, %v5453, %v5457
        %v5459 = vshrl.u32 %v5408, 16
        %v5461 = vor.u32 %v5459, %v5457
        %v5463 = vshll.u32 %v5409, 16
        %v5465 = vrot.slane %v5463, 1
        %v5466 = vsel %vm1066, %v5461, %v5465
        %v5467 = vshrl.u32 %v5409, 16
        %v5469 = vor.u32 %v5467, %v5465
        %v5471 = vshll.u32 %v5410, 16
        %v5473 = vrot.slane %v5471, 1
        %v5474 = vsel %vm1066, %v5469, %v5473
        %v5475 = vshrl.u32 %v5410, 16
        %v5477 = vor.u32 %v5475, %v5473
        %v5479 = vshll.u32 %v5411, 16
        %v5481 = vrot.slane %v5479, 1
        %v5482 = vsel %vm1066, %v5477, %v5481
        %v5483 = vshrl.u32 %v5411, 16
        %v5485 = vor.u32 %v5483, %v5481
        %v5487 = vshll.u32 %v5412, 16
        %v5489 = vrot.slane %v5487, 1
        %v5490 = vsel %vm1066, %v5485, %v5489
        %v5491 = vshrl.u32 %v5412, 16
        %v5493 = vor.u32 %v5491, %v5489
        %v5495 = vshll.u32 %v5413, 16
        %v5497 = vrot.slane %v5495, 1
        %v5498 = vsel %vm1066, %v5493, %v5497
        %v5499 = vshrl.u32 %v5413, 16
        %v5501 = vor.u32 %v5499, %v5497
        %v5503 = vshll.u32 %v5414, 16
        %v5505 = vrot.slane %v5503, 1
        %v5506 = vsel %vm1066, %v5501, %v5505
        %v5507 = vshrl.u32 %v5414, 16
        %v5509 = vor.u32 %v5507, %v5505
        %v5511 = vshll.u32 %v5415, 16
        %v5513 = vrot.slane %v5511, 1
        %v5514 = vsel %vm1066, %v5509, %v5513
        %v5515 = vshrl.u32 %v5415, 16
        %v5517 = vor.u32 %v5515, %v5513
        %v5519 = vshll.u32 %v5416, 16
        %v5521 = vrot.slane %v5519, 1
        %v5522 = vsel %vm1066, %v5517, %v5521
        %v5523 = vshrl.u32 %v5416, 16
        %v5525 = vor.u32 %v5523, %v5521
        %v5527 = vshll.u32 %v5417, 16
        %v5529 = vrot.slane %v5527, 1
        %v5530 = vsel %vm1066, %v5525, %v5529
        %v5531 = vshrl.u32 %v5417, 16
        %v5533 = vor.u32 %v5531, %v5529
        %v5535 = vshll.u32 %v5418, 16
        %v5537 = vrot.slane %v5535, 1
        %v5538 = vsel %vm1066, %v5533, %v5537
        %v5539 = vshrl.u32 %v5418, 16
        %v5541 = vor.u32 %v5539, %v5537
        %v5543 = vshll.u32 %v5419, 16
        %v5545 = vrot.slane %v5543, 1
        %v5546 = vsel %vm1066, %v5541, %v5545
        %v5547 = vshrl.u32 %v5419, 16
        %v5549 = vor.u32 %v5547, %v5545
        %v5551 = vshll.u32 %v5420, 16
        %v5553 = vrot.slane %v5551, 1
        %v5554 = vsel %vm1066, %v5549, %v5553
        %v5555 = vshrl.u32 %v5420, 16
        %v5557 = vor.u32 %v5555, %v5553
        %v5559 = vshll.u32 %v5421, 16
        %v5561 = vrot.slane %v5559, 1
        %v5562 = vsel %vm1066, %v5557, %v5561
        %v5571 = vunpack.c.l.b16 %v5423
        %v5572 = vunpack.c.l.b16 %v5424
        %v5573 = vunpack.c.l.b16 %v5425
        %v5574 = vunpack.c.l.b16 %v5426
        %v5575 = vunpack.c.l.b16 %v5427
        %v5576 = vunpack.c.l.b16 %v5428
        %v5577 = vunpack.c.l.b16 %v5429
        %v5578 = vunpack.c.l.b16 %v5430
        %v5579 = vpack.c.b16 %v5572, %v5571
        %v5580 = vpack.c.b16 %v5574, %v5573
        %v5581 = vpack.c.b16 %v5576, %v5575
        %v5582 = vpack.c.b16 %v5578, %v5577
        %v5588 = vsel %vm4702, %v5442, 0
        %v5591 = vsel %vm4702, %v5450, 0
        %v5594 = vsel %vm4702, %v5458, 0
        %v5597 = vsel %vm4702, %v5466, 0
        %v5600 = vsel %vm4702, %v5474, 0
        %v5603 = vsel %vm4702, %v5482, 0
        %v5606 = vsel %vm4702, %v5490, 0
        %v5609 = vsel %vm4702, %v5498, 0
        %v5612 = vsel %vm4702, %v5506, 0
        %v5615 = vsel %vm4702, %v5514, 0
        %v5618 = vsel %vm4702, %v5522, 0
        %v5621 = vsel %vm4702, %v5530, 0
        %v5624 = vsel %vm4702, %v5538, 0
        %v5627 = vsel %vm4702, %v5546, 0
        %v5630 = vsel %vm4702, %v5554, 0
        %v5633 = vsel %vm4702, %v5562, 0
        %5635 = vmatprep.subr.bf16.mxu0 0
        %5636 = vmatpush1.bf16.msra.mxu0 %v5579
        %5637 = vmatprep.subr.bf16.mxu0 0
        %5638 = vmatpush1.bf16.msra.mxu0 %v5580
        %5639 = vmatprep.subr.bf16.mxu0 0
        %5640 = vmatpush1.bf16.msra.mxu0 %v5581
        %5641 = vmatprep.subr.bf16.mxu0 0
        %5642 = vmatpush1.bf16.msra.mxu0 %v5582
        %5643 = vmatprep.subr.bf16.mxu0 0
        %5644 = vmatpush1.bf16.msra.mxu0 0
        %5645 = vmatprep.subr.bf16.mxu0 0
        %5646 = vmatpush1.bf16.msra.mxu0 0
        %5647 = vmatprep.subr.bf16.mxu0 0
        %5648 = vmatpush1.bf16.msra.mxu0 0
        %5649 = vmatprep.subr.bf16.mxu0 0
        %5650 = vmatpush1.bf16.msra.mxu0 0
        %5651 = vmatprep.subr.bf16.mxu0 0
        %5652 = vmatpush1.bf16.msra.mxu0 0
        %5653 = vmatprep.subr.bf16.mxu0 0
        %5654 = vmatpush1.bf16.msra.mxu0 0
        %5655 = vmatprep.subr.bf16.mxu0 0
        %5656 = vmatpush1.bf16.msra.mxu0 0
        %5657 = vmatprep.subr.bf16.mxu0 0
        %5658 = vmatpush1.bf16.msra.mxu0 0
        %5659 = vmatprep.subr.bf16.mxu0 0
        %5660 = vmatpush1.bf16.msra.mxu0 0
        %5661 = vmatprep.subr.bf16.mxu0 0
        %5662 = vmatpush1.bf16.msra.mxu0 0
        %5663 = vmatprep.subr.bf16.mxu0 0
        %5664 = vmatpush1.bf16.msra.mxu0 0
        %5665 = vmatprep.subr.bf16.mxu0 0
        %5666 = vmatpush1.bf16.msra.mxu0 0
        %5667 = vmatprep.mubr.bf16.mxu0 0
        %5668 = vmatmul.mubr.bf16.gmra.mrb[0].mxu0 %v5588
        %v5669 = vpop.f32.mrb[0].mxu0
        %v5670 = vadd.f32 0.0, %v5669
        %v5671 = vpop.f32.mrb[0].mxu0
        %v5672 = vpop.f32.mrb[0].mxu0
        %v5673 = vadd.f32 0.0, %v5672
        %v5674 = vpop.f32.mrb[0].mxu0
        %5675 = vmatprep.mubr.bf16.mxu0 0
        %5676 = vmatmul.mubr.bf16.gmra.mrb[0].mxu0 %v5591
        %v5677 = vpop.f32.mrb[0].mxu0
        %v5678 = vadd.f32 0.0, %v5677
        %v5679 = vpop.f32.mrb[0].mxu0
        %v5680 = vpop.f32.mrb[0].mxu0
        %v5681 = vadd.f32 0.0, %v5680
        %v5682 = vpop.f32.mrb[0].mxu0
        %5683 = vmatprep.mubr.bf16.mxu0 0
        %5684 = vmatmul.mubr.bf16.gmra.mrb[0].mxu0 %v5594
        %v5685 = vpop.f32.mrb[0].mxu0
        %v5686 = vadd.f32 0.0, %v5685
        %v5687 = vpop.f32.mrb[0].mxu0
        %v5688 = vpop.f32.mrb[0].mxu0
        %v5689 = vadd.f32 0.0, %v5688
        %v5690 = vpop.f32.mrb[0].mxu0
        %5691 = vmatprep.mubr.bf16.mxu0 0
        %5692 = vmatmul.mubr.bf16.gmra.mrb[0].mxu0 %v5597
        %v5693 = vpop.f32.mrb[0].mxu0
        %v5694 = vadd.f32 0.0, %v5693
        %v5695 = vpop.f32.mrb[0].mxu0
        %v5696 = vpop.f32.mrb[0].mxu0
        %v5697 = vadd.f32 0.0, %v5696
        %v5698 = vpop.f32.mrb[0].mxu0
        %5699 = vmatprep.mubr.bf16.mxu0 0
        %5700 = vmatmul.mubr.bf16.gmra.mrb[0].mxu0 %v5600
        %v5701 = vpop.f32.mrb[0].mxu0
        %v5702 = vadd.f32 0.0, %v5701
        %v5703 = vpop.f32.mrb[0].mxu0
        %v5704 = vpop.f32.mrb[0].mxu0
        %v5705 = vadd.f32 0.0, %v5704
        %v5706 = vpop.f32.mrb[0].mxu0
        %5707 = vmatprep.mubr.bf16.mxu0 0
        %5708 = vmatmul.mubr.bf16.gmra.mrb[0].mxu0 %v5603
        %v5709 = vpop.f32.mrb[0].mxu0
        %v5710 = vadd.f32 0.0, %v5709
        %v5711 = vpop.f32.mrb[0].mxu0
        %v5712 = vpop.f32.mrb[0].mxu0
        %v5713 = vadd.f32 0.0, %v5712
        %v5714 = vpop.f32.mrb[0].mxu0
        %5715 = vmatprep.mubr.bf16.mxu0 0
        %5716 = vmatmul.mubr.bf16.gmra.mrb[0].mxu0 %v5606
        %v5717 = vpop.f32.mrb[0].mxu0
        %v5718 = vadd.f32 0.0, %v5717
        %v5719 = vpop.f32.mrb[0].mxu0
        %v5720 = vpop.f32.mrb[0].mxu0
        %v5721 = vadd.f32 0.0, %v5720
        %v5722 = vpop.f32.mrb[0].mxu0
        %5723 = vmatprep.mubr.bf16.mxu0 0
        %5724 = vmatmul.mubr.bf16.gmra.mrb[0].mxu0 %v5609
        %v5725 = vpop.f32.mrb[0].mxu0
        %v5726 = vadd.f32 0.0, %v5725
        %v5727 = vpop.f32.mrb[0].mxu0
        %v5728 = vpop.f32.mrb[0].mxu0
        %v5729 = vadd.f32 0.0, %v5728
        %v5730 = vpop.f32.mrb[0].mxu0
        %5731 = vmatprep.mubr.bf16.mxu0 0
        %5732 = vmatmul.mubr.bf16.gmra.mrb[0].mxu0 %v5612
        %v5733 = vpop.f32.mrb[0].mxu0
        %v5734 = vadd.f32 0.0, %v5733
        %v5735 = vpop.f32.mrb[0].mxu0
        %v5736 = vpop.f32.mrb[0].mxu0
        %v5737 = vadd.f32 0.0, %v5736
        %v5738 = vpop.f32.mrb[0].mxu0
        %5739 = vmatprep.mubr.bf16.mxu0 0
        %5740 = vmatmul.mubr.bf16.gmra.mrb[0].mxu0 %v5615
        %v5741 = vpop.f32.mrb[0].mxu0
        %v5742 = vadd.f32 0.0, %v5741
        %v5743 = vpop.f32.mrb[0].mxu0
        %v5744 = vpop.f32.mrb[0].mxu0
        %v5745 = vadd.f32 0.0, %v5744
        %v5746 = vpop.f32.mrb[0].mxu0
        %5747 = vmatprep.mubr.bf16.mxu0 0
        %5748 = vmatmul.mubr.bf16.gmra.mrb[0].mxu0 %v5618
        %v5749 = vpop.f32.mrb[0].mxu0
        %v5750 = vadd.f32 0.0, %v5749
        %v5751 = vpop.f32.mrb[0].mxu0
        %v5752 = vpop.f32.mrb[0].mxu0
        %v5753 = vadd.f32 0.0, %v5752
        %v5754 = vpop.f32.mrb[0].mxu0
        %5755 = vmatprep.mubr.bf16.mxu0 0
        %5756 = vmatmul.mubr.bf16.gmra.mrb[0].mxu0 %v5621
        %v5757 = vpop.f32.mrb[0].mxu0
        %v5758 = vadd.f32 0.0, %v5757
        %v5759 = vpop.f32.mrb[0].mxu0
        %v5760 = vpop.f32.mrb[0].mxu0
        %v5761 = vadd.f32 0.0, %v5760
        %v5762 = vpop.f32.mrb[0].mxu0
        %5763 = vmatprep.mubr.bf16.mxu0 0
        %5764 = vmatmul.mubr.bf16.gmra.mrb[0].mxu0 %v5624
        %v5765 = vpop.f32.mrb[0].mxu0
        %v5766 = vadd.f32 0.0, %v5765
        %v5767 = vpop.f32.mrb[0].mxu0
        %v5768 = vpop.f32.mrb[0].mxu0
        %v5769 = vadd.f32 0.0, %v5768
        %v5770 = vpop.f32.mrb[0].mxu0
        %5771 = vmatprep.mubr.bf16.mxu0 0
        %5772 = vmatmul.mubr.bf16.gmra.mrb[0].mxu0 %v5627
        %v5773 = vpop.f32.mrb[0].mxu0
        %v5774 = vadd.f32 0.0, %v5773
        %v5775 = vpop.f32.mrb[0].mxu0
        %v5776 = vpop.f32.mrb[0].mxu0
        %v5777 = vadd.f32 0.0, %v5776
        %v5778 = vpop.f32.mrb[0].mxu0
        %5779 = vmatprep.mubr.bf16.mxu0 0
        %5780 = vmatmul.mubr.bf16.gmra.mrb[0].mxu0 %v5630
        %v5781 = vpop.f32.mrb[0].mxu0
        %v5782 = vadd.f32 0.0, %v5781
        %v5783 = vpop.f32.mrb[0].mxu0
        %v5784 = vpop.f32.mrb[0].mxu0
        %v5785 = vadd.f32 0.0, %v5784
        %v5786 = vpop.f32.mrb[0].mxu0
        %5787 = vmatprep.mubr.bf16.mxu0 0
        %5788 = vmatmul.mubr.bf16.gmra.mrb[0].mxu0 %v5633
        %v5789 = vpop.f32.mrb[0].mxu0
        %v5790 = vadd.f32 0.0, %v5789
        %v5791 = vpop.f32.mrb[0].mxu0
        %v5792 = vpop.f32.mrb[0].mxu0
        %v5793 = vadd.f32 0.0, %v5792
        %v5794 = vpop.f32.mrb[0].mxu0
        %5795 = vdwg.mxu0
        %v5796 = vadd.f32 %v5262, %v5670
        %v5797 = vadd.f32 %v5265, %v5673
        %v5798 = vadd.f32 %v5270, %v5678
        %v5799 = vadd.f32 %v5273, %v5681
        %v5800 = vadd.f32 %v5278, %v5686
        %v5801 = vadd.f32 %v5281, %v5689
        %v5802 = vadd.f32 %v5286, %v5694
        %v5803 = vadd.f32 %v5289, %v5697
        %v5804 = vadd.f32 %v5294, %v5702
        %v5805 = vadd.f32 %v5297, %v5705
        %v5806 = vadd.f32 %v5302, %v5710
        %v5807 = vadd.f32 %v5305, %v5713
        %v5808 = vadd.f32 %v5310, %v5718
        %v5809 = vadd.f32 %v5313, %v5721
        %v5810 = vadd.f32 %v5318, %v5726
        %v5811 = vadd.f32 %v5321, %v5729
        %v5812 = vadd.f32 %v5326, %v5734
        %v5813 = vadd.f32 %v5329, %v5737
        %v5814 = vadd.f32 %v5334, %v5742
        %v5815 = vadd.f32 %v5337, %v5745
        %v5816 = vadd.f32 %v5342, %v5750
        %v5817 = vadd.f32 %v5345, %v5753
        %v5818 = vadd.f32 %v5350, %v5758
        %v5819 = vadd.f32 %v5353, %v5761
        %v5820 = vadd.f32 %v5358, %v5766
        %v5821 = vadd.f32 %v5361, %v5769
        %v5822 = vadd.f32 %v5366, %v5774
        %v5823 = vadd.f32 %v5369, %v5777
        %v5824 = vadd.f32 %v5374, %v5782
        %v5825 = vadd.f32 %v5377, %v5785
        %v5826 = vadd.f32 %v5382, %v5790
        %v5827 = vadd.f32 %v5385, %v5793
        %v5828 = vld [vmem:[#allocation3 + $0x8] sm:$0x80]
        %v5829 = vld [vmem:[#allocation3 + $0x88] sm:$0xff]
        %v5830 = vsel %vm1194, %v5828, 0
        %v5831 = vsel %vm1195, %v5389, 0
        %v5832 = vsel %vm1196, %v5390, 0
        %v5833 = vsel %vm1197, %v5391, 0
        %v5834 = vsel %vm1198, %v5392, 0
        %v5835 = vsel %vm1199, %v5393, 0
        %v5836 = vsel %vm1200, %v5394, 0
        %v5837 = vsel %vm1201, %v5395, 0
        %v5838 = vsel %vm1202, %v5396, 0
        %v5839 = vsel %vm1203, %v5397, 0
        %v5840 = vsel %vm1204, %v5398, 0
        %v5841 = vsel %vm1205, %v5399, 0
        %v5842 = vsel %vm1206, %v5400, 0
        %v5843 = vsel %vm1207, %v5401, 0
        %v5844 = vsel %vm1208, %v5402, 0
        %v5845 = vsel %vm1209, %v5403, 0
        %v5846 = vsel %vm1210, %v5829, 0
        %s5847 = scalar_lea.vmem [#allocation4], 96
        %v5848 = vld [vmem:[%s5847] sm:$0xf]
        %v5849 = vld [vmem:[%s5847 + $0x4] sm:$0xf]
        %v5850 = vld [vmem:[%s5847 + $0x8] sm:$0xf]
        %v5851 = vld [vmem:[%s5847 + $0xc] sm:$0xf]
        %v5852 = vld [vmem:[%s5847 + $0x10] sm:$0xf]
        %v5853 = vld [vmem:[%s5847 + $0x14] sm:$0xf]
        %v5854 = vld [vmem:[%s5847 + $0x18] sm:$0xf]
        %v5855 = vld [vmem:[%s5847 + $0x1c] sm:$0xf]
        %v5857 = vshrl.u32 %v5830, 16
        %v5859 = vrot.slane %v5857, 7
        %v5861 = vshrl.u32 %v5831, 16
        %v5863 = vrot.slane %v5861, 7
        %v5864 = vshll.u32 %v5831, 16
        %v5866 = vor.u32 %v5863, %v5864
        %v5867 = vsel %vm1444, %v5859, %v5866
        %v5869 = vshrl.u32 %v5832, 16
        %v5871 = vrot.slane %v5869, 7
        %v5872 = vshll.u32 %v5832, 16
        %v5874 = vor.u32 %v5871, %v5872
        %v5875 = vsel %vm1444, %v5863, %v5874
        %v5877 = vshrl.u32 %v5833, 16
        %v5879 = vrot.slane %v5877, 7
        %v5880 = vshll.u32 %v5833, 16
        %v5882 = vor.u32 %v5879, %v5880
        %v5883 = vsel %vm1444, %v5871, %v5882
        %v5885 = vshrl.u32 %v5834, 16
        %v5887 = vrot.slane %v5885, 7
        %v5888 = vshll.u32 %v5834, 16
        %v5890 = vor.u32 %v5887, %v5888
        %v5891 = vsel %vm1444, %v5879, %v5890
        %v5893 = vshrl.u32 %v5835, 16
        %v5895 = vrot.slane %v5893, 7
        %v5896 = vshll.u32 %v5835, 16
        %v5898 = vor.u32 %v5895, %v5896
        %v5899 = vsel %vm1444, %v5887, %v5898
        %v5901 = vshrl.u32 %v5836, 16
        %v5903 = vrot.slane %v5901, 7
        %v5904 = vshll.u32 %v5836, 16
        %v5906 = vor.u32 %v5903, %v5904
        %v5907 = vsel %vm1444, %v5895, %v5906
        %v5909 = vshrl.u32 %v5837, 16
        %v5911 = vrot.slane %v5909, 7
        %v5912 = vshll.u32 %v5837, 16
        %v5914 = vor.u32 %v5911, %v5912
        %v5915 = vsel %vm1444, %v5903, %v5914
        %v5917 = vshrl.u32 %v5838, 16
        %v5919 = vrot.slane %v5917, 7
        %v5920 = vshll.u32 %v5838, 16
        %v5922 = vor.u32 %v5919, %v5920
        %v5923 = vsel %vm1444, %v5911, %v5922
        %v5925 = vshrl.u32 %v5839, 16
        %v5927 = vrot.slane %v5925, 7
        %v5928 = vshll.u32 %v5839, 16
        %v5930 = vor.u32 %v5927, %v5928
        %v5931 = vsel %vm1444, %v5919, %v5930
        %v5933 = vshrl.u32 %v5840, 16
        %v5935 = vrot.slane %v5933, 7
        %v5936 = vshll.u32 %v5840, 16
        %v5938 = vor.u32 %v5935, %v5936
        %v5939 = vsel %vm1444, %v5927, %v5938
        %v5941 = vshrl.u32 %v5841, 16
        %v5943 = vrot.slane %v5941, 7
        %v5944 = vshll.u32 %v5841, 16
        %v5946 = vor.u32 %v5943, %v5944
        %v5947 = vsel %vm1444, %v5935, %v5946
        %v5949 = vshrl.u32 %v5842, 16
        %v5951 = vrot.slane %v5949, 7
        %v5952 = vshll.u32 %v5842, 16
        %v5954 = vor.u32 %v5951, %v5952
        %v5955 = vsel %vm1444, %v5943, %v5954
        %v5957 = vshrl.u32 %v5843, 16
        %v5959 = vrot.slane %v5957, 7
        %v5960 = vshll.u32 %v5843, 16
        %v5962 = vor.u32 %v5959, %v5960
        %v5963 = vsel %vm1444, %v5951, %v5962
        %v5965 = vshrl.u32 %v5844, 16
        %v5967 = vrot.slane %v5965, 7
        %v5968 = vshll.u32 %v5844, 16
        %v5970 = vor.u32 %v5967, %v5968
        %v5971 = vsel %vm1444, %v5959, %v5970
        %v5973 = vshrl.u32 %v5845, 16
        %v5975 = vrot.slane %v5973, 7
        %v5976 = vshll.u32 %v5845, 16
        %v5978 = vor.u32 %v5975, %v5976
        %v5979 = vsel %vm1444, %v5967, %v5978
        %v5981 = vshrl.u32 %v5846, 16
        %v5983 = vrot.slane %v5981, 7
        %v5984 = vshll.u32 %v5846, 16
        %v5986 = vor.u32 %v5983, %v5984
        %v5987 = vsel %vm1444, %v5975, %v5986
        %v5996 = vunpack.c.l.b16 %v5848
        %v5997 = vunpack.c.l.b16 %v5849
        %v5998 = vunpack.c.l.b16 %v5850
        %v5999 = vunpack.c.l.b16 %v5851
        %v6000 = vunpack.c.l.b16 %v5852
        %v6001 = vunpack.c.l.b16 %v5853
        %v6002 = vunpack.c.l.b16 %v5854
        %v6003 = vunpack.c.l.b16 %v5855
        %v6004 = vpack.c.b16 %v5997, %v5996
        %v6005 = vpack.c.b16 %v5999, %v5998
        %v6006 = vpack.c.b16 %v6001, %v6000
        %v6007 = vpack.c.b16 %v6003, %v6002
        %v6013 = vsel %vm4702, %v5867, 0
        %v6016 = vsel %vm4702, %v5875, 0
        %v6019 = vsel %vm4702, %v5883, 0
        %v6022 = vsel %vm4702, %v5891, 0
        %v6025 = vsel %vm4702, %v5899, 0
        %v6028 = vsel %vm4702, %v5907, 0
        %v6031 = vsel %vm4702, %v5915, 0
        %v6034 = vsel %vm4702, %v5923, 0
        %v6037 = vsel %vm4702, %v5931, 0
        %v6040 = vsel %vm4702, %v5939, 0
        %v6043 = vsel %vm4702, %v5947, 0
        %v6046 = vsel %vm4702, %v5955, 0
        %v6049 = vsel %vm4702, %v5963, 0
        %v6052 = vsel %vm4702, %v5971, 0
        %v6055 = vsel %vm4702, %v5979, 0
        %v6058 = vsel %vm4702, %v5987, 0
        %6060 = vmatprep.subr.bf16.mxu0 0
        %6061 = vmatpush1.bf16.msra.mxu0 %v6004
        %6062 = vmatprep.subr.bf16.mxu0 0
        %6063 = vmatpush1.bf16.msra.mxu0 %v6005
        %6064 = vmatprep.subr.bf16.mxu0 0
        %6065 = vmatpush1.bf16.msra.mxu0 %v6006
        %6066 = vmatprep.subr.bf16.mxu0 0
        %6067 = vmatpush1.bf16.msra.mxu0 %v6007
        %6068 = vmatprep.subr.bf16.mxu0 0
        %6069 = vmatpush1.bf16.msra.mxu0 0
        %6070 = vmatprep.subr.bf16.mxu0 0
        %6071 = vmatpush1.bf16.msra.mxu0 0
        %6072 = vmatprep.subr.bf16.mxu0 0
        %6073 = vmatpush1.bf16.msra.mxu0 0
        %6074 = vmatprep.subr.bf16.mxu0 0
        %6075 = vmatpush1.bf16.msra.mxu0 0
        %6076 = vmatprep.subr.bf16.mxu0 0
        %6077 = vmatpush1.bf16.msra.mxu0 0
        %6078 = vmatprep.subr.bf16.mxu0 0
        %6079 = vmatpush1.bf16.msra.mxu0 0
        %6080 = vmatprep.subr.bf16.mxu0 0
        %6081 = vmatpush1.bf16.msra.mxu0 0
        %6082 = vmatprep.subr.bf16.mxu0 0
        %6083 = vmatpush1.bf16.msra.mxu0 0
        %6084 = vmatprep.subr.bf16.mxu0 0
        %6085 = vmatpush1.bf16.msra.mxu0 0
        %6086 = vmatprep.subr.bf16.mxu0 0
        %6087 = vmatpush1.bf16.msra.mxu0 0
        %6088 = vmatprep.subr.bf16.mxu0 0
        %6089 = vmatpush1.bf16.msra.mxu0 0
        %6090 = vmatprep.subr.bf16.mxu0 0
        %6091 = vmatpush1.bf16.msra.mxu0 0
        %6092 = vmatprep.mubr.bf16.mxu0 0
        %6093 = vmatmul.mubr.bf16.gmra.mrb[0].mxu0 %v6013
        %v6094 = vpop.f32.mrb[0].mxu0
        %v6095 = vadd.f32 0.0, %v6094
        %v6096 = vpop.f32.mrb[0].mxu0
        %v6097 = vpop.f32.mrb[0].mxu0
        %v6098 = vadd.f32 0.0, %v6097
        %v6099 = vpop.f32.mrb[0].mxu0
        %6100 = vmatprep.mubr.bf16.mxu0 0
        %6101 = vmatmul.mubr.bf16.gmra.mrb[0].mxu0 %v6016
        %v6102 = vpop.f32.mrb[0].mxu0
        %v6103 = vadd.f32 0.0, %v6102
        %v6104 = vpop.f32.mrb[0].mxu0
        %v6105 = vpop.f32.mrb[0].mxu0
        %v6106 = vadd.f32 0.0, %v6105
        %v6107 = vpop.f32.mrb[0].mxu0
        %6108 = vmatprep.mubr.bf16.mxu0 0
        %6109 = vmatmul.mubr.bf16.gmra.mrb[0].mxu0 %v6019
        %v6110 = vpop.f32.mrb[0].mxu0
        %v6111 = vadd.f32 0.0, %v6110
        %v6112 = vpop.f32.mrb[0].mxu0
        %v6113 = vpop.f32.mrb[0].mxu0
        %v6114 = vadd.f32 0.0, %v6113
        %v6115 = vpop.f32.mrb[0].mxu0
        %6116 = vmatprep.mubr.bf16.mxu0 0
        %6117 = vmatmul.mubr.bf16.gmra.mrb[0].mxu0 %v6022
        %v6118 = vpop.f32.mrb[0].mxu0
        %v6119 = vadd.f32 0.0, %v6118
        %v6120 = vpop.f32.mrb[0].mxu0
        %v6121 = vpop.f32.mrb[0].mxu0
        %v6122 = vadd.f32 0.0, %v6121
        %v6123 = vpop.f32.mrb[0].mxu0
        %6124 = vmatprep.mubr.bf16.mxu0 0
        %6125 = vmatmul.mubr.bf16.gmra.mrb[0].mxu0 %v6025
        %v6126 = vpop.f32.mrb[0].mxu0
        %v6127 = vadd.f32 0.0, %v6126
        %v6128 = vpop.f32.mrb[0].mxu0
        %v6129 = vpop.f32.mrb[0].mxu0
        %v6130 = vadd.f32 0.0, %v6129
        %v6131 = vpop.f32.mrb[0].mxu0
        %6132 = vmatprep.mubr.bf16.mxu0 0
        %6133 = vmatmul.mubr.bf16.gmra.mrb[0].mxu0 %v6028
        %v6134 = vpop.f32.mrb[0].mxu0
        %v6135 = vadd.f32 0.0, %v6134
        %v6136 = vpop.f32.mrb[0].mxu0
        %v6137 = vpop.f32.mrb[0].mxu0
        %v6138 = vadd.f32 0.0, %v6137
        %v6139 = vpop.f32.mrb[0].mxu0
        %6140 = vmatprep.mubr.bf16.mxu0 0
        %6141 = vmatmul.mubr.bf16.gmra.mrb[0].mxu0 %v6031
        %v6142 = vpop.f32.mrb[0].mxu0
        %v6143 = vadd.f32 0.0, %v6142
        %v6144 = vpop.f32.mrb[0].mxu0
        %v6145 = vpop.f32.mrb[0].mxu0
        %v6146 = vadd.f32 0.0, %v6145
        %v6147 = vpop.f32.mrb[0].mxu0
        %6148 = vmatprep.mubr.bf16.mxu0 0
        %6149 = vmatmul.mubr.bf16.gmra.mrb[0].mxu0 %v6034
        %v6150 = vpop.f32.mrb[0].mxu0
        %v6151 = vadd.f32 0.0, %v6150
        %v6152 = vpop.f32.mrb[0].mxu0
        %v6153 = vpop.f32.mrb[0].mxu0
        %v6154 = vadd.f32 0.0, %v6153
        %v6155 = vpop.f32.mrb[0].mxu0
        %6156 = vmatprep.mubr.bf16.mxu0 0
        %6157 = vmatmul.mubr.bf16.gmra.mrb[0].mxu0 %v6037
        %v6158 = vpop.f32.mrb[0].mxu0
        %v6159 = vadd.f32 0.0, %v6158
        %v6160 = vpop.f32.mrb[0].mxu0
        %v6161 = vpop.f32.mrb[0].mxu0
        %v6162 = vadd.f32 0.0, %v6161
        %v6163 = vpop.f32.mrb[0].mxu0
        %6164 = vmatprep.mubr.bf16.mxu0 0
        %6165 = vmatmul.mubr.bf16.gmra.mrb[0].mxu0 %v6040
        %v6166 = vpop.f32.mrb[0].mxu0
        %v6167 = vadd.f32 0.0, %v6166
        %v6168 = vpop.f32.mrb[0].mxu0
        %v6169 = vpop.f32.mrb[0].mxu0
        %v6170 = vadd.f32 0.0, %v6169
        %v6171 = vpop.f32.mrb[0].mxu0
        %6172 = vmatprep.mubr.bf16.mxu0 0
        %6173 = vmatmul.mubr.bf16.gmra.mrb[0].mxu0 %v6043
        %v6174 = vpop.f32.mrb[0].mxu0
        %v6175 = vadd.f32 0.0, %v6174
        %v6176 = vpop.f32.mrb[0].mxu0
        %v6177 = vpop.f32.mrb[0].mxu0
        %v6178 = vadd.f32 0.0, %v6177
        %v6179 = vpop.f32.mrb[0].mxu0
        %6180 = vmatprep.mubr.bf16.mxu0 0
        %6181 = vmatmul.mubr.bf16.gmra.mrb[0].mxu0 %v6046
        %v6182 = vpop.f32.mrb[0].mxu0
        %v6183 = vadd.f32 0.0, %v6182
        %v6184 = vpop.f32.mrb[0].mxu0
        %v6185 = vpop.f32.mrb[0].mxu0
        %v6186 = vadd.f32 0.0, %v6185
        %v6187 = vpop.f32.mrb[0].mxu0
        %6188 = vmatprep.mubr.bf16.mxu0 0
        %6189 = vmatmul.mubr.bf16.gmra.mrb[0].mxu0 %v6049
        %v6190 = vpop.f32.mrb[0].mxu0
        %v6191 = vadd.f32 0.0, %v6190
        %v6192 = vpop.f32.mrb[0].mxu0
        %v6193 = vpop.f32.mrb[0].mxu0
        %v6194 = vadd.f32 0.0, %v6193
        %v6195 = vpop.f32.mrb[0].mxu0
        %6196 = vmatprep.mubr.bf16.mxu0 0
        %6197 = vmatmul.mubr.bf16.gmra.mrb[0].mxu0 %v6052
        %v6198 = vpop.f32.mrb[0].mxu0
        %v6199 = vadd.f32 0.0, %v6198
        %v6200 = vpop.f32.mrb[0].mxu0
        %v6201 = vpop.f32.mrb[0].mxu0
        %v6202 = vadd.f32 0.0, %v6201
        %v6203 = vpop.f32.mrb[0].mxu0
        %6204 = vmatprep.mubr.bf16.mxu0 0
        %6205 = vmatmul.mubr.bf16.gmra.mrb[0].mxu0 %v6055
        %v6206 = vpop.f32.mrb[0].mxu0
        %v6207 = vadd.f32 0.0, %v6206
        %v6208 = vpop.f32.mrb[0].mxu0
        %v6209 = vpop.f32.mrb[0].mxu0
        %v6210 = vadd.f32 0.0, %v6209
        %v6211 = vpop.f32.mrb[0].mxu0
        %6212 = vmatprep.mubr.bf16.mxu0 0
        %6213 = vmatmul.mubr.bf16.gmra.mrb[0].mxu0 %v6058
        %v6214 = vpop.f32.mrb[0].mxu0
        %v6215 = vadd.f32 0.0, %v6214
        %v6216 = vpop.f32.mrb[0].mxu0
        %v6217 = vpop.f32.mrb[0].mxu0
        %v6218 = vadd.f32 0.0, %v6217
        %v6219 = vpop.f32.mrb[0].mxu0
        %6220 = vdwg.mxu0
        %v6221 = vadd.f32 %v5796, %v6095
        %v6222 = vadd.f32 %v5797, %v6098
        %v6223 = vadd.f32 %v5798, %v6103
        %v6224 = vadd.f32 %v5799, %v6106
        %v6225 = vadd.f32 %v5800, %v6111
        %v6226 = vadd.f32 %v5801, %v6114
        %v6227 = vadd.f32 %v5802, %v6119
        %v6228 = vadd.f32 %v5803, %v6122
        %v6229 = vadd.f32 %v5804, %v6127
        %v6230 = vadd.f32 %v5805, %v6130
        %v6231 = vadd.f32 %v5806, %v6135
        %v6232 = vadd.f32 %v5807, %v6138
        %v6233 = vadd.f32 %v5808, %v6143
        %v6234 = vadd.f32 %v5809, %v6146
        %v6235 = vadd.f32 %v5810, %v6151
        %v6236 = vadd.f32 %v5811, %v6154
        %v6237 = vadd.f32 %v5812, %v6159
        %v6238 = vadd.f32 %v5813, %v6162
        %v6239 = vadd.f32 %v5814, %v6167
        %v6240 = vadd.f32 %v5815, %v6170
        %v6241 = vadd.f32 %v5816, %v6175
        %v6242 = vadd.f32 %v5817, %v6178
        %v6243 = vadd.f32 %v5818, %v6183
        %v6244 = vadd.f32 %v5819, %v6186
        %v6245 = vadd.f32 %v5820, %v6191
        %v6246 = vadd.f32 %v5821, %v6194
        %v6247 = vadd.f32 %v5822, %v6199
        %v6248 = vadd.f32 %v5823, %v6202
        %v6249 = vadd.f32 %v5824, %v6207
        %v6250 = vadd.f32 %v5825, %v6210
        %v6251 = vadd.f32 %v5826, %v6215
        %v6252 = vadd.f32 %v5827, %v6218
        %s6253 = scalar_lea.vmem [#allocation4], 128
        %v6254 = vld [vmem:[%s6253] sm:$0xf]
        %v6255 = vld [vmem:[%s6253 + $0x4] sm:$0xf]
        %v6256 = vld [vmem:[%s6253 + $0x8] sm:$0xf]
        %v6257 = vld [vmem:[%s6253 + $0xc] sm:$0xf]
        %v6258 = vld [vmem:[%s6253 + $0x10] sm:$0xf]
        %v6259 = vld [vmem:[%s6253 + $0x14] sm:$0xf]
        %v6260 = vld [vmem:[%s6253 + $0x18] sm:$0xf]
        %v6261 = vld [vmem:[%s6253 + $0x1c] sm:$0xf]
        %v6270 = vunpack.c.l.b16 %v6254
        %v6271 = vunpack.c.l.b16 %v6255
        %v6272 = vunpack.c.l.b16 %v6256
        %v6273 = vunpack.c.l.b16 %v6257
        %v6274 = vunpack.c.l.b16 %v6258
        %v6275 = vunpack.c.l.b16 %v6259
        %v6276 = vunpack.c.l.b16 %v6260
        %v6277 = vunpack.c.l.b16 %v6261
        %v6278 = vpack.c.b16 %v6271, %v6270
        %v6279 = vpack.c.b16 %v6273, %v6272
        %v6280 = vpack.c.b16 %v6275, %v6274
        %v6281 = vpack.c.b16 %v6277, %v6276
        %v6287 = vsel %vm4702, %v5389, 0
        %v6290 = vsel %vm4702, %v5390, 0
        %v6293 = vsel %vm4702, %v5391, 0
        %v6296 = vsel %vm4702, %v5392, 0
        %v6299 = vsel %vm4702, %v5393, 0
        %v6302 = vsel %vm4702, %v5394, 0
        %v6305 = vsel %vm4702, %v5395, 0
        %v6308 = vsel %vm4702, %v5396, 0
        %v6311 = vsel %vm4702, %v5397, 0
        %v6314 = vsel %vm4702, %v5398, 0
        %v6317 = vsel %vm4702, %v5399, 0
        %v6320 = vsel %vm4702, %v5400, 0
        %v6323 = vsel %vm4702, %v5401, 0
        %v6326 = vsel %vm4702, %v5402, 0
        %v6329 = vsel %vm4702, %v5403, 0
        %v6332 = vsel %vm4702, %v5829, 0
        %6334 = vmatprep.subr.bf16.mxu0 0
        %6335 = vmatpush1.bf16.msra.mxu0 %v6278
        %6336 = vmatprep.subr.bf16.mxu0 0
        %6337 = vmatpush1.bf16.msra.mxu0 %v6279
        %6338 = vmatprep.subr.bf16.mxu0 0
        %6339 = vmatpush1.bf16.msra.mxu0 %v6280
        %6340 = vmatprep.subr.bf16.mxu0 0
        %6341 = vmatpush1.bf16.msra.mxu0 %v6281
        %6342 = vmatprep.subr.bf16.mxu0 0
        %6343 = vmatpush1.bf16.msra.mxu0 0
        %6344 = vmatprep.subr.bf16.mxu0 0
        %6345 = vmatpush1.bf16.msra.mxu0 0
        %6346 = vmatprep.subr.bf16.mxu0 0
        %6347 = vmatpush1.bf16.msra.mxu0 0
        %6348 = vmatprep.subr.bf16.mxu0 0
        %6349 = vmatpush1.bf16.msra.mxu0 0
        %6350 = vmatprep.subr.bf16.mxu0 0
        %6351 = vmatpush1.bf16.msra.mxu0 0
        %6352 = vmatprep.subr.bf16.mxu0 0
        %6353 = vmatpush1.bf16.msra.mxu0 0
        %6354 = vmatprep.subr.bf16.mxu0 0
        %6355 = vmatpush1.bf16.msra.mxu0 0
        %6356 = vmatprep.subr.bf16.mxu0 0
        %6357 = vmatpush1.bf16.msra.mxu0 0
        %6358 = vmatprep.subr.bf16.mxu0 0
        %6359 = vmatpush1.bf16.msra.mxu0 0
        %6360 = vmatprep.subr.bf16.mxu0 0
        %6361 = vmatpush1.bf16.msra.mxu0 0
        %6362 = vmatprep.subr.bf16.mxu0 0
        %6363 = vmatpush1.bf16.msra.mxu0 0
        %6364 = vmatprep.subr.bf16.mxu0 0
        %6365 = vmatpush1.bf16.msra.mxu0 0
        %6366 = vmatprep.mubr.bf16.mxu0 0
        %6367 = vmatmul.mubr.bf16.gmra.mrb[0].mxu0 %v6287
        %v6368 = vpop.f32.mrb[0].mxu0
        %v6369 = vadd.f32 0.0, %v6368
        %v6370 = vpop.f32.mrb[0].mxu0
        %v6371 = vpop.f32.mrb[0].mxu0
        %v6372 = vadd.f32 0.0, %v6371
        %v6373 = vpop.f32.mrb[0].mxu0
        %6374 = vmatprep.mubr.bf16.mxu0 0
        %6375 = vmatmul.mubr.bf16.gmra.mrb[0].mxu0 %v6290
        %v6376 = vpop.f32.mrb[0].mxu0
        %v6377 = vadd.f32 0.0, %v6376
        %v6378 = vpop.f32.mrb[0].mxu0
        %v6379 = vpop.f32.mrb[0].mxu0
        %v6380 = vadd.f32 0.0, %v6379
        %v6381 = vpop.f32.mrb[0].mxu0
        %6382 = vmatprep.mubr.bf16.mxu0 0
        %6383 = vmatmul.mubr.bf16.gmra.mrb[0].mxu0 %v6293
        %v6384 = vpop.f32.mrb[0].mxu0
        %v6385 = vadd.f32 0.0, %v6384
        %v6386 = vpop.f32.mrb[0].mxu0
        %v6387 = vpop.f32.mrb[0].mxu0
        %v6388 = vadd.f32 0.0, %v6387
        %v6389 = vpop.f32.mrb[0].mxu0
        %6390 = vmatprep.mubr.bf16.mxu0 0
        %6391 = vmatmul.mubr.bf16.gmra.mrb[0].mxu0 %v6296
        %v6392 = vpop.f32.mrb[0].mxu0
        %v6393 = vadd.f32 0.0, %v6392
        %v6394 = vpop.f32.mrb[0].mxu0
        %v6395 = vpop.f32.mrb[0].mxu0
        %v6396 = vadd.f32 0.0, %v6395
        %v6397 = vpop.f32.mrb[0].mxu0
        %6398 = vmatprep.mubr.bf16.mxu0 0
        %6399 = vmatmul.mubr.bf16.gmra.mrb[0].mxu0 %v6299
        %v6400 = vpop.f32.mrb[0].mxu0
        %v6401 = vadd.f32 0.0, %v6400
        %v6402 = vpop.f32.mrb[0].mxu0
        %v6403 = vpop.f32.mrb[0].mxu0
        %v6404 = vadd.f32 0.0, %v6403
        %v6405 = vpop.f32.mrb[0].mxu0
        %6406 = vmatprep.mubr.bf16.mxu0 0
        %6407 = vmatmul.mubr.bf16.gmra.mrb[0].mxu0 %v6302
        %v6408 = vpop.f32.mrb[0].mxu0
        %v6409 = vadd.f32 0.0, %v6408
        %v6410 = vpop.f32.mrb[0].mxu0
        %v6411 = vpop.f32.mrb[0].mxu0
        %v6412 = vadd.f32 0.0, %v6411
        %v6413 = vpop.f32.mrb[0].mxu0
        %6414 = vmatprep.mubr.bf16.mxu0 0
        %6415 = vmatmul.mubr.bf16.gmra.mrb[0].mxu0 %v6305
        %v6416 = vpop.f32.mrb[0].mxu0
        %v6417 = vadd.f32 0.0, %v6416
        %v6418 = vpop.f32.mrb[0].mxu0
        %v6419 = vpop.f32.mrb[0].mxu0
        %v6420 = vadd.f32 0.0, %v6419
        %v6421 = vpop.f32.mrb[0].mxu0
        %6422 = vmatprep.mubr.bf16.mxu0 0
        %6423 = vmatmul.mubr.bf16.gmra.mrb[0].mxu0 %v6308
        %v6424 = vpop.f32.mrb[0].mxu0
        %v6425 = vadd.f32 0.0, %v6424
        %v6426 = vpop.f32.mrb[0].mxu0
        %v6427 = vpop.f32.mrb[0].mxu0
        %v6428 = vadd.f32 0.0, %v6427
        %v6429 = vpop.f32.mrb[0].mxu0
        %6430 = vmatprep.mubr.bf16.mxu0 0
        %6431 = vmatmul.mubr.bf16.gmra.mrb[0].mxu0 %v6311
        %v6432 = vpop.f32.mrb[0].mxu0
        %v6433 = vadd.f32 0.0, %v6432
        %v6434 = vpop.f32.mrb[0].mxu0
        %v6435 = vpop.f32.mrb[0].mxu0
        %v6436 = vadd.f32 0.0, %v6435
        %v6437 = vpop.f32.mrb[0].mxu0
        %6438 = vmatprep.mubr.bf16.mxu0 0
        %6439 = vmatmul.mubr.bf16.gmra.mrb[0].mxu0 %v6314
        %v6440 = vpop.f32.mrb[0].mxu0
        %v6441 = vadd.f32 0.0, %v6440
        %v6442 = vpop.f32.mrb[0].mxu0
        %v6443 = vpop.f32.mrb[0].mxu0
        %v6444 = vadd.f32 0.0, %v6443
        %v6445 = vpop.f32.mrb[0].mxu0
        %6446 = vmatprep.mubr.bf16.mxu0 0
        %6447 = vmatmul.mubr.bf16.gmra.mrb[0].mxu0 %v6317
        %v6448 = vpop.f32.mrb[0].mxu0
        %v6449 = vadd.f32 0.0, %v6448
        %v6450 = vpop.f32.mrb[0].mxu0
        %v6451 = vpop.f32.mrb[0].mxu0
        %v6452 = vadd.f32 0.0, %v6451
        %v6453 = vpop.f32.mrb[0].mxu0
        %6454 = vmatprep.mubr.bf16.mxu0 0
        %6455 = vmatmul.mubr.bf16.gmra.mrb[0].mxu0 %v6320
        %v6456 = vpop.f32.mrb[0].mxu0
        %v6457 = vadd.f32 0.0, %v6456
        %v6458 = vpop.f32.mrb[0].mxu0
        %v6459 = vpop.f32.mrb[0].mxu0
        %v6460 = vadd.f32 0.0, %v6459
        %v6461 = vpop.f32.mrb[0].mxu0
        %6462 = vmatprep.mubr.bf16.mxu0 0
        %6463 = vmatmul.mubr.bf16.gmra.mrb[0].mxu0 %v6323
        %v6464 = vpop.f32.mrb[0].mxu0
        %v6465 = vadd.f32 0.0, %v6464
        %v6466 = vpop.f32.mrb[0].mxu0
        %v6467 = vpop.f32.mrb[0].mxu0
        %v6468 = vadd.f32 0.0, %v6467
        %v6469 = vpop.f32.mrb[0].mxu0
        %6470 = vmatprep.mubr.bf16.mxu0 0
        %6471 = vmatmul.mubr.bf16.gmra.mrb[0].mxu0 %v6326
        %v6472 = vpop.f32.mrb[0].mxu0
        %v6473 = vadd.f32 0.0, %v6472
        %v6474 = vpop.f32.mrb[0].mxu0
        %v6475 = vpop.f32.mrb[0].mxu0
        %v6476 = vadd.f32 0.0, %v6475
        %v6477 = vpop.f32.mrb[0].mxu0
        %6478 = vmatprep.mubr.bf16.mxu0 0
        %6479 = vmatmul.mubr.bf16.gmra.mrb[0].mxu0 %v6329
        %v6480 = vpop.f32.mrb[0].mxu0
        %v6481 = vadd.f32 0.0, %v6480
        %v6482 = vpop.f32.mrb[0].mxu0
        %v6483 = vpop.f32.mrb[0].mxu0
        %v6484 = vadd.f32 0.0, %v6483
        %v6485 = vpop.f32.mrb[0].mxu0
        %6486 = vmatprep.mubr.bf16.mxu0 0
        %6487 = vmatmul.mubr.bf16.gmra.mrb[0].mxu0 %v6332
        %v6488 = vpop.f32.mrb[0].mxu0
        %v6489 = vadd.f32 0.0, %v6488
        %v6490 = vpop.f32.mrb[0].mxu0
        %v6491 = vpop.f32.mrb[0].mxu0
        %v6492 = vadd.f32 0.0, %v6491
        %v6493 = vpop.f32.mrb[0].mxu0
        %6494 = vdwg.mxu0
        %v6495 = vadd.f32 %v6221, %v6369
        %v6496 = vadd.f32 %v6222, %v6372
        %v6497 = vadd.f32 %v6223, %v6377
        %v6498 = vadd.f32 %v6224, %v6380
        %v6499 = vadd.f32 %v6225, %v6385
        %v6500 = vadd.f32 %v6226, %v6388
        %v6501 = vadd.f32 %v6227, %v6393
        %v6502 = vadd.f32 %v6228, %v6396
        %v6503 = vadd.f32 %v6229, %v6401
        %v6504 = vadd.f32 %v6230, %v6404
        %v6505 = vadd.f32 %v6231, %v6409
        %v6506 = vadd.f32 %v6232, %v6412
        %v6507 = vadd.f32 %v6233, %v6417
        %v6508 = vadd.f32 %v6234, %v6420
        %v6509 = vadd.f32 %v6235, %v6425
        %v6510 = vadd.f32 %v6236, %v6428
        %v6511 = vadd.f32 %v6237, %v6433
        %v6512 = vadd.f32 %v6238, %v6436
        %v6513 = vadd.f32 %v6239, %v6441
        %v6514 = vadd.f32 %v6240, %v6444
        %v6515 = vadd.f32 %v6241, %v6449
        %v6516 = vadd.f32 %v6242, %v6452
        %v6517 = vadd.f32 %v6243, %v6457
        %v6518 = vadd.f32 %v6244, %v6460
        %v6519 = vadd.f32 %v6245, %v6465
        %v6520 = vadd.f32 %v6246, %v6468
        %v6521 = vadd.f32 %v6247, %v6473
        %v6522 = vadd.f32 %v6248, %v6476
        %v6523 = vadd.f32 %v6249, %v6481
        %v6524 = vadd.f32 %v6250, %v6484
        %v6525 = vadd.f32 %v6251, %v6489
        %v6526 = vadd.f32 %v6252, %v6492
        %v6527 = vld [vmem:[#allocation3 + $0x10] sm:$0xff]
        %v6528 = vld [vmem:[#allocation3 + $0x18] sm:$0xff]
        %v6529 = vld [vmem:[#allocation3 + $0x20] sm:$0xff]
        %v6530 = vld [vmem:[#allocation3 + $0x28] sm:$0xff]
        %v6531 = vld [vmem:[#allocation3 + $0x30] sm:$0xff]
        %v6532 = vld [vmem:[#allocation3 + $0x38] sm:$0xff]
        %v6533 = vld [vmem:[#allocation3 + $0x40] sm:$0xff]
        %v6534 = vld [vmem:[#allocation3 + $0x48] sm:$0xff]
        %v6535 = vld [vmem:[#allocation3 + $0x50] sm:$0xff]
        %v6536 = vld [vmem:[#allocation3 + $0x58] sm:$0xff]
        %v6537 = vld [vmem:[#allocation3 + $0x60] sm:$0xff]
        %v6538 = vld [vmem:[#allocation3 + $0x68] sm:$0xff]
        %v6539 = vld [vmem:[#allocation3 + $0x70] sm:$0xff]
        %v6540 = vld [vmem:[#allocation3 + $0x78] sm:$0xff]
        %v6541 = vld [vmem:[#allocation3 + $0x80] sm:$0xff]
        %v6542 = vld [vmem:[#allocation3 + $0x88] sm:$0xff]
        %v6543 = vld [vmem:[#allocation3 + $0x90] sm:$0x1]
        %v6544 = vsel %vm2109, %v6527, 0
        %v6545 = vsel %vm2110, %v6528, 0
        %v6546 = vsel %vm2111, %v6529, 0
        %v6547 = vsel %vm2112, %v6530, 0
        %v6548 = vsel %vm2113, %v6531, 0
        %v6549 = vsel %vm2114, %v6532, 0
        %v6550 = vsel %vm2115, %v6533, 0
        %v6551 = vsel %vm2116, %v6534, 0
        %v6552 = vsel %vm2117, %v6535, 0
        %v6553 = vsel %vm2118, %v6536, 0
        %v6554 = vsel %vm2119, %v6537, 0
        %v6555 = vsel %vm2120, %v6538, 0
        %v6556 = vsel %vm2121, %v6539, 0
        %v6557 = vsel %vm2122, %v6540, 0
        %v6558 = vsel %vm2123, %v6541, 0
        %v6559 = vsel %vm2124, %v6542, 0
        %v6560 = vsel %vm2125, %v6543, 0
        %s6561 = scalar_lea.vmem [#allocation4], 160
        %v6562 = vld [vmem:[%s6561] sm:$0xf]
        %v6563 = vld [vmem:[%s6561 + $0x4] sm:$0xf]
        %v6564 = vld [vmem:[%s6561 + $0x8] sm:$0xf]
        %v6565 = vld [vmem:[%s6561 + $0xc] sm:$0xf]
        %v6566 = vld [vmem:[%s6561 + $0x10] sm:$0xf]
        %v6567 = vld [vmem:[%s6561 + $0x14] sm:$0xf]
        %v6568 = vld [vmem:[%s6561 + $0x18] sm:$0xf]
        %v6569 = vld [vmem:[%s6561 + $0x1c] sm:$0xf]
        %v6571 = vshrl.u32 %v6544, 16
        %v6573 = vshll.u32 %v6544, 16
        %v6575 = vrot.slane %v6573, 1
        %v6576 = vor.u32 %v6571, %v6575
        %v6578 = vshll.u32 %v6545, 16
        %v6580 = vrot.slane %v6578, 1
        %v6581 = vsel %vm1066, %v6576, %v6580
        %v6582 = vshrl.u32 %v6545, 16
        %v6584 = vor.u32 %v6582, %v6580
        %v6586 = vshll.u32 %v6546, 16
        %v6588 = vrot.slane %v6586, 1
        %v6589 = vsel %vm1066, %v6584, %v6588
        %v6590 = vshrl.u32 %v6546, 16
        %v6592 = vor.u32 %v6590, %v6588
        %v6594 = vshll.u32 %v6547, 16
        %v6596 = vrot.slane %v6594, 1
        %v6597 = vsel %vm1066, %v6592, %v6596
        %v6598 = vshrl.u32 %v6547, 16
        %v6600 = vor.u32 %v6598, %v6596
        %v6602 = vshll.u32 %v6548, 16
        %v6604 = vrot.slane %v6602, 1
        %v6605 = vsel %vm1066, %v6600, %v6604
        %v6606 = vshrl.u32 %v6548, 16
        %v6608 = vor.u32 %v6606, %v6604
        %v6610 = vshll.u32 %v6549, 16
        %v6612 = vrot.slane %v6610, 1
        %v6613 = vsel %vm1066, %v6608, %v6612
        %v6614 = vshrl.u32 %v6549, 16
        %v6616 = vor.u32 %v6614, %v6612
        %v6618 = vshll.u32 %v6550, 16
        %v6620 = vrot.slane %v6618, 1
        %v6621 = vsel %vm1066, %v6616, %v6620
        %v6622 = vshrl.u32 %v6550, 16
        %v6624 = vor.u32 %v6622, %v6620
        %v6626 = vshll.u32 %v6551, 16
        %v6628 = vrot.slane %v6626, 1
        %v6629 = vsel %vm1066, %v6624, %v6628
        %v6630 = vshrl.u32 %v6551, 16
        %v6632 = vor.u32 %v6630, %v6628
        %v6634 = vshll.u32 %v6552, 16
        %v6636 = vrot.slane %v6634, 1
        %v6637 = vsel %vm1066, %v6632, %v6636
        %v6638 = vshrl.u32 %v6552, 16
        %v6640 = vor.u32 %v6638, %v6636
        %v6642 = vshll.u32 %v6553, 16
        %v6644 = vrot.slane %v6642, 1
        %v6645 = vsel %vm1066, %v6640, %v6644
        %v6646 = vshrl.u32 %v6553, 16
        %v6648 = vor.u32 %v6646, %v6644
        %v6650 = vshll.u32 %v6554, 16
        %v6652 = vrot.slane %v6650, 1
        %v6653 = vsel %vm1066, %v6648, %v6652
        %v6654 = vshrl.u32 %v6554, 16
        %v6656 = vor.u32 %v6654, %v6652
        %v6658 = vshll.u32 %v6555, 16
        %v6660 = vrot.slane %v6658, 1
        %v6661 = vsel %vm1066, %v6656, %v6660
        %v6662 = vshrl.u32 %v6555, 16
        %v6664 = vor.u32 %v6662, %v6660
        %v6666 = vshll.u32 %v6556, 16
        %v6668 = vrot.slane %v6666, 1
        %v6669 = vsel %vm1066, %v6664, %v6668
        %v6670 = vshrl.u32 %v6556, 16
        %v6672 = vor.u32 %v6670, %v6668
        %v6674 = vshll.u32 %v6557, 16
        %v6676 = vrot.slane %v6674, 1
        %v6677 = vsel %vm1066, %v6672, %v6676
        %v6678 = vshrl.u32 %v6557, 16
        %v6680 = vor.u32 %v6678, %v6676
        %v6682 = vshll.u32 %v6558, 16
        %v6684 = vrot.slane %v6682, 1
        %v6685 = vsel %vm1066, %v6680, %v6684
        %v6686 = vshrl.u32 %v6558, 16
        %v6688 = vor.u32 %v6686, %v6684
        %v6690 = vshll.u32 %v6559, 16
        %v6692 = vrot.slane %v6690, 1
        %v6693 = vsel %vm1066, %v6688, %v6692
        %v6694 = vshrl.u32 %v6559, 16
        %v6696 = vor.u32 %v6694, %v6692
        %v6698 = vshll.u32 %v6560, 16
        %v6700 = vrot.slane %v6698, 1
        %v6701 = vsel %vm1066, %v6696, %v6700
        %v6710 = vunpack.c.l.b16 %v6562
        %v6711 = vunpack.c.l.b16 %v6563
        %v6712 = vunpack.c.l.b16 %v6564
        %v6713 = vunpack.c.l.b16 %v6565
        %v6714 = vunpack.c.l.b16 %v6566
        %v6715 = vunpack.c.l.b16 %v6567
        %v6716 = vunpack.c.l.b16 %v6568
        %v6717 = vunpack.c.l.b16 %v6569
        %v6718 = vpack.c.b16 %v6711, %v6710
        %v6719 = vpack.c.b16 %v6713, %v6712
        %v6720 = vpack.c.b16 %v6715, %v6714
        %v6721 = vpack.c.b16 %v6717, %v6716
        %v6727 = vsel %vm4702, %v6581, 0
        %v6730 = vsel %vm4702, %v6589, 0
        %v6733 = vsel %vm4702, %v6597, 0
        %v6736 = vsel %vm4702, %v6605, 0
        %v6739 = vsel %vm4702, %v6613, 0
        %v6742 = vsel %vm4702, %v6621, 0
        %v6745 = vsel %vm4702, %v6629, 0
        %v6748 = vsel %vm4702, %v6637, 0
        %v6751 = vsel %vm4702, %v6645, 0
        %v6754 = vsel %vm4702, %v6653, 0
        %v6757 = vsel %vm4702, %v6661, 0
        %v6760 = vsel %vm4702, %v6669, 0
        %v6763 = vsel %vm4702, %v6677, 0
        %v6766 = vsel %vm4702, %v6685, 0
        %v6769 = vsel %vm4702, %v6693, 0
        %v6772 = vsel %vm4702, %v6701, 0
        %6774 = vmatprep.subr.bf16.mxu0 0
        %6775 = vmatpush1.bf16.msra.mxu0 %v6718
        %6776 = vmatprep.subr.bf16.mxu0 0
        %6777 = vmatpush1.bf16.msra.mxu0 %v6719
        %6778 = vmatprep.subr.bf16.mxu0 0
        %6779 = vmatpush1.bf16.msra.mxu0 %v6720
        %6780 = vmatprep.subr.bf16.mxu0 0
        %6781 = vmatpush1.bf16.msra.mxu0 %v6721
        %6782 = vmatprep.subr.bf16.mxu0 0
        %6783 = vmatpush1.bf16.msra.mxu0 0
        %6784 = vmatprep.subr.bf16.mxu0 0
        %6785 = vmatpush1.bf16.msra.mxu0 0
        %6786 = vmatprep.subr.bf16.mxu0 0
        %6787 = vmatpush1.bf16.msra.mxu0 0
        %6788 = vmatprep.subr.bf16.mxu0 0
        %6789 = vmatpush1.bf16.msra.mxu0 0
        %6790 = vmatprep.subr.bf16.mxu0 0
        %6791 = vmatpush1.bf16.msra.mxu0 0
        %6792 = vmatprep.subr.bf16.mxu0 0
        %6793 = vmatpush1.bf16.msra.mxu0 0
        %6794 = vmatprep.subr.bf16.mxu0 0
        %6795 = vmatpush1.bf16.msra.mxu0 0
        %6796 = vmatprep.subr.bf16.mxu0 0
        %6797 = vmatpush1.bf16.msra.mxu0 0
        %6798 = vmatprep.subr.bf16.mxu0 0
        %6799 = vmatpush1.bf16.msra.mxu0 0
        %6800 = vmatprep.subr.bf16.mxu0 0
        %6801 = vmatpush1.bf16.msra.mxu0 0
        %6802 = vmatprep.subr.bf16.mxu0 0
        %6803 = vmatpush1.bf16.msra.mxu0 0
        %6804 = vmatprep.subr.bf16.mxu0 0
        %6805 = vmatpush1.bf16.msra.mxu0 0
        %6806 = vmatprep.mubr.bf16.mxu0 0
        %6807 = vmatmul.mubr.bf16.gmra.mrb[0].mxu0 %v6727
        %v6808 = vpop.f32.mrb[0].mxu0
        %v6809 = vadd.f32 0.0, %v6808
        %v6810 = vpop.f32.mrb[0].mxu0
        %v6811 = vpop.f32.mrb[0].mxu0
        %v6812 = vadd.f32 0.0, %v6811
        %v6813 = vpop.f32.mrb[0].mxu0
        %6814 = vmatprep.mubr.bf16.mxu0 0
        %6815 = vmatmul.mubr.bf16.gmra.mrb[0].mxu0 %v6730
        %v6816 = vpop.f32.mrb[0].mxu0
        %v6817 = vadd.f32 0.0, %v6816
        %v6818 = vpop.f32.mrb[0].mxu0
        %v6819 = vpop.f32.mrb[0].mxu0
        %v6820 = vadd.f32 0.0, %v6819
        %v6821 = vpop.f32.mrb[0].mxu0
        %6822 = vmatprep.mubr.bf16.mxu0 0
        %6823 = vmatmul.mubr.bf16.gmra.mrb[0].mxu0 %v6733
        %v6824 = vpop.f32.mrb[0].mxu0
        %v6825 = vadd.f32 0.0, %v6824
        %v6826 = vpop.f32.mrb[0].mxu0
        %v6827 = vpop.f32.mrb[0].mxu0
        %v6828 = vadd.f32 0.0, %v6827
        %v6829 = vpop.f32.mrb[0].mxu0
        %6830 = vmatprep.mubr.bf16.mxu0 0
        %6831 = vmatmul.mubr.bf16.gmra.mrb[0].mxu0 %v6736
        %v6832 = vpop.f32.mrb[0].mxu0
        %v6833 = vadd.f32 0.0, %v6832
        %v6834 = vpop.f32.mrb[0].mxu0
        %v6835 = vpop.f32.mrb[0].mxu0
        %v6836 = vadd.f32 0.0, %v6835
        %v6837 = vpop.f32.mrb[0].mxu0
        %6838 = vmatprep.mubr.bf16.mxu0 0
        %6839 = vmatmul.mubr.bf16.gmra.mrb[0].mxu0 %v6739
        %v6840 = vpop.f32.mrb[0].mxu0
        %v6841 = vadd.f32 0.0, %v6840
        %v6842 = vpop.f32.mrb[0].mxu0
        %v6843 = vpop.f32.mrb[0].mxu0
        %v6844 = vadd.f32 0.0, %v6843
        %v6845 = vpop.f32.mrb[0].mxu0
        %6846 = vmatprep.mubr.bf16.mxu0 0
        %6847 = vmatmul.mubr.bf16.gmra.mrb[0].mxu0 %v6742
        %v6848 = vpop.f32.mrb[0].mxu0
        %v6849 = vadd.f32 0.0, %v6848
        %v6850 = vpop.f32.mrb[0].mxu0
        %v6851 = vpop.f32.mrb[0].mxu0
        %v6852 = vadd.f32 0.0, %v6851
        %v6853 = vpop.f32.mrb[0].mxu0
        %6854 = vmatprep.mubr.bf16.mxu0 0
        %6855 = vmatmul.mubr.bf16.gmra.mrb[0].mxu0 %v6745
        %v6856 = vpop.f32.mrb[0].mxu0
        %v6857 = vadd.f32 0.0, %v6856
        %v6858 = vpop.f32.mrb[0].mxu0
        %v6859 = vpop.f32.mrb[0].mxu0
        %v6860 = vadd.f32 0.0, %v6859
        %v6861 = vpop.f32.mrb[0].mxu0
        %6862 = vmatprep.mubr.bf16.mxu0 0
        %6863 = vmatmul.mubr.bf16.gmra.mrb[0].mxu0 %v6748
        %v6864 = vpop.f32.mrb[0].mxu0
        %v6865 = vadd.f32 0.0, %v6864
        %v6866 = vpop.f32.mrb[0].mxu0
        %v6867 = vpop.f32.mrb[0].mxu0
        %v6868 = vadd.f32 0.0, %v6867
        %v6869 = vpop.f32.mrb[0].mxu0
        %6870 = vmatprep.mubr.bf16.mxu0 0
        %6871 = vmatmul.mubr.bf16.gmra.mrb[0].mxu0 %v6751
        %v6872 = vpop.f32.mrb[0].mxu0
        %v6873 = vadd.f32 0.0, %v6872
        %v6874 = vpop.f32.mrb[0].mxu0
        %v6875 = vpop.f32.mrb[0].mxu0
        %v6876 = vadd.f32 0.0, %v6875
        %v6877 = vpop.f32.mrb[0].mxu0
        %6878 = vmatprep.mubr.bf16.mxu0 0
        %6879 = vmatmul.mubr.bf16.gmra.mrb[0].mxu0 %v6754
        %v6880 = vpop.f32.mrb[0].mxu0
        %v6881 = vadd.f32 0.0, %v6880
        %v6882 = vpop.f32.mrb[0].mxu0
        %v6883 = vpop.f32.mrb[0].mxu0
        %v6884 = vadd.f32 0.0, %v6883
        %v6885 = vpop.f32.mrb[0].mxu0
        %6886 = vmatprep.mubr.bf16.mxu0 0
        %6887 = vmatmul.mubr.bf16.gmra.mrb[0].mxu0 %v6757
        %v6888 = vpop.f32.mrb[0].mxu0
        %v6889 = vadd.f32 0.0, %v6888
        %v6890 = vpop.f32.mrb[0].mxu0
        %v6891 = vpop.f32.mrb[0].mxu0
        %v6892 = vadd.f32 0.0, %v6891
        %v6893 = vpop.f32.mrb[0].mxu0
        %6894 = vmatprep.mubr.bf16.mxu0 0
        %6895 = vmatmul.mubr.bf16.gmra.mrb[0].mxu0 %v6760
        %v6896 = vpop.f32.mrb[0].mxu0
        %v6897 = vadd.f32 0.0, %v6896
        %v6898 = vpop.f32.mrb[0].mxu0
        %v6899 = vpop.f32.mrb[0].mxu0
        %v6900 = vadd.f32 0.0, %v6899
        %v6901 = vpop.f32.mrb[0].mxu0
        %6902 = vmatprep.mubr.bf16.mxu0 0
        %6903 = vmatmul.mubr.bf16.gmra.mrb[0].mxu0 %v6763
        %v6904 = vpop.f32.mrb[0].mxu0
        %v6905 = vadd.f32 0.0, %v6904
        %v6906 = vpop.f32.mrb[0].mxu0
        %v6907 = vpop.f32.mrb[0].mxu0
        %v6908 = vadd.f32 0.0, %v6907
        %v6909 = vpop.f32.mrb[0].mxu0
        %6910 = vmatprep.mubr.bf16.mxu0 0
        %6911 = vmatmul.mubr.bf16.gmra.mrb[0].mxu0 %v6766
        %v6912 = vpop.f32.mrb[0].mxu0
        %v6913 = vadd.f32 0.0, %v6912
        %v6914 = vpop.f32.mrb[0].mxu0
        %v6915 = vpop.f32.mrb[0].mxu0
        %v6916 = vadd.f32 0.0, %v6915
        %v6917 = vpop.f32.mrb[0].mxu0
        %6918 = vmatprep.mubr.bf16.mxu0 0
        %6919 = vmatmul.mubr.bf16.gmra.mrb[0].mxu0 %v6769
        %v6920 = vpop.f32.mrb[0].mxu0
        %v6921 = vadd.f32 0.0, %v6920
        %v6922 = vpop.f32.mrb[0].mxu0
        %v6923 = vpop.f32.mrb[0].mxu0
        %v6924 = vadd.f32 0.0, %v6923
        %v6925 = vpop.f32.mrb[0].mxu0
        %6926 = vmatprep.mubr.bf16.mxu0 0
        %6927 = vmatmul.mubr.bf16.gmra.mrb[0].mxu0 %v6772
        %v6928 = vpop.f32.mrb[0].mxu0
        %v6929 = vadd.f32 0.0, %v6928
        %v6930 = vpop.f32.mrb[0].mxu0
        %v6931 = vpop.f32.mrb[0].mxu0
        %v6932 = vadd.f32 0.0, %v6931
        %v6933 = vpop.f32.mrb[0].mxu0
        %6934 = vdwg.mxu0
        %v6935 = vadd.f32 %v6495, %v6809
        %v6936 = vadd.f32 %v6496, %v6812
        %v6937 = vadd.f32 %v6497, %v6817
        %v6938 = vadd.f32 %v6498, %v6820
        %v6939 = vadd.f32 %v6499, %v6825
        %v6940 = vadd.f32 %v6500, %v6828
        %v6941 = vadd.f32 %v6501, %v6833
        %v6942 = vadd.f32 %v6502, %v6836
        %v6943 = vadd.f32 %v6503, %v6841
        %v6944 = vadd.f32 %v6504, %v6844
        %v6945 = vadd.f32 %v6505, %v6849
        %v6946 = vadd.f32 %v6506, %v6852
        %v6947 = vadd.f32 %v6507, %v6857
        %v6948 = vadd.f32 %v6508, %v6860
        %v6949 = vadd.f32 %v6509, %v6865
        %v6950 = vadd.f32 %v6510, %v6868
        %v6951 = vadd.f32 %v6511, %v6873
        %v6952 = vadd.f32 %v6512, %v6876
        %v6953 = vadd.f32 %v6513, %v6881
        %v6954 = vadd.f32 %v6514, %v6884
        %v6955 = vadd.f32 %v6515, %v6889
        %v6956 = vadd.f32 %v6516, %v6892
        %v6957 = vadd.f32 %v6517, %v6897
        %v6958 = vadd.f32 %v6518, %v6900
        %v6959 = vadd.f32 %v6519, %v6905
        %v6960 = vadd.f32 %v6520, %v6908
        %v6961 = vadd.f32 %v6521, %v6913
        %v6962 = vadd.f32 %v6522, %v6916
        %v6963 = vadd.f32 %v6523, %v6921
        %v6964 = vadd.f32 %v6524, %v6924
        %v6965 = vadd.f32 %v6525, %v6929
        %v6966 = vadd.f32 %v6526, %v6932
        %v6967 = vld [vmem:[#allocation3 + $0x10] sm:$0x80]
        %v6968 = vld [vmem:[#allocation3 + $0x90] sm:$0xff]
        %v6969 = vsel %vm1194, %v6967, 0
        %v6970 = vsel %vm1195, %v6528, 0
        %v6971 = vsel %vm1196, %v6529, 0
        %v6972 = vsel %vm1197, %v6530, 0
        %v6973 = vsel %vm1198, %v6531, 0
        %v6974 = vsel %vm1199, %v6532, 0
        %v6975 = vsel %vm1200, %v6533, 0
        %v6976 = vsel %vm1201, %v6534, 0
        %v6977 = vsel %vm1202, %v6535, 0
        %v6978 = vsel %vm1203, %v6536, 0
        %v6979 = vsel %vm1204, %v6537, 0
        %v6980 = vsel %vm1205, %v6538, 0
        %v6981 = vsel %vm1206, %v6539, 0
        %v6982 = vsel %vm1207, %v6540, 0
        %v6983 = vsel %vm1208, %v6541, 0
        %v6984 = vsel %vm1209, %v6542, 0
        %v6985 = vsel %vm1210, %v6968, 0
        %s6986 = scalar_lea.vmem [#allocation4], 192
        %v6987 = vld [vmem:[%s6986] sm:$0xf]
        %v6988 = vld [vmem:[%s6986 + $0x4] sm:$0xf]
        %v6989 = vld [vmem:[%s6986 + $0x8] sm:$0xf]
        %v6990 = vld [vmem:[%s6986 + $0xc] sm:$0xf]
        %v6991 = vld [vmem:[%s6986 + $0x10] sm:$0xf]
        %v6992 = vld [vmem:[%s6986 + $0x14] sm:$0xf]
        %v6993 = vld [vmem:[%s6986 + $0x18] sm:$0xf]
        %v6994 = vld [vmem:[%s6986 + $0x1c] sm:$0xf]
        %v6996 = vshrl.u32 %v6969, 16
        %v6998 = vrot.slane %v6996, 7
        %v7000 = vshrl.u32 %v6970, 16
        %v7002 = vrot.slane %v7000, 7
        %v7003 = vshll.u32 %v6970, 16
        %v7005 = vor.u32 %v7002, %v7003
        %v7006 = vsel %vm1444, %v6998, %v7005
        %v7008 = vshrl.u32 %v6971, 16
        %v7010 = vrot.slane %v7008, 7
        %v7011 = vshll.u32 %v6971, 16
        %v7013 = vor.u32 %v7010, %v7011
        %v7014 = vsel %vm1444, %v7002, %v7013
        %v7016 = vshrl.u32 %v6972, 16
        %v7018 = vrot.slane %v7016, 7
        %v7019 = vshll.u32 %v6972, 16
        %v7021 = vor.u32 %v7018, %v7019
        %v7022 = vsel %vm1444, %v7010, %v7021
        %v7024 = vshrl.u32 %v6973, 16
        %v7026 = vrot.slane %v7024, 7
        %v7027 = vshll.u32 %v6973, 16
        %v7029 = vor.u32 %v7026, %v7027
        %v7030 = vsel %vm1444, %v7018, %v7029
        %v7032 = vshrl.u32 %v6974, 16
        %v7034 = vrot.slane %v7032, 7
        %v7035 = vshll.u32 %v6974, 16
        %v7037 = vor.u32 %v7034, %v7035
        %v7038 = vsel %vm1444, %v7026, %v7037
        %v7040 = vshrl.u32 %v6975, 16
        %v7042 = vrot.slane %v7040, 7
        %v7043 = vshll.u32 %v6975, 16
        %v7045 = vor.u32 %v7042, %v7043
        %v7046 = vsel %vm1444, %v7034, %v7045
        %v7048 = vshrl.u32 %v6976, 16
        %v7050 = vrot.slane %v7048, 7
        %v7051 = vshll.u32 %v6976, 16
        %v7053 = vor.u32 %v7050, %v7051
        %v7054 = vsel %vm1444, %v7042, %v7053
        %v7056 = vshrl.u32 %v6977, 16
        %v7058 = vrot.slane %v7056, 7
        %v7059 = vshll.u32 %v6977, 16
        %v7061 = vor.u32 %v7058, %v7059
        %v7062 = vsel %vm1444, %v7050, %v7061
        %v7064 = vshrl.u32 %v6978, 16
        %v7066 = vrot.slane %v7064, 7
        %v7067 = vshll.u32 %v6978, 16
        %v7069 = vor.u32 %v7066, %v7067
        %v7070 = vsel %vm1444, %v7058, %v7069
        %v7072 = vshrl.u32 %v6979, 16
        %v7074 = vrot.slane %v7072, 7
        %v7075 = vshll.u32 %v6979, 16
        %v7077 = vor.u32 %v7074, %v7075
        %v7078 = vsel %vm1444, %v7066, %v7077
        %v7080 = vshrl.u32 %v6980, 16
        %v7082 = vrot.slane %v7080, 7
        %v7083 = vshll.u32 %v6980, 16
        %v7085 = vor.u32 %v7082, %v7083
        %v7086 = vsel %vm1444, %v7074, %v7085
        %v7088 = vshrl.u32 %v6981, 16
        %v7090 = vrot.slane %v7088, 7
        %v7091 = vshll.u32 %v6981, 16
        %v7093 = vor.u32 %v7090, %v7091
        %v7094 = vsel %vm1444, %v7082, %v7093
        %v7096 = vshrl.u32 %v6982, 16
        %v7098 = vrot.slane %v7096, 7
        %v7099 = vshll.u32 %v6982, 16
        %v7101 = vor.u32 %v7098, %v7099
        %v7102 = vsel %vm1444, %v7090, %v7101
        %v7104 = vshrl.u32 %v6983, 16
        %v7106 = vrot.slane %v7104, 7
        %v7107 = vshll.u32 %v6983, 16
        %v7109 = vor.u32 %v7106, %v7107
        %v7110 = vsel %vm1444, %v7098, %v7109
        %v7112 = vshrl.u32 %v6984, 16
        %v7114 = vrot.slane %v7112, 7
        %v7115 = vshll.u32 %v6984, 16
        %v7117 = vor.u32 %v7114, %v7115
        %v7118 = vsel %vm1444, %v7106, %v7117
        %v7120 = vshrl.u32 %v6985, 16
        %v7122 = vrot.slane %v7120, 7
        %v7123 = vshll.u32 %v6985, 16
        %v7125 = vor.u32 %v7122, %v7123
        %v7126 = vsel %vm1444, %v7114, %v7125
        %v7135 = vunpack.c.l.b16 %v6987
        %v7136 = vunpack.c.l.b16 %v6988
        %v7137 = vunpack.c.l.b16 %v6989
        %v7138 = vunpack.c.l.b16 %v6990
        %v7139 = vunpack.c.l.b16 %v6991
        %v7140 = vunpack.c.l.b16 %v6992
        %v7141 = vunpack.c.l.b16 %v6993
        %v7142 = vunpack.c.l.b16 %v6994
        %v7143 = vpack.c.b16 %v7136, %v7135
        %v7144 = vpack.c.b16 %v7138, %v7137
        %v7145 = vpack.c.b16 %v7140, %v7139
        %v7146 = vpack.c.b16 %v7142, %v7141
        %v7152 = vsel %vm4702, %v7006, 0
        %v7155 = vsel %vm4702, %v7014, 0
        %v7158 = vsel %vm4702, %v7022, 0
        %v7161 = vsel %vm4702, %v7030, 0
        %v7164 = vsel %vm4702, %v7038, 0
        %v7167 = vsel %vm4702, %v7046, 0
        %v7170 = vsel %vm4702, %v7054, 0
        %v7173 = vsel %vm4702, %v7062, 0
        %v7176 = vsel %vm4702, %v7070, 0
        %v7179 = vsel %vm4702, %v7078, 0
        %v7182 = vsel %vm4702, %v7086, 0
        %v7185 = vsel %vm4702, %v7094, 0
        %v7188 = vsel %vm4702, %v7102, 0
        %v7191 = vsel %vm4702, %v7110, 0
        %v7194 = vsel %vm4702, %v7118, 0
        %v7197 = vsel %vm4702, %v7126, 0
        %7199 = vmatprep.subr.bf16.mxu0 0
        %7200 = vmatpush1.bf16.msra.mxu0 %v7143
        %7201 = vmatprep.subr.bf16.mxu0 0
        %7202 = vmatpush1.bf16.msra.mxu0 %v7144
        %7203 = vmatprep.subr.bf16.mxu0 0
        %7204 = vmatpush1.bf16.msra.mxu0 %v7145
        %7205 = vmatprep.subr.bf16.mxu0 0
        %7206 = vmatpush1.bf16.msra.mxu0 %v7146
        %7207 = vmatprep.subr.bf16.mxu0 0
        %7208 = vmatpush1.bf16.msra.mxu0 0
        %7209 = vmatprep.subr.bf16.mxu0 0
        %7210 = vmatpush1.bf16.msra.mxu0 0
        %7211 = vmatprep.subr.bf16.mxu0 0
        %7212 = vmatpush1.bf16.msra.mxu0 0
        %7213 = vmatprep.subr.bf16.mxu0 0
        %7214 = vmatpush1.bf16.msra.mxu0 0
        %7215 = vmatprep.subr.bf16.mxu0 0
        %7216 = vmatpush1.bf16.msra.mxu0 0
        %7217 = vmatprep.subr.bf16.mxu0 0
        %7218 = vmatpush1.bf16.msra.mxu0 0
        %7219 = vmatprep.subr.bf16.mxu0 0
        %7220 = vmatpush1.bf16.msra.mxu0 0
        %7221 = vmatprep.subr.bf16.mxu0 0
        %7222 = vmatpush1.bf16.msra.mxu0 0
        %7223 = vmatprep.subr.bf16.mxu0 0
        %7224 = vmatpush1.bf16.msra.mxu0 0
        %7225 = vmatprep.subr.bf16.mxu0 0
        %7226 = vmatpush1.bf16.msra.mxu0 0
        %7227 = vmatprep.subr.bf16.mxu0 0
        %7228 = vmatpush1.bf16.msra.mxu0 0
        %7229 = vmatprep.subr.bf16.mxu0 0
        %7230 = vmatpush1.bf16.msra.mxu0 0
        %7231 = vmatprep.mubr.bf16.mxu0 0
        %7232 = vmatmul.mubr.bf16.gmra.mrb[0].mxu0 %v7152
        %v7233 = vpop.f32.mrb[0].mxu0
        %v7234 = vadd.f32 0.0, %v7233
        %v7235 = vpop.f32.mrb[0].mxu0
        %v7236 = vpop.f32.mrb[0].mxu0
        %v7237 = vadd.f32 0.0, %v7236
        %v7238 = vpop.f32.mrb[0].mxu0
        %7239 = vmatprep.mubr.bf16.mxu0 0
        %7240 = vmatmul.mubr.bf16.gmra.mrb[0].mxu0 %v7155
        %v7241 = vpop.f32.mrb[0].mxu0
        %v7242 = vadd.f32 0.0, %v7241
        %v7243 = vpop.f32.mrb[0].mxu0
        %v7244 = vpop.f32.mrb[0].mxu0
        %v7245 = vadd.f32 0.0, %v7244
        %v7246 = vpop.f32.mrb[0].mxu0
        %7247 = vmatprep.mubr.bf16.mxu0 0
        %7248 = vmatmul.mubr.bf16.gmra.mrb[0].mxu0 %v7158
        %v7249 = vpop.f32.mrb[0].mxu0
        %v7250 = vadd.f32 0.0, %v7249
        %v7251 = vpop.f32.mrb[0].mxu0
        %v7252 = vpop.f32.mrb[0].mxu0
        %v7253 = vadd.f32 0.0, %v7252
        %v7254 = vpop.f32.mrb[0].mxu0
        %7255 = vmatprep.mubr.bf16.mxu0 0
        %7256 = vmatmul.mubr.bf16.gmra.mrb[0].mxu0 %v7161
        %v7257 = vpop.f32.mrb[0].mxu0
        %v7258 = vadd.f32 0.0, %v7257
        %v7259 = vpop.f32.mrb[0].mxu0
        %v7260 = vpop.f32.mrb[0].mxu0
        %v7261 = vadd.f32 0.0, %v7260
        %v7262 = vpop.f32.mrb[0].mxu0
        %7263 = vmatprep.mubr.bf16.mxu0 0
        %7264 = vmatmul.mubr.bf16.gmra.mrb[0].mxu0 %v7164
        %v7265 = vpop.f32.mrb[0].mxu0
        %v7266 = vadd.f32 0.0, %v7265
        %v7267 = vpop.f32.mrb[0].mxu0
        %v7268 = vpop.f32.mrb[0].mxu0
        %v7269 = vadd.f32 0.0, %v7268
        %v7270 = vpop.f32.mrb[0].mxu0
        %7271 = vmatprep.mubr.bf16.mxu0 0
        %7272 = vmatmul.mubr.bf16.gmra.mrb[0].mxu0 %v7167
        %v7273 = vpop.f32.mrb[0].mxu0
        %v7274 = vadd.f32 0.0, %v7273
        %v7275 = vpop.f32.mrb[0].mxu0
        %v7276 = vpop.f32.mrb[0].mxu0
        %v7277 = vadd.f32 0.0, %v7276
        %v7278 = vpop.f32.mrb[0].mxu0
        %7279 = vmatprep.mubr.bf16.mxu0 0
        %7280 = vmatmul.mubr.bf16.gmra.mrb[0].mxu0 %v7170
        %v7281 = vpop.f32.mrb[0].mxu0
        %v7282 = vadd.f32 0.0, %v7281
        %v7283 = vpop.f32.mrb[0].mxu0
        %v7284 = vpop.f32.mrb[0].mxu0
        %v7285 = vadd.f32 0.0, %v7284
        %v7286 = vpop.f32.mrb[0].mxu0
        %7287 = vmatprep.mubr.bf16.mxu0 0
        %7288 = vmatmul.mubr.bf16.gmra.mrb[0].mxu0 %v7173
        %v7289 = vpop.f32.mrb[0].mxu0
        %v7290 = vadd.f32 0.0, %v7289
        %v7291 = vpop.f32.mrb[0].mxu0
        %v7292 = vpop.f32.mrb[0].mxu0
        %v7293 = vadd.f32 0.0, %v7292
        %v7294 = vpop.f32.mrb[0].mxu0
        %7295 = vmatprep.mubr.bf16.mxu0 0
        %7296 = vmatmul.mubr.bf16.gmra.mrb[0].mxu0 %v7176
        %v7297 = vpop.f32.mrb[0].mxu0
        %v7298 = vadd.f32 0.0, %v7297
        %v7299 = vpop.f32.mrb[0].mxu0
        %v7300 = vpop.f32.mrb[0].mxu0
        %v7301 = vadd.f32 0.0, %v7300
        %v7302 = vpop.f32.mrb[0].mxu0
        %7303 = vmatprep.mubr.bf16.mxu0 0
        %7304 = vmatmul.mubr.bf16.gmra.mrb[0].mxu0 %v7179
        %v7305 = vpop.f32.mrb[0].mxu0
        %v7306 = vadd.f32 0.0, %v7305
        %v7307 = vpop.f32.mrb[0].mxu0
        %v7308 = vpop.f32.mrb[0].mxu0
        %v7309 = vadd.f32 0.0, %v7308
        %v7310 = vpop.f32.mrb[0].mxu0
        %7311 = vmatprep.mubr.bf16.mxu0 0
        %7312 = vmatmul.mubr.bf16.gmra.mrb[0].mxu0 %v7182
        %v7313 = vpop.f32.mrb[0].mxu0
        %v7314 = vadd.f32 0.0, %v7313
        %v7315 = vpop.f32.mrb[0].mxu0
        %v7316 = vpop.f32.mrb[0].mxu0
        %v7317 = vadd.f32 0.0, %v7316
        %v7318 = vpop.f32.mrb[0].mxu0
        %7319 = vmatprep.mubr.bf16.mxu0 0
        %7320 = vmatmul.mubr.bf16.gmra.mrb[0].mxu0 %v7185
        %v7321 = vpop.f32.mrb[0].mxu0
        %v7322 = vadd.f32 0.0, %v7321
        %v7323 = vpop.f32.mrb[0].mxu0
        %v7324 = vpop.f32.mrb[0].mxu0
        %v7325 = vadd.f32 0.0, %v7324
        %v7326 = vpop.f32.mrb[0].mxu0
        %7327 = vmatprep.mubr.bf16.mxu0 0
        %7328 = vmatmul.mubr.bf16.gmra.mrb[0].mxu0 %v7188
        %v7329 = vpop.f32.mrb[0].mxu0
        %v7330 = vadd.f32 0.0, %v7329
        %v7331 = vpop.f32.mrb[0].mxu0
        %v7332 = vpop.f32.mrb[0].mxu0
        %v7333 = vadd.f32 0.0, %v7332
        %v7334 = vpop.f32.mrb[0].mxu0
        %7335 = vmatprep.mubr.bf16.mxu0 0
        %7336 = vmatmul.mubr.bf16.gmra.mrb[0].mxu0 %v7191
        %v7337 = vpop.f32.mrb[0].mxu0
        %v7338 = vadd.f32 0.0, %v7337
        %v7339 = vpop.f32.mrb[0].mxu0
        %v7340 = vpop.f32.mrb[0].mxu0
        %v7341 = vadd.f32 0.0, %v7340
        %v7342 = vpop.f32.mrb[0].mxu0
        %7343 = vmatprep.mubr.bf16.mxu0 0
        %7344 = vmatmul.mubr.bf16.gmra.mrb[0].mxu0 %v7194
        %v7345 = vpop.f32.mrb[0].mxu0
        %v7346 = vadd.f32 0.0, %v7345
        %v7347 = vpop.f32.mrb[0].mxu0
        %v7348 = vpop.f32.mrb[0].mxu0
        %v7349 = vadd.f32 0.0, %v7348
        %v7350 = vpop.f32.mrb[0].mxu0
        %7351 = vmatprep.mubr.bf16.mxu0 0
        %7352 = vmatmul.mubr.bf16.gmra.mrb[0].mxu0 %v7197
        %v7353 = vpop.f32.mrb[0].mxu0
        %v7354 = vadd.f32 0.0, %v7353
        %v7355 = vpop.f32.mrb[0].mxu0
        %v7356 = vpop.f32.mrb[0].mxu0
        %v7357 = vadd.f32 0.0, %v7356
        %v7358 = vpop.f32.mrb[0].mxu0
        %7359 = vdwg.mxu0
        %v7360 = vadd.f32 %v6935, %v7234
        %v7361 = vadd.f32 %v6936, %v7237
        %v7362 = vadd.f32 %v6937, %v7242
        %v7363 = vadd.f32 %v6938, %v7245
        %v7364 = vadd.f32 %v6939, %v7250
        %v7365 = vadd.f32 %v6940, %v7253
        %v7366 = vadd.f32 %v6941, %v7258
        %v7367 = vadd.f32 %v6942, %v7261
        %v7368 = vadd.f32 %v6943, %v7266
        %v7369 = vadd.f32 %v6944, %v7269
        %v7370 = vadd.f32 %v6945, %v7274
        %v7371 = vadd.f32 %v6946, %v7277
        %v7372 = vadd.f32 %v6947, %v7282
        %v7373 = vadd.f32 %v6948, %v7285
        %v7374 = vadd.f32 %v6949, %v7290
        %v7375 = vadd.f32 %v6950, %v7293
        %v7376 = vadd.f32 %v6951, %v7298
        %v7377 = vadd.f32 %v6952, %v7301
        %v7378 = vadd.f32 %v6953, %v7306
        %v7379 = vadd.f32 %v6954, %v7309
        %v7380 = vadd.f32 %v6955, %v7314
        %v7381 = vadd.f32 %v6956, %v7317
        %v7382 = vadd.f32 %v6957, %v7322
        %v7383 = vadd.f32 %v6958, %v7325
        %v7384 = vadd.f32 %v6959, %v7330
        %v7385 = vadd.f32 %v6960, %v7333
        %v7386 = vadd.f32 %v6961, %v7338
        %v7387 = vadd.f32 %v6962, %v7341
        %v7388 = vadd.f32 %v6963, %v7346
        %v7389 = vadd.f32 %v6964, %v7349
        %v7390 = vadd.f32 %v6965, %v7354
        %v7391 = vadd.f32 %v6966, %v7357
        %s7392 = scalar_lea.vmem [#allocation4], 224
        %v7393 = vld [vmem:[%s7392] sm:$0xf]
        %v7394 = vld [vmem:[%s7392 + $0x4] sm:$0xf]
        %v7395 = vld [vmem:[%s7392 + $0x8] sm:$0xf]
        %v7396 = vld [vmem:[%s7392 + $0xc] sm:$0xf]
        %v7397 = vld [vmem:[%s7392 + $0x10] sm:$0xf]
        %v7398 = vld [vmem:[%s7392 + $0x14] sm:$0xf]
        %v7399 = vld [vmem:[%s7392 + $0x18] sm:$0xf]
        %v7400 = vld [vmem:[%s7392 + $0x1c] sm:$0xf]
        %v7409 = vunpack.c.l.b16 %v7393
        %v7410 = vunpack.c.l.b16 %v7394
        %v7411 = vunpack.c.l.b16 %v7395
        %v7412 = vunpack.c.l.b16 %v7396
        %v7413 = vunpack.c.l.b16 %v7397
        %v7414 = vunpack.c.l.b16 %v7398
        %v7415 = vunpack.c.l.b16 %v7399
        %v7416 = vunpack.c.l.b16 %v7400
        %v7417 = vpack.c.b16 %v7410, %v7409
        %v7418 = vpack.c.b16 %v7412, %v7411
        %v7419 = vpack.c.b16 %v7414, %v7413
        %v7420 = vpack.c.b16 %v7416, %v7415
        %v7426 = vsel %vm4702, %v6528, 0
        %v7429 = vsel %vm4702, %v6529, 0
        %v7432 = vsel %vm4702, %v6530, 0
        %v7435 = vsel %vm4702, %v6531, 0
        %v7438 = vsel %vm4702, %v6532, 0
        %v7441 = vsel %vm4702, %v6533, 0
        %v7444 = vsel %vm4702, %v6534, 0
        %v7447 = vsel %vm4702, %v6535, 0
        %v7450 = vsel %vm4702, %v6536, 0
        %v7453 = vsel %vm4702, %v6537, 0
        %v7456 = vsel %vm4702, %v6538, 0
        %v7459 = vsel %vm4702, %v6539, 0
        %v7462 = vsel %vm4702, %v6540, 0
        %v7465 = vsel %vm4702, %v6541, 0
        %v7468 = vsel %vm4702, %v6542, 0
        %v7471 = vsel %vm4702, %v6968, 0
        %7473 = vmatprep.subr.bf16.mxu0 0
        %7474 = vmatpush1.bf16.msra.mxu0 %v7417
        %7475 = vmatprep.subr.bf16.mxu0 0
        %7476 = vmatpush1.bf16.msra.mxu0 %v7418
        %7477 = vmatprep.subr.bf16.mxu0 0
        %7478 = vmatpush1.bf16.msra.mxu0 %v7419
        %7479 = vmatprep.subr.bf16.mxu0 0
        %7480 = vmatpush1.bf16.msra.mxu0 %v7420
        %7481 = vmatprep.subr.bf16.mxu0 0
        %7482 = vmatpush1.bf16.msra.mxu0 0
        %7483 = vmatprep.subr.bf16.mxu0 0
        %7484 = vmatpush1.bf16.msra.mxu0 0
        %7485 = vmatprep.subr.bf16.mxu0 0
        %7486 = vmatpush1.bf16.msra.mxu0 0
        %7487 = vmatprep.subr.bf16.mxu0 0
        %7488 = vmatpush1.bf16.msra.mxu0 0
        %7489 = vmatprep.subr.bf16.mxu0 0
        %7490 = vmatpush1.bf16.msra.mxu0 0
        %7491 = vmatprep.subr.bf16.mxu0 0
        %7492 = vmatpush1.bf16.msra.mxu0 0
        %7493 = vmatprep.subr.bf16.mxu0 0
        %7494 = vmatpush1.bf16.msra.mxu0 0
        %7495 = vmatprep.subr.bf16.mxu0 0
        %7496 = vmatpush1.bf16.msra.mxu0 0
        %7497 = vmatprep.subr.bf16.mxu0 0
        %7498 = vmatpush1.bf16.msra.mxu0 0
        %7499 = vmatprep.subr.bf16.mxu0 0
        %7500 = vmatpush1.bf16.msra.mxu0 0
        %7501 = vmatprep.subr.bf16.mxu0 0
        %7502 = vmatpush1.bf16.msra.mxu0 0
        %7503 = vmatprep.subr.bf16.mxu0 0
        %7504 = vmatpush1.bf16.msra.mxu0 0
        %7505 = vmatprep.mubr.bf16.mxu0 0
        %7506 = vmatmul.mubr.bf16.gmra.mrb[0].mxu0 %v7426
        %v7507 = vpop.f32.mrb[0].mxu0
        %v7508 = vadd.f32 0.0, %v7507
        %v7509 = vpop.f32.mrb[0].mxu0
        %v7510 = vpop.f32.mrb[0].mxu0
        %v7511 = vadd.f32 0.0, %v7510
        %v7512 = vpop.f32.mrb[0].mxu0
        %7513 = vmatprep.mubr.bf16.mxu0 0
        %7514 = vmatmul.mubr.bf16.gmra.mrb[0].mxu0 %v7429
        %v7515 = vpop.f32.mrb[0].mxu0
        %v7516 = vadd.f32 0.0, %v7515
        %v7517 = vpop.f32.mrb[0].mxu0
        %v7518 = vpop.f32.mrb[0].mxu0
        %v7519 = vadd.f32 0.0, %v7518
        %v7520 = vpop.f32.mrb[0].mxu0
        %7521 = vmatprep.mubr.bf16.mxu0 0
        %7522 = vmatmul.mubr.bf16.gmra.mrb[0].mxu0 %v7432
        %v7523 = vpop.f32.mrb[0].mxu0
        %v7524 = vadd.f32 0.0, %v7523
        %v7525 = vpop.f32.mrb[0].mxu0
        %v7526 = vpop.f32.mrb[0].mxu0
        %v7527 = vadd.f32 0.0, %v7526
        %v7528 = vpop.f32.mrb[0].mxu0
        %7529 = vmatprep.mubr.bf16.mxu0 0
        %7530 = vmatmul.mubr.bf16.gmra.mrb[0].mxu0 %v7435
        %v7531 = vpop.f32.mrb[0].mxu0
        %v7532 = vadd.f32 0.0, %v7531
        %v7533 = vpop.f32.mrb[0].mxu0
        %v7534 = vpop.f32.mrb[0].mxu0
        %v7535 = vadd.f32 0.0, %v7534
        %v7536 = vpop.f32.mrb[0].mxu0
        %7537 = vmatprep.mubr.bf16.mxu0 0
        %7538 = vmatmul.mubr.bf16.gmra.mrb[0].mxu0 %v7438
        %v7539 = vpop.f32.mrb[0].mxu0
        %v7540 = vadd.f32 0.0, %v7539
        %v7541 = vpop.f32.mrb[0].mxu0
        %v7542 = vpop.f32.mrb[0].mxu0
        %v7543 = vadd.f32 0.0, %v7542
        %v7544 = vpop.f32.mrb[0].mxu0
        %7545 = vmatprep.mubr.bf16.mxu0 0
        %7546 = vmatmul.mubr.bf16.gmra.mrb[0].mxu0 %v7441
        %v7547 = vpop.f32.mrb[0].mxu0
        %v7548 = vadd.f32 0.0, %v7547
        %v7549 = vpop.f32.mrb[0].mxu0
        %v7550 = vpop.f32.mrb[0].mxu0
        %v7551 = vadd.f32 0.0, %v7550
        %v7552 = vpop.f32.mrb[0].mxu0
        %7553 = vmatprep.mubr.bf16.mxu0 0
        %7554 = vmatmul.mubr.bf16.gmra.mrb[0].mxu0 %v7444
        %v7555 = vpop.f32.mrb[0].mxu0
        %v7556 = vadd.f32 0.0, %v7555
        %v7557 = vpop.f32.mrb[0].mxu0
        %v7558 = vpop.f32.mrb[0].mxu0
        %v7559 = vadd.f32 0.0, %v7558
        %v7560 = vpop.f32.mrb[0].mxu0
        %7561 = vmatprep.mubr.bf16.mxu0 0
        %7562 = vmatmul.mubr.bf16.gmra.mrb[0].mxu0 %v7447
        %v7563 = vpop.f32.mrb[0].mxu0
        %v7564 = vadd.f32 0.0, %v7563
        %v7565 = vpop.f32.mrb[0].mxu0
        %v7566 = vpop.f32.mrb[0].mxu0
        %v7567 = vadd.f32 0.0, %v7566
        %v7568 = vpop.f32.mrb[0].mxu0
        %7569 = vmatprep.mubr.bf16.mxu0 0
        %7570 = vmatmul.mubr.bf16.gmra.mrb[0].mxu0 %v7450
        %v7571 = vpop.f32.mrb[0].mxu0
        %v7572 = vadd.f32 0.0, %v7571
        %v7573 = vpop.f32.mrb[0].mxu0
        %v7574 = vpop.f32.mrb[0].mxu0
        %v7575 = vadd.f32 0.0, %v7574
        %v7576 = vpop.f32.mrb[0].mxu0
        %7577 = vmatprep.mubr.bf16.mxu0 0
        %7578 = vmatmul.mubr.bf16.gmra.mrb[0].mxu0 %v7453
        %v7579 = vpop.f32.mrb[0].mxu0
        %v7580 = vadd.f32 0.0, %v7579
        %v7581 = vpop.f32.mrb[0].mxu0
        %v7582 = vpop.f32.mrb[0].mxu0
        %v7583 = vadd.f32 0.0, %v7582
        %v7584 = vpop.f32.mrb[0].mxu0
        %7585 = vmatprep.mubr.bf16.mxu0 0
        %7586 = vmatmul.mubr.bf16.gmra.mrb[0].mxu0 %v7456
        %v7587 = vpop.f32.mrb[0].mxu0
        %v7588 = vadd.f32 0.0, %v7587
        %v7589 = vpop.f32.mrb[0].mxu0
        %v7590 = vpop.f32.mrb[0].mxu0
        %v7591 = vadd.f32 0.0, %v7590
        %v7592 = vpop.f32.mrb[0].mxu0
        %7593 = vmatprep.mubr.bf16.mxu0 0
        %7594 = vmatmul.mubr.bf16.gmra.mrb[0].mxu0 %v7459
        %v7595 = vpop.f32.mrb[0].mxu0
        %v7596 = vadd.f32 0.0, %v7595
        %v7597 = vpop.f32.mrb[0].mxu0
        %v7598 = vpop.f32.mrb[0].mxu0
        %v7599 = vadd.f32 0.0, %v7598
        %v7600 = vpop.f32.mrb[0].mxu0
        %7601 = vmatprep.mubr.bf16.mxu0 0
        %7602 = vmatmul.mubr.bf16.gmra.mrb[0].mxu0 %v7462
        %v7603 = vpop.f32.mrb[0].mxu0
        %v7604 = vadd.f32 0.0, %v7603
        %v7605 = vpop.f32.mrb[0].mxu0
        %v7606 = vpop.f32.mrb[0].mxu0
        %v7607 = vadd.f32 0.0, %v7606
        %v7608 = vpop.f32.mrb[0].mxu0
        %7609 = vmatprep.mubr.bf16.mxu0 0
        %7610 = vmatmul.mubr.bf16.gmra.mrb[0].mxu0 %v7465
        %v7611 = vpop.f32.mrb[0].mxu0
        %v7612 = vadd.f32 0.0, %v7611
        %v7613 = vpop.f32.mrb[0].mxu0
        %v7614 = vpop.f32.mrb[0].mxu0
        %v7615 = vadd.f32 0.0, %v7614
        %v7616 = vpop.f32.mrb[0].mxu0
        %7617 = vmatprep.mubr.bf16.mxu0 0
        %7618 = vmatmul.mubr.bf16.gmra.mrb[0].mxu0 %v7468
        %v7619 = vpop.f32.mrb[0].mxu0
        %v7620 = vadd.f32 0.0, %v7619
        %v7621 = vpop.f32.mrb[0].mxu0
        %v7622 = vpop.f32.mrb[0].mxu0
        %v7623 = vadd.f32 0.0, %v7622
        %v7624 = vpop.f32.mrb[0].mxu0
        %7625 = vmatprep.mubr.bf16.mxu0 0
        %7626 = vmatmul.mubr.bf16.gmra.mrb[0].mxu0 %v7471
        %v7627 = vpop.f32.mrb[0].mxu0
        %v7628 = vadd.f32 0.0, %v7627
        %v7629 = vpop.f32.mrb[0].mxu0
        %v7630 = vpop.f32.mrb[0].mxu0
        %v7631 = vadd.f32 0.0, %v7630
        %v7632 = vpop.f32.mrb[0].mxu0
        %7633 = vdwg.mxu0
        %v7634 = vadd.f32 %v7360, %v7508
        %v7635 = vadd.f32 %v7361, %v7511
        %v7636 = vadd.f32 %v7362, %v7516
        %v7637 = vadd.f32 %v7363, %v7519
        %v7638 = vadd.f32 %v7364, %v7524
        %v7639 = vadd.f32 %v7365, %v7527
        %v7640 = vadd.f32 %v7366, %v7532
        %v7641 = vadd.f32 %v7367, %v7535
        %v7642 = vadd.f32 %v7368, %v7540
        %v7643 = vadd.f32 %v7369, %v7543
        %v7644 = vadd.f32 %v7370, %v7548
        %v7645 = vadd.f32 %v7371, %v7551
        %v7646 = vadd.f32 %v7372, %v7556
        %v7647 = vadd.f32 %v7373, %v7559
        %v7648 = vadd.f32 %v7374, %v7564
        %v7649 = vadd.f32 %v7375, %v7567
        %v7650 = vadd.f32 %v7376, %v7572
        %v7651 = vadd.f32 %v7377, %v7575
        %v7652 = vadd.f32 %v7378, %v7580
        %v7653 = vadd.f32 %v7379, %v7583
        %v7654 = vadd.f32 %v7380, %v7588
        %v7655 = vadd.f32 %v7381, %v7591
        %v7656 = vadd.f32 %v7382, %v7596
        %v7657 = vadd.f32 %v7383, %v7599
        %v7658 = vadd.f32 %v7384, %v7604
        %v7659 = vadd.f32 %v7385, %v7607
        %v7660 = vadd.f32 %v7386, %v7612
        %v7661 = vadd.f32 %v7387, %v7615
        %v7662 = vadd.f32 %v7388, %v7620
        %v7663 = vadd.f32 %v7389, %v7623
        %v7664 = vadd.f32 %v7390, %v7628
        %v7665 = vadd.f32 %v7391, %v7631
        %v7666 = vld [vmem:[#allocation3 + $0x18] sm:$0xff]
        %v7667 = vld [vmem:[#allocation3 + $0x20] sm:$0xff]
        %v7668 = vld [vmem:[#allocation3 + $0x28] sm:$0xff]
        %v7669 = vld [vmem:[#allocation3 + $0x30] sm:$0xff]
        %v7670 = vld [vmem:[#allocation3 + $0x38] sm:$0xff]
        %v7671 = vld [vmem:[#allocation3 + $0x40] sm:$0xff]
        %v7672 = vld [vmem:[#allocation3 + $0x48] sm:$0xff]
        %v7673 = vld [vmem:[#allocation3 + $0x50] sm:$0xff]
        %v7674 = vld [vmem:[#allocation3 + $0x58] sm:$0xff]
        %v7675 = vld [vmem:[#allocation3 + $0x60] sm:$0xff]
        %v7676 = vld [vmem:[#allocation3 + $0x68] sm:$0xff]
        %v7677 = vld [vmem:[#allocation3 + $0x70] sm:$0xff]
        %v7678 = vld [vmem:[#allocation3 + $0x78] sm:$0xff]
        %v7679 = vld [vmem:[#allocation3 + $0x80] sm:$0xff]
        %v7680 = vld [vmem:[#allocation3 + $0x88] sm:$0xff]
        %v7681 = vld [vmem:[#allocation3 + $0x90] sm:$0xff]
        %v7682 = vld [vmem:[#allocation3 + $0x98] sm:$0x1]
        %v7683 = vsel %vm2109, %v7666, 0
        %v7684 = vsel %vm2110, %v7667, 0
        %v7685 = vsel %vm2111, %v7668, 0
        %v7686 = vsel %vm2112, %v7669, 0
        %v7687 = vsel %vm2113, %v7670, 0
        %v7688 = vsel %vm2114, %v7671, 0
        %v7689 = vsel %vm2115, %v7672, 0
        %v7690 = vsel %vm2116, %v7673, 0
        %v7691 = vsel %vm2117, %v7674, 0
        %v7692 = vsel %vm2118, %v7675, 0
        %v7693 = vsel %vm2119, %v7676, 0
        %v7694 = vsel %vm2120, %v7677, 0
        %v7695 = vsel %vm2121, %v7678, 0
        %v7696 = vsel %vm2122, %v7679, 0
        %v7697 = vsel %vm2123, %v7680, 0
        %v7698 = vsel %vm2124, %v7681, 0
        %v7699 = vsel %vm2125, %v7682, 0
        %s7700 = scalar_lea.vmem [#allocation4], 256
        %v7701 = vld [vmem:[%s7700] sm:$0xf]
        %v7702 = vld [vmem:[%s7700 + $0x4] sm:$0xf]
        %v7703 = vld [vmem:[%s7700 + $0x8] sm:$0xf]
        %v7704 = vld [vmem:[%s7700 + $0xc] sm:$0xf]
        %v7705 = vld [vmem:[%s7700 + $0x10] sm:$0xf]
        %v7706 = vld [vmem:[%s7700 + $0x14] sm:$0xf]
        %v7707 = vld [vmem:[%s7700 + $0x18] sm:$0xf]
        %v7708 = vld [vmem:[%s7700 + $0x1c] sm:$0xf]
        %v7710 = vshrl.u32 %v7683, 16
        %v7712 = vshll.u32 %v7683, 16
        %v7714 = vrot.slane %v7712, 1
        %v7715 = vor.u32 %v7710, %v7714
        %v7717 = vshll.u32 %v7684, 16
        %v7719 = vrot.slane %v7717, 1
        %v7720 = vsel %vm1066, %v7715, %v7719
        %v7721 = vshrl.u32 %v7684, 16
        %v7723 = vor.u32 %v7721, %v7719
        %v7725 = vshll.u32 %v7685, 16
        %v7727 = vrot.slane %v7725, 1
        %v7728 = vsel %vm1066, %v7723, %v7727
        %v7729 = vshrl.u32 %v7685, 16
        %v7731 = vor.u32 %v7729, %v7727
        %v7733 = vshll.u32 %v7686, 16
        %v7735 = vrot.slane %v7733, 1
        %v7736 = vsel %vm1066, %v7731, %v7735
        %v7737 = vshrl.u32 %v7686, 16
        %v7739 = vor.u32 %v7737, %v7735
        %v7741 = vshll.u32 %v7687, 16
        %v7743 = vrot.slane %v7741, 1
        %v7744 = vsel %vm1066, %v7739, %v7743
        %v7745 = vshrl.u32 %v7687, 16
        %v7747 = vor.u32 %v7745, %v7743
        %v7749 = vshll.u32 %v7688, 16
        %v7751 = vrot.slane %v7749, 1
        %v7752 = vsel %vm1066, %v7747, %v7751
        %v7753 = vshrl.u32 %v7688, 16
        %v7755 = vor.u32 %v7753, %v7751
        %v7757 = vshll.u32 %v7689, 16
        %v7759 = vrot.slane %v7757, 1
        %v7760 = vsel %vm1066, %v7755, %v7759
        %v7761 = vshrl.u32 %v7689, 16
        %v7763 = vor.u32 %v7761, %v7759
        %v7765 = vshll.u32 %v7690, 16
        %v7767 = vrot.slane %v7765, 1
        %v7768 = vsel %vm1066, %v7763, %v7767
        %v7769 = vshrl.u32 %v7690, 16
        %v7771 = vor.u32 %v7769, %v7767
        %v7773 = vshll.u32 %v7691, 16
        %v7775 = vrot.slane %v7773, 1
        %v7776 = vsel %vm1066, %v7771, %v7775
        %v7777 = vshrl.u32 %v7691, 16
        %v7779 = vor.u32 %v7777, %v7775
        %v7781 = vshll.u32 %v7692, 16
        %v7783 = vrot.slane %v7781, 1
        %v7784 = vsel %vm1066, %v7779, %v7783
        %v7785 = vshrl.u32 %v7692, 16
        %v7787 = vor.u32 %v7785, %v7783
        %v7789 = vshll.u32 %v7693, 16
        %v7791 = vrot.slane %v7789, 1
        %v7792 = vsel %vm1066, %v7787, %v7791
        %v7793 = vshrl.u32 %v7693, 16
        %v7795 = vor.u32 %v7793, %v7791
        %v7797 = vshll.u32 %v7694, 16
        %v7799 = vrot.slane %v7797, 1
        %v7800 = vsel %vm1066, %v7795, %v7799
        %v7801 = vshrl.u32 %v7694, 16
        %v7803 = vor.u32 %v7801, %v7799
        %v7805 = vshll.u32 %v7695, 16
        %v7807 = vrot.slane %v7805, 1
        %v7808 = vsel %vm1066, %v7803, %v7807
        %v7809 = vshrl.u32 %v7695, 16
        %v7811 = vor.u32 %v7809, %v7807
        %v7813 = vshll.u32 %v7696, 16
        %v7815 = vrot.slane %v7813, 1
        %v7816 = vsel %vm1066, %v7811, %v7815
        %v7817 = vshrl.u32 %v7696, 16
        %v7819 = vor.u32 %v7817, %v7815
        %v7821 = vshll.u32 %v7697, 16
        %v7823 = vrot.slane %v7821, 1
        %v7824 = vsel %vm1066, %v7819, %v7823
        %v7825 = vshrl.u32 %v7697, 16
        %v7827 = vor.u32 %v7825, %v7823
        %v7829 = vshll.u32 %v7698, 16
        %v7831 = vrot.slane %v7829, 1
        %v7832 = vsel %vm1066, %v7827, %v7831
        %v7833 = vshrl.u32 %v7698, 16
        %v7835 = vor.u32 %v7833, %v7831
        %v7837 = vshll.u32 %v7699, 16
        %v7839 = vrot.slane %v7837, 1
        %v7840 = vsel %vm1066, %v7835, %v7839
        %v7849 = vunpack.c.l.b16 %v7701
        %v7850 = vunpack.c.l.b16 %v7702
        %v7851 = vunpack.c.l.b16 %v7703
        %v7852 = vunpack.c.l.b16 %v7704
        %v7853 = vunpack.c.l.b16 %v7705
        %v7854 = vunpack.c.l.b16 %v7706
        %v7855 = vunpack.c.l.b16 %v7707
        %v7856 = vunpack.c.l.b16 %v7708
        %v7857 = vpack.c.b16 %v7850, %v7849
        %v7858 = vpack.c.b16 %v7852, %v7851
        %v7859 = vpack.c.b16 %v7854, %v7853
        %v7860 = vpack.c.b16 %v7856, %v7855
        %v7866 = vsel %vm4702, %v7720, 0
        %v7869 = vsel %vm4702, %v7728, 0
        %v7872 = vsel %vm4702, %v7736, 0
        %v7875 = vsel %vm4702, %v7744, 0
        %v7878 = vsel %vm4702, %v7752, 0
        %v7881 = vsel %vm4702, %v7760, 0
        %v7884 = vsel %vm4702, %v7768, 0
        %v7887 = vsel %vm4702, %v7776, 0
        %v7890 = vsel %vm4702, %v7784, 0
        %v7893 = vsel %vm4702, %v7792, 0
        %v7896 = vsel %vm4702, %v7800, 0
        %v7899 = vsel %vm4702, %v7808, 0
        %v7902 = vsel %vm4702, %v7816, 0
        %v7905 = vsel %vm4702, %v7824, 0
        %v7908 = vsel %vm4702, %v7832, 0
        %v7911 = vsel %vm4702, %v7840, 0
        %7913 = vmatprep.subr.bf16.mxu0 0
        %7914 = vmatpush1.bf16.msra.mxu0 %v7857
        %7915 = vmatprep.subr.bf16.mxu0 0
        %7916 = vmatpush1.bf16.msra.mxu0 %v7858
        %7917 = vmatprep.subr.bf16.mxu0 0
        %7918 = vmatpush1.bf16.msra.mxu0 %v7859
        %7919 = vmatprep.subr.bf16.mxu0 0
        %7920 = vmatpush1.bf16.msra.mxu0 %v7860
        %7921 = vmatprep.subr.bf16.mxu0 0
        %7922 = vmatpush1.bf16.msra.mxu0 0
        %7923 = vmatprep.subr.bf16.mxu0 0
        %7924 = vmatpush1.bf16.msra.mxu0 0
        %7925 = vmatprep.subr.bf16.mxu0 0
        %7926 = vmatpush1.bf16.msra.mxu0 0
        %7927 = vmatprep.subr.bf16.mxu0 0
        %7928 = vmatpush1.bf16.msra.mxu0 0
        %7929 = vmatprep.subr.bf16.mxu0 0
        %7930 = vmatpush1.bf16.msra.mxu0 0
        %7931 = vmatprep.subr.bf16.mxu0 0
        %7932 = vmatpush1.bf16.msra.mxu0 0
        %7933 = vmatprep.subr.bf16.mxu0 0
        %7934 = vmatpush1.bf16.msra.mxu0 0
        %7935 = vmatprep.subr.bf16.mxu0 0
        %7936 = vmatpush1.bf16.msra.mxu0 0
        %7937 = vmatprep.subr.bf16.mxu0 0
        %7938 = vmatpush1.bf16.msra.mxu0 0
        %7939 = vmatprep.subr.bf16.mxu0 0
        %7940 = vmatpush1.bf16.msra.mxu0 0
        %7941 = vmatprep.subr.bf16.mxu0 0
        %7942 = vmatpush1.bf16.msra.mxu0 0
        %7943 = vmatprep.subr.bf16.mxu0 0
        %7944 = vmatpush1.bf16.msra.mxu0 0
        %7945 = vmatprep.mubr.bf16.mxu0 0
        %7946 = vmatmul.mubr.bf16.gmra.mrb[0].mxu0 %v7866
        %v7947 = vpop.f32.mrb[0].mxu0
        %v7948 = vadd.f32 0.0, %v7947
        %v7949 = vpop.f32.mrb[0].mxu0
        %v7950 = vpop.f32.mrb[0].mxu0
        %v7951 = vadd.f32 0.0, %v7950
        %v7952 = vpop.f32.mrb[0].mxu0
        %7953 = vmatprep.mubr.bf16.mxu0 0
        %7954 = vmatmul.mubr.bf16.gmra.mrb[0].mxu0 %v7869
        %v7955 = vpop.f32.mrb[0].mxu0
        %v7956 = vadd.f32 0.0, %v7955
        %v7957 = vpop.f32.mrb[0].mxu0
        %v7958 = vpop.f32.mrb[0].mxu0
        %v7959 = vadd.f32 0.0, %v7958
        %v7960 = vpop.f32.mrb[0].mxu0
        %7961 = vmatprep.mubr.bf16.mxu0 0
        %7962 = vmatmul.mubr.bf16.gmra.mrb[0].mxu0 %v7872
        %v7963 = vpop.f32.mrb[0].mxu0
        %v7964 = vadd.f32 0.0, %v7963
        %v7965 = vpop.f32.mrb[0].mxu0
        %v7966 = vpop.f32.mrb[0].mxu0
        %v7967 = vadd.f32 0.0, %v7966
        %v7968 = vpop.f32.mrb[0].mxu0
        %7969 = vmatprep.mubr.bf16.mxu0 0
        %7970 = vmatmul.mubr.bf16.gmra.mrb[0].mxu0 %v7875
        %v7971 = vpop.f32.mrb[0].mxu0
        %v7972 = vadd.f32 0.0, %v7971
        %v7973 = vpop.f32.mrb[0].mxu0
        %v7974 = vpop.f32.mrb[0].mxu0
        %v7975 = vadd.f32 0.0, %v7974
        %v7976 = vpop.f32.mrb[0].mxu0
        %7977 = vmatprep.mubr.bf16.mxu0 0
        %7978 = vmatmul.mubr.bf16.gmra.mrb[0].mxu0 %v7878
        %v7979 = vpop.f32.mrb[0].mxu0
        %v7980 = vadd.f32 0.0, %v7979
        %v7981 = vpop.f32.mrb[0].mxu0
        %v7982 = vpop.f32.mrb[0].mxu0
        %v7983 = vadd.f32 0.0, %v7982
        %v7984 = vpop.f32.mrb[0].mxu0
        %7985 = vmatprep.mubr.bf16.mxu0 0
        %7986 = vmatmul.mubr.bf16.gmra.mrb[0].mxu0 %v7881
        %v7987 = vpop.f32.mrb[0].mxu0
        %v7988 = vadd.f32 0.0, %v7987
        %v7989 = vpop.f32.mrb[0].mxu0
        %v7990 = vpop.f32.mrb[0].mxu0
        %v7991 = vadd.f32 0.0, %v7990
        %v7992 = vpop.f32.mrb[0].mxu0
        %7993 = vmatprep.mubr.bf16.mxu0 0
        %7994 = vmatmul.mubr.bf16.gmra.mrb[0].mxu0 %v7884
        %v7995 = vpop.f32.mrb[0].mxu0
        %v7996 = vadd.f32 0.0, %v7995
        %v7997 = vpop.f32.mrb[0].mxu0
        %v7998 = vpop.f32.mrb[0].mxu0
        %v7999 = vadd.f32 0.0, %v7998
        %v8000 = vpop.f32.mrb[0].mxu0
        %8001 = vmatprep.mubr.bf16.mxu0 0
        %8002 = vmatmul.mubr.bf16.gmra.mrb[0].mxu0 %v7887
        %v8003 = vpop.f32.mrb[0].mxu0
        %v8004 = vadd.f32 0.0, %v8003
        %v8005 = vpop.f32.mrb[0].mxu0
        %v8006 = vpop.f32.mrb[0].mxu0
        %v8007 = vadd.f32 0.0, %v8006
        %v8008 = vpop.f32.mrb[0].mxu0
        %8009 = vmatprep.mubr.bf16.mxu0 0
        %8010 = vmatmul.mubr.bf16.gmra.mrb[0].mxu0 %v7890
        %v8011 = vpop.f32.mrb[0].mxu0
        %v8012 = vadd.f32 0.0, %v8011
        %v8013 = vpop.f32.mrb[0].mxu0
        %v8014 = vpop.f32.mrb[0].mxu0
        %v8015 = vadd.f32 0.0, %v8014
        %v8016 = vpop.f32.mrb[0].mxu0
        %8017 = vmatprep.mubr.bf16.mxu0 0
        %8018 = vmatmul.mubr.bf16.gmra.mrb[0].mxu0 %v7893
        %v8019 = vpop.f32.mrb[0].mxu0
        %v8020 = vadd.f32 0.0, %v8019
        %v8021 = vpop.f32.mrb[0].mxu0
        %v8022 = vpop.f32.mrb[0].mxu0
        %v8023 = vadd.f32 0.0, %v8022
        %v8024 = vpop.f32.mrb[0].mxu0
        %8025 = vmatprep.mubr.bf16.mxu0 0
        %8026 = vmatmul.mubr.bf16.gmra.mrb[0].mxu0 %v7896
        %v8027 = vpop.f32.mrb[0].mxu0
        %v8028 = vadd.f32 0.0, %v8027
        %v8029 = vpop.f32.mrb[0].mxu0
        %v8030 = vpop.f32.mrb[0].mxu0
        %v8031 = vadd.f32 0.0, %v8030
        %v8032 = vpop.f32.mrb[0].mxu0
        %8033 = vmatprep.mubr.bf16.mxu0 0
        %8034 = vmatmul.mubr.bf16.gmra.mrb[0].mxu0 %v7899
        %v8035 = vpop.f32.mrb[0].mxu0
        %v8036 = vadd.f32 0.0, %v8035
        %v8037 = vpop.f32.mrb[0].mxu0
        %v8038 = vpop.f32.mrb[0].mxu0
        %v8039 = vadd.f32 0.0, %v8038
        %v8040 = vpop.f32.mrb[0].mxu0
        %8041 = vmatprep.mubr.bf16.mxu0 0
        %8042 = vmatmul.mubr.bf16.gmra.mrb[0].mxu0 %v7902
        %v8043 = vpop.f32.mrb[0].mxu0
        %v8044 = vadd.f32 0.0, %v8043
        %v8045 = vpop.f32.mrb[0].mxu0
        %v8046 = vpop.f32.mrb[0].mxu0
        %v8047 = vadd.f32 0.0, %v8046
        %v8048 = vpop.f32.mrb[0].mxu0
        %8049 = vmatprep.mubr.bf16.mxu0 0
        %8050 = vmatmul.mubr.bf16.gmra.mrb[0].mxu0 %v7905
        %v8051 = vpop.f32.mrb[0].mxu0
        %v8052 = vadd.f32 0.0, %v8051
        %v8053 = vpop.f32.mrb[0].mxu0
        %v8054 = vpop.f32.mrb[0].mxu0
        %v8055 = vadd.f32 0.0, %v8054
        %v8056 = vpop.f32.mrb[0].mxu0
        %8057 = vmatprep.mubr.bf16.mxu0 0
        %8058 = vmatmul.mubr.bf16.gmra.mrb[0].mxu0 %v7908
        %v8059 = vpop.f32.mrb[0].mxu0
        %v8060 = vadd.f32 0.0, %v8059
        %v8061 = vpop.f32.mrb[0].mxu0
        %v8062 = vpop.f32.mrb[0].mxu0
        %v8063 = vadd.f32 0.0, %v8062
        %v8064 = vpop.f32.mrb[0].mxu0
        %8065 = vmatprep.mubr.bf16.mxu0 0
        %8066 = vmatmul.mubr.bf16.gmra.mrb[0].mxu0 %v7911
        %v8067 = vpop.f32.mrb[0].mxu0
        %v8068 = vadd.f32 0.0, %v8067
        %v8069 = vpop.f32.mrb[0].mxu0
        %v8070 = vpop.f32.mrb[0].mxu0
        %v8071 = vadd.f32 0.0, %v8070
        %v8072 = vpop.f32.mrb[0].mxu0
        %8073 = vdwg.mxu0
        %v8074 = vadd.f32 %v7634, %v7948
        %v8075 = vadd.f32 %v7635, %v7951
        %v8076 = vadd.f32 %v7636, %v7956
        %v8077 = vadd.f32 %v7637, %v7959
        %v8078 = vadd.f32 %v7638, %v7964
        %v8079 = vadd.f32 %v7639, %v7967
        %v8080 = vadd.f32 %v7640, %v7972
        %v8081 = vadd.f32 %v7641, %v7975
        %v8082 = vadd.f32 %v7642, %v7980
        %v8083 = vadd.f32 %v7643, %v7983
        %v8084 = vadd.f32 %v7644, %v7988
        %v8085 = vadd.f32 %v7645, %v7991
        %v8086 = vadd.f32 %v7646, %v7996
        %v8087 = vadd.f32 %v7647, %v7999
        %v8088 = vadd.f32 %v7648, %v8004
        %v8089 = vadd.f32 %v7649, %v8007
        %v8090 = vadd.f32 %v7650, %v8012
        %v8091 = vadd.f32 %v7651, %v8015
        %v8092 = vadd.f32 %v7652, %v8020
        %v8093 = vadd.f32 %v7653, %v8023
        %v8094 = vadd.f32 %v7654, %v8028
        %v8095 = vadd.f32 %v7655, %v8031
        %v8096 = vadd.f32 %v7656, %v8036
        %v8097 = vadd.f32 %v7657, %v8039
        %v8098 = vadd.f32 %v7658, %v8044
        %v8099 = vadd.f32 %v7659, %v8047
        %v8100 = vadd.f32 %v7660, %v8052
        %v8101 = vadd.f32 %v7661, %v8055
        %v8102 = vadd.f32 %v7662, %v8060
        %v8103 = vadd.f32 %v7663, %v8063
        %v8104 = vadd.f32 %v7664, %v8068
        %v8105 = vadd.f32 %v7665, %v8071
        %v8106 = vld [vmem:[%s4] sm:$0x1]
        %v8108 = vlaneseq
        %v8109 = vshrl.u32 %v8108, 7
        %v8110 = vsub.s32 0, %v8109
        %v8111 = vrot.slane %v8106, %v8110
        %v8113 = vadd.f32 %v8074, %v8111
        %v8114 = vadd.f32 %v8075, %v8111
        %v8115 = vadd.f32 %v8076, %v8111
        %v8116 = vadd.f32 %v8077, %v8111
        %v8117 = vadd.f32 %v8078, %v8111
        %v8118 = vadd.f32 %v8079, %v8111
        %v8119 = vadd.f32 %v8080, %v8111
        %v8120 = vadd.f32 %v8081, %v8111
        %v8121 = vadd.f32 %v8082, %v8111
        %v8122 = vadd.f32 %v8083, %v8111
        %v8123 = vadd.f32 %v8084, %v8111
        %v8124 = vadd.f32 %v8085, %v8111
        %v8125 = vadd.f32 %v8086, %v8111
        %v8126 = vadd.f32 %v8087, %v8111
        %v8127 = vadd.f32 %v8088, %v8111
        %v8128 = vadd.f32 %v8089, %v8111
        %v8129 = vadd.f32 %v8090, %v8111
        %v8130 = vadd.f32 %v8091, %v8111
        %v8131 = vadd.f32 %v8092, %v8111
        %v8132 = vadd.f32 %v8093, %v8111
        %v8133 = vadd.f32 %v8094, %v8111
        %v8134 = vadd.f32 %v8095, %v8111
        %v8135 = vadd.f32 %v8096, %v8111
        %v8136 = vadd.f32 %v8097, %v8111
        %v8137 = vadd.f32 %v8098, %v8111
        %v8138 = vadd.f32 %v8099, %v8111
        %v8139 = vadd.f32 %v8100, %v8111
        %v8140 = vadd.f32 %v8101, %v8111
        %v8141 = vadd.f32 %v8102, %v8111
        %v8142 = vadd.f32 %v8103, %v8111
        %v8143 = vadd.f32 %v8104, %v8111
        %v8144 = vadd.f32 %v8105, %v8111
        %v8145 = vmax.f32 %v8113, 0.0
        %v8146 = vmax.f32 %v8114, 0.0
        %v8147 = vmax.f32 %v8115, 0.0
        %v8148 = vmax.f32 %v8116, 0.0
        %v8149 = vmax.f32 %v8117, 0.0
        %v8150 = vmax.f32 %v8118, 0.0
        %v8151 = vmax.f32 %v8119, 0.0
        %v8152 = vmax.f32 %v8120, 0.0
        %v8153 = vmax.f32 %v8121, 0.0
        %v8154 = vmax.f32 %v8122, 0.0
        %v8155 = vmax.f32 %v8123, 0.0
        %v8156 = vmax.f32 %v8124, 0.0
        %v8157 = vmax.f32 %v8125, 0.0
        %v8158 = vmax.f32 %v8126, 0.0
        %v8159 = vmax.f32 %v8127, 0.0
        %v8160 = vmax.f32 %v8128, 0.0
        %v8161 = vmax.f32 %v8129, 0.0
        %v8162 = vmax.f32 %v8130, 0.0
        %v8163 = vmax.f32 %v8131, 0.0
        %v8164 = vmax.f32 %v8132, 0.0
        %v8165 = vmax.f32 %v8133, 0.0
        %v8166 = vmax.f32 %v8134, 0.0
        %v8167 = vmax.f32 %v8135, 0.0
        %v8168 = vmax.f32 %v8136, 0.0
        %v8169 = vmax.f32 %v8137, 0.0
        %v8170 = vmax.f32 %v8138, 0.0
        %v8171 = vmax.f32 %v8139, 0.0
        %v8172 = vmax.f32 %v8140, 0.0
        %v8173 = vmax.f32 %v8141, 0.0
        %v8174 = vmax.f32 %v8142, 0.0
        %v8175 = vmax.f32 %v8143, 0.0
        %v8176 = vmax.f32 %v8144, 0.0
        %v8177 = vpack.c.bf16 %v8146, %v8145
        %v8178 = vpack.c.bf16 %v8148, %v8147
        %v8179 = vpack.c.bf16 %v8150, %v8149
        %v8180 = vpack.c.bf16 %v8152, %v8151
        %v8181 = vpack.c.bf16 %v8154, %v8153
        %v8182 = vpack.c.bf16 %v8156, %v8155
        %v8183 = vpack.c.bf16 %v8158, %v8157
        %v8184 = vpack.c.bf16 %v8160, %v8159
        %v8185 = vpack.c.bf16 %v8162, %v8161
        %v8186 = vpack.c.bf16 %v8164, %v8163
        %v8187 = vpack.c.bf16 %v8166, %v8165
        %v8188 = vpack.c.bf16 %v8168, %v8167
        %v8189 = vpack.c.bf16 %v8170, %v8169
        %v8190 = vpack.c.bf16 %v8172, %v8171
        %v8191 = vpack.c.bf16 %v8174, %v8173
        %v8192 = vpack.c.bf16 %v8176, %v8175
        %v8209 = vunpack.c.l.b16 %v8177
        %v8210 = vunpack.c.h.b16 %v8177
        %v8211 = vunpack.c.l.b16 %v8178
        %v8212 = vunpack.c.h.b16 %v8178
        %v8213 = vunpack.c.l.b16 %v8179
        %v8214 = vunpack.c.h.b16 %v8179
        %v8215 = vunpack.c.l.b16 %v8180
        %v8216 = vunpack.c.h.b16 %v8180
        %v8217 = vunpack.c.l.b16 %v8181
        %v8218 = vunpack.c.h.b16 %v8181
        %v8219 = vunpack.c.l.b16 %v8182
        %v8220 = vunpack.c.h.b16 %v8182
        %v8221 = vunpack.c.l.b16 %v8183
        %v8222 = vunpack.c.h.b16 %v8183
        %v8223 = vunpack.c.l.b16 %v8184
        %v8224 = vunpack.c.h.b16 %v8184
        %v8225 = vunpack.c.l.b16 %v8185
        %v8226 = vunpack.c.h.b16 %v8185
        %v8227 = vunpack.c.l.b16 %v8186
        %v8228 = vunpack.c.h.b16 %v8186
        %v8229 = vunpack.c.l.b16 %v8187
        %v8230 = vunpack.c.h.b16 %v8187
        %v8231 = vunpack.c.l.b16 %v8188
        %v8232 = vunpack.c.h.b16 %v8188
        %v8233 = vunpack.c.l.b16 %v8189
        %v8234 = vunpack.c.h.b16 %v8189
        %v8235 = vunpack.c.l.b16 %v8190
        %v8236 = vunpack.c.h.b16 %v8190
        %v8237 = vunpack.c.l.b16 %v8191
        %v8238 = vunpack.c.h.b16 %v8191
        %v8239 = vunpack.c.l.b16 %v8192
        %v8240 = vunpack.c.h.b16 %v8192
        %v8241 = vpack.c.b16 %v8209, %v8209
        %v8242 = vpack.c.b16 %v8210, %v8210
        %v8243 = vpack.c.b16 %v8211, %v8211
        %v8244 = vpack.c.b16 %v8212, %v8212
        %v8245 = vpack.c.b16 %v8213, %v8213
        %v8246 = vpack.c.b16 %v8214, %v8214
        %v8247 = vpack.c.b16 %v8215, %v8215
        %v8248 = vpack.c.b16 %v8216, %v8216
        %v8249 = vpack.c.b16 %v8217, %v8217
        %v8250 = vpack.c.b16 %v8218, %v8218
        %v8251 = vpack.c.b16 %v8219, %v8219
        %v8252 = vpack.c.b16 %v8220, %v8220
        %v8253 = vpack.c.b16 %v8221, %v8221
        %v8254 = vpack.c.b16 %v8222, %v8222
        %v8255 = vpack.c.b16 %v8223, %v8223
        %v8256 = vpack.c.b16 %v8224, %v8224
        %v8257 = vpack.c.b16 %v8225, %v8225
        %v8258 = vpack.c.b16 %v8226, %v8226
        %v8259 = vpack.c.b16 %v8227, %v8227
        %v8260 = vpack.c.b16 %v8228, %v8228
        %v8261 = vpack.c.b16 %v8229, %v8229
        %v8262 = vpack.c.b16 %v8230, %v8230
        %v8263 = vpack.c.b16 %v8231, %v8231
        %v8264 = vpack.c.b16 %v8232, %v8232
        %v8265 = vpack.c.b16 %v8233, %v8233
        %v8266 = vpack.c.b16 %v8234, %v8234
        %v8267 = vpack.c.b16 %v8235, %v8235
        %v8268 = vpack.c.b16 %v8236, %v8236
        %v8269 = vpack.c.b16 %v8237, %v8237
        %v8270 = vpack.c.b16 %v8238, %v8238
        %v8271 = vpack.c.b16 %v8239, %v8239
        %v8272 = vpack.c.b16 %v8240, %v8240
        %vm8305 = vcmask 519168
        %8306 = vst.msk [vmem:[%s239] sm:$0xf] %vm8305, %v8241
        %8307 = vst.msk [vmem:[%s239 + $0x4] sm:$0xf] %vm8305, %v8242
        %8308 = vst.msk [vmem:[%s239 + $0x8] sm:$0xf] %vm8305, %v8243
        %8309 = vst.msk [vmem:[%s239 + $0xc] sm:$0xf] %vm8305, %v8244
        %8310 = vst.msk [vmem:[%s239 + $0x10] sm:$0xf] %vm8305, %v8245
        %8311 = vst.msk [vmem:[%s239 + $0x14] sm:$0xf] %vm8305, %v8246
        %8312 = vst.msk [vmem:[%s239 + $0x18] sm:$0xf] %vm8305, %v8247
        %8313 = vst.msk [vmem:[%s239 + $0x1c] sm:$0xf] %vm8305, %v8248
        %8314 = vst.msk [vmem:[%s239 + $0x20] sm:$0xf] %vm8305, %v8249
        %8315 = vst.msk [vmem:[%s239 + $0x24] sm:$0xf] %vm8305, %v8250
        %8316 = vst.msk [vmem:[%s239 + $0x28] sm:$0xf] %vm8305, %v8251
        %8317 = vst.msk [vmem:[%s239 + $0x2c] sm:$0xf] %vm8305, %v8252
        %8318 = vst.msk [vmem:[%s239 + $0x30] sm:$0xf] %vm8305, %v8253
        %8319 = vst.msk [vmem:[%s239 + $0x34] sm:$0xf] %vm8305, %v8254
        %8320 = vst.msk [vmem:[%s239 + $0x38] sm:$0xf] %vm8305, %v8255
        %8321 = vst.msk [vmem:[%s239 + $0x3c] sm:$0xf] %vm8305, %v8256
        %8322 = vst.msk [vmem:[%s239 + $0x40] sm:$0xf] %vm8305, %v8257
        %8323 = vst.msk [vmem:[%s239 + $0x44] sm:$0xf] %vm8305, %v8258
        %8324 = vst.msk [vmem:[%s239 + $0x48] sm:$0xf] %vm8305, %v8259
        %8325 = vst.msk [vmem:[%s239 + $0x4c] sm:$0xf] %vm8305, %v8260
        %8326 = vst.msk [vmem:[%s239 + $0x50] sm:$0xf] %vm8305, %v8261
        %8327 = vst.msk [vmem:[%s239 + $0x54] sm:$0xf] %vm8305, %v8262
        %8328 = vst.msk [vmem:[%s239 + $0x58] sm:$0xf] %vm8305, %v8263
        %8329 = vst.msk [vmem:[%s239 + $0x5c] sm:$0xf] %vm8305, %v8264
        %8330 = vst.msk [vmem:[%s239 + $0x60] sm:$0xf] %vm8305, %v8265
        %8331 = vst.msk [vmem:[%s239 + $0x64] sm:$0xf] %vm8305, %v8266
        %8332 = vst.msk [vmem:[%s239 + $0x68] sm:$0xf] %vm8305, %v8267
        %8333 = vst.msk [vmem:[%s239 + $0x6c] sm:$0xf] %vm8305, %v8268
        %8334 = vst.msk [vmem:[%s239 + $0x70] sm:$0xf] %vm8305, %v8269
        %8335 = vst.msk [vmem:[%s239 + $0x74] sm:$0xf] %vm8305, %v8270
        %8336 = vst.msk [vmem:[%s239 + $0x78] sm:$0xf] %vm8305, %v8271
        %8337 = vst.msk [vmem:[%s239 + $0x7c] sm:$0xf] %vm8305, %v8272
        %p8338 = scmp.lt.s32.totalorder %s17, 1
        %s8339 = scalar_select %p8338, %s17, 1
        %s8340 = smul.addr %s8339, 32
        %s8341 = smul.addr %s8340, 4
        %s8342 = scalar_lea.vmem %s5, %s8341
        // Predicated region
        $region45: #{tpu_custom_call.1} parent=39 // pred_check
          %p8343 = pneg %p145
        $region46: #{tpu_custom_call.1} parent=39 // pred_check_branch
          %8345 = sbr.rel (%p8343) target = $region48
        $region47: #{tpu_custom_call.1} parent=39 // pred_region
          _
        $region48: #{tpu_custom_call.1} parent=39 // pred_fallthru
          _
      $region40: #{tpu_custom_call.1} parent=5 // pred_fallthru
        _
      %p8346 = scmp.le.s32.totalorder 2, %s12
      // Predicated region
      $region49: #{tpu_custom_call.1} parent=5 // pred_check
        %p8347 = pneg %p8346
      $region50: #{tpu_custom_call.1} parent=5 // pred_check_branch
        %8349 = sbr.rel (%p8347) target = $region52
      $region51: #{tpu_custom_call.1} parent=5 // pred_region
        %s8350 = ssub.s32 %s12, 2
        // Predicated region
        $region53: #{tpu_custom_call.1} parent=51 // pred_check
          %p8351 = pneg %p151
        $region54: #{tpu_custom_call.1} parent=51 // pred_check_branch
          %8353 = sbr.rel (%p8351) target = $region56
        $region55: #{tpu_custom_call.1} parent=51 // pred_region
          %p8354 = scmp.lt.s32.totalorder %s18, 1
          %s8355 = scalar_select %p8354, %s18, 1
          %s8356 = smul.addr %s8355, 32
          %s8357 = smul.addr %s8356, 4
          %s8358 = scalar_lea.vmem %s5, %s8357
        $region56: #{tpu_custom_call.1} parent=51 // pred_fallthru
          _
      $region52: #{tpu_custom_call.1} parent=5 // pred_fallthru
        _
    $region6: #{tpu_custom_call.1} parent=1 // loop_footer
      %s16 = sadd.s32 1, %s12
    $region7: #{tpu_custom_call.1} parent=1 // loop_footer_branch
      %11 = sbr.rel target = $region3
    $region8: #{tpu_custom_call.1} parent=1 // loop_exit
      _
    %8359 = vsyncpa [#allocation5], 1
    %s8360 = scalar_lea.sflag [#allocation5], 1
    %8361 = vsyncpa %s8360, 1

</llo_original>
